<compile_context>
chip_gen: v7x
topology: tpu7x:2x2x1
jax: 0.10.0
libtpu: 0.0.40
codegen_flags: <defaults>
</compile_context>

<pallas_src>
import numpy as np
import jax
import jax.numpy as jnp
from jax.experimental import pallas as pl
from jax.experimental.pallas import tpu as pltpu


def _make_fused_encoder_kernel(N, dims, neg_slope=0.2):
    """Fused forward for all encoder blocks on one batch of N NHWC images.

    dims: list of (H, W, Cin, Cout) per block (input spatial dims of the
          block; the block emits (H//2, W//2, Cout) after the 2x2 max-pool).

    Kernel refs (in order):
      x_ref                      : (N, H0, W0, Cin0) f32   NHWC input
      w_ref[k], b_ref[k]         : (9*Cin_k, Cout_k) bf16, (1, Cout_k) f32
      o_ref                      : (N*Hp_last*Wp_last, Cout_last) f32
      per-block scratches        : im2col (N, H, W, 9*Cin) f32
                                   wpool  (N*(H//2)*W, Cout) f32
                                   hnext  (N, H//2, W//2, Cout) f32  [not last]
    """
    nblocks = len(dims)

    def kernel(*refs):
        x_ref = refs[0]
        wb_refs = refs[1:1 + 2 * nblocks]
        o_ref = refs[1 + 2 * nblocks]
        scratch = list(refs[2 + 2 * nblocks:])

        src = x_ref
        si = 0
        for bi, (H, W, Cin, Cout) in enumerate(dims):
            w_ref = wb_refs[2 * bi]
            b_ref = wb_refs[2 * bi + 1]
            im2col = scratch[si]; si += 1
            wpool = scratch[si]; si += 1
            Hp, Wp = H // 2, W // 2
            M, K, Mp = N * H * W, 9 * Cin, N * Hp * Wp

            # ---- im2col with in-kernel halo handling ------------------------
            # Zero once (boundary taps contribute 0 = SAME zero padding), then
            # scatter the valid window of each of the 9 taps into its K-slot.
            im2col[...] = jnp.zeros_like(im2col)
            for kh in range(3):
                for kw in range(3):
                    dh, dw = kh - 1, kw - 1
                    h0, h1 = max(0, -dh), H - max(0, dh)
                    w0, w1 = max(0, -dw), W - max(0, dw)
                    t = kh * 3 + kw
                    im2col[:, h0:h1, w0:w1, t * Cin:(t + 1) * Cin] = (
                        src[:, h0 + dh:h1 + dh, w0 + dw:w1 + dw, :])

            # ---- single K=9*Cin matmul on the MXU (bf16 in, f32 acc) --------
            lhs = im2col[...].reshape(M, K).astype(jnp.bfloat16)
            y = jnp.dot(lhs, w_ref[...], preferred_element_type=jnp.float32)

            # ---- 2x2 max-pool: H half fully in registers --------------------
            y = y.reshape(N * Hp, 2, W, Cout)            # rows are (n, h, w)
            hmax = jnp.maximum(y[:, 0], y[:, 1])         # (N*Hp, W, Cout)

            # ---- W half via ONE scratch round-trip + stride-2 reads ---------
            # (flattened row parity == w parity because W is even)
            wpool[...] = hmax.reshape(N * Hp * W, Cout)
            even = wpool[pl.ds(0, Mp, stride=2), :]
            odd = wpool[pl.ds(1, Mp, stride=2), :]

            # ---- bias once after pooling + LeakyReLU(0.2) -------------------
            act = jnp.maximum(even, odd) + b_ref[...]    # (Mp, Cout)
            act = jnp.where(act >= 0.0, act, neg_slope * act)

            if bi < nblocks - 1:
                hnext = scratch[si]; si += 1
                hnext[...] = act.reshape(N, Hp, Wp, Cout)
                src = hnext                               # next block's input
            else:
                o_ref[...] = act.astype(o_ref.dtype)

    return kernel


def encoder_pallas(x_nhwc, flat_weights, biases, block_dims, *, neg_slope=0.2):
    """One fused pallas_call for the whole encoder (all blocks)."""
    N = x_nhwc.shape[0]
    nblocks = len(block_dims)
    Hf, Wf = block_dims[-1][0] // 2, block_dims[-1][1] // 2
    Cf = block_dims[-1][3]
    out_rows = N * Hf * Wf

    in_specs = [pl.BlockSpec(x_nhwc.shape, lambda i: (0, 0, 0, 0))]
    args = [x_nhwc]
    scratch_shapes = []
    for bi, (H, W, Cin, Cout) in enumerate(block_dims):
        in_specs.append(pl.BlockSpec((9 * Cin, Cout), lambda i: (0, 0)))
        in_specs.append(pl.BlockSpec((1, Cout), lambda i: (0, 0)))
        args += [flat_weights[bi], biases[bi]]
        scratch_shapes.append(pltpu.VMEM((N, H, W, 9 * Cin), jnp.float32))
        scratch_shapes.append(pltpu.VMEM((N * (H // 2) * W, Cout), jnp.float32))
        if bi < nblocks - 1:
            scratch_shapes.append(
                pltpu.VMEM((N, H // 2, W // 2, Cout), jnp.float32))

    kernel = _make_fused_encoder_kernel(N, block_dims, neg_slope)
    out_flat = pl.pallas_call(
        kernel,
        out_shape=jax.ShapeDtypeStruct((out_rows, Cf), jnp.float32),
        grid_spec=pltpu.PrefetchScalarGridSpec(
            num_scalar_prefetch=0,
            grid=(1,),                     # whole batch in one step (1 TC)
            in_specs=in_specs,
            out_specs=pl.BlockSpec((out_rows, Cf), lambda i: (0, 0)),
            scratch_shapes=scratch_shapes,
        ),
        compiler_params=pltpu.CompilerParams(
            dimension_semantics=("arbitrary",),
            vmem_limit_bytes=16 * 1024 * 1024),
    )(*args)
    return out_flat.reshape(N, Hf, Wf, Cf)


def init_encoder_params(key, config):
    params = {}
    in_ch = config['input_size'][-1]
    for k, out_ch in enumerate(config['channels']):
        key, kw, kb = jax.random.split(key, 3)
        fan_in = 3 * 3 * in_ch
        w = jax.random.normal(kw, (3, 3, in_ch, out_ch), jnp.float32) / np.sqrt(fan_in)
        b = jax.random.normal(kb, (out_ch,), jnp.float32) * 0.05
        params[f'conv{k + 1}'] = (w, b)
        in_ch = out_ch
    return params


def encoder_forward(x, params, config):
    """Matches Encoder.forward for down='maxpool'.  x: (B, T, C, H, W) f32."""
    if config.get('down', 'maxpool') != 'maxpool':
        # TODO(synk): 'maxpool_unpool' (pool_idx / hidden_size) not supported.
        raise NotImplementedError("only down='maxpool' is implemented")

    x = x.reshape((-1,) + x.shape[2:])        # x.reshape(-1, *x.shape[2:]) -> (N, C, H, W)
    x = jnp.transpose(x, (0, 2, 3, 1))        # NCHW -> NHWC (kernel layout)
    N, H, W, Cin = x.shape

    block_dims, flat_w, flat_b = [], [], []
    h, w, cin = H, W, Cin
    for k in range(config['blocks']):
        cout = config['channels'][k]
        assert h % 2 == 0 and w % 2 == 0, "MaxPool2d(2) path assumes even H, W"
        # TODO(synk): support W not a multiple of 8 (needs relayout-safe reshapes).
        assert w % 8 == 0, "kernel reshapes assume each block's W is a multiple of 8"
        if k < config['blocks'] - 1:
            assert (w // 2) % 8 == 0, "intermediate pooled W must be a multiple of 8"
        wk, bk = params[f'conv{k + 1}']       # (3,3,cin,cout) HWIO, (cout,)
        flat_w.append(wk.reshape(9 * cin, cout).astype(jnp.bfloat16))
        flat_b.append(bk.reshape(1, cout).astype(jnp.float32))
        block_dims.append((h, w, cin, cout))
        h, w, cin = h // 2, w // 2, cout

    y = encoder_pallas(x, flat_w, flat_b, block_dims)   # (N, Hf, Wf, Cf) NHWC
    return jnp.transpose(y, (0, 3, 1, 2))               # NHWC -> NCHW


def _reference_forward(x, params, config):
    """Pure-JAX (XLA) reference for numerical verification."""
    x = x.reshape((-1,) + x.shape[2:])
    x = jnp.transpose(x, (0, 2, 3, 1))
    for k in range(config['blocks']):
        w, b = params[f'conv{k + 1}']
        y = jax.lax.conv_general_dilated(
            x, w, window_strides=(1, 1), padding='SAME',
            dimension_numbers=('NHWC', 'HWIO', 'NHWC'),
            precision=jax.lax.Precision.HIGHEST)
        y = y + b
        y = jax.lax.reduce_window(y, -jnp.inf, jax.lax.max,
                                  (1, 2, 2, 1), (1, 2, 2, 1), 'VALID')
        x = jnp.where(y >= 0, y, 0.2 * y)
    return jnp.transpose(x, (0, 3, 1, 2))


if __name__ == "__main__":
    config = {
        'blocks': 2,
        'input_size': [16, 16, 4],        # (H, W, C); channel count is input_size[-1]
        'channels': [8, 16],
        'down': 'maxpool',
        'mean_pool': True,
        'last_conv_size': [4, 4, 16],
    }
    latent_dim = 32                        # fc is defined but unused in forward()

    key = jax.random.PRNGKey(0)
    key, kx, kp = jax.random.split(key, 3)
    # Input (B, T, C, H, W); forward() merges the first two dims.
    x = jax.random.normal(kx, (2, 2, 4, 16, 16), jnp.float32)
    params = init_encoder_params(kp, config)

    fwd = jax.jit(lambda xx: encoder_forward(xx, params, config))
    out = jax.block_until_ready(fwd(x))
    assert out.shape == (4, 16, 4, 4), out.shape

    ref = _reference_forward(x, params, config)
    # bf16 matmul operands (f32 accumulation) -> slightly looser tolerance.
    np.testing.assert_allclose(np.asarray(out), np.asarray(ref), rtol=2e-2, atol=2e-2)

    print("KERNEL_OK")
</pallas_src>

<mosaic_0001>
module attributes {stable_mosaic.version = 11 : i64} {
  func.func @kernel(%arg0: i32, %arg1: memref<4x16x16x4xf32, #tpu.memory_space<vmem>>, %arg2: memref<36x8xbf16, #tpu.memory_space<vmem>>, %arg3: memref<1x8xf32, #tpu.memory_space<vmem>>, %arg4: memref<72x16xbf16, #tpu.memory_space<vmem>>, %arg5: memref<1x16xf32, #tpu.memory_space<vmem>>, %arg6: memref<64x16xf32, #tpu.memory_space<vmem>>, %arg7: memref<4x16x16x36xf32, #tpu.memory_space<vmem>>, %arg8: memref<512x8xf32, #tpu.memory_space<vmem>>, %arg9: memref<4x8x8x8xf32, #tpu.memory_space<vmem>>, %arg10: memref<4x8x8x72xf32, #tpu.memory_space<vmem>>, %arg11: memref<128x16xf32, #tpu.memory_space<vmem>>) attributes {dimension_semantics = [#tpu.dimension_semantics<arbitrary>], iteration_bounds = array<i64: 1>, scalar_prefetch = 0 : i64, scratch_operands = 5 : i64, tpu.core_type = #tpu.core_type<tc>, window_params = [{pipeline_mode = #tpu.pipeline_mode<synchronous>, transform_indices = @transform_0, window_bounds = array<i64: 4, 16, 16, 4>}, {pipeline_mode = #tpu.pipeline_mode<synchronous>, transform_indices = @transform_1, window_bounds = array<i64: 36, 8>}, {pipeline_mode = #tpu.pipeline_mode<synchronous>, transform_indices = @transform_2, window_bounds = array<i64: 1, 8>}, {pipeline_mode = #tpu.pipeline_mode<synchronous>, transform_indices = @transform_3, window_bounds = array<i64: 72, 16>}, {pipeline_mode = #tpu.pipeline_mode<synchronous>, transform_indices = @transform_4, window_bounds = array<i64: 1, 16>}, {pipeline_mode = #tpu.pipeline_mode<synchronous>, transform_indices = @transform_5, window_bounds = array<i64: 64, 16>}]} {
    %cst = arith.constant 0.000000e+00 : f32
    %0 = vector.broadcast %cst : f32 to vector<4x16x16x36xf32>
    %c0 = arith.constant 0 : index
    %c0_0 = arith.constant 0 : index
    %c0_1 = arith.constant 0 : index
    %c0_2 = arith.constant 0 : index
    %1 = vector.load %arg7[%c0, %c0_0, %c0_1, %c0_2] : memref<4x16x16x36xf32, #tpu.memory_space<vmem>>, vector<4x16x16x36xf32>
    tpu.vector_store %arg7[%c0, %c0_0, %c0_1, %c0_2], %0 {strides = array<i32>} : memref<4x16x16x36xf32, #tpu.memory_space<vmem>>, vector<4x16x16x36xf32>,
    %c0_3 = arith.constant 0 : index
    %c0_4 = arith.constant 0 : index
    %c0_5 = arith.constant 0 : index
    %c0_6 = arith.constant 0 : index
    %2 = vector.load %arg1[%c0_3, %c0_4, %c0_5, %c0_6] : memref<4x16x16x4xf32, #tpu.memory_space<vmem>>, vector<4x15x15x4xf32>
    %c0_7 = arith.constant 0 : index
    %c1 = arith.constant 1 : index
    %c1_8 = arith.constant 1 : index
    %c0_9 = arith.constant 0 : index
    %3 = vector.load %arg7[%c0_7, %c1, %c1_8, %c0_9] : memref<4x16x16x36xf32, #tpu.memory_space<vmem>>, vector<4x15x15x4xf32>
    tpu.vector_store %arg7[%c0_7, %c1, %c1_8, %c0_9], %2 {strides = array<i32>} : memref<4x16x16x36xf32, #tpu.memory_space<vmem>>, vector<4x15x15x4xf32>,
    %c0_10 = arith.constant 0 : index
    %c0_11 = arith.constant 0 : index
    %c0_12 = arith.constant 0 : index
    %c0_13 = arith.constant 0 : index
    %4 = vector.load %arg1[%c0_10, %c0_11, %c0_12, %c0_13] : memref<4x16x16x4xf32, #tpu.memory_space<vmem>>, vector<4x15x16x4xf32>
    %c0_14 = arith.constant 0 : index
    %c1_15 = arith.constant 1 : index
    %c0_16 = arith.constant 0 : index
    %c4 = arith.constant 4 : index
    %5 = vector.load %arg7[%c0_14, %c1_15, %c0_16, %c4] : memref<4x16x16x36xf32, #tpu.memory_space<vmem>>, vector<4x15x16x4xf32>
    tpu.vector_store %arg7[%c0_14, %c1_15, %c0_16, %c4], %4 {strides = array<i32>} : memref<4x16x16x36xf32, #tpu.memory_space<vmem>>, vector<4x15x16x4xf32>,
    %c0_17 = arith.constant 0 : index
    %c0_18 = arith.constant 0 : index
    %c1_19 = arith.constant 1 : index
    %c0_20 = arith.constant 0 : index
    %6 = vector.load %arg1[%c0_17, %c0_18, %c1_19, %c0_20] : memref<4x16x16x4xf32, #tpu.memory_space<vmem>>, vector<4x15x15x4xf32>
    %c0_21 = arith.constant 0 : index
    %c1_22 = arith.constant 1 : index
    %c0_23 = arith.constant 0 : index
    %c8 = arith.constant 8 : index
    %7 = vector.load %arg7[%c0_21, %c1_22, %c0_23, %c8] : memref<4x16x16x36xf32, #tpu.memory_space<vmem>>, vector<4x15x15x4xf32>
    tpu.vector_store %arg7[%c0_21, %c1_22, %c0_23, %c8], %6 {strides = array<i32>} : memref<4x16x16x36xf32, #tpu.memory_space<vmem>>, vector<4x15x15x4xf32>,
    %c0_24 = arith.constant 0 : index
    %c0_25 = arith.constant 0 : index
    %c0_26 = arith.constant 0 : index
    %c0_27 = arith.constant 0 : index
    %8 = vector.load %arg1[%c0_24, %c0_25, %c0_26, %c0_27] : memref<4x16x16x4xf32, #tpu.memory_space<vmem>>, vector<4x16x15x4xf32>
    %c0_28 = arith.constant 0 : index
    %c0_29 = arith.constant 0 : index
    %c1_30 = arith.constant 1 : index
    %c12 = arith.constant 12 : index
    %9 = vector.load %arg7[%c0_28, %c0_29, %c1_30, %c12] : memref<4x16x16x36xf32, #tpu.memory_space<vmem>>, vector<4x16x15x4xf32>
    tpu.vector_store %arg7[%c0_28, %c0_29, %c1_30, %c12], %8 {strides = array<i32>} : memref<4x16x16x36xf32, #tpu.memory_space<vmem>>, vector<4x16x15x4xf32>,
    %c0_31 = arith.constant 0 : index
    %c0_32 = arith.constant 0 : index
    %c0_33 = arith.constant 0 : index
    %c0_34 = arith.constant 0 : index
    %10 = vector.load %arg1[%c0_31, %c0_32, %c0_33, %c0_34] : memref<4x16x16x4xf32, #tpu.memory_space<vmem>>, vector<4x16x16x4xf32>
    %c0_35 = arith.constant 0 : index
    %c0_36 = arith.constant 0 : index
    %c0_37 = arith.constant 0 : index
    %c16 = arith.constant 16 : index
    %11 = vector.load %arg7[%c0_35, %c0_36, %c0_37, %c16] : memref<4x16x16x36xf32, #tpu.memory_space<vmem>>, vector<4x16x16x4xf32>
    tpu.vector_store %arg7[%c0_35, %c0_36, %c0_37, %c16], %10 {strides = array<i32>} : memref<4x16x16x36xf32, #tpu.memory_space<vmem>>, vector<4x16x16x4xf32>,
    %c0_38 = arith.constant 0 : index
    %c0_39 = arith.constant 0 : index
    %c1_40 = arith.constant 1 : index
    %c0_41 = arith.constant 0 : index
    %12 = vector.load %arg1[%c0_38, %c0_39, %c1_40, %c0_41] : memref<4x16x16x4xf32, #tpu.memory_space<vmem>>, vector<4x16x15x4xf32>
    %c0_42 = arith.constant 0 : index
    %c0_43 = arith.constant 0 : index
    %c0_44 = arith.constant 0 : index
    %c20 = arith.constant 20 : index
    %13 = vector.load %arg7[%c0_42, %c0_43, %c0_44, %c20] : memref<4x16x16x36xf32, #tpu.memory_space<vmem>>, vector<4x16x15x4xf32>
    tpu.vector_store %arg7[%c0_42, %c0_43, %c0_44, %c20], %12 {strides = array<i32>} : memref<4x16x16x36xf32, #tpu.memory_space<vmem>>, vector<4x16x15x4xf32>,
    %c0_45 = arith.constant 0 : index
    %c1_46 = arith.constant 1 : index
    %c0_47 = arith.constant 0 : index
    %c0_48 = arith.constant 0 : index
    %14 = vector.load %arg1[%c0_45, %c1_46, %c0_47, %c0_48] : memref<4x16x16x4xf32, #tpu.memory_space<vmem>>, vector<4x15x15x4xf32>
    %c0_49 = arith.constant 0 : index
    %c0_50 = arith.constant 0 : index
    %c1_51 = arith.constant 1 : index
    %c24 = arith.constant 24 : index
    %15 = vector.load %arg7[%c0_49, %c0_50, %c1_51, %c24] : memref<4x16x16x36xf32, #tpu.memory_space<vmem>>, vector<4x15x15x4xf32>
    tpu.vector_store %arg7[%c0_49, %c0_50, %c1_51, %c24], %14 {strides = array<i32>} : memref<4x16x16x36xf32, #tpu.memory_space<vmem>>, vector<4x15x15x4xf32>,
    %c0_52 = arith.constant 0 : index
    %c1_53 = arith.constant 1 : index
    %c0_54 = arith.constant 0 : index
    %c0_55 = arith.constant 0 : index
    %16 = vector.load %arg1[%c0_52, %c1_53, %c0_54, %c0_55] : memref<4x16x16x4xf32, #tpu.memory_space<vmem>>, vector<4x15x16x4xf32>
    %c0_56 = arith.constant 0 : index
    %c0_57 = arith.constant 0 : index
    %c0_58 = arith.constant 0 : index
    %c28 = arith.constant 28 : index
    %17 = vector.load %arg7[%c0_56, %c0_57, %c0_58, %c28] : memref<4x16x16x36xf32, #tpu.memory_space<vmem>>, vector<4x15x16x4xf32>
    tpu.vector_store %arg7[%c0_56, %c0_57, %c0_58, %c28], %16 {strides = array<i32>} : memref<4x16x16x36xf32, #tpu.memory_space<vmem>>, vector<4x15x16x4xf32>,
    %c0_59 = arith.constant 0 : index
    %c1_60 = arith.constant 1 : index
    %c1_61 = arith.constant 1 : index
    %c0_62 = arith.constant 0 : index
    %18 = vector.load %arg1[%c0_59, %c1_60, %c1_61, %c0_62] : memref<4x16x16x4xf32, #tpu.memory_space<vmem>>, vector<4x15x15x4xf32>
    %c0_63 = arith.constant 0 : index
    %c0_64 = arith.constant 0 : index
    %c0_65 = arith.constant 0 : index
    %c32 = arith.constant 32 : index
    %19 = vector.load %arg7[%c0_63, %c0_64, %c0_65, %c32] : memref<4x16x16x36xf32, #tpu.memory_space<vmem>>, vector<4x15x15x4xf32>
    tpu.vector_store %arg7[%c0_63, %c0_64, %c0_65, %c32], %18 {strides = array<i32>} : memref<4x16x16x36xf32, #tpu.memory_space<vmem>>, vector<4x15x15x4xf32>,
    %c0_66 = arith.constant 0 : index
    %c0_67 = arith.constant 0 : index
    %c0_68 = arith.constant 0 : index
    %c0_69 = arith.constant 0 : index
    %20 = vector.load %arg7[%c0_66, %c0_67, %c0_68, %c0_69] : memref<4x16x16x36xf32, #tpu.memory_space<vmem>>, vector<4x16x16x36xf32>
    %21 = vector.shape_cast %20 : vector<4x16x16x36xf32> to vector<1024x36xf32>
    %22 = arith.truncf %21 : vector<1024x36xf32> to vector<1024x36xbf16>
    %c0_70 = arith.constant 0 : index
    %c0_71 = arith.constant 0 : index
    %23 = vector.load %arg2[%c0_70, %c0_71] : memref<36x8xbf16, #tpu.memory_space<vmem>>, vector<36x8xbf16>
    %cst_72 = arith.constant dense<0.000000e+00> : vector<1024x8xf32>
    %24 = tpu.matmul %22, %23, %cst_72 {dimension_numbers = #tpu.dot_dimension_numbers<[1], [0], [0], [1], [0, 0, 1, 1], [], []>} : vector<1024x36xbf16>, vector<36x8xbf16>, vector<1024x8xf32> -> vector<1024x8xf32>
    %25 = vector.shape_cast %24 : vector<1024x8xf32> to vector<32x2x16x8xf32>
    %26 = vector.extract_strided_slice %25 {offsets = [0, 0, 0, 0], sizes = [32, 1, 16, 8], strides = [1, 1, 1, 1]} : vector<32x2x16x8xf32> to vector<32x1x16x8xf32>
    %27 = vector.shape_cast %26 : vector<32x1x16x8xf32> to vector<32x16x8xf32>
    %28 = vector.extract_strided_slice %25 {offsets = [0, 1, 0, 0], sizes = [32, 1, 16, 8], strides = [1, 1, 1, 1]} : vector<32x2x16x8xf32> to vector<32x1x16x8xf32>
    %29 = vector.shape_cast %28 : vector<32x1x16x8xf32> to vector<32x16x8xf32>
    %30 = arith.maximumf %27, %29 : vector<32x16x8xf32>
    %31 = vector.shape_cast %30 : vector<32x16x8xf32> to vector<512x8xf32>
    %c0_73 = arith.constant 0 : index
    %c0_74 = arith.constant 0 : index
    %32 = vector.load %arg8[%c0_73, %c0_74] : memref<512x8xf32, #tpu.memory_space<vmem>>, vector<512x8xf32>
    tpu.vector_store %arg8[%c0_73, %c0_74], %31 {strides = array<i32>} : memref<512x8xf32, #tpu.memory_space<vmem>>, vector<512x8xf32>,
    %c0_75 = arith.constant 0 : index
    %c0_76 = arith.constant 0 : index
    %33 = tpu.strided_load %arg8[%c0_75, %c0_76] {strides = array<i32: 2, 1>} : memref<512x8xf32, #tpu.memory_space<vmem>>, vector<256x8xf32>
    %c1_77 = arith.constant 1 : index
    %c0_78 = arith.constant 0 : index
    %34 = tpu.strided_load %arg8[%c1_77, %c0_78] {strides = array<i32: 2, 1>} : memref<512x8xf32, #tpu.memory_space<vmem>>, vector<256x8xf32>
    %35 = arith.maximumf %33, %34 : vector<256x8xf32>
    %c0_79 = arith.constant 0 : index
    %c0_80 = arith.constant 0 : index
    %36 = vector.load %arg3[%c0_79, %c0_80] : memref<1x8xf32, #tpu.memory_space<vmem>>, vector<1x8xf32>
    %37 = vector.broadcast %36 : vector<1x8xf32> to vector<256x8xf32>
    %38 = arith.addf %35, %37 : vector<256x8xf32>
    %cst_81 = arith.constant 0.000000e+00 : f32
    %39 = vector.broadcast %cst_81 : f32 to vector<256x8xf32>
    %40 = arith.cmpf oge, %38, %39 : vector<256x8xf32>
    %cst_82 = arith.constant 2.000000e-01 : f32
    %41 = vector.broadcast %cst_82 : f32 to vector<256x8xf32>
    %42 = arith.mulf %41, %38 : vector<256x8xf32>
    %43 = arith.select %40, %38, %42 : vector<256x8xi1>, vector<256x8xf32>
    %44 = vector.shape_cast %43 : vector<256x8xf32> to vector<4x8x8x8xf32>
    %c0_83 = arith.constant 0 : index
    %c0_84 = arith.constant 0 : index
    %c0_85 = arith.constant 0 : index
    %c0_86 = arith.constant 0 : index
    %45 = vector.load %arg9[%c0_83, %c0_84, %c0_85, %c0_86] : memref<4x8x8x8xf32, #tpu.memory_space<vmem>>, vector<4x8x8x8xf32>
    tpu.vector_store %arg9[%c0_83, %c0_84, %c0_85, %c0_86], %44 {strides = array<i32>} : memref<4x8x8x8xf32, #tpu.memory_space<vmem>>, vector<4x8x8x8xf32>,
    %cst_87 = arith.constant 0.000000e+00 : f32
    %46 = vector.broadcast %cst_87 : f32 to vector<4x8x8x72xf32>
    %c0_88 = arith.constant 0 : index
    %c0_89 = arith.constant 0 : index
    %c0_90 = arith.constant 0 : index
    %c0_91 = arith.constant 0 : index
    %47 = vector.load %arg10[%c0_88, %c0_89, %c0_90, %c0_91] : memref<4x8x8x72xf32, #tpu.memory_space<vmem>>, vector<4x8x8x72xf32>
    tpu.vector_store %arg10[%c0_88, %c0_89, %c0_90, %c0_91], %46 {strides = array<i32>} : memref<4x8x8x72xf32, #tpu.memory_space<vmem>>, vector<4x8x8x72xf32>,
    %c0_92 = arith.constant 0 : index
    %c0_93 = arith.constant 0 : index
    %c0_94 = arith.constant 0 : index
    %c0_95 = arith.constant 0 : index
    %48 = vector.load %arg9[%c0_92, %c0_93, %c0_94, %c0_95] : memref<4x8x8x8xf32, #tpu.memory_space<vmem>>, vector<4x7x7x8xf32>
    %c0_96 = arith.constant 0 : index
    %c1_97 = arith.constant 1 : index
    %c1_98 = arith.constant 1 : index
    %c0_99 = arith.constant 0 : index
    %49 = vector.load %arg10[%c0_96, %c1_97, %c1_98, %c0_99] : memref<4x8x8x72xf32, #tpu.memory_space<vmem>>, vector<4x7x7x8xf32>
    tpu.vector_store %arg10[%c0_96, %c1_97, %c1_98, %c0_99], %48 {strides = array<i32>} : memref<4x8x8x72xf32, #tpu.memory_space<vmem>>, vector<4x7x7x8xf32>,
    %c0_100 = arith.constant 0 : index
    %c0_101 = arith.constant 0 : index
    %c0_102 = arith.constant 0 : index
    %c0_103 = arith.constant 0 : index
    %50 = vector.load %arg9[%c0_100, %c0_101, %c0_102, %c0_103] : memref<4x8x8x8xf32, #tpu.memory_space<vmem>>, vector<4x7x8x8xf32>
    %c0_104 = arith.constant 0 : index
    %c1_105 = arith.constant 1 : index
    %c0_106 = arith.constant 0 : index
    %c8_107 = arith.constant 8 : index
    %51 = vector.load %arg10[%c0_104, %c1_105, %c0_106, %c8_107] : memref<4x8x8x72xf32, #tpu.memory_space<vmem>>, vector<4x7x8x8xf32>
    tpu.vector_store %arg10[%c0_104, %c1_105, %c0_106, %c8_107], %50 {strides = array<i32>} : memref<4x8x8x72xf32, #tpu.memory_space<vmem>>, vector<4x7x8x8xf32>,
    %c0_108 = arith.constant 0 : index
    %c0_109 = arith.constant 0 : index
    %c1_110 = arith.constant 1 : index
    %c0_111 = arith.constant 0 : index
    %52 = vector.load %arg9[%c0_108, %c0_109, %c1_110, %c0_111] : memref<4x8x8x8xf32, #tpu.memory_space<vmem>>, vector<4x7x7x8xf32>
    %c0_112 = arith.constant 0 : index
    %c1_113 = arith.constant 1 : index
    %c0_114 = arith.constant 0 : index
    %c16_115 = arith.constant 16 : index
    %53 = vector.load %arg10[%c0_112, %c1_113, %c0_114, %c16_115] : memref<4x8x8x72xf32, #tpu.memory_space<vmem>>, vector<4x7x7x8xf32>
    tpu.vector_store %arg10[%c0_112, %c1_113, %c0_114, %c16_115], %52 {strides = array<i32>} : memref<4x8x8x72xf32, #tpu.memory_space<vmem>>, vector<4x7x7x8xf32>,
    %c0_116 = arith.constant 0 : index
    %c0_117 = arith.constant 0 : index
    %c0_118 = arith.constant 0 : index
    %c0_119 = arith.constant 0 : index
    %54 = vector.load %arg9[%c0_116, %c0_117, %c0_118, %c0_119] : memref<4x8x8x8xf32, #tpu.memory_space<vmem>>, vector<4x8x7x8xf32>
    %c0_120 = arith.constant 0 : index
    %c0_121 = arith.constant 0 : index
    %c1_122 = arith.constant 1 : index
    %c24_123 = arith.constant 24 : index
    %55 = vector.load %arg10[%c0_120, %c0_121, %c1_122, %c24_123] : memref<4x8x8x72xf32, #tpu.memory_space<vmem>>, vector<4x8x7x8xf32>
    tpu.vector_store %arg10[%c0_120, %c0_121, %c1_122, %c24_123], %54 {strides = array<i32>} : memref<4x8x8x72xf32, #tpu.memory_space<vmem>>, vector<4x8x7x8xf32>,
    %c0_124 = arith.constant 0 : index
    %c0_125 = arith.constant 0 : index
    %c0_126 = arith.constant 0 : index
    %c0_127 = arith.constant 0 : index
    %56 = vector.load %arg9[%c0_124, %c0_125, %c0_126, %c0_127] : memref<4x8x8x8xf32, #tpu.memory_space<vmem>>, vector<4x8x8x8xf32>
    %c0_128 = arith.constant 0 : index
    %c0_129 = arith.constant 0 : index
    %c0_130 = arith.constant 0 : index
    %c32_131 = arith.constant 32 : index
    %57 = vector.load %arg10[%c0_128, %c0_129, %c0_130, %c32_131] : memref<4x8x8x72xf32, #tpu.memory_space<vmem>>, vector<4x8x8x8xf32>
    tpu.vector_store %arg10[%c0_128, %c0_129, %c0_130, %c32_131], %56 {strides = array<i32>} : memref<4x8x8x72xf32, #tpu.memory_space<vmem>>, vector<4x8x8x8xf32>,
    %c0_132 = arith.constant 0 : index
    %c0_133 = arith.constant 0 : index
    %c1_134 = arith.constant 1 : index
    %c0_135 = arith.constant 0 : index
    %58 = vector.load %arg9[%c0_132, %c0_133, %c1_134, %c0_135] : memref<4x8x8x8xf32, #tpu.memory_space<vmem>>, vector<4x8x7x8xf32>
    %c0_136 = arith.constant 0 : index
    %c0_137 = arith.constant 0 : index
    %c0_138 = arith.constant 0 : index
    %c40 = arith.constant 40 : index
    %59 = vector.load %arg10[%c0_136, %c0_137, %c0_138, %c40] : memref<4x8x8x72xf32, #tpu.memory_space<vmem>>, vector<4x8x7x8xf32>
    tpu.vector_store %arg10[%c0_136, %c0_137, %c0_138, %c40], %58 {strides = array<i32>} : memref<4x8x8x72xf32, #tpu.memory_space<vmem>>, vector<4x8x7x8xf32>,
    %c0_139 = arith.constant 0 : index
    %c1_140 = arith.constant 1 : index
    %c0_141 = arith.constant 0 : index
    %c0_142 = arith.constant 0 : index
    %60 = vector.load %arg9[%c0_139, %c1_140, %c0_141, %c0_142] : memref<4x8x8x8xf32, #tpu.memory_space<vmem>>, vector<4x7x7x8xf32>
    %c0_143 = arith.constant 0 : index
    %c0_144 = arith.constant 0 : index
    %c1_145 = arith.constant 1 : index
    %c48 = arith.constant 48 : index
    %61 = vector.load %arg10[%c0_143, %c0_144, %c1_145, %c48] : memref<4x8x8x72xf32, #tpu.memory_space<vmem>>, vector<4x7x7x8xf32>
    tpu.vector_store %arg10[%c0_143, %c0_144, %c1_145, %c48], %60 {strides = array<i32>} : memref<4x8x8x72xf32, #tpu.memory_space<vmem>>, vector<4x7x7x8xf32>,
    %c0_146 = arith.constant 0 : index
    %c1_147 = arith.constant 1 : index
    %c0_148 = arith.constant 0 : index
    %c0_149 = arith.constant 0 : index
    %62 = vector.load %arg9[%c0_146, %c1_147, %c0_148, %c0_149] : memref<4x8x8x8xf32, #tpu.memory_space<vmem>>, vector<4x7x8x8xf32>
    %c0_150 = arith.constant 0 : index
    %c0_151 = arith.constant 0 : index
    %c0_152 = arith.constant 0 : index
    %c56 = arith.constant 56 : index
    %63 = vector.load %arg10[%c0_150, %c0_151, %c0_152, %c56] : memref<4x8x8x72xf32, #tpu.memory_space<vmem>>, vector<4x7x8x8xf32>
    tpu.vector_store %arg10[%c0_150, %c0_151, %c0_152, %c56], %62 {strides = array<i32>} : memref<4x8x8x72xf32, #tpu.memory_space<vmem>>, vector<4x7x8x8xf32>,
    %c0_153 = arith.constant 0 : index
    %c1_154 = arith.constant 1 : index
    %c1_155 = arith.constant 1 : index
    %c0_156 = arith.constant 0 : index
    %64 = vector.load %arg9[%c0_153, %c1_154, %c1_155, %c0_156] : memref<4x8x8x8xf32, #tpu.memory_space<vmem>>, vector<4x7x7x8xf32>
    %c0_157 = arith.constant 0 : index
    %c0_158 = arith.constant 0 : index
    %c0_159 = arith.constant 0 : index
    %c64 = arith.constant 64 : index
    %65 = vector.load %arg10[%c0_157, %c0_158, %c0_159, %c64] : memref<4x8x8x72xf32, #tpu.memory_space<vmem>>, vector<4x7x7x8xf32>
    tpu.vector_store %arg10[%c0_157, %c0_158, %c0_159, %c64], %64 {strides = array<i32>} : memref<4x8x8x72xf32, #tpu.memory_space<vmem>>, vector<4x7x7x8xf32>,
    %c0_160 = arith.constant 0 : index
    %c0_161 = arith.constant 0 : index
    %c0_162 = arith.constant 0 : index
    %c0_163 = arith.constant 0 : index
    %66 = vector.load %arg10[%c0_160, %c0_161, %c0_162, %c0_163] : memref<4x8x8x72xf32, #tpu.memory_space<vmem>>, vector<4x8x8x72xf32>
    %67 = vector.shape_cast %66 : vector<4x8x8x72xf32> to vector<256x72xf32>
    %68 = arith.truncf %67 : vector<256x72xf32> to vector<256x72xbf16>
    %c0_164 = arith.constant 0 : index
    %c0_165 = arith.constant 0 : index
    %69 = vector.load %arg4[%c0_164, %c0_165] : memref<72x16xbf16, #tpu.memory_space<vmem>>, vector<72x16xbf16>
    %cst_166 = arith.constant dense<0.000000e+00> : vector<256x16xf32>
    %70 = tpu.matmul %68, %69, %cst_166 {dimension_numbers = #tpu.dot_dimension_numbers<[1], [0], [0], [1], [0, 0, 1, 1], [], []>} : vector<256x72xbf16>, vector<72x16xbf16>, vector<256x16xf32> -> vector<256x16xf32>
    %71 = vector.shape_cast %70 : vector<256x16xf32> to vector<16x2x8x16xf32>
    %72 = vector.extract_strided_slice %71 {offsets = [0, 0, 0, 0], sizes = [16, 1, 8, 16], strides = [1, 1, 1, 1]} : vector<16x2x8x16xf32> to vector<16x1x8x16xf32>
    %73 = vector.shape_cast %72 : vector<16x1x8x16xf32> to vector<16x8x16xf32>
    %74 = vector.extract_strided_slice %71 {offsets = [0, 1, 0, 0], sizes = [16, 1, 8, 16], strides = [1, 1, 1, 1]} : vector<16x2x8x16xf32> to vector<16x1x8x16xf32>
    %75 = vector.shape_cast %74 : vector<16x1x8x16xf32> to vector<16x8x16xf32>
    %76 = arith.maximumf %73, %75 : vector<16x8x16xf32>
    %77 = vector.shape_cast %76 : vector<16x8x16xf32> to vector<128x16xf32>
    %c0_167 = arith.constant 0 : index
    %c0_168 = arith.constant 0 : index
    %78 = vector.load %arg11[%c0_167, %c0_168] : memref<128x16xf32, #tpu.memory_space<vmem>>, vector<128x16xf32>
    tpu.vector_store %arg11[%c0_167, %c0_168], %77 {strides = array<i32>} : memref<128x16xf32, #tpu.memory_space<vmem>>, vector<128x16xf32>,
    %c0_169 = arith.constant 0 : index
    %c0_170 = arith.constant 0 : index
    %79 = tpu.strided_load %arg11[%c0_169, %c0_170] {strides = array<i32: 2, 1>} : memref<128x16xf32, #tpu.memory_space<vmem>>, vector<64x16xf32>
    %c1_171 = arith.constant 1 : index
    %c0_172 = arith.constant 0 : index
    %80 = tpu.strided_load %arg11[%c1_171, %c0_172] {strides = array<i32: 2, 1>} : memref<128x16xf32, #tpu.memory_space<vmem>>, vector<64x16xf32>
    %81 = arith.maximumf %79, %80 : vector<64x16xf32>
    %c0_173 = arith.constant 0 : index
    %c0_174 = arith.constant 0 : index
    %82 = vector.load %arg5[%c0_173, %c0_174] : memref<1x16xf32, #tpu.memory_space<vmem>>, vector<1x16xf32>
    %83 = vector.broadcast %82 : vector<1x16xf32> to vector<64x16xf32>
    %84 = arith.addf %81, %83 : vector<64x16xf32>
    %cst_175 = arith.constant 0.000000e+00 : f32
    %85 = vector.broadcast %cst_175 : f32 to vector<64x16xf32>
    %86 = arith.cmpf oge, %84, %85 : vector<64x16xf32>
    %cst_176 = arith.constant 2.000000e-01 : f32
    %87 = vector.broadcast %cst_176 : f32 to vector<64x16xf32>
    %88 = arith.mulf %87, %84 : vector<64x16xf32>
    %89 = arith.select %86, %84, %88 : vector<64x16xi1>, vector<64x16xf32>
    %c0_177 = arith.constant 0 : index
    %c0_178 = arith.constant 0 : index
    %90 = vector.load %arg6[%c0_177, %c0_178] : memref<64x16xf32, #tpu.memory_space<vmem>>, vector<64x16xf32>
    tpu.vector_store %arg6[%c0_177, %c0_178], %89 {strides = array<i32>} : memref<64x16xf32, #tpu.memory_space<vmem>>, vector<64x16xf32>,
    return
  }
  func.func @transform_0(%arg0: i32) -> (i32, i32, i32, i32) {
    %c0_i32 = arith.constant 0 : i32
    %c0_i32_0 = arith.constant 0 : i32
    %c0_i32_1 = arith.constant 0 : i32
    %c0_i32_2 = arith.constant 0 : i32
    %c0_i32_3 = arith.constant 0 : i32
    return %c0_i32, %c0_i32_0, %c0_i32_1, %c0_i32_2 : i32, i32, i32, i32
  }
  func.func @transform_1(%arg0: i32) -> (i32, i32) {
    %c0_i32 = arith.constant 0 : i32
    %c0_i32_0 = arith.constant 0 : i32
    %c0_i32_1 = arith.constant 0 : i32
    return %c0_i32, %c0_i32_0 : i32, i32
  }
  func.func @transform_2(%arg0: i32) -> (i32, i32) {
    %c0_i32 = arith.constant 0 : i32
    %c0_i32_0 = arith.constant 0 : i32
    %c0_i32_1 = arith.constant 0 : i32
    return %c0_i32, %c0_i32_0 : i32, i32
  }
  func.func @transform_3(%arg0: i32) -> (i32, i32) {
    %c0_i32 = arith.constant 0 : i32
    %c0_i32_0 = arith.constant 0 : i32
    %c0_i32_1 = arith.constant 0 : i32
    return %c0_i32, %c0_i32_0 : i32, i32
  }
  func.func @transform_4(%arg0: i32) -> (i32, i32) {
    %c0_i32 = arith.constant 0 : i32
    %c0_i32_0 = arith.constant 0 : i32
    %c0_i32_1 = arith.constant 0 : i32
    return %c0_i32, %c0_i32_0 : i32, i32
  }
  func.func @transform_5(%arg0: i32) -> (i32, i32) {
    %c0_i32 = arith.constant 0 : i32
    %c0_i32_0 = arith.constant 0 : i32
    %c0_i32_1 = arith.constant 0 : i32
    return %c0_i32, %c0_i32_0 : i32, i32
  }
}

</mosaic_0001>

<llo_original>
// kernel: _lambda_.1
$region0: #{_lambda_.1}
  #allocation0 [shape = 'u32[]', space=smem, size = 0x4, offset = 0x4, fixed_abs, tag = 'smem constant byte address 0x4 - core index']
  #allocation1 [shape = 'u32[144,128]{1,0:T(1,128)}', space=vmem, size = 0x12000, scoped, tag = 'internal scratch']
  #allocation2 [shape = 'f32[4,16,16,36]{3,2,1,0:T(8,128)}', space=vmem, size = 0x80000, scoped, tag = 'scratch operand']
  #allocation3 [shape = 'f32[512,8]{1,0:T(8,128)}', space=vmem, size = 0x40000, scoped, tag = 'scratch operand']
  #allocation4 [shape = 'f32[4,8,8,8]{3,2,1,0:T(8,128)}', space=vmem, size = 0x20000, scoped, tag = 'scratch operand']
  #allocation5 [shape = 'f32[4,8,8,72]{3,2,1,0:T(8,128)}', space=vmem, size = 0x20000, scoped, tag = 'scratch operand']
  #allocation6 [shape = 'f32[128,16]{1,0:T(8,128)}', space=vmem, size = 0x10000, scoped, tag = 'scratch operand']
  %s0 = inlined_call_operand.vmem [shape: f32[4,16,16,4], index: 0, kind: input, shape index: {}]
  %s1 = inlined_call_operand.vmem [shape: bf16[36,8], index: 1, kind: input, shape index: {}]
  %s2 = inlined_call_operand.vmem [shape: f32[1,8], index: 2, kind: input, shape index: {}]
  %s3 = inlined_call_operand.vmem [shape: bf16[72,16], index: 3, kind: input, shape index: {}]
  %s4 = inlined_call_operand.vmem [shape: f32[1,16], index: 4, kind: input, shape index: {}]
  %s5 = inlined_call_operand.hbm [shape: f32[64,16], index: 5, kind: output, shape index: {}]
  %s6 = sld [smem:[#allocation0]]
  $region30: #{_lambda_.1} parent=0
    _
  %s8 = ssub.s32 1, %s6
  %s9 = scalar_select 0, %s8, %s6
  $region1: #{_lambda_.1} parent=0
    #allocation7 [shape = 'u8[32768]{0}', space=vmem, size = 0x8000, scoped, tag = 'output window, operand 0, single buffered']
    #allocation8 [shape = 's32[1]{0}', space=sflag, size = 0x4, scoped, tag = 'scoped memory for _lambda_.1']
    %10 = vsyncpa [#allocation8], 0
    // Predicated region
    $region2: #{_lambda_.1} parent=1 // pred_check
      _
    $region3: #{_lambda_.1} parent=1 // pred_check_branch
      %12 = sbr.rel (0) target = $region5
    $region4: #{_lambda_.1} parent=1 // pred_region
      _
    $region5: #{_lambda_.1} parent=1 // pred_fallthru
      _
    // Predicated region
    $region6: #{_lambda_.1} parent=1 // pred_check
      _
    $region7: #{_lambda_.1} parent=1 // pred_check_branch
      %14 = sbr.rel (0) target = $region9
    $region8: #{_lambda_.1} parent=1 // pred_region
      _
    $region9: #{_lambda_.1} parent=1 // pred_fallthru
      _
    // Predicated region
    $region10: #{_lambda_.1} parent=1 // pred_check
      _
    $region11: #{_lambda_.1} parent=1 // pred_check_branch
      %16 = sbr.rel (0) target = $region13
    $region12: #{_lambda_.1} parent=1 // pred_region
      _
    $region13: #{_lambda_.1} parent=1 // pred_fallthru
      _
    // Predicated region
    $region14: #{_lambda_.1} parent=1 // pred_check
      _
    $region15: #{_lambda_.1} parent=1 // pred_check_branch
      %18 = sbr.rel (0) target = $region17
    $region16: #{_lambda_.1} parent=1 // pred_region
      _
    $region17: #{_lambda_.1} parent=1 // pred_fallthru
      _
    // Predicated region
    $region18: #{_lambda_.1} parent=1 // pred_check
      _
    $region19: #{_lambda_.1} parent=1 // pred_check_branch
      %20 = sbr.rel (0) target = $region21
    $region20: #{_lambda_.1} parent=1 // pred_region
      _
    $region21: #{_lambda_.1} parent=1 // pred_fallthru
      _
    %vm22 = vcmask 293888
    %23 = vst.msk [vmem:[#allocation2] sm:$0xff] %vm22, 0.0
    %24 = vst.msk [vmem:[#allocation2 + $0x8] sm:$0xff] %vm22, 0.0
    %25 = vst.msk [vmem:[#allocation2 + $0x10] sm:$0xff] %vm22, 0.0
    %26 = vst.msk [vmem:[#allocation2 + $0x18] sm:$0xff] %vm22, 0.0
    %27 = vst.msk [vmem:[#allocation2 + $0x20] sm:$0xff] %vm22, 0.0
    %28 = vst.msk [vmem:[#allocation2 + $0x28] sm:$0xff] %vm22, 0.0
    %29 = vst.msk [vmem:[#allocation2 + $0x30] sm:$0xff] %vm22, 0.0
    %30 = vst.msk [vmem:[#allocation2 + $0x38] sm:$0xff] %vm22, 0.0
    %31 = vst.msk [vmem:[#allocation2 + $0x40] sm:$0xff] %vm22, 0.0
    %32 = vst.msk [vmem:[#allocation2 + $0x48] sm:$0xff] %vm22, 0.0
    %33 = vst.msk [vmem:[#allocation2 + $0x50] sm:$0xff] %vm22, 0.0
    %34 = vst.msk [vmem:[#allocation2 + $0x58] sm:$0xff] %vm22, 0.0
    %35 = vst.msk [vmem:[#allocation2 + $0x60] sm:$0xff] %vm22, 0.0
    %36 = vst.msk [vmem:[#allocation2 + $0x68] sm:$0xff] %vm22, 0.0
    %37 = vst.msk [vmem:[#allocation2 + $0x70] sm:$0xff] %vm22, 0.0
    %38 = vst.msk [vmem:[#allocation2 + $0x78] sm:$0xff] %vm22, 0.0
    %39 = vst.msk [vmem:[#allocation2 + $0x80] sm:$0xff] %vm22, 0.0
    %40 = vst.msk [vmem:[#allocation2 + $0x88] sm:$0xff] %vm22, 0.0
    %41 = vst.msk [vmem:[#allocation2 + $0x90] sm:$0xff] %vm22, 0.0
    %42 = vst.msk [vmem:[#allocation2 + $0x98] sm:$0xff] %vm22, 0.0
    %43 = vst.msk [vmem:[#allocation2 + $0xa0] sm:$0xff] %vm22, 0.0
    %44 = vst.msk [vmem:[#allocation2 + $0xa8] sm:$0xff] %vm22, 0.0
    %45 = vst.msk [vmem:[#allocation2 + $0xb0] sm:$0xff] %vm22, 0.0
    %46 = vst.msk [vmem:[#allocation2 + $0xb8] sm:$0xff] %vm22, 0.0
    %47 = vst.msk [vmem:[#allocation2 + $0xc0] sm:$0xff] %vm22, 0.0
    %48 = vst.msk [vmem:[#allocation2 + $0xc8] sm:$0xff] %vm22, 0.0
    %49 = vst.msk [vmem:[#allocation2 + $0xd0] sm:$0xff] %vm22, 0.0
    %50 = vst.msk [vmem:[#allocation2 + $0xd8] sm:$0xff] %vm22, 0.0
    %51 = vst.msk [vmem:[#allocation2 + $0xe0] sm:$0xff] %vm22, 0.0
    %52 = vst.msk [vmem:[#allocation2 + $0xe8] sm:$0xff] %vm22, 0.0
    %53 = vst.msk [vmem:[#allocation2 + $0xf0] sm:$0xff] %vm22, 0.0
    %54 = vst.msk [vmem:[#allocation2 + $0xf8] sm:$0xff] %vm22, 0.0
    %55 = vst.msk [vmem:[#allocation2 + $0x100] sm:$0xff] %vm22, 0.0
    %56 = vst.msk [vmem:[#allocation2 + $0x108] sm:$0xff] %vm22, 0.0
    %57 = vst.msk [vmem:[#allocation2 + $0x110] sm:$0xff] %vm22, 0.0
    %58 = vst.msk [vmem:[#allocation2 + $0x118] sm:$0xff] %vm22, 0.0
    %59 = vst.msk [vmem:[#allocation2 + $0x120] sm:$0xff] %vm22, 0.0
    %60 = vst.msk [vmem:[#allocation2 + $0x128] sm:$0xff] %vm22, 0.0
    %61 = vst.msk [vmem:[#allocation2 + $0x130] sm:$0xff] %vm22, 0.0
    %62 = vst.msk [vmem:[#allocation2 + $0x138] sm:$0xff] %vm22, 0.0
    %63 = vst.msk [vmem:[#allocation2 + $0x140] sm:$0xff] %vm22, 0.0
    %64 = vst.msk [vmem:[#allocation2 + $0x148] sm:$0xff] %vm22, 0.0
    %65 = vst.msk [vmem:[#allocation2 + $0x150] sm:$0xff] %vm22, 0.0
    %66 = vst.msk [vmem:[#allocation2 + $0x158] sm:$0xff] %vm22, 0.0
    %67 = vst.msk [vmem:[#allocation2 + $0x160] sm:$0xff] %vm22, 0.0
    %68 = vst.msk [vmem:[#allocation2 + $0x168] sm:$0xff] %vm22, 0.0
    %69 = vst.msk [vmem:[#allocation2 + $0x170] sm:$0xff] %vm22, 0.0
    %70 = vst.msk [vmem:[#allocation2 + $0x178] sm:$0xff] %vm22, 0.0
    %71 = vst.msk [vmem:[#allocation2 + $0x180] sm:$0xff] %vm22, 0.0
    %72 = vst.msk [vmem:[#allocation2 + $0x188] sm:$0xff] %vm22, 0.0
    %73 = vst.msk [vmem:[#allocation2 + $0x190] sm:$0xff] %vm22, 0.0
    %74 = vst.msk [vmem:[#allocation2 + $0x198] sm:$0xff] %vm22, 0.0
    %75 = vst.msk [vmem:[#allocation2 + $0x1a0] sm:$0xff] %vm22, 0.0
    %76 = vst.msk [vmem:[#allocation2 + $0x1a8] sm:$0xff] %vm22, 0.0
    %77 = vst.msk [vmem:[#allocation2 + $0x1b0] sm:$0xff] %vm22, 0.0
    %78 = vst.msk [vmem:[#allocation2 + $0x1b8] sm:$0xff] %vm22, 0.0
    %79 = vst.msk [vmem:[#allocation2 + $0x1c0] sm:$0xff] %vm22, 0.0
    %80 = vst.msk [vmem:[#allocation2 + $0x1c8] sm:$0xff] %vm22, 0.0
    %81 = vst.msk [vmem:[#allocation2 + $0x1d0] sm:$0xff] %vm22, 0.0
    %82 = vst.msk [vmem:[#allocation2 + $0x1d8] sm:$0xff] %vm22, 0.0
    %83 = vst.msk [vmem:[#allocation2 + $0x1e0] sm:$0xff] %vm22, 0.0
    %84 = vst.msk [vmem:[#allocation2 + $0x1e8] sm:$0xff] %vm22, 0.0
    %85 = vst.msk [vmem:[#allocation2 + $0x1f0] sm:$0xff] %vm22, 0.0
    %86 = vst.msk [vmem:[#allocation2 + $0x1f8] sm:$0xff] %vm22, 0.0
    %87 = vst.msk [vmem:[#allocation2 + $0x200] sm:$0xff] %vm22, 0.0
    %88 = vst.msk [vmem:[#allocation2 + $0x208] sm:$0xff] %vm22, 0.0
    %89 = vst.msk [vmem:[#allocation2 + $0x210] sm:$0xff] %vm22, 0.0
    %90 = vst.msk [vmem:[#allocation2 + $0x218] sm:$0xff] %vm22, 0.0
    %91 = vst.msk [vmem:[#allocation2 + $0x220] sm:$0xff] %vm22, 0.0
    %92 = vst.msk [vmem:[#allocation2 + $0x228] sm:$0xff] %vm22, 0.0
    %93 = vst.msk [vmem:[#allocation2 + $0x230] sm:$0xff] %vm22, 0.0
    %94 = vst.msk [vmem:[#allocation2 + $0x238] sm:$0xff] %vm22, 0.0
    %95 = vst.msk [vmem:[#allocation2 + $0x240] sm:$0xff] %vm22, 0.0
    %96 = vst.msk [vmem:[#allocation2 + $0x248] sm:$0xff] %vm22, 0.0
    %97 = vst.msk [vmem:[#allocation2 + $0x250] sm:$0xff] %vm22, 0.0
    %98 = vst.msk [vmem:[#allocation2 + $0x258] sm:$0xff] %vm22, 0.0
    %99 = vst.msk [vmem:[#allocation2 + $0x260] sm:$0xff] %vm22, 0.0
    %100 = vst.msk [vmem:[#allocation2 + $0x268] sm:$0xff] %vm22, 0.0
    %101 = vst.msk [vmem:[#allocation2 + $0x270] sm:$0xff] %vm22, 0.0
    %102 = vst.msk [vmem:[#allocation2 + $0x278] sm:$0xff] %vm22, 0.0
    %103 = vst.msk [vmem:[#allocation2 + $0x280] sm:$0xff] %vm22, 0.0
    %104 = vst.msk [vmem:[#allocation2 + $0x288] sm:$0xff] %vm22, 0.0
    %105 = vst.msk [vmem:[#allocation2 + $0x290] sm:$0xff] %vm22, 0.0
    %106 = vst.msk [vmem:[#allocation2 + $0x298] sm:$0xff] %vm22, 0.0
    %107 = vst.msk [vmem:[#allocation2 + $0x2a0] sm:$0xff] %vm22, 0.0
    %108 = vst.msk [vmem:[#allocation2 + $0x2a8] sm:$0xff] %vm22, 0.0
    %109 = vst.msk [vmem:[#allocation2 + $0x2b0] sm:$0xff] %vm22, 0.0
    %110 = vst.msk [vmem:[#allocation2 + $0x2b8] sm:$0xff] %vm22, 0.0
    %111 = vst.msk [vmem:[#allocation2 + $0x2c0] sm:$0xff] %vm22, 0.0
    %112 = vst.msk [vmem:[#allocation2 + $0x2c8] sm:$0xff] %vm22, 0.0
    %113 = vst.msk [vmem:[#allocation2 + $0x2d0] sm:$0xff] %vm22, 0.0
    %114 = vst.msk [vmem:[#allocation2 + $0x2d8] sm:$0xff] %vm22, 0.0
    %115 = vst.msk [vmem:[#allocation2 + $0x2e0] sm:$0xff] %vm22, 0.0
    %116 = vst.msk [vmem:[#allocation2 + $0x2e8] sm:$0xff] %vm22, 0.0
    %117 = vst.msk [vmem:[#allocation2 + $0x2f0] sm:$0xff] %vm22, 0.0
    %118 = vst.msk [vmem:[#allocation2 + $0x2f8] sm:$0xff] %vm22, 0.0
    %119 = vst.msk [vmem:[#allocation2 + $0x300] sm:$0xff] %vm22, 0.0
    %120 = vst.msk [vmem:[#allocation2 + $0x308] sm:$0xff] %vm22, 0.0
    %121 = vst.msk [vmem:[#allocation2 + $0x310] sm:$0xff] %vm22, 0.0
    %122 = vst.msk [vmem:[#allocation2 + $0x318] sm:$0xff] %vm22, 0.0
    %123 = vst.msk [vmem:[#allocation2 + $0x320] sm:$0xff] %vm22, 0.0
    %124 = vst.msk [vmem:[#allocation2 + $0x328] sm:$0xff] %vm22, 0.0
    %125 = vst.msk [vmem:[#allocation2 + $0x330] sm:$0xff] %vm22, 0.0
    %126 = vst.msk [vmem:[#allocation2 + $0x338] sm:$0xff] %vm22, 0.0
    %127 = vst.msk [vmem:[#allocation2 + $0x340] sm:$0xff] %vm22, 0.0
    %128 = vst.msk [vmem:[#allocation2 + $0x348] sm:$0xff] %vm22, 0.0
    %129 = vst.msk [vmem:[#allocation2 + $0x350] sm:$0xff] %vm22, 0.0
    %130 = vst.msk [vmem:[#allocation2 + $0x358] sm:$0xff] %vm22, 0.0
    %131 = vst.msk [vmem:[#allocation2 + $0x360] sm:$0xff] %vm22, 0.0
    %132 = vst.msk [vmem:[#allocation2 + $0x368] sm:$0xff] %vm22, 0.0
    %133 = vst.msk [vmem:[#allocation2 + $0x370] sm:$0xff] %vm22, 0.0
    %134 = vst.msk [vmem:[#allocation2 + $0x378] sm:$0xff] %vm22, 0.0
    %135 = vst.msk [vmem:[#allocation2 + $0x380] sm:$0xff] %vm22, 0.0
    %136 = vst.msk [vmem:[#allocation2 + $0x388] sm:$0xff] %vm22, 0.0
    %137 = vst.msk [vmem:[#allocation2 + $0x390] sm:$0xff] %vm22, 0.0
    %138 = vst.msk [vmem:[#allocation2 + $0x398] sm:$0xff] %vm22, 0.0
    %139 = vst.msk [vmem:[#allocation2 + $0x3a0] sm:$0xff] %vm22, 0.0
    %140 = vst.msk [vmem:[#allocation2 + $0x3a8] sm:$0xff] %vm22, 0.0
    %141 = vst.msk [vmem:[#allocation2 + $0x3b0] sm:$0xff] %vm22, 0.0
    %142 = vst.msk [vmem:[#allocation2 + $0x3b8] sm:$0xff] %vm22, 0.0
    %143 = vst.msk [vmem:[#allocation2 + $0x3c0] sm:$0xff] %vm22, 0.0
    %144 = vst.msk [vmem:[#allocation2 + $0x3c8] sm:$0xff] %vm22, 0.0
    %145 = vst.msk [vmem:[#allocation2 + $0x3d0] sm:$0xff] %vm22, 0.0
    %146 = vst.msk [vmem:[#allocation2 + $0x3d8] sm:$0xff] %vm22, 0.0
    %147 = vst.msk [vmem:[#allocation2 + $0x3e0] sm:$0xff] %vm22, 0.0
    %148 = vst.msk [vmem:[#allocation2 + $0x3e8] sm:$0xff] %vm22, 0.0
    %149 = vst.msk [vmem:[#allocation2 + $0x3f0] sm:$0xff] %vm22, 0.0
    %150 = vst.msk [vmem:[#allocation2 + $0x3f8] sm:$0xff] %vm22, 0.0
    %v151 = vld [vmem:[%s0] sm:$0xff]
    %v152 = vld [vmem:[%s0 + $0x8] sm:$0x7f]
    %v153 = vld [vmem:[%s0 + $0x10] sm:$0xff]
    %v154 = vld [vmem:[%s0 + $0x18] sm:$0x7f]
    %v155 = vld [vmem:[%s0 + $0x20] sm:$0xff]
    %v156 = vld [vmem:[%s0 + $0x28] sm:$0x7f]
    %v157 = vld [vmem:[%s0 + $0x30] sm:$0xff]
    %v158 = vld [vmem:[%s0 + $0x38] sm:$0x7f]
    %v159 = vld [vmem:[%s0 + $0x40] sm:$0xff]
    %v160 = vld [vmem:[%s0 + $0x48] sm:$0x7f]
    %v161 = vld [vmem:[%s0 + $0x50] sm:$0xff]
    %v162 = vld [vmem:[%s0 + $0x58] sm:$0x7f]
    %v163 = vld [vmem:[%s0 + $0x60] sm:$0xff]
    %v164 = vld [vmem:[%s0 + $0x68] sm:$0x7f]
    %v165 = vld [vmem:[%s0 + $0x70] sm:$0xff]
    %v166 = vld [vmem:[%s0 + $0x78] sm:$0x7f]
    %v167 = vld [vmem:[%s0 + $0x80] sm:$0xff]
    %v168 = vld [vmem:[%s0 + $0x88] sm:$0x7f]
    %v169 = vld [vmem:[%s0 + $0x90] sm:$0xff]
    %v170 = vld [vmem:[%s0 + $0x98] sm:$0x7f]
    %v171 = vld [vmem:[%s0 + $0xa0] sm:$0xff]
    %v172 = vld [vmem:[%s0 + $0xa8] sm:$0x7f]
    %v173 = vld [vmem:[%s0 + $0xb0] sm:$0xff]
    %v174 = vld [vmem:[%s0 + $0xb8] sm:$0x7f]
    %v175 = vld [vmem:[%s0 + $0xc0] sm:$0xff]
    %v176 = vld [vmem:[%s0 + $0xc8] sm:$0x7f]
    %v177 = vld [vmem:[%s0 + $0xd0] sm:$0xff]
    %v178 = vld [vmem:[%s0 + $0xd8] sm:$0x7f]
    %v179 = vld [vmem:[%s0 + $0xe0] sm:$0xff]
    %v180 = vld [vmem:[%s0 + $0xe8] sm:$0x7f]
    %v181 = vld [vmem:[%s0 + $0x100] sm:$0xff]
    %v182 = vld [vmem:[%s0 + $0x108] sm:$0x7f]
    %v183 = vld [vmem:[%s0 + $0x110] sm:$0xff]
    %v184 = vld [vmem:[%s0 + $0x118] sm:$0x7f]
    %v185 = vld [vmem:[%s0 + $0x120] sm:$0xff]
    %v186 = vld [vmem:[%s0 + $0x128] sm:$0x7f]
    %v187 = vld [vmem:[%s0 + $0x130] sm:$0xff]
    %v188 = vld [vmem:[%s0 + $0x138] sm:$0x7f]
    %v189 = vld [vmem:[%s0 + $0x140] sm:$0xff]
    %v190 = vld [vmem:[%s0 + $0x148] sm:$0x7f]
    %v191 = vld [vmem:[%s0 + $0x150] sm:$0xff]
    %v192 = vld [vmem:[%s0 + $0x158] sm:$0x7f]
    %v193 = vld [vmem:[%s0 + $0x160] sm:$0xff]
    %v194 = vld [vmem:[%s0 + $0x168] sm:$0x7f]
    %v195 = vld [vmem:[%s0 + $0x170] sm:$0xff]
    %v196 = vld [vmem:[%s0 + $0x178] sm:$0x7f]
    %v197 = vld [vmem:[%s0 + $0x180] sm:$0xff]
    %v198 = vld [vmem:[%s0 + $0x188] sm:$0x7f]
    %v199 = vld [vmem:[%s0 + $0x190] sm:$0xff]
    %v200 = vld [vmem:[%s0 + $0x198] sm:$0x7f]
    %v201 = vld [vmem:[%s0 + $0x1a0] sm:$0xff]
    %v202 = vld [vmem:[%s0 + $0x1a8] sm:$0x7f]
    %v203 = vld [vmem:[%s0 + $0x1b0] sm:$0xff]
    %v204 = vld [vmem:[%s0 + $0x1b8] sm:$0x7f]
    %v205 = vld [vmem:[%s0 + $0x1c0] sm:$0xff]
    %v206 = vld [vmem:[%s0 + $0x1c8] sm:$0x7f]
    %v207 = vld [vmem:[%s0 + $0x1d0] sm:$0xff]
    %v208 = vld [vmem:[%s0 + $0x1d8] sm:$0x7f]
    %v209 = vld [vmem:[%s0 + $0x1e0] sm:$0xff]
    %v210 = vld [vmem:[%s0 + $0x1e8] sm:$0x7f]
    %v211 = vld [vmem:[%s0 + $0x200] sm:$0xff]
    %v212 = vld [vmem:[%s0 + $0x208] sm:$0x7f]
    %v213 = vld [vmem:[%s0 + $0x210] sm:$0xff]
    %v214 = vld [vmem:[%s0 + $0x218] sm:$0x7f]
    %v215 = vld [vmem:[%s0 + $0x220] sm:$0xff]
    %v216 = vld [vmem:[%s0 + $0x228] sm:$0x7f]
    %v217 = vld [vmem:[%s0 + $0x230] sm:$0xff]
    %v218 = vld [vmem:[%s0 + $0x238] sm:$0x7f]
    %v219 = vld [vmem:[%s0 + $0x240] sm:$0xff]
    %v220 = vld [vmem:[%s0 + $0x248] sm:$0x7f]
    %v221 = vld [vmem:[%s0 + $0x250] sm:$0xff]
    %v222 = vld [vmem:[%s0 + $0x258] sm:$0x7f]
    %v223 = vld [vmem:[%s0 + $0x260] sm:$0xff]
    %v224 = vld [vmem:[%s0 + $0x268] sm:$0x7f]
    %v225 = vld [vmem:[%s0 + $0x270] sm:$0xff]
    %v226 = vld [vmem:[%s0 + $0x278] sm:$0x7f]
    %v227 = vld [vmem:[%s0 + $0x280] sm:$0xff]
    %v228 = vld [vmem:[%s0 + $0x288] sm:$0x7f]
    %v229 = vld [vmem:[%s0 + $0x290] sm:$0xff]
    %v230 = vld [vmem:[%s0 + $0x298] sm:$0x7f]
    %v231 = vld [vmem:[%s0 + $0x2a0] sm:$0xff]
    %v232 = vld [vmem:[%s0 + $0x2a8] sm:$0x7f]
    %v233 = vld [vmem:[%s0 + $0x2b0] sm:$0xff]
    %v234 = vld [vmem:[%s0 + $0x2b8] sm:$0x7f]
    %v235 = vld [vmem:[%s0 + $0x2c0] sm:$0xff]
    %v236 = vld [vmem:[%s0 + $0x2c8] sm:$0x7f]
    %v237 = vld [vmem:[%s0 + $0x2d0] sm:$0xff]
    %v238 = vld [vmem:[%s0 + $0x2d8] sm:$0x7f]
    %v239 = vld [vmem:[%s0 + $0x2e0] sm:$0xff]
    %v240 = vld [vmem:[%s0 + $0x2e8] sm:$0x7f]
    %v241 = vld [vmem:[%s0 + $0x300] sm:$0xff]
    %v242 = vld [vmem:[%s0 + $0x308] sm:$0x7f]
    %v243 = vld [vmem:[%s0 + $0x310] sm:$0xff]
    %v244 = vld [vmem:[%s0 + $0x318] sm:$0x7f]
    %v245 = vld [vmem:[%s0 + $0x320] sm:$0xff]
    %v246 = vld [vmem:[%s0 + $0x328] sm:$0x7f]
    %v247 = vld [vmem:[%s0 + $0x330] sm:$0xff]
    %v248 = vld [vmem:[%s0 + $0x338] sm:$0x7f]
    %v249 = vld [vmem:[%s0 + $0x340] sm:$0xff]
    %v250 = vld [vmem:[%s0 + $0x348] sm:$0x7f]
    %v251 = vld [vmem:[%s0 + $0x350] sm:$0xff]
    %v252 = vld [vmem:[%s0 + $0x358] sm:$0x7f]
    %v253 = vld [vmem:[%s0 + $0x360] sm:$0xff]
    %v254 = vld [vmem:[%s0 + $0x368] sm:$0x7f]
    %v255 = vld [vmem:[%s0 + $0x370] sm:$0xff]
    %v256 = vld [vmem:[%s0 + $0x378] sm:$0x7f]
    %v257 = vld [vmem:[%s0 + $0x380] sm:$0xff]
    %v258 = vld [vmem:[%s0 + $0x388] sm:$0x7f]
    %v259 = vld [vmem:[%s0 + $0x390] sm:$0xff]
    %v260 = vld [vmem:[%s0 + $0x398] sm:$0x7f]
    %v261 = vld [vmem:[%s0 + $0x3a0] sm:$0xff]
    %v262 = vld [vmem:[%s0 + $0x3a8] sm:$0x7f]
    %v263 = vld [vmem:[%s0 + $0x3b0] sm:$0xff]
    %v264 = vld [vmem:[%s0 + $0x3b8] sm:$0x7f]
    %v265 = vld [vmem:[%s0 + $0x3c0] sm:$0xff]
    %v266 = vld [vmem:[%s0 + $0x3c8] sm:$0x7f]
    %v267 = vld [vmem:[%s0 + $0x3d0] sm:$0xff]
    %v268 = vld [vmem:[%s0 + $0x3d8] sm:$0x7f]
    %v269 = vld [vmem:[%s0 + $0x3e0] sm:$0xff]
    %v270 = vld [vmem:[%s0 + $0x3e8] sm:$0x7f]
    %s271 = scalar_lea.vmem [#allocation2], 16
    %vm272 = vcmask 31744
    %273 = vst.msk [vmem:[%s271 + $0x1] sm:$0xff] %vm272, %v151
    %vm274 = vcmask 30720
    %275 = vst.msk [vmem:[%s271 + $0x9] sm:$0x7f] %vm274, %v152
    %276 = vst.msk [vmem:[%s271 + $0x11] sm:$0xff] %vm272, %v153
    %277 = vst.msk [vmem:[%s271 + $0x19] sm:$0x7f] %vm274, %v154
    %278 = vst.msk [vmem:[%s271 + $0x21] sm:$0xff] %vm272, %v155
    %279 = vst.msk [vmem:[%s271 + $0x29] sm:$0x7f] %vm274, %v156
    %280 = vst.msk [vmem:[%s271 + $0x31] sm:$0xff] %vm272, %v157
    %281 = vst.msk [vmem:[%s271 + $0x39] sm:$0x7f] %vm274, %v158
    %282 = vst.msk [vmem:[%s271 + $0x41] sm:$0xff] %vm272, %v159
    %283 = vst.msk [vmem:[%s271 + $0x49] sm:$0x7f] %vm274, %v160
    %284 = vst.msk [vmem:[%s271 + $0x51] sm:$0xff] %vm272, %v161
    %285 = vst.msk [vmem:[%s271 + $0x59] sm:$0x7f] %vm274, %v162
    %286 = vst.msk [vmem:[%s271 + $0x61] sm:$0xff] %vm272, %v163
    %287 = vst.msk [vmem:[%s271 + $0x69] sm:$0x7f] %vm274, %v164
    %288 = vst.msk [vmem:[%s271 + $0x71] sm:$0xff] %vm272, %v165
    %289 = vst.msk [vmem:[%s271 + $0x79] sm:$0x7f] %vm274, %v166
    %290 = vst.msk [vmem:[%s271 + $0x81] sm:$0xff] %vm272, %v167
    %291 = vst.msk [vmem:[%s271 + $0x89] sm:$0x7f] %vm274, %v168
    %292 = vst.msk [vmem:[%s271 + $0x91] sm:$0xff] %vm272, %v169
    %293 = vst.msk [vmem:[%s271 + $0x99] sm:$0x7f] %vm274, %v170
    %294 = vst.msk [vmem:[%s271 + $0xa1] sm:$0xff] %vm272, %v171
    %295 = vst.msk [vmem:[%s271 + $0xa9] sm:$0x7f] %vm274, %v172
    %296 = vst.msk [vmem:[%s271 + $0xb1] sm:$0xff] %vm272, %v173
    %297 = vst.msk [vmem:[%s271 + $0xb9] sm:$0x7f] %vm274, %v174
    %298 = vst.msk [vmem:[%s271 + $0xc1] sm:$0xff] %vm272, %v175
    %299 = vst.msk [vmem:[%s271 + $0xc9] sm:$0x7f] %vm274, %v176
    %300 = vst.msk [vmem:[%s271 + $0xd1] sm:$0xff] %vm272, %v177
    %301 = vst.msk [vmem:[%s271 + $0xd9] sm:$0x7f] %vm274, %v178
    %302 = vst.msk [vmem:[%s271 + $0xe1] sm:$0xff] %vm272, %v179
    %303 = vst.msk [vmem:[%s271 + $0xe9] sm:$0x7f] %vm274, %v180
    %304 = vst.msk [vmem:[%s271 + $0x101] sm:$0xff] %vm272, %v181
    %305 = vst.msk [vmem:[%s271 + $0x109] sm:$0x7f] %vm274, %v182
    %306 = vst.msk [vmem:[%s271 + $0x111] sm:$0xff] %vm272, %v183
    %307 = vst.msk [vmem:[%s271 + $0x119] sm:$0x7f] %vm274, %v184
    %308 = vst.msk [vmem:[%s271 + $0x121] sm:$0xff] %vm272, %v185
    %309 = vst.msk [vmem:[%s271 + $0x129] sm:$0x7f] %vm274, %v186
    %310 = vst.msk [vmem:[%s271 + $0x131] sm:$0xff] %vm272, %v187
    %311 = vst.msk [vmem:[%s271 + $0x139] sm:$0x7f] %vm274, %v188
    %312 = vst.msk [vmem:[%s271 + $0x141] sm:$0xff] %vm272, %v189
    %313 = vst.msk [vmem:[%s271 + $0x149] sm:$0x7f] %vm274, %v190
    %314 = vst.msk [vmem:[%s271 + $0x151] sm:$0xff] %vm272, %v191
    %315 = vst.msk [vmem:[%s271 + $0x159] sm:$0x7f] %vm274, %v192
    %316 = vst.msk [vmem:[%s271 + $0x161] sm:$0xff] %vm272, %v193
    %317 = vst.msk [vmem:[%s271 + $0x169] sm:$0x7f] %vm274, %v194
    %318 = vst.msk [vmem:[%s271 + $0x171] sm:$0xff] %vm272, %v195
    %319 = vst.msk [vmem:[%s271 + $0x179] sm:$0x7f] %vm274, %v196
    %320 = vst.msk [vmem:[%s271 + $0x181] sm:$0xff] %vm272, %v197
    %321 = vst.msk [vmem:[%s271 + $0x189] sm:$0x7f] %vm274, %v198
    %322 = vst.msk [vmem:[%s271 + $0x191] sm:$0xff] %vm272, %v199
    %323 = vst.msk [vmem:[%s271 + $0x199] sm:$0x7f] %vm274, %v200
    %324 = vst.msk [vmem:[%s271 + $0x1a1] sm:$0xff] %vm272, %v201
    %325 = vst.msk [vmem:[%s271 + $0x1a9] sm:$0x7f] %vm274, %v202
    %326 = vst.msk [vmem:[%s271 + $0x1b1] sm:$0xff] %vm272, %v203
    %327 = vst.msk [vmem:[%s271 + $0x1b9] sm:$0x7f] %vm274, %v204
    %328 = vst.msk [vmem:[%s271 + $0x1c1] sm:$0xff] %vm272, %v205
    %329 = vst.msk [vmem:[%s271 + $0x1c9] sm:$0x7f] %vm274, %v206
    %330 = vst.msk [vmem:[%s271 + $0x1d1] sm:$0xff] %vm272, %v207
    %331 = vst.msk [vmem:[%s271 + $0x1d9] sm:$0x7f] %vm274, %v208
    %332 = vst.msk [vmem:[%s271 + $0x1e1] sm:$0xff] %vm272, %v209
    %333 = vst.msk [vmem:[%s271 + $0x1e9] sm:$0x7f] %vm274, %v210
    %334 = vst.msk [vmem:[%s271 + $0x201] sm:$0xff] %vm272, %v211
    %335 = vst.msk [vmem:[%s271 + $0x209] sm:$0x7f] %vm274, %v212
    %336 = vst.msk [vmem:[%s271 + $0x211] sm:$0xff] %vm272, %v213
    %337 = vst.msk [vmem:[%s271 + $0x219] sm:$0x7f] %vm274, %v214
    %338 = vst.msk [vmem:[%s271 + $0x221] sm:$0xff] %vm272, %v215
    %339 = vst.msk [vmem:[%s271 + $0x229] sm:$0x7f] %vm274, %v216
    %340 = vst.msk [vmem:[%s271 + $0x231] sm:$0xff] %vm272, %v217
    %341 = vst.msk [vmem:[%s271 + $0x239] sm:$0x7f] %vm274, %v218
    %342 = vst.msk [vmem:[%s271 + $0x241] sm:$0xff] %vm272, %v219
    %343 = vst.msk [vmem:[%s271 + $0x249] sm:$0x7f] %vm274, %v220
    %344 = vst.msk [vmem:[%s271 + $0x251] sm:$0xff] %vm272, %v221
    %345 = vst.msk [vmem:[%s271 + $0x259] sm:$0x7f] %vm274, %v222
    %346 = vst.msk [vmem:[%s271 + $0x261] sm:$0xff] %vm272, %v223
    %347 = vst.msk [vmem:[%s271 + $0x269] sm:$0x7f] %vm274, %v224
    %348 = vst.msk [vmem:[%s271 + $0x271] sm:$0xff] %vm272, %v225
    %349 = vst.msk [vmem:[%s271 + $0x279] sm:$0x7f] %vm274, %v226
    %350 = vst.msk [vmem:[%s271 + $0x281] sm:$0xff] %vm272, %v227
    %351 = vst.msk [vmem:[%s271 + $0x289] sm:$0x7f] %vm274, %v228
    %352 = vst.msk [vmem:[%s271 + $0x291] sm:$0xff] %vm272, %v229
    %353 = vst.msk [vmem:[%s271 + $0x299] sm:$0x7f] %vm274, %v230
    %354 = vst.msk [vmem:[%s271 + $0x2a1] sm:$0xff] %vm272, %v231
    %355 = vst.msk [vmem:[%s271 + $0x2a9] sm:$0x7f] %vm274, %v232
    %356 = vst.msk [vmem:[%s271 + $0x2b1] sm:$0xff] %vm272, %v233
    %357 = vst.msk [vmem:[%s271 + $0x2b9] sm:$0x7f] %vm274, %v234
    %358 = vst.msk [vmem:[%s271 + $0x2c1] sm:$0xff] %vm272, %v235
    %359 = vst.msk [vmem:[%s271 + $0x2c9] sm:$0x7f] %vm274, %v236
    %360 = vst.msk [vmem:[%s271 + $0x2d1] sm:$0xff] %vm272, %v237
    %361 = vst.msk [vmem:[%s271 + $0x2d9] sm:$0x7f] %vm274, %v238
    %362 = vst.msk [vmem:[%s271 + $0x2e1] sm:$0xff] %vm272, %v239
    %363 = vst.msk [vmem:[%s271 + $0x2e9] sm:$0x7f] %vm274, %v240
    %364 = vst.msk [vmem:[%s271 + $0x301] sm:$0xff] %vm272, %v241
    %365 = vst.msk [vmem:[%s271 + $0x309] sm:$0x7f] %vm274, %v242
    %366 = vst.msk [vmem:[%s271 + $0x311] sm:$0xff] %vm272, %v243
    %367 = vst.msk [vmem:[%s271 + $0x319] sm:$0x7f] %vm274, %v244
    %368 = vst.msk [vmem:[%s271 + $0x321] sm:$0xff] %vm272, %v245
    %369 = vst.msk [vmem:[%s271 + $0x329] sm:$0x7f] %vm274, %v246
    %370 = vst.msk [vmem:[%s271 + $0x331] sm:$0xff] %vm272, %v247
    %371 = vst.msk [vmem:[%s271 + $0x339] sm:$0x7f] %vm274, %v248
    %372 = vst.msk [vmem:[%s271 + $0x341] sm:$0xff] %vm272, %v249
    %373 = vst.msk [vmem:[%s271 + $0x349] sm:$0x7f] %vm274, %v250
    %374 = vst.msk [vmem:[%s271 + $0x351] sm:$0xff] %vm272, %v251
    %375 = vst.msk [vmem:[%s271 + $0x359] sm:$0x7f] %vm274, %v252
    %376 = vst.msk [vmem:[%s271 + $0x361] sm:$0xff] %vm272, %v253
    %377 = vst.msk [vmem:[%s271 + $0x369] sm:$0x7f] %vm274, %v254
    %378 = vst.msk [vmem:[%s271 + $0x371] sm:$0xff] %vm272, %v255
    %379 = vst.msk [vmem:[%s271 + $0x379] sm:$0x7f] %vm274, %v256
    %380 = vst.msk [vmem:[%s271 + $0x381] sm:$0xff] %vm272, %v257
    %381 = vst.msk [vmem:[%s271 + $0x389] sm:$0x7f] %vm274, %v258
    %382 = vst.msk [vmem:[%s271 + $0x391] sm:$0xff] %vm272, %v259
    %383 = vst.msk [vmem:[%s271 + $0x399] sm:$0x7f] %vm274, %v260
    %384 = vst.msk [vmem:[%s271 + $0x3a1] sm:$0xff] %vm272, %v261
    %385 = vst.msk [vmem:[%s271 + $0x3a9] sm:$0x7f] %vm274, %v262
    %386 = vst.msk [vmem:[%s271 + $0x3b1] sm:$0xff] %vm272, %v263
    %387 = vst.msk [vmem:[%s271 + $0x3b9] sm:$0x7f] %vm274, %v264
    %388 = vst.msk [vmem:[%s271 + $0x3c1] sm:$0xff] %vm272, %v265
    %389 = vst.msk [vmem:[%s271 + $0x3c9] sm:$0x7f] %vm274, %v266
    %390 = vst.msk [vmem:[%s271 + $0x3d1] sm:$0xff] %vm272, %v267
    %391 = vst.msk [vmem:[%s271 + $0x3d9] sm:$0x7f] %vm274, %v268
    %392 = vst.msk [vmem:[%s271 + $0x3e1] sm:$0xff] %vm272, %v269
    %393 = vst.msk [vmem:[%s271 + $0x3e9] sm:$0x7f] %vm274, %v270
    %v394 = vld [vmem:[%s0] sm:$0xff]
    %v395 = vld [vmem:[%s0 + $0x8] sm:$0xff]
    %v396 = vld [vmem:[%s0 + $0x10] sm:$0xff]
    %v397 = vld [vmem:[%s0 + $0x18] sm:$0xff]
    %v398 = vld [vmem:[%s0 + $0x20] sm:$0xff]
    %v399 = vld [vmem:[%s0 + $0x28] sm:$0xff]
    %v400 = vld [vmem:[%s0 + $0x30] sm:$0xff]
    %v401 = vld [vmem:[%s0 + $0x38] sm:$0xff]
    %v402 = vld [vmem:[%s0 + $0x40] sm:$0xff]
    %v403 = vld [vmem:[%s0 + $0x48] sm:$0xff]
    %v404 = vld [vmem:[%s0 + $0x50] sm:$0xff]
    %v405 = vld [vmem:[%s0 + $0x58] sm:$0xff]
    %v406 = vld [vmem:[%s0 + $0x60] sm:$0xff]
    %v407 = vld [vmem:[%s0 + $0x68] sm:$0xff]
    %v408 = vld [vmem:[%s0 + $0x70] sm:$0xff]
    %v409 = vld [vmem:[%s0 + $0x78] sm:$0xff]
    %v410 = vld [vmem:[%s0 + $0x80] sm:$0xff]
    %v411 = vld [vmem:[%s0 + $0x88] sm:$0xff]
    %v412 = vld [vmem:[%s0 + $0x90] sm:$0xff]
    %v413 = vld [vmem:[%s0 + $0x98] sm:$0xff]
    %v414 = vld [vmem:[%s0 + $0xa0] sm:$0xff]
    %v415 = vld [vmem:[%s0 + $0xa8] sm:$0xff]
    %v416 = vld [vmem:[%s0 + $0xb0] sm:$0xff]
    %v417 = vld [vmem:[%s0 + $0xb8] sm:$0xff]
    %v418 = vld [vmem:[%s0 + $0xc0] sm:$0xff]
    %v419 = vld [vmem:[%s0 + $0xc8] sm:$0xff]
    %v420 = vld [vmem:[%s0 + $0xd0] sm:$0xff]
    %v421 = vld [vmem:[%s0 + $0xd8] sm:$0xff]
    %v422 = vld [vmem:[%s0 + $0xe0] sm:$0xff]
    %v423 = vld [vmem:[%s0 + $0xe8] sm:$0xff]
    %v424 = vld [vmem:[%s0 + $0x100] sm:$0xff]
    %v425 = vld [vmem:[%s0 + $0x108] sm:$0xff]
    %v426 = vld [vmem:[%s0 + $0x110] sm:$0xff]
    %v427 = vld [vmem:[%s0 + $0x118] sm:$0xff]
    %v428 = vld [vmem:[%s0 + $0x120] sm:$0xff]
    %v429 = vld [vmem:[%s0 + $0x128] sm:$0xff]
    %v430 = vld [vmem:[%s0 + $0x130] sm:$0xff]
    %v431 = vld [vmem:[%s0 + $0x138] sm:$0xff]
    %v432 = vld [vmem:[%s0 + $0x140] sm:$0xff]
    %v433 = vld [vmem:[%s0 + $0x148] sm:$0xff]
    %v434 = vld [vmem:[%s0 + $0x150] sm:$0xff]
    %v435 = vld [vmem:[%s0 + $0x158] sm:$0xff]
    %v436 = vld [vmem:[%s0 + $0x160] sm:$0xff]
    %v437 = vld [vmem:[%s0 + $0x168] sm:$0xff]
    %v438 = vld [vmem:[%s0 + $0x170] sm:$0xff]
    %v439 = vld [vmem:[%s0 + $0x178] sm:$0xff]
    %v440 = vld [vmem:[%s0 + $0x180] sm:$0xff]
    %v441 = vld [vmem:[%s0 + $0x188] sm:$0xff]
    %v442 = vld [vmem:[%s0 + $0x190] sm:$0xff]
    %v443 = vld [vmem:[%s0 + $0x198] sm:$0xff]
    %v444 = vld [vmem:[%s0 + $0x1a0] sm:$0xff]
    %v445 = vld [vmem:[%s0 + $0x1a8] sm:$0xff]
    %v446 = vld [vmem:[%s0 + $0x1b0] sm:$0xff]
    %v447 = vld [vmem:[%s0 + $0x1b8] sm:$0xff]
    %v448 = vld [vmem:[%s0 + $0x1c0] sm:$0xff]
    %v449 = vld [vmem:[%s0 + $0x1c8] sm:$0xff]
    %v450 = vld [vmem:[%s0 + $0x1d0] sm:$0xff]
    %v451 = vld [vmem:[%s0 + $0x1d8] sm:$0xff]
    %v452 = vld [vmem:[%s0 + $0x1e0] sm:$0xff]
    %v453 = vld [vmem:[%s0 + $0x1e8] sm:$0xff]
    %v454 = vld [vmem:[%s0 + $0x200] sm:$0xff]
    %v455 = vld [vmem:[%s0 + $0x208] sm:$0xff]
    %v456 = vld [vmem:[%s0 + $0x210] sm:$0xff]
    %v457 = vld [vmem:[%s0 + $0x218] sm:$0xff]
    %v458 = vld [vmem:[%s0 + $0x220] sm:$0xff]
    %v459 = vld [vmem:[%s0 + $0x228] sm:$0xff]
    %v460 = vld [vmem:[%s0 + $0x230] sm:$0xff]
    %v461 = vld [vmem:[%s0 + $0x238] sm:$0xff]
    %v462 = vld [vmem:[%s0 + $0x240] sm:$0xff]
    %v463 = vld [vmem:[%s0 + $0x248] sm:$0xff]
    %v464 = vld [vmem:[%s0 + $0x250] sm:$0xff]
    %v465 = vld [vmem:[%s0 + $0x258] sm:$0xff]
    %v466 = vld [vmem:[%s0 + $0x260] sm:$0xff]
    %v467 = vld [vmem:[%s0 + $0x268] sm:$0xff]
    %v468 = vld [vmem:[%s0 + $0x270] sm:$0xff]
    %v469 = vld [vmem:[%s0 + $0x278] sm:$0xff]
    %v470 = vld [vmem:[%s0 + $0x280] sm:$0xff]
    %v471 = vld [vmem:[%s0 + $0x288] sm:$0xff]
    %v472 = vld [vmem:[%s0 + $0x290] sm:$0xff]
    %v473 = vld [vmem:[%s0 + $0x298] sm:$0xff]
    %v474 = vld [vmem:[%s0 + $0x2a0] sm:$0xff]
    %v475 = vld [vmem:[%s0 + $0x2a8] sm:$0xff]
    %v476 = vld [vmem:[%s0 + $0x2b0] sm:$0xff]
    %v477 = vld [vmem:[%s0 + $0x2b8] sm:$0xff]
    %v478 = vld [vmem:[%s0 + $0x2c0] sm:$0xff]
    %v479 = vld [vmem:[%s0 + $0x2c8] sm:$0xff]
    %v480 = vld [vmem:[%s0 + $0x2d0] sm:$0xff]
    %v481 = vld [vmem:[%s0 + $0x2d8] sm:$0xff]
    %v482 = vld [vmem:[%s0 + $0x2e0] sm:$0xff]
    %v483 = vld [vmem:[%s0 + $0x2e8] sm:$0xff]
    %v484 = vld [vmem:[%s0 + $0x300] sm:$0xff]
    %v485 = vld [vmem:[%s0 + $0x308] sm:$0xff]
    %v486 = vld [vmem:[%s0 + $0x310] sm:$0xff]
    %v487 = vld [vmem:[%s0 + $0x318] sm:$0xff]
    %v488 = vld [vmem:[%s0 + $0x320] sm:$0xff]
    %v489 = vld [vmem:[%s0 + $0x328] sm:$0xff]
    %v490 = vld [vmem:[%s0 + $0x330] sm:$0xff]
    %v491 = vld [vmem:[%s0 + $0x338] sm:$0xff]
    %v492 = vld [vmem:[%s0 + $0x340] sm:$0xff]
    %v493 = vld [vmem:[%s0 + $0x348] sm:$0xff]
    %v494 = vld [vmem:[%s0 + $0x350] sm:$0xff]
    %v495 = vld [vmem:[%s0 + $0x358] sm:$0xff]
    %v496 = vld [vmem:[%s0 + $0x360] sm:$0xff]
    %v497 = vld [vmem:[%s0 + $0x368] sm:$0xff]
    %v498 = vld [vmem:[%s0 + $0x370] sm:$0xff]
    %v499 = vld [vmem:[%s0 + $0x378] sm:$0xff]
    %v500 = vld [vmem:[%s0 + $0x380] sm:$0xff]
    %v501 = vld [vmem:[%s0 + $0x388] sm:$0xff]
    %v502 = vld [vmem:[%s0 + $0x390] sm:$0xff]
    %v503 = vld [vmem:[%s0 + $0x398] sm:$0xff]
    %v504 = vld [vmem:[%s0 + $0x3a0] sm:$0xff]
    %v505 = vld [vmem:[%s0 + $0x3a8] sm:$0xff]
    %v506 = vld [vmem:[%s0 + $0x3b0] sm:$0xff]
    %v507 = vld [vmem:[%s0 + $0x3b8] sm:$0xff]
    %v508 = vld [vmem:[%s0 + $0x3c0] sm:$0xff]
    %v509 = vld [vmem:[%s0 + $0x3c8] sm:$0xff]
    %v510 = vld [vmem:[%s0 + $0x3d0] sm:$0xff]
    %v511 = vld [vmem:[%s0 + $0x3d8] sm:$0xff]
    %v512 = vld [vmem:[%s0 + $0x3e0] sm:$0xff]
    %v513 = vld [vmem:[%s0 + $0x3e8] sm:$0xff]
    %634 = vrot.lane.b32.xlu0 %v394, 4
    %v635 = vpop.permute.xlu0 %634
    %636 = vrot.lane.b32.xlu0 %v395, 4
    %v637 = vpop.permute.xlu0 %636
    %638 = vrot.lane.b32.xlu0 %v396, 4
    %v639 = vpop.permute.xlu0 %638
    %640 = vrot.lane.b32.xlu0 %v397, 4
    %v641 = vpop.permute.xlu0 %640
    %642 = vrot.lane.b32.xlu0 %v398, 4
    %v643 = vpop.permute.xlu0 %642
    %644 = vrot.lane.b32.xlu0 %v399, 4
    %v645 = vpop.permute.xlu0 %644
    %646 = vrot.lane.b32.xlu0 %v400, 4
    %v647 = vpop.permute.xlu0 %646
    %648 = vrot.lane.b32.xlu0 %v401, 4
    %v649 = vpop.permute.xlu0 %648
    %650 = vrot.lane.b32.xlu0 %v402, 4
    %v651 = vpop.permute.xlu0 %650
    %652 = vrot.lane.b32.xlu0 %v403, 4
    %v653 = vpop.permute.xlu0 %652
    %654 = vrot.lane.b32.xlu0 %v404, 4
    %v655 = vpop.permute.xlu0 %654
    %656 = vrot.lane.b32.xlu0 %v405, 4
    %v657 = vpop.permute.xlu0 %656
    %658 = vrot.lane.b32.xlu0 %v406, 4
    %v659 = vpop.permute.xlu0 %658
    %660 = vrot.lane.b32.xlu0 %v407, 4
    %v661 = vpop.permute.xlu0 %660
    %662 = vrot.lane.b32.xlu0 %v408, 4
    %v663 = vpop.permute.xlu0 %662
    %664 = vrot.lane.b32.xlu0 %v409, 4
    %v665 = vpop.permute.xlu0 %664
    %666 = vrot.lane.b32.xlu0 %v410, 4
    %v667 = vpop.permute.xlu0 %666
    %668 = vrot.lane.b32.xlu0 %v411, 4
    %v669 = vpop.permute.xlu0 %668
    %670 = vrot.lane.b32.xlu0 %v412, 4
    %v671 = vpop.permute.xlu0 %670
    %672 = vrot.lane.b32.xlu0 %v413, 4
    %v673 = vpop.permute.xlu0 %672
    %674 = vrot.lane.b32.xlu0 %v414, 4
    %v675 = vpop.permute.xlu0 %674
    %676 = vrot.lane.b32.xlu0 %v415, 4
    %v677 = vpop.permute.xlu0 %676
    %678 = vrot.lane.b32.xlu0 %v416, 4
    %v679 = vpop.permute.xlu0 %678
    %680 = vrot.lane.b32.xlu0 %v417, 4
    %v681 = vpop.permute.xlu0 %680
    %682 = vrot.lane.b32.xlu0 %v418, 4
    %v683 = vpop.permute.xlu0 %682
    %684 = vrot.lane.b32.xlu0 %v419, 4
    %v685 = vpop.permute.xlu0 %684
    %686 = vrot.lane.b32.xlu0 %v420, 4
    %v687 = vpop.permute.xlu0 %686
    %688 = vrot.lane.b32.xlu0 %v421, 4
    %v689 = vpop.permute.xlu0 %688
    %690 = vrot.lane.b32.xlu0 %v422, 4
    %v691 = vpop.permute.xlu0 %690
    %692 = vrot.lane.b32.xlu0 %v423, 4
    %v693 = vpop.permute.xlu0 %692
    %694 = vrot.lane.b32.xlu0 %v424, 4
    %v695 = vpop.permute.xlu0 %694
    %696 = vrot.lane.b32.xlu0 %v425, 4
    %v697 = vpop.permute.xlu0 %696
    %698 = vrot.lane.b32.xlu0 %v426, 4
    %v699 = vpop.permute.xlu0 %698
    %700 = vrot.lane.b32.xlu0 %v427, 4
    %v701 = vpop.permute.xlu0 %700
    %702 = vrot.lane.b32.xlu0 %v428, 4
    %v703 = vpop.permute.xlu0 %702
    %704 = vrot.lane.b32.xlu0 %v429, 4
    %v705 = vpop.permute.xlu0 %704
    %706 = vrot.lane.b32.xlu0 %v430, 4
    %v707 = vpop.permute.xlu0 %706
    %708 = vrot.lane.b32.xlu0 %v431, 4
    %v709 = vpop.permute.xlu0 %708
    %710 = vrot.lane.b32.xlu0 %v432, 4
    %v711 = vpop.permute.xlu0 %710
    %712 = vrot.lane.b32.xlu0 %v433, 4
    %v713 = vpop.permute.xlu0 %712
    %714 = vrot.lane.b32.xlu0 %v434, 4
    %v715 = vpop.permute.xlu0 %714
    %716 = vrot.lane.b32.xlu0 %v435, 4
    %v717 = vpop.permute.xlu0 %716
    %718 = vrot.lane.b32.xlu0 %v436, 4
    %v719 = vpop.permute.xlu0 %718
    %720 = vrot.lane.b32.xlu0 %v437, 4
    %v721 = vpop.permute.xlu0 %720
    %722 = vrot.lane.b32.xlu0 %v438, 4
    %v723 = vpop.permute.xlu0 %722
    %724 = vrot.lane.b32.xlu0 %v439, 4
    %v725 = vpop.permute.xlu0 %724
    %726 = vrot.lane.b32.xlu0 %v440, 4
    %v727 = vpop.permute.xlu0 %726
    %728 = vrot.lane.b32.xlu0 %v441, 4
    %v729 = vpop.permute.xlu0 %728
    %730 = vrot.lane.b32.xlu0 %v442, 4
    %v731 = vpop.permute.xlu0 %730
    %732 = vrot.lane.b32.xlu0 %v443, 4
    %v733 = vpop.permute.xlu0 %732
    %734 = vrot.lane.b32.xlu0 %v444, 4
    %v735 = vpop.permute.xlu0 %734
    %736 = vrot.lane.b32.xlu0 %v445, 4
    %v737 = vpop.permute.xlu0 %736
    %738 = vrot.lane.b32.xlu0 %v446, 4
    %v739 = vpop.permute.xlu0 %738
    %740 = vrot.lane.b32.xlu0 %v447, 4
    %v741 = vpop.permute.xlu0 %740
    %742 = vrot.lane.b32.xlu0 %v448, 4
    %v743 = vpop.permute.xlu0 %742
    %744 = vrot.lane.b32.xlu0 %v449, 4
    %v745 = vpop.permute.xlu0 %744
    %746 = vrot.lane.b32.xlu0 %v450, 4
    %v747 = vpop.permute.xlu0 %746
    %748 = vrot.lane.b32.xlu0 %v451, 4
    %v749 = vpop.permute.xlu0 %748
    %750 = vrot.lane.b32.xlu0 %v452, 4
    %v751 = vpop.permute.xlu0 %750
    %752 = vrot.lane.b32.xlu0 %v453, 4
    %v753 = vpop.permute.xlu0 %752
    %754 = vrot.lane.b32.xlu0 %v454, 4
    %v755 = vpop.permute.xlu0 %754
    %756 = vrot.lane.b32.xlu0 %v455, 4
    %v757 = vpop.permute.xlu0 %756
    %758 = vrot.lane.b32.xlu0 %v456, 4
    %v759 = vpop.permute.xlu0 %758
    %760 = vrot.lane.b32.xlu0 %v457, 4
    %v761 = vpop.permute.xlu0 %760
    %762 = vrot.lane.b32.xlu0 %v458, 4
    %v763 = vpop.permute.xlu0 %762
    %764 = vrot.lane.b32.xlu0 %v459, 4
    %v765 = vpop.permute.xlu0 %764
    %766 = vrot.lane.b32.xlu0 %v460, 4
    %v767 = vpop.permute.xlu0 %766
    %768 = vrot.lane.b32.xlu0 %v461, 4
    %v769 = vpop.permute.xlu0 %768
    %770 = vrot.lane.b32.xlu0 %v462, 4
    %v771 = vpop.permute.xlu0 %770
    %772 = vrot.lane.b32.xlu0 %v463, 4
    %v773 = vpop.permute.xlu0 %772
    %774 = vrot.lane.b32.xlu0 %v464, 4
    %v775 = vpop.permute.xlu0 %774
    %776 = vrot.lane.b32.xlu0 %v465, 4
    %v777 = vpop.permute.xlu0 %776
    %778 = vrot.lane.b32.xlu0 %v466, 4
    %v779 = vpop.permute.xlu0 %778
    %780 = vrot.lane.b32.xlu0 %v467, 4
    %v781 = vpop.permute.xlu0 %780
    %782 = vrot.lane.b32.xlu0 %v468, 4
    %v783 = vpop.permute.xlu0 %782
    %784 = vrot.lane.b32.xlu0 %v469, 4
    %v785 = vpop.permute.xlu0 %784
    %786 = vrot.lane.b32.xlu0 %v470, 4
    %v787 = vpop.permute.xlu0 %786
    %788 = vrot.lane.b32.xlu0 %v471, 4
    %v789 = vpop.permute.xlu0 %788
    %790 = vrot.lane.b32.xlu0 %v472, 4
    %v791 = vpop.permute.xlu0 %790
    %792 = vrot.lane.b32.xlu0 %v473, 4
    %v793 = vpop.permute.xlu0 %792
    %794 = vrot.lane.b32.xlu0 %v474, 4
    %v795 = vpop.permute.xlu0 %794
    %796 = vrot.lane.b32.xlu0 %v475, 4
    %v797 = vpop.permute.xlu0 %796
    %798 = vrot.lane.b32.xlu0 %v476, 4
    %v799 = vpop.permute.xlu0 %798
    %800 = vrot.lane.b32.xlu0 %v477, 4
    %v801 = vpop.permute.xlu0 %800
    %802 = vrot.lane.b32.xlu0 %v478, 4
    %v803 = vpop.permute.xlu0 %802
    %804 = vrot.lane.b32.xlu0 %v479, 4
    %v805 = vpop.permute.xlu0 %804
    %806 = vrot.lane.b32.xlu0 %v480, 4
    %v807 = vpop.permute.xlu0 %806
    %808 = vrot.lane.b32.xlu0 %v481, 4
    %v809 = vpop.permute.xlu0 %808
    %810 = vrot.lane.b32.xlu0 %v482, 4
    %v811 = vpop.permute.xlu0 %810
    %812 = vrot.lane.b32.xlu0 %v483, 4
    %v813 = vpop.permute.xlu0 %812
    %814 = vrot.lane.b32.xlu0 %v484, 4
    %v815 = vpop.permute.xlu0 %814
    %816 = vrot.lane.b32.xlu0 %v485, 4
    %v817 = vpop.permute.xlu0 %816
    %818 = vrot.lane.b32.xlu0 %v486, 4
    %v819 = vpop.permute.xlu0 %818
    %820 = vrot.lane.b32.xlu0 %v487, 4
    %v821 = vpop.permute.xlu0 %820
    %822 = vrot.lane.b32.xlu0 %v488, 4
    %v823 = vpop.permute.xlu0 %822
    %824 = vrot.lane.b32.xlu0 %v489, 4
    %v825 = vpop.permute.xlu0 %824
    %826 = vrot.lane.b32.xlu0 %v490, 4
    %v827 = vpop.permute.xlu0 %826
    %828 = vrot.lane.b32.xlu0 %v491, 4
    %v829 = vpop.permute.xlu0 %828
    %830 = vrot.lane.b32.xlu0 %v492, 4
    %v831 = vpop.permute.xlu0 %830
    %832 = vrot.lane.b32.xlu0 %v493, 4
    %v833 = vpop.permute.xlu0 %832
    %834 = vrot.lane.b32.xlu0 %v494, 4
    %v835 = vpop.permute.xlu0 %834
    %836 = vrot.lane.b32.xlu0 %v495, 4
    %v837 = vpop.permute.xlu0 %836
    %838 = vrot.lane.b32.xlu0 %v496, 4
    %v839 = vpop.permute.xlu0 %838
    %840 = vrot.lane.b32.xlu0 %v497, 4
    %v841 = vpop.permute.xlu0 %840
    %842 = vrot.lane.b32.xlu0 %v498, 4
    %v843 = vpop.permute.xlu0 %842
    %844 = vrot.lane.b32.xlu0 %v499, 4
    %v845 = vpop.permute.xlu0 %844
    %846 = vrot.lane.b32.xlu0 %v500, 4
    %v847 = vpop.permute.xlu0 %846
    %848 = vrot.lane.b32.xlu0 %v501, 4
    %v849 = vpop.permute.xlu0 %848
    %850 = vrot.lane.b32.xlu0 %v502, 4
    %v851 = vpop.permute.xlu0 %850
    %852 = vrot.lane.b32.xlu0 %v503, 4
    %v853 = vpop.permute.xlu0 %852
    %854 = vrot.lane.b32.xlu0 %v504, 4
    %v855 = vpop.permute.xlu0 %854
    %856 = vrot.lane.b32.xlu0 %v505, 4
    %v857 = vpop.permute.xlu0 %856
    %858 = vrot.lane.b32.xlu0 %v506, 4
    %v859 = vpop.permute.xlu0 %858
    %860 = vrot.lane.b32.xlu0 %v507, 4
    %v861 = vpop.permute.xlu0 %860
    %862 = vrot.lane.b32.xlu0 %v508, 4
    %v863 = vpop.permute.xlu0 %862
    %864 = vrot.lane.b32.xlu0 %v509, 4
    %v865 = vpop.permute.xlu0 %864
    %866 = vrot.lane.b32.xlu0 %v510, 4
    %v867 = vpop.permute.xlu0 %866
    %868 = vrot.lane.b32.xlu0 %v511, 4
    %v869 = vpop.permute.xlu0 %868
    %870 = vrot.lane.b32.xlu0 %v512, 4
    %v871 = vpop.permute.xlu0 %870
    %872 = vrot.lane.b32.xlu0 %v513, 4
    %v873 = vpop.permute.xlu0 %872
    %vm994 = vcmask 64544
    %995 = vst.msk [vmem:[%s271] sm:$0xff] %vm994, %v635
    %996 = vst.msk [vmem:[%s271 + $0x8] sm:$0xff] %vm994, %v637
    %997 = vst.msk [vmem:[%s271 + $0x10] sm:$0xff] %vm994, %v639
    %998 = vst.msk [vmem:[%s271 + $0x18] sm:$0xff] %vm994, %v641
    %999 = vst.msk [vmem:[%s271 + $0x20] sm:$0xff] %vm994, %v643
    %1000 = vst.msk [vmem:[%s271 + $0x28] sm:$0xff] %vm994, %v645
    %1001 = vst.msk [vmem:[%s271 + $0x30] sm:$0xff] %vm994, %v647
    %1002 = vst.msk [vmem:[%s271 + $0x38] sm:$0xff] %vm994, %v649
    %1003 = vst.msk [vmem:[%s271 + $0x40] sm:$0xff] %vm994, %v651
    %1004 = vst.msk [vmem:[%s271 + $0x48] sm:$0xff] %vm994, %v653
    %1005 = vst.msk [vmem:[%s271 + $0x50] sm:$0xff] %vm994, %v655
    %1006 = vst.msk [vmem:[%s271 + $0x58] sm:$0xff] %vm994, %v657
    %1007 = vst.msk [vmem:[%s271 + $0x60] sm:$0xff] %vm994, %v659
    %1008 = vst.msk [vmem:[%s271 + $0x68] sm:$0xff] %vm994, %v661
    %1009 = vst.msk [vmem:[%s271 + $0x70] sm:$0xff] %vm994, %v663
    %1010 = vst.msk [vmem:[%s271 + $0x78] sm:$0xff] %vm994, %v665
    %1011 = vst.msk [vmem:[%s271 + $0x80] sm:$0xff] %vm994, %v667
    %1012 = vst.msk [vmem:[%s271 + $0x88] sm:$0xff] %vm994, %v669
    %1013 = vst.msk [vmem:[%s271 + $0x90] sm:$0xff] %vm994, %v671
    %1014 = vst.msk [vmem:[%s271 + $0x98] sm:$0xff] %vm994, %v673
    %1015 = vst.msk [vmem:[%s271 + $0xa0] sm:$0xff] %vm994, %v675
    %1016 = vst.msk [vmem:[%s271 + $0xa8] sm:$0xff] %vm994, %v677
    %1017 = vst.msk [vmem:[%s271 + $0xb0] sm:$0xff] %vm994, %v679
    %1018 = vst.msk [vmem:[%s271 + $0xb8] sm:$0xff] %vm994, %v681
    %1019 = vst.msk [vmem:[%s271 + $0xc0] sm:$0xff] %vm994, %v683
    %1020 = vst.msk [vmem:[%s271 + $0xc8] sm:$0xff] %vm994, %v685
    %1021 = vst.msk [vmem:[%s271 + $0xd0] sm:$0xff] %vm994, %v687
    %1022 = vst.msk [vmem:[%s271 + $0xd8] sm:$0xff] %vm994, %v689
    %1023 = vst.msk [vmem:[%s271 + $0xe0] sm:$0xff] %vm994, %v691
    %1024 = vst.msk [vmem:[%s271 + $0xe8] sm:$0xff] %vm994, %v693
    %1025 = vst.msk [vmem:[%s271 + $0x100] sm:$0xff] %vm994, %v695
    %1026 = vst.msk [vmem:[%s271 + $0x108] sm:$0xff] %vm994, %v697
    %1027 = vst.msk [vmem:[%s271 + $0x110] sm:$0xff] %vm994, %v699
    %1028 = vst.msk [vmem:[%s271 + $0x118] sm:$0xff] %vm994, %v701
    %1029 = vst.msk [vmem:[%s271 + $0x120] sm:$0xff] %vm994, %v703
    %1030 = vst.msk [vmem:[%s271 + $0x128] sm:$0xff] %vm994, %v705
    %1031 = vst.msk [vmem:[%s271 + $0x130] sm:$0xff] %vm994, %v707
    %1032 = vst.msk [vmem:[%s271 + $0x138] sm:$0xff] %vm994, %v709
    %1033 = vst.msk [vmem:[%s271 + $0x140] sm:$0xff] %vm994, %v711
    %1034 = vst.msk [vmem:[%s271 + $0x148] sm:$0xff] %vm994, %v713
    %1035 = vst.msk [vmem:[%s271 + $0x150] sm:$0xff] %vm994, %v715
    %1036 = vst.msk [vmem:[%s271 + $0x158] sm:$0xff] %vm994, %v717
    %1037 = vst.msk [vmem:[%s271 + $0x160] sm:$0xff] %vm994, %v719
    %1038 = vst.msk [vmem:[%s271 + $0x168] sm:$0xff] %vm994, %v721
    %1039 = vst.msk [vmem:[%s271 + $0x170] sm:$0xff] %vm994, %v723
    %1040 = vst.msk [vmem:[%s271 + $0x178] sm:$0xff] %vm994, %v725
    %1041 = vst.msk [vmem:[%s271 + $0x180] sm:$0xff] %vm994, %v727
    %1042 = vst.msk [vmem:[%s271 + $0x188] sm:$0xff] %vm994, %v729
    %1043 = vst.msk [vmem:[%s271 + $0x190] sm:$0xff] %vm994, %v731
    %1044 = vst.msk [vmem:[%s271 + $0x198] sm:$0xff] %vm994, %v733
    %1045 = vst.msk [vmem:[%s271 + $0x1a0] sm:$0xff] %vm994, %v735
    %1046 = vst.msk [vmem:[%s271 + $0x1a8] sm:$0xff] %vm994, %v737
    %1047 = vst.msk [vmem:[%s271 + $0x1b0] sm:$0xff] %vm994, %v739
    %1048 = vst.msk [vmem:[%s271 + $0x1b8] sm:$0xff] %vm994, %v741
    %1049 = vst.msk [vmem:[%s271 + $0x1c0] sm:$0xff] %vm994, %v743
    %1050 = vst.msk [vmem:[%s271 + $0x1c8] sm:$0xff] %vm994, %v745
    %1051 = vst.msk [vmem:[%s271 + $0x1d0] sm:$0xff] %vm994, %v747
    %1052 = vst.msk [vmem:[%s271 + $0x1d8] sm:$0xff] %vm994, %v749
    %1053 = vst.msk [vmem:[%s271 + $0x1e0] sm:$0xff] %vm994, %v751
    %1054 = vst.msk [vmem:[%s271 + $0x1e8] sm:$0xff] %vm994, %v753
    %1055 = vst.msk [vmem:[%s271 + $0x200] sm:$0xff] %vm994, %v755
    %1056 = vst.msk [vmem:[%s271 + $0x208] sm:$0xff] %vm994, %v757
    %1057 = vst.msk [vmem:[%s271 + $0x210] sm:$0xff] %vm994, %v759
    %1058 = vst.msk [vmem:[%s271 + $0x218] sm:$0xff] %vm994, %v761
    %1059 = vst.msk [vmem:[%s271 + $0x220] sm:$0xff] %vm994, %v763
    %1060 = vst.msk [vmem:[%s271 + $0x228] sm:$0xff] %vm994, %v765
    %1061 = vst.msk [vmem:[%s271 + $0x230] sm:$0xff] %vm994, %v767
    %1062 = vst.msk [vmem:[%s271 + $0x238] sm:$0xff] %vm994, %v769
    %1063 = vst.msk [vmem:[%s271 + $0x240] sm:$0xff] %vm994, %v771
    %1064 = vst.msk [vmem:[%s271 + $0x248] sm:$0xff] %vm994, %v773
    %1065 = vst.msk [vmem:[%s271 + $0x250] sm:$0xff] %vm994, %v775
    %1066 = vst.msk [vmem:[%s271 + $0x258] sm:$0xff] %vm994, %v777
    %1067 = vst.msk [vmem:[%s271 + $0x260] sm:$0xff] %vm994, %v779
    %1068 = vst.msk [vmem:[%s271 + $0x268] sm:$0xff] %vm994, %v781
    %1069 = vst.msk [vmem:[%s271 + $0x270] sm:$0xff] %vm994, %v783
    %1070 = vst.msk [vmem:[%s271 + $0x278] sm:$0xff] %vm994, %v785
    %1071 = vst.msk [vmem:[%s271 + $0x280] sm:$0xff] %vm994, %v787
    %1072 = vst.msk [vmem:[%s271 + $0x288] sm:$0xff] %vm994, %v789
    %1073 = vst.msk [vmem:[%s271 + $0x290] sm:$0xff] %vm994, %v791
    %1074 = vst.msk [vmem:[%s271 + $0x298] sm:$0xff] %vm994, %v793
    %1075 = vst.msk [vmem:[%s271 + $0x2a0] sm:$0xff] %vm994, %v795
    %1076 = vst.msk [vmem:[%s271 + $0x2a8] sm:$0xff] %vm994, %v797
    %1077 = vst.msk [vmem:[%s271 + $0x2b0] sm:$0xff] %vm994, %v799
    %1078 = vst.msk [vmem:[%s271 + $0x2b8] sm:$0xff] %vm994, %v801
    %1079 = vst.msk [vmem:[%s271 + $0x2c0] sm:$0xff] %vm994, %v803
    %1080 = vst.msk [vmem:[%s271 + $0x2c8] sm:$0xff] %vm994, %v805
    %1081 = vst.msk [vmem:[%s271 + $0x2d0] sm:$0xff] %vm994, %v807
    %1082 = vst.msk [vmem:[%s271 + $0x2d8] sm:$0xff] %vm994, %v809
    %1083 = vst.msk [vmem:[%s271 + $0x2e0] sm:$0xff] %vm994, %v811
    %1084 = vst.msk [vmem:[%s271 + $0x2e8] sm:$0xff] %vm994, %v813
    %1085 = vst.msk [vmem:[%s271 + $0x300] sm:$0xff] %vm994, %v815
    %1086 = vst.msk [vmem:[%s271 + $0x308] sm:$0xff] %vm994, %v817
    %1087 = vst.msk [vmem:[%s271 + $0x310] sm:$0xff] %vm994, %v819
    %1088 = vst.msk [vmem:[%s271 + $0x318] sm:$0xff] %vm994, %v821
    %1089 = vst.msk [vmem:[%s271 + $0x320] sm:$0xff] %vm994, %v823
    %1090 = vst.msk [vmem:[%s271 + $0x328] sm:$0xff] %vm994, %v825
    %1091 = vst.msk [vmem:[%s271 + $0x330] sm:$0xff] %vm994, %v827
    %1092 = vst.msk [vmem:[%s271 + $0x338] sm:$0xff] %vm994, %v829
    %1093 = vst.msk [vmem:[%s271 + $0x340] sm:$0xff] %vm994, %v831
    %1094 = vst.msk [vmem:[%s271 + $0x348] sm:$0xff] %vm994, %v833
    %1095 = vst.msk [vmem:[%s271 + $0x350] sm:$0xff] %vm994, %v835
    %1096 = vst.msk [vmem:[%s271 + $0x358] sm:$0xff] %vm994, %v837
    %1097 = vst.msk [vmem:[%s271 + $0x360] sm:$0xff] %vm994, %v839
    %1098 = vst.msk [vmem:[%s271 + $0x368] sm:$0xff] %vm994, %v841
    %1099 = vst.msk [vmem:[%s271 + $0x370] sm:$0xff] %vm994, %v843
    %1100 = vst.msk [vmem:[%s271 + $0x378] sm:$0xff] %vm994, %v845
    %1101 = vst.msk [vmem:[%s271 + $0x380] sm:$0xff] %vm994, %v847
    %1102 = vst.msk [vmem:[%s271 + $0x388] sm:$0xff] %vm994, %v849
    %1103 = vst.msk [vmem:[%s271 + $0x390] sm:$0xff] %vm994, %v851
    %1104 = vst.msk [vmem:[%s271 + $0x398] sm:$0xff] %vm994, %v853
    %1105 = vst.msk [vmem:[%s271 + $0x3a0] sm:$0xff] %vm994, %v855
    %1106 = vst.msk [vmem:[%s271 + $0x3a8] sm:$0xff] %vm994, %v857
    %1107 = vst.msk [vmem:[%s271 + $0x3b0] sm:$0xff] %vm994, %v859
    %1108 = vst.msk [vmem:[%s271 + $0x3b8] sm:$0xff] %vm994, %v861
    %1109 = vst.msk [vmem:[%s271 + $0x3c0] sm:$0xff] %vm994, %v863
    %1110 = vst.msk [vmem:[%s271 + $0x3c8] sm:$0xff] %vm994, %v865
    %1111 = vst.msk [vmem:[%s271 + $0x3d0] sm:$0xff] %vm994, %v867
    %1112 = vst.msk [vmem:[%s271 + $0x3d8] sm:$0xff] %vm994, %v869
    %1113 = vst.msk [vmem:[%s271 + $0x3e0] sm:$0xff] %vm994, %v871
    %1114 = vst.msk [vmem:[%s271 + $0x3e8] sm:$0xff] %vm994, %v873
    %v1115 = vld [vmem:[%s0 + $0x1] sm:$0xff]
    %v1116 = vld [vmem:[%s0 + $0x9] sm:$0x7f]
    %v1117 = vld [vmem:[%s0 + $0x11] sm:$0xff]
    %v1118 = vld [vmem:[%s0 + $0x19] sm:$0x7f]
    %v1119 = vld [vmem:[%s0 + $0x21] sm:$0xff]
    %v1120 = vld [vmem:[%s0 + $0x29] sm:$0x7f]
    %v1121 = vld [vmem:[%s0 + $0x31] sm:$0xff]
    %v1122 = vld [vmem:[%s0 + $0x39] sm:$0x7f]
    %v1123 = vld [vmem:[%s0 + $0x41] sm:$0xff]
    %v1124 = vld [vmem:[%s0 + $0x49] sm:$0x7f]
    %v1125 = vld [vmem:[%s0 + $0x51] sm:$0xff]
    %v1126 = vld [vmem:[%s0 + $0x59] sm:$0x7f]
    %v1127 = vld [vmem:[%s0 + $0x61] sm:$0xff]
    %v1128 = vld [vmem:[%s0 + $0x69] sm:$0x7f]
    %v1129 = vld [vmem:[%s0 + $0x71] sm:$0xff]
    %v1130 = vld [vmem:[%s0 + $0x79] sm:$0x7f]
    %v1131 = vld [vmem:[%s0 + $0x81] sm:$0xff]
    %v1132 = vld [vmem:[%s0 + $0x89] sm:$0x7f]
    %v1133 = vld [vmem:[%s0 + $0x91] sm:$0xff]
    %v1134 = vld [vmem:[%s0 + $0x99] sm:$0x7f]
    %v1135 = vld [vmem:[%s0 + $0xa1] sm:$0xff]
    %v1136 = vld [vmem:[%s0 + $0xa9] sm:$0x7f]
    %v1137 = vld [vmem:[%s0 + $0xb1] sm:$0xff]
    %v1138 = vld [vmem:[%s0 + $0xb9] sm:$0x7f]
    %v1139 = vld [vmem:[%s0 + $0xc1] sm:$0xff]
    %v1140 = vld [vmem:[%s0 + $0xc9] sm:$0x7f]
    %v1141 = vld [vmem:[%s0 + $0xd1] sm:$0xff]
    %v1142 = vld [vmem:[%s0 + $0xd9] sm:$0x7f]
    %v1143 = vld [vmem:[%s0 + $0xe1] sm:$0xff]
    %v1144 = vld [vmem:[%s0 + $0xe9] sm:$0x7f]
    %v1145 = vld [vmem:[%s0 + $0x101] sm:$0xff]
    %v1146 = vld [vmem:[%s0 + $0x109] sm:$0x7f]
    %v1147 = vld [vmem:[%s0 + $0x111] sm:$0xff]
    %v1148 = vld [vmem:[%s0 + $0x119] sm:$0x7f]
    %v1149 = vld [vmem:[%s0 + $0x121] sm:$0xff]
    %v1150 = vld [vmem:[%s0 + $0x129] sm:$0x7f]
    %v1151 = vld [vmem:[%s0 + $0x131] sm:$0xff]
    %v1152 = vld [vmem:[%s0 + $0x139] sm:$0x7f]
    %v1153 = vld [vmem:[%s0 + $0x141] sm:$0xff]
    %v1154 = vld [vmem:[%s0 + $0x149] sm:$0x7f]
    %v1155 = vld [vmem:[%s0 + $0x151] sm:$0xff]
    %v1156 = vld [vmem:[%s0 + $0x159] sm:$0x7f]
    %v1157 = vld [vmem:[%s0 + $0x161] sm:$0xff]
    %v1158 = vld [vmem:[%s0 + $0x169] sm:$0x7f]
    %v1159 = vld [vmem:[%s0 + $0x171] sm:$0xff]
    %v1160 = vld [vmem:[%s0 + $0x179] sm:$0x7f]
    %v1161 = vld [vmem:[%s0 + $0x181] sm:$0xff]
    %v1162 = vld [vmem:[%s0 + $0x189] sm:$0x7f]
    %v1163 = vld [vmem:[%s0 + $0x191] sm:$0xff]
    %v1164 = vld [vmem:[%s0 + $0x199] sm:$0x7f]
    %v1165 = vld [vmem:[%s0 + $0x1a1] sm:$0xff]
    %v1166 = vld [vmem:[%s0 + $0x1a9] sm:$0x7f]
    %v1167 = vld [vmem:[%s0 + $0x1b1] sm:$0xff]
    %v1168 = vld [vmem:[%s0 + $0x1b9] sm:$0x7f]
    %v1169 = vld [vmem:[%s0 + $0x1c1] sm:$0xff]
    %v1170 = vld [vmem:[%s0 + $0x1c9] sm:$0x7f]
    %v1171 = vld [vmem:[%s0 + $0x1d1] sm:$0xff]
    %v1172 = vld [vmem:[%s0 + $0x1d9] sm:$0x7f]
    %v1173 = vld [vmem:[%s0 + $0x1e1] sm:$0xff]
    %v1174 = vld [vmem:[%s0 + $0x1e9] sm:$0x7f]
    %v1175 = vld [vmem:[%s0 + $0x201] sm:$0xff]
    %v1176 = vld [vmem:[%s0 + $0x209] sm:$0x7f]
    %v1177 = vld [vmem:[%s0 + $0x211] sm:$0xff]
    %v1178 = vld [vmem:[%s0 + $0x219] sm:$0x7f]
    %v1179 = vld [vmem:[%s0 + $0x221] sm:$0xff]
    %v1180 = vld [vmem:[%s0 + $0x229] sm:$0x7f]
    %v1181 = vld [vmem:[%s0 + $0x231] sm:$0xff]
    %v1182 = vld [vmem:[%s0 + $0x239] sm:$0x7f]
    %v1183 = vld [vmem:[%s0 + $0x241] sm:$0xff]
    %v1184 = vld [vmem:[%s0 + $0x249] sm:$0x7f]
    %v1185 = vld [vmem:[%s0 + $0x251] sm:$0xff]
    %v1186 = vld [vmem:[%s0 + $0x259] sm:$0x7f]
    %v1187 = vld [vmem:[%s0 + $0x261] sm:$0xff]
    %v1188 = vld [vmem:[%s0 + $0x269] sm:$0x7f]
    %v1189 = vld [vmem:[%s0 + $0x271] sm:$0xff]
    %v1190 = vld [vmem:[%s0 + $0x279] sm:$0x7f]
    %v1191 = vld [vmem:[%s0 + $0x281] sm:$0xff]
    %v1192 = vld [vmem:[%s0 + $0x289] sm:$0x7f]
    %v1193 = vld [vmem:[%s0 + $0x291] sm:$0xff]
    %v1194 = vld [vmem:[%s0 + $0x299] sm:$0x7f]
    %v1195 = vld [vmem:[%s0 + $0x2a1] sm:$0xff]
    %v1196 = vld [vmem:[%s0 + $0x2a9] sm:$0x7f]
    %v1197 = vld [vmem:[%s0 + $0x2b1] sm:$0xff]
    %v1198 = vld [vmem:[%s0 + $0x2b9] sm:$0x7f]
    %v1199 = vld [vmem:[%s0 + $0x2c1] sm:$0xff]
    %v1200 = vld [vmem:[%s0 + $0x2c9] sm:$0x7f]
    %v1201 = vld [vmem:[%s0 + $0x2d1] sm:$0xff]
    %v1202 = vld [vmem:[%s0 + $0x2d9] sm:$0x7f]
    %v1203 = vld [vmem:[%s0 + $0x2e1] sm:$0xff]
    %v1204 = vld [vmem:[%s0 + $0x2e9] sm:$0x7f]
    %v1205 = vld [vmem:[%s0 + $0x301] sm:$0xff]
    %v1206 = vld [vmem:[%s0 + $0x309] sm:$0x7f]
    %v1207 = vld [vmem:[%s0 + $0x311] sm:$0xff]
    %v1208 = vld [vmem:[%s0 + $0x319] sm:$0x7f]
    %v1209 = vld [vmem:[%s0 + $0x321] sm:$0xff]
    %v1210 = vld [vmem:[%s0 + $0x329] sm:$0x7f]
    %v1211 = vld [vmem:[%s0 + $0x331] sm:$0xff]
    %v1212 = vld [vmem:[%s0 + $0x339] sm:$0x7f]
    %v1213 = vld [vmem:[%s0 + $0x341] sm:$0xff]
    %v1214 = vld [vmem:[%s0 + $0x349] sm:$0x7f]
    %v1215 = vld [vmem:[%s0 + $0x351] sm:$0xff]
    %v1216 = vld [vmem:[%s0 + $0x359] sm:$0x7f]
    %v1217 = vld [vmem:[%s0 + $0x361] sm:$0xff]
    %v1218 = vld [vmem:[%s0 + $0x369] sm:$0x7f]
    %v1219 = vld [vmem:[%s0 + $0x371] sm:$0xff]
    %v1220 = vld [vmem:[%s0 + $0x379] sm:$0x7f]
    %v1221 = vld [vmem:[%s0 + $0x381] sm:$0xff]
    %v1222 = vld [vmem:[%s0 + $0x389] sm:$0x7f]
    %v1223 = vld [vmem:[%s0 + $0x391] sm:$0xff]
    %v1224 = vld [vmem:[%s0 + $0x399] sm:$0x7f]
    %v1225 = vld [vmem:[%s0 + $0x3a1] sm:$0xff]
    %v1226 = vld [vmem:[%s0 + $0x3a9] sm:$0x7f]
    %v1227 = vld [vmem:[%s0 + $0x3b1] sm:$0xff]
    %v1228 = vld [vmem:[%s0 + $0x3b9] sm:$0x7f]
    %v1229 = vld [vmem:[%s0 + $0x3c1] sm:$0xff]
    %v1230 = vld [vmem:[%s0 + $0x3c9] sm:$0x7f]
    %v1231 = vld [vmem:[%s0 + $0x3d1] sm:$0xff]
    %v1232 = vld [vmem:[%s0 + $0x3d9] sm:$0x7f]
    %v1233 = vld [vmem:[%s0 + $0x3e1] sm:$0xff]
    %v1234 = vld [vmem:[%s0 + $0x3e9] sm:$0x7f]
    %1355 = vrot.lane.b32.xlu0 %v1115, 8
    %v1356 = vpop.permute.xlu0 %1355
    %1357 = vrot.lane.b32.xlu0 %v1116, 8
    %v1358 = vpop.permute.xlu0 %1357
    %1359 = vrot.lane.b32.xlu0 %v1117, 8
    %v1360 = vpop.permute.xlu0 %1359
    %1361 = vrot.lane.b32.xlu0 %v1118, 8
    %v1362 = vpop.permute.xlu0 %1361
    %1363 = vrot.lane.b32.xlu0 %v1119, 8
    %v1364 = vpop.permute.xlu0 %1363
    %1365 = vrot.lane.b32.xlu0 %v1120, 8
    %v1366 = vpop.permute.xlu0 %1365
    %1367 = vrot.lane.b32.xlu0 %v1121, 8
    %v1368 = vpop.permute.xlu0 %1367
    %1369 = vrot.lane.b32.xlu0 %v1122, 8
    %v1370 = vpop.permute.xlu0 %1369
    %1371 = vrot.lane.b32.xlu0 %v1123, 8
    %v1372 = vpop.permute.xlu0 %1371
    %1373 = vrot.lane.b32.xlu0 %v1124, 8
    %v1374 = vpop.permute.xlu0 %1373
    %1375 = vrot.lane.b32.xlu0 %v1125, 8
    %v1376 = vpop.permute.xlu0 %1375
    %1377 = vrot.lane.b32.xlu0 %v1126, 8
    %v1378 = vpop.permute.xlu0 %1377
    %1379 = vrot.lane.b32.xlu0 %v1127, 8
    %v1380 = vpop.permute.xlu0 %1379
    %1381 = vrot.lane.b32.xlu0 %v1128, 8
    %v1382 = vpop.permute.xlu0 %1381
    %1383 = vrot.lane.b32.xlu0 %v1129, 8
    %v1384 = vpop.permute.xlu0 %1383
    %1385 = vrot.lane.b32.xlu0 %v1130, 8
    %v1386 = vpop.permute.xlu0 %1385
    %1387 = vrot.lane.b32.xlu0 %v1131, 8
    %v1388 = vpop.permute.xlu0 %1387
    %1389 = vrot.lane.b32.xlu0 %v1132, 8
    %v1390 = vpop.permute.xlu0 %1389
    %1391 = vrot.lane.b32.xlu0 %v1133, 8
    %v1392 = vpop.permute.xlu0 %1391
    %1393 = vrot.lane.b32.xlu0 %v1134, 8
    %v1394 = vpop.permute.xlu0 %1393
    %1395 = vrot.lane.b32.xlu0 %v1135, 8
    %v1396 = vpop.permute.xlu0 %1395
    %1397 = vrot.lane.b32.xlu0 %v1136, 8
    %v1398 = vpop.permute.xlu0 %1397
    %1399 = vrot.lane.b32.xlu0 %v1137, 8
    %v1400 = vpop.permute.xlu0 %1399
    %1401 = vrot.lane.b32.xlu0 %v1138, 8
    %v1402 = vpop.permute.xlu0 %1401
    %1403 = vrot.lane.b32.xlu0 %v1139, 8
    %v1404 = vpop.permute.xlu0 %1403
    %1405 = vrot.lane.b32.xlu0 %v1140, 8
    %v1406 = vpop.permute.xlu0 %1405
    %1407 = vrot.lane.b32.xlu0 %v1141, 8
    %v1408 = vpop.permute.xlu0 %1407
    %1409 = vrot.lane.b32.xlu0 %v1142, 8
    %v1410 = vpop.permute.xlu0 %1409
    %1411 = vrot.lane.b32.xlu0 %v1143, 8
    %v1412 = vpop.permute.xlu0 %1411
    %1413 = vrot.lane.b32.xlu0 %v1144, 8
    %v1414 = vpop.permute.xlu0 %1413
    %1415 = vrot.lane.b32.xlu0 %v1145, 8
    %v1416 = vpop.permute.xlu0 %1415
    %1417 = vrot.lane.b32.xlu0 %v1146, 8
    %v1418 = vpop.permute.xlu0 %1417
    %1419 = vrot.lane.b32.xlu0 %v1147, 8
    %v1420 = vpop.permute.xlu0 %1419
    %1421 = vrot.lane.b32.xlu0 %v1148, 8
    %v1422 = vpop.permute.xlu0 %1421
    %1423 = vrot.lane.b32.xlu0 %v1149, 8
    %v1424 = vpop.permute.xlu0 %1423
    %1425 = vrot.lane.b32.xlu0 %v1150, 8
    %v1426 = vpop.permute.xlu0 %1425
    %1427 = vrot.lane.b32.xlu0 %v1151, 8
    %v1428 = vpop.permute.xlu0 %1427
    %1429 = vrot.lane.b32.xlu0 %v1152, 8
    %v1430 = vpop.permute.xlu0 %1429
    %1431 = vrot.lane.b32.xlu0 %v1153, 8
    %v1432 = vpop.permute.xlu0 %1431
    %1433 = vrot.lane.b32.xlu0 %v1154, 8
    %v1434 = vpop.permute.xlu0 %1433
    %1435 = vrot.lane.b32.xlu0 %v1155, 8
    %v1436 = vpop.permute.xlu0 %1435
    %1437 = vrot.lane.b32.xlu0 %v1156, 8
    %v1438 = vpop.permute.xlu0 %1437
    %1439 = vrot.lane.b32.xlu0 %v1157, 8
    %v1440 = vpop.permute.xlu0 %1439
    %1441 = vrot.lane.b32.xlu0 %v1158, 8
    %v1442 = vpop.permute.xlu0 %1441
    %1443 = vrot.lane.b32.xlu0 %v1159, 8
    %v1444 = vpop.permute.xlu0 %1443
    %1445 = vrot.lane.b32.xlu0 %v1160, 8
    %v1446 = vpop.permute.xlu0 %1445
    %1447 = vrot.lane.b32.xlu0 %v1161, 8
    %v1448 = vpop.permute.xlu0 %1447
    %1449 = vrot.lane.b32.xlu0 %v1162, 8
    %v1450 = vpop.permute.xlu0 %1449
    %1451 = vrot.lane.b32.xlu0 %v1163, 8
    %v1452 = vpop.permute.xlu0 %1451
    %1453 = vrot.lane.b32.xlu0 %v1164, 8
    %v1454 = vpop.permute.xlu0 %1453
    %1455 = vrot.lane.b32.xlu0 %v1165, 8
    %v1456 = vpop.permute.xlu0 %1455
    %1457 = vrot.lane.b32.xlu0 %v1166, 8
    %v1458 = vpop.permute.xlu0 %1457
    %1459 = vrot.lane.b32.xlu0 %v1167, 8
    %v1460 = vpop.permute.xlu0 %1459
    %1461 = vrot.lane.b32.xlu0 %v1168, 8
    %v1462 = vpop.permute.xlu0 %1461
    %1463 = vrot.lane.b32.xlu0 %v1169, 8
    %v1464 = vpop.permute.xlu0 %1463
    %1465 = vrot.lane.b32.xlu0 %v1170, 8
    %v1466 = vpop.permute.xlu0 %1465
    %1467 = vrot.lane.b32.xlu0 %v1171, 8
    %v1468 = vpop.permute.xlu0 %1467
    %1469 = vrot.lane.b32.xlu0 %v1172, 8
    %v1470 = vpop.permute.xlu0 %1469
    %1471 = vrot.lane.b32.xlu0 %v1173, 8
    %v1472 = vpop.permute.xlu0 %1471
    %1473 = vrot.lane.b32.xlu0 %v1174, 8
    %v1474 = vpop.permute.xlu0 %1473
    %1475 = vrot.lane.b32.xlu0 %v1175, 8
    %v1476 = vpop.permute.xlu0 %1475
    %1477 = vrot.lane.b32.xlu0 %v1176, 8
    %v1478 = vpop.permute.xlu0 %1477
    %1479 = vrot.lane.b32.xlu0 %v1177, 8
    %v1480 = vpop.permute.xlu0 %1479
    %1481 = vrot.lane.b32.xlu0 %v1178, 8
    %v1482 = vpop.permute.xlu0 %1481
    %1483 = vrot.lane.b32.xlu0 %v1179, 8
    %v1484 = vpop.permute.xlu0 %1483
    %1485 = vrot.lane.b32.xlu0 %v1180, 8
    %v1486 = vpop.permute.xlu0 %1485
    %1487 = vrot.lane.b32.xlu0 %v1181, 8
    %v1488 = vpop.permute.xlu0 %1487
    %1489 = vrot.lane.b32.xlu0 %v1182, 8
    %v1490 = vpop.permute.xlu0 %1489
    %1491 = vrot.lane.b32.xlu0 %v1183, 8
    %v1492 = vpop.permute.xlu0 %1491
    %1493 = vrot.lane.b32.xlu0 %v1184, 8
    %v1494 = vpop.permute.xlu0 %1493
    %1495 = vrot.lane.b32.xlu0 %v1185, 8
    %v1496 = vpop.permute.xlu0 %1495
    %1497 = vrot.lane.b32.xlu0 %v1186, 8
    %v1498 = vpop.permute.xlu0 %1497
    %1499 = vrot.lane.b32.xlu0 %v1187, 8
    %v1500 = vpop.permute.xlu0 %1499
    %1501 = vrot.lane.b32.xlu0 %v1188, 8
    %v1502 = vpop.permute.xlu0 %1501
    %1503 = vrot.lane.b32.xlu0 %v1189, 8
    %v1504 = vpop.permute.xlu0 %1503
    %1505 = vrot.lane.b32.xlu0 %v1190, 8
    %v1506 = vpop.permute.xlu0 %1505
    %1507 = vrot.lane.b32.xlu0 %v1191, 8
    %v1508 = vpop.permute.xlu0 %1507
    %1509 = vrot.lane.b32.xlu0 %v1192, 8
    %v1510 = vpop.permute.xlu0 %1509
    %1511 = vrot.lane.b32.xlu0 %v1193, 8
    %v1512 = vpop.permute.xlu0 %1511
    %1513 = vrot.lane.b32.xlu0 %v1194, 8
    %v1514 = vpop.permute.xlu0 %1513
    %1515 = vrot.lane.b32.xlu0 %v1195, 8
    %v1516 = vpop.permute.xlu0 %1515
    %1517 = vrot.lane.b32.xlu0 %v1196, 8
    %v1518 = vpop.permute.xlu0 %1517
    %1519 = vrot.lane.b32.xlu0 %v1197, 8
    %v1520 = vpop.permute.xlu0 %1519
    %1521 = vrot.lane.b32.xlu0 %v1198, 8
    %v1522 = vpop.permute.xlu0 %1521
    %1523 = vrot.lane.b32.xlu0 %v1199, 8
    %v1524 = vpop.permute.xlu0 %1523
    %1525 = vrot.lane.b32.xlu0 %v1200, 8
    %v1526 = vpop.permute.xlu0 %1525
    %1527 = vrot.lane.b32.xlu0 %v1201, 8
    %v1528 = vpop.permute.xlu0 %1527
    %1529 = vrot.lane.b32.xlu0 %v1202, 8
    %v1530 = vpop.permute.xlu0 %1529
    %1531 = vrot.lane.b32.xlu0 %v1203, 8
    %v1532 = vpop.permute.xlu0 %1531
    %1533 = vrot.lane.b32.xlu0 %v1204, 8
    %v1534 = vpop.permute.xlu0 %1533
    %1535 = vrot.lane.b32.xlu0 %v1205, 8
    %v1536 = vpop.permute.xlu0 %1535
    %1537 = vrot.lane.b32.xlu0 %v1206, 8
    %v1538 = vpop.permute.xlu0 %1537
    %1539 = vrot.lane.b32.xlu0 %v1207, 8
    %v1540 = vpop.permute.xlu0 %1539
    %1541 = vrot.lane.b32.xlu0 %v1208, 8
    %v1542 = vpop.permute.xlu0 %1541
    %1543 = vrot.lane.b32.xlu0 %v1209, 8
    %v1544 = vpop.permute.xlu0 %1543
    %1545 = vrot.lane.b32.xlu0 %v1210, 8
    %v1546 = vpop.permute.xlu0 %1545
    %1547 = vrot.lane.b32.xlu0 %v1211, 8
    %v1548 = vpop.permute.xlu0 %1547
    %1549 = vrot.lane.b32.xlu0 %v1212, 8
    %v1550 = vpop.permute.xlu0 %1549
    %1551 = vrot.lane.b32.xlu0 %v1213, 8
    %v1552 = vpop.permute.xlu0 %1551
    %1553 = vrot.lane.b32.xlu0 %v1214, 8
    %v1554 = vpop.permute.xlu0 %1553
    %1555 = vrot.lane.b32.xlu0 %v1215, 8
    %v1556 = vpop.permute.xlu0 %1555
    %1557 = vrot.lane.b32.xlu0 %v1216, 8
    %v1558 = vpop.permute.xlu0 %1557
    %1559 = vrot.lane.b32.xlu0 %v1217, 8
    %v1560 = vpop.permute.xlu0 %1559
    %1561 = vrot.lane.b32.xlu0 %v1218, 8
    %v1562 = vpop.permute.xlu0 %1561
    %1563 = vrot.lane.b32.xlu0 %v1219, 8
    %v1564 = vpop.permute.xlu0 %1563
    %1565 = vrot.lane.b32.xlu0 %v1220, 8
    %v1566 = vpop.permute.xlu0 %1565
    %1567 = vrot.lane.b32.xlu0 %v1221, 8
    %v1568 = vpop.permute.xlu0 %1567
    %1569 = vrot.lane.b32.xlu0 %v1222, 8
    %v1570 = vpop.permute.xlu0 %1569
    %1571 = vrot.lane.b32.xlu0 %v1223, 8
    %v1572 = vpop.permute.xlu0 %1571
    %1573 = vrot.lane.b32.xlu0 %v1224, 8
    %v1574 = vpop.permute.xlu0 %1573
    %1575 = vrot.lane.b32.xlu0 %v1225, 8
    %v1576 = vpop.permute.xlu0 %1575
    %1577 = vrot.lane.b32.xlu0 %v1226, 8
    %v1578 = vpop.permute.xlu0 %1577
    %1579 = vrot.lane.b32.xlu0 %v1227, 8
    %v1580 = vpop.permute.xlu0 %1579
    %1581 = vrot.lane.b32.xlu0 %v1228, 8
    %v1582 = vpop.permute.xlu0 %1581
    %1583 = vrot.lane.b32.xlu0 %v1229, 8
    %v1584 = vpop.permute.xlu0 %1583
    %1585 = vrot.lane.b32.xlu0 %v1230, 8
    %v1586 = vpop.permute.xlu0 %1585
    %1587 = vrot.lane.b32.xlu0 %v1231, 8
    %v1588 = vpop.permute.xlu0 %1587
    %1589 = vrot.lane.b32.xlu0 %v1232, 8
    %v1590 = vpop.permute.xlu0 %1589
    %1591 = vrot.lane.b32.xlu0 %v1233, 8
    %v1592 = vpop.permute.xlu0 %1591
    %1593 = vrot.lane.b32.xlu0 %v1234, 8
    %v1594 = vpop.permute.xlu0 %1593
    %vm1715 = vcmask 97344
    %1716 = vst.msk [vmem:[%s271] sm:$0xff] %vm1715, %v1356
    %vm1717 = vcmask 96320
    %1718 = vst.msk [vmem:[%s271 + $0x8] sm:$0x7f] %vm1717, %v1358
    %1719 = vst.msk [vmem:[%s271 + $0x10] sm:$0xff] %vm1715, %v1360
    %1720 = vst.msk [vmem:[%s271 + $0x18] sm:$0x7f] %vm1717, %v1362
    %1721 = vst.msk [vmem:[%s271 + $0x20] sm:$0xff] %vm1715, %v1364
    %1722 = vst.msk [vmem:[%s271 + $0x28] sm:$0x7f] %vm1717, %v1366
    %1723 = vst.msk [vmem:[%s271 + $0x30] sm:$0xff] %vm1715, %v1368
    %1724 = vst.msk [vmem:[%s271 + $0x38] sm:$0x7f] %vm1717, %v1370
    %1725 = vst.msk [vmem:[%s271 + $0x40] sm:$0xff] %vm1715, %v1372
    %1726 = vst.msk [vmem:[%s271 + $0x48] sm:$0x7f] %vm1717, %v1374
    %1727 = vst.msk [vmem:[%s271 + $0x50] sm:$0xff] %vm1715, %v1376
    %1728 = vst.msk [vmem:[%s271 + $0x58] sm:$0x7f] %vm1717, %v1378
    %1729 = vst.msk [vmem:[%s271 + $0x60] sm:$0xff] %vm1715, %v1380
    %1730 = vst.msk [vmem:[%s271 + $0x68] sm:$0x7f] %vm1717, %v1382
    %1731 = vst.msk [vmem:[%s271 + $0x70] sm:$0xff] %vm1715, %v1384
    %1732 = vst.msk [vmem:[%s271 + $0x78] sm:$0x7f] %vm1717, %v1386
    %1733 = vst.msk [vmem:[%s271 + $0x80] sm:$0xff] %vm1715, %v1388
    %1734 = vst.msk [vmem:[%s271 + $0x88] sm:$0x7f] %vm1717, %v1390
    %1735 = vst.msk [vmem:[%s271 + $0x90] sm:$0xff] %vm1715, %v1392
    %1736 = vst.msk [vmem:[%s271 + $0x98] sm:$0x7f] %vm1717, %v1394
    %1737 = vst.msk [vmem:[%s271 + $0xa0] sm:$0xff] %vm1715, %v1396
    %1738 = vst.msk [vmem:[%s271 + $0xa8] sm:$0x7f] %vm1717, %v1398
    %1739 = vst.msk [vmem:[%s271 + $0xb0] sm:$0xff] %vm1715, %v1400
    %1740 = vst.msk [vmem:[%s271 + $0xb8] sm:$0x7f] %vm1717, %v1402
    %1741 = vst.msk [vmem:[%s271 + $0xc0] sm:$0xff] %vm1715, %v1404
    %1742 = vst.msk [vmem:[%s271 + $0xc8] sm:$0x7f] %vm1717, %v1406
    %1743 = vst.msk [vmem:[%s271 + $0xd0] sm:$0xff] %vm1715, %v1408
    %1744 = vst.msk [vmem:[%s271 + $0xd8] sm:$0x7f] %vm1717, %v1410
    %1745 = vst.msk [vmem:[%s271 + $0xe0] sm:$0xff] %vm1715, %v1412
    %1746 = vst.msk [vmem:[%s271 + $0xe8] sm:$0x7f] %vm1717, %v1414
    %1747 = vst.msk [vmem:[%s271 + $0x100] sm:$0xff] %vm1715, %v1416
    %1748 = vst.msk [vmem:[%s271 + $0x108] sm:$0x7f] %vm1717, %v1418
    %1749 = vst.msk [vmem:[%s271 + $0x110] sm:$0xff] %vm1715, %v1420
    %1750 = vst.msk [vmem:[%s271 + $0x118] sm:$0x7f] %vm1717, %v1422
    %1751 = vst.msk [vmem:[%s271 + $0x120] sm:$0xff] %vm1715, %v1424
    %1752 = vst.msk [vmem:[%s271 + $0x128] sm:$0x7f] %vm1717, %v1426
    %1753 = vst.msk [vmem:[%s271 + $0x130] sm:$0xff] %vm1715, %v1428
    %1754 = vst.msk [vmem:[%s271 + $0x138] sm:$0x7f] %vm1717, %v1430
    %1755 = vst.msk [vmem:[%s271 + $0x140] sm:$0xff] %vm1715, %v1432
    %1756 = vst.msk [vmem:[%s271 + $0x148] sm:$0x7f] %vm1717, %v1434
    %1757 = vst.msk [vmem:[%s271 + $0x150] sm:$0xff] %vm1715, %v1436
    %1758 = vst.msk [vmem:[%s271 + $0x158] sm:$0x7f] %vm1717, %v1438
    %1759 = vst.msk [vmem:[%s271 + $0x160] sm:$0xff] %vm1715, %v1440
    %1760 = vst.msk [vmem:[%s271 + $0x168] sm:$0x7f] %vm1717, %v1442
    %1761 = vst.msk [vmem:[%s271 + $0x170] sm:$0xff] %vm1715, %v1444
    %1762 = vst.msk [vmem:[%s271 + $0x178] sm:$0x7f] %vm1717, %v1446
    %1763 = vst.msk [vmem:[%s271 + $0x180] sm:$0xff] %vm1715, %v1448
    %1764 = vst.msk [vmem:[%s271 + $0x188] sm:$0x7f] %vm1717, %v1450
    %1765 = vst.msk [vmem:[%s271 + $0x190] sm:$0xff] %vm1715, %v1452
    %1766 = vst.msk [vmem:[%s271 + $0x198] sm:$0x7f] %vm1717, %v1454
    %1767 = vst.msk [vmem:[%s271 + $0x1a0] sm:$0xff] %vm1715, %v1456
    %1768 = vst.msk [vmem:[%s271 + $0x1a8] sm:$0x7f] %vm1717, %v1458
    %1769 = vst.msk [vmem:[%s271 + $0x1b0] sm:$0xff] %vm1715, %v1460
    %1770 = vst.msk [vmem:[%s271 + $0x1b8] sm:$0x7f] %vm1717, %v1462
    %1771 = vst.msk [vmem:[%s271 + $0x1c0] sm:$0xff] %vm1715, %v1464
    %1772 = vst.msk [vmem:[%s271 + $0x1c8] sm:$0x7f] %vm1717, %v1466
    %1773 = vst.msk [vmem:[%s271 + $0x1d0] sm:$0xff] %vm1715, %v1468
    %1774 = vst.msk [vmem:[%s271 + $0x1d8] sm:$0x7f] %vm1717, %v1470
    %1775 = vst.msk [vmem:[%s271 + $0x1e0] sm:$0xff] %vm1715, %v1472
    %1776 = vst.msk [vmem:[%s271 + $0x1e8] sm:$0x7f] %vm1717, %v1474
    %1777 = vst.msk [vmem:[%s271 + $0x200] sm:$0xff] %vm1715, %v1476
    %1778 = vst.msk [vmem:[%s271 + $0x208] sm:$0x7f] %vm1717, %v1478
    %1779 = vst.msk [vmem:[%s271 + $0x210] sm:$0xff] %vm1715, %v1480
    %1780 = vst.msk [vmem:[%s271 + $0x218] sm:$0x7f] %vm1717, %v1482
    %1781 = vst.msk [vmem:[%s271 + $0x220] sm:$0xff] %vm1715, %v1484
    %1782 = vst.msk [vmem:[%s271 + $0x228] sm:$0x7f] %vm1717, %v1486
    %1783 = vst.msk [vmem:[%s271 + $0x230] sm:$0xff] %vm1715, %v1488
    %1784 = vst.msk [vmem:[%s271 + $0x238] sm:$0x7f] %vm1717, %v1490
    %1785 = vst.msk [vmem:[%s271 + $0x240] sm:$0xff] %vm1715, %v1492
    %1786 = vst.msk [vmem:[%s271 + $0x248] sm:$0x7f] %vm1717, %v1494
    %1787 = vst.msk [vmem:[%s271 + $0x250] sm:$0xff] %vm1715, %v1496
    %1788 = vst.msk [vmem:[%s271 + $0x258] sm:$0x7f] %vm1717, %v1498
    %1789 = vst.msk [vmem:[%s271 + $0x260] sm:$0xff] %vm1715, %v1500
    %1790 = vst.msk [vmem:[%s271 + $0x268] sm:$0x7f] %vm1717, %v1502
    %1791 = vst.msk [vmem:[%s271 + $0x270] sm:$0xff] %vm1715, %v1504
    %1792 = vst.msk [vmem:[%s271 + $0x278] sm:$0x7f] %vm1717, %v1506
    %1793 = vst.msk [vmem:[%s271 + $0x280] sm:$0xff] %vm1715, %v1508
    %1794 = vst.msk [vmem:[%s271 + $0x288] sm:$0x7f] %vm1717, %v1510
    %1795 = vst.msk [vmem:[%s271 + $0x290] sm:$0xff] %vm1715, %v1512
    %1796 = vst.msk [vmem:[%s271 + $0x298] sm:$0x7f] %vm1717, %v1514
    %1797 = vst.msk [vmem:[%s271 + $0x2a0] sm:$0xff] %vm1715, %v1516
    %1798 = vst.msk [vmem:[%s271 + $0x2a8] sm:$0x7f] %vm1717, %v1518
    %1799 = vst.msk [vmem:[%s271 + $0x2b0] sm:$0xff] %vm1715, %v1520
    %1800 = vst.msk [vmem:[%s271 + $0x2b8] sm:$0x7f] %vm1717, %v1522
    %1801 = vst.msk [vmem:[%s271 + $0x2c0] sm:$0xff] %vm1715, %v1524
    %1802 = vst.msk [vmem:[%s271 + $0x2c8] sm:$0x7f] %vm1717, %v1526
    %1803 = vst.msk [vmem:[%s271 + $0x2d0] sm:$0xff] %vm1715, %v1528
    %1804 = vst.msk [vmem:[%s271 + $0x2d8] sm:$0x7f] %vm1717, %v1530
    %1805 = vst.msk [vmem:[%s271 + $0x2e0] sm:$0xff] %vm1715, %v1532
    %1806 = vst.msk [vmem:[%s271 + $0x2e8] sm:$0x7f] %vm1717, %v1534
    %1807 = vst.msk [vmem:[%s271 + $0x300] sm:$0xff] %vm1715, %v1536
    %1808 = vst.msk [vmem:[%s271 + $0x308] sm:$0x7f] %vm1717, %v1538
    %1809 = vst.msk [vmem:[%s271 + $0x310] sm:$0xff] %vm1715, %v1540
    %1810 = vst.msk [vmem:[%s271 + $0x318] sm:$0x7f] %vm1717, %v1542
    %1811 = vst.msk [vmem:[%s271 + $0x320] sm:$0xff] %vm1715, %v1544
    %1812 = vst.msk [vmem:[%s271 + $0x328] sm:$0x7f] %vm1717, %v1546
    %1813 = vst.msk [vmem:[%s271 + $0x330] sm:$0xff] %vm1715, %v1548
    %1814 = vst.msk [vmem:[%s271 + $0x338] sm:$0x7f] %vm1717, %v1550
    %1815 = vst.msk [vmem:[%s271 + $0x340] sm:$0xff] %vm1715, %v1552
    %1816 = vst.msk [vmem:[%s271 + $0x348] sm:$0x7f] %vm1717, %v1554
    %1817 = vst.msk [vmem:[%s271 + $0x350] sm:$0xff] %vm1715, %v1556
    %1818 = vst.msk [vmem:[%s271 + $0x358] sm:$0x7f] %vm1717, %v1558
    %1819 = vst.msk [vmem:[%s271 + $0x360] sm:$0xff] %vm1715, %v1560
    %1820 = vst.msk [vmem:[%s271 + $0x368] sm:$0x7f] %vm1717, %v1562
    %1821 = vst.msk [vmem:[%s271 + $0x370] sm:$0xff] %vm1715, %v1564
    %1822 = vst.msk [vmem:[%s271 + $0x378] sm:$0x7f] %vm1717, %v1566
    %1823 = vst.msk [vmem:[%s271 + $0x380] sm:$0xff] %vm1715, %v1568
    %1824 = vst.msk [vmem:[%s271 + $0x388] sm:$0x7f] %vm1717, %v1570
    %1825 = vst.msk [vmem:[%s271 + $0x390] sm:$0xff] %vm1715, %v1572
    %1826 = vst.msk [vmem:[%s271 + $0x398] sm:$0x7f] %vm1717, %v1574
    %1827 = vst.msk [vmem:[%s271 + $0x3a0] sm:$0xff] %vm1715, %v1576
    %1828 = vst.msk [vmem:[%s271 + $0x3a8] sm:$0x7f] %vm1717, %v1578
    %1829 = vst.msk [vmem:[%s271 + $0x3b0] sm:$0xff] %vm1715, %v1580
    %1830 = vst.msk [vmem:[%s271 + $0x3b8] sm:$0x7f] %vm1717, %v1582
    %1831 = vst.msk [vmem:[%s271 + $0x3c0] sm:$0xff] %vm1715, %v1584
    %1832 = vst.msk [vmem:[%s271 + $0x3c8] sm:$0x7f] %vm1717, %v1586
    %1833 = vst.msk [vmem:[%s271 + $0x3d0] sm:$0xff] %vm1715, %v1588
    %1834 = vst.msk [vmem:[%s271 + $0x3d8] sm:$0x7f] %vm1717, %v1590
    %1835 = vst.msk [vmem:[%s271 + $0x3e0] sm:$0xff] %vm1715, %v1592
    %1836 = vst.msk [vmem:[%s271 + $0x3e8] sm:$0x7f] %vm1717, %v1594
    %v1837 = vld [vmem:[%s0] sm:$0xff]
    %v1838 = vld [vmem:[%s0 + $0x8] sm:$0x7f]
    %v1839 = vld [vmem:[%s0 + $0x10] sm:$0xff]
    %v1840 = vld [vmem:[%s0 + $0x18] sm:$0x7f]
    %v1841 = vld [vmem:[%s0 + $0x20] sm:$0xff]
    %v1842 = vld [vmem:[%s0 + $0x28] sm:$0x7f]
    %v1843 = vld [vmem:[%s0 + $0x30] sm:$0xff]
    %v1844 = vld [vmem:[%s0 + $0x38] sm:$0x7f]
    %v1845 = vld [vmem:[%s0 + $0x40] sm:$0xff]
    %v1846 = vld [vmem:[%s0 + $0x48] sm:$0x7f]
    %v1847 = vld [vmem:[%s0 + $0x50] sm:$0xff]
    %v1848 = vld [vmem:[%s0 + $0x58] sm:$0x7f]
    %v1849 = vld [vmem:[%s0 + $0x60] sm:$0xff]
    %v1850 = vld [vmem:[%s0 + $0x68] sm:$0x7f]
    %v1851 = vld [vmem:[%s0 + $0x70] sm:$0xff]
    %v1852 = vld [vmem:[%s0 + $0x78] sm:$0x7f]
    %v1853 = vld [vmem:[%s0 + $0x80] sm:$0xff]
    %v1854 = vld [vmem:[%s0 + $0x88] sm:$0x7f]
    %v1855 = vld [vmem:[%s0 + $0x90] sm:$0xff]
    %v1856 = vld [vmem:[%s0 + $0x98] sm:$0x7f]
    %v1857 = vld [vmem:[%s0 + $0xa0] sm:$0xff]
    %v1858 = vld [vmem:[%s0 + $0xa8] sm:$0x7f]
    %v1859 = vld [vmem:[%s0 + $0xb0] sm:$0xff]
    %v1860 = vld [vmem:[%s0 + $0xb8] sm:$0x7f]
    %v1861 = vld [vmem:[%s0 + $0xc0] sm:$0xff]
    %v1862 = vld [vmem:[%s0 + $0xc8] sm:$0x7f]
    %v1863 = vld [vmem:[%s0 + $0xd0] sm:$0xff]
    %v1864 = vld [vmem:[%s0 + $0xd8] sm:$0x7f]
    %v1865 = vld [vmem:[%s0 + $0xe0] sm:$0xff]
    %v1866 = vld [vmem:[%s0 + $0xe8] sm:$0x7f]
    %v1867 = vld [vmem:[%s0 + $0xf0] sm:$0xff]
    %v1868 = vld [vmem:[%s0 + $0xf8] sm:$0x7f]
    %v1869 = vld [vmem:[%s0 + $0x100] sm:$0xff]
    %v1870 = vld [vmem:[%s0 + $0x108] sm:$0x7f]
    %v1871 = vld [vmem:[%s0 + $0x110] sm:$0xff]
    %v1872 = vld [vmem:[%s0 + $0x118] sm:$0x7f]
    %v1873 = vld [vmem:[%s0 + $0x120] sm:$0xff]
    %v1874 = vld [vmem:[%s0 + $0x128] sm:$0x7f]
    %v1875 = vld [vmem:[%s0 + $0x130] sm:$0xff]
    %v1876 = vld [vmem:[%s0 + $0x138] sm:$0x7f]
    %v1877 = vld [vmem:[%s0 + $0x140] sm:$0xff]
    %v1878 = vld [vmem:[%s0 + $0x148] sm:$0x7f]
    %v1879 = vld [vmem:[%s0 + $0x150] sm:$0xff]
    %v1880 = vld [vmem:[%s0 + $0x158] sm:$0x7f]
    %v1881 = vld [vmem:[%s0 + $0x160] sm:$0xff]
    %v1882 = vld [vmem:[%s0 + $0x168] sm:$0x7f]
    %v1883 = vld [vmem:[%s0 + $0x170] sm:$0xff]
    %v1884 = vld [vmem:[%s0 + $0x178] sm:$0x7f]
    %v1885 = vld [vmem:[%s0 + $0x180] sm:$0xff]
    %v1886 = vld [vmem:[%s0 + $0x188] sm:$0x7f]
    %v1887 = vld [vmem:[%s0 + $0x190] sm:$0xff]
    %v1888 = vld [vmem:[%s0 + $0x198] sm:$0x7f]
    %v1889 = vld [vmem:[%s0 + $0x1a0] sm:$0xff]
    %v1890 = vld [vmem:[%s0 + $0x1a8] sm:$0x7f]
    %v1891 = vld [vmem:[%s0 + $0x1b0] sm:$0xff]
    %v1892 = vld [vmem:[%s0 + $0x1b8] sm:$0x7f]
    %v1893 = vld [vmem:[%s0 + $0x1c0] sm:$0xff]
    %v1894 = vld [vmem:[%s0 + $0x1c8] sm:$0x7f]
    %v1895 = vld [vmem:[%s0 + $0x1d0] sm:$0xff]
    %v1896 = vld [vmem:[%s0 + $0x1d8] sm:$0x7f]
    %v1897 = vld [vmem:[%s0 + $0x1e0] sm:$0xff]
    %v1898 = vld [vmem:[%s0 + $0x1e8] sm:$0x7f]
    %v1899 = vld [vmem:[%s0 + $0x1f0] sm:$0xff]
    %v1900 = vld [vmem:[%s0 + $0x1f8] sm:$0x7f]
    %v1901 = vld [vmem:[%s0 + $0x200] sm:$0xff]
    %v1902 = vld [vmem:[%s0 + $0x208] sm:$0x7f]
    %v1903 = vld [vmem:[%s0 + $0x210] sm:$0xff]
    %v1904 = vld [vmem:[%s0 + $0x218] sm:$0x7f]
    %v1905 = vld [vmem:[%s0 + $0x220] sm:$0xff]
    %v1906 = vld [vmem:[%s0 + $0x228] sm:$0x7f]
    %v1907 = vld [vmem:[%s0 + $0x230] sm:$0xff]
    %v1908 = vld [vmem:[%s0 + $0x238] sm:$0x7f]
    %v1909 = vld [vmem:[%s0 + $0x240] sm:$0xff]
    %v1910 = vld [vmem:[%s0 + $0x248] sm:$0x7f]
    %v1911 = vld [vmem:[%s0 + $0x250] sm:$0xff]
    %v1912 = vld [vmem:[%s0 + $0x258] sm:$0x7f]
    %v1913 = vld [vmem:[%s0 + $0x260] sm:$0xff]
    %v1914 = vld [vmem:[%s0 + $0x268] sm:$0x7f]
    %v1915 = vld [vmem:[%s0 + $0x270] sm:$0xff]
    %v1916 = vld [vmem:[%s0 + $0x278] sm:$0x7f]
    %v1917 = vld [vmem:[%s0 + $0x280] sm:$0xff]
    %v1918 = vld [vmem:[%s0 + $0x288] sm:$0x7f]
    %v1919 = vld [vmem:[%s0 + $0x290] sm:$0xff]
    %v1920 = vld [vmem:[%s0 + $0x298] sm:$0x7f]
    %v1921 = vld [vmem:[%s0 + $0x2a0] sm:$0xff]
    %v1922 = vld [vmem:[%s0 + $0x2a8] sm:$0x7f]
    %v1923 = vld [vmem:[%s0 + $0x2b0] sm:$0xff]
    %v1924 = vld [vmem:[%s0 + $0x2b8] sm:$0x7f]
    %v1925 = vld [vmem:[%s0 + $0x2c0] sm:$0xff]
    %v1926 = vld [vmem:[%s0 + $0x2c8] sm:$0x7f]
    %v1927 = vld [vmem:[%s0 + $0x2d0] sm:$0xff]
    %v1928 = vld [vmem:[%s0 + $0x2d8] sm:$0x7f]
    %v1929 = vld [vmem:[%s0 + $0x2e0] sm:$0xff]
    %v1930 = vld [vmem:[%s0 + $0x2e8] sm:$0x7f]
    %v1931 = vld [vmem:[%s0 + $0x2f0] sm:$0xff]
    %v1932 = vld [vmem:[%s0 + $0x2f8] sm:$0x7f]
    %v1933 = vld [vmem:[%s0 + $0x300] sm:$0xff]
    %v1934 = vld [vmem:[%s0 + $0x308] sm:$0x7f]
    %v1935 = vld [vmem:[%s0 + $0x310] sm:$0xff]
    %v1936 = vld [vmem:[%s0 + $0x318] sm:$0x7f]
    %v1937 = vld [vmem:[%s0 + $0x320] sm:$0xff]
    %v1938 = vld [vmem:[%s0 + $0x328] sm:$0x7f]
    %v1939 = vld [vmem:[%s0 + $0x330] sm:$0xff]
    %v1940 = vld [vmem:[%s0 + $0x338] sm:$0x7f]
    %v1941 = vld [vmem:[%s0 + $0x340] sm:$0xff]
    %v1942 = vld [vmem:[%s0 + $0x348] sm:$0x7f]
    %v1943 = vld [vmem:[%s0 + $0x350] sm:$0xff]
    %v1944 = vld [vmem:[%s0 + $0x358] sm:$0x7f]
    %v1945 = vld [vmem:[%s0 + $0x360] sm:$0xff]
    %v1946 = vld [vmem:[%s0 + $0x368] sm:$0x7f]
    %v1947 = vld [vmem:[%s0 + $0x370] sm:$0xff]
    %v1948 = vld [vmem:[%s0 + $0x378] sm:$0x7f]
    %v1949 = vld [vmem:[%s0 + $0x380] sm:$0xff]
    %v1950 = vld [vmem:[%s0 + $0x388] sm:$0x7f]
    %v1951 = vld [vmem:[%s0 + $0x390] sm:$0xff]
    %v1952 = vld [vmem:[%s0 + $0x398] sm:$0x7f]
    %v1953 = vld [vmem:[%s0 + $0x3a0] sm:$0xff]
    %v1954 = vld [vmem:[%s0 + $0x3a8] sm:$0x7f]
    %v1955 = vld [vmem:[%s0 + $0x3b0] sm:$0xff]
    %v1956 = vld [vmem:[%s0 + $0x3b8] sm:$0x7f]
    %v1957 = vld [vmem:[%s0 + $0x3c0] sm:$0xff]
    %v1958 = vld [vmem:[%s0 + $0x3c8] sm:$0x7f]
    %v1959 = vld [vmem:[%s0 + $0x3d0] sm:$0xff]
    %v1960 = vld [vmem:[%s0 + $0x3d8] sm:$0x7f]
    %v1961 = vld [vmem:[%s0 + $0x3e0] sm:$0xff]
    %v1962 = vld [vmem:[%s0 + $0x3e8] sm:$0x7f]
    %v1963 = vld [vmem:[%s0 + $0x3f0] sm:$0xff]
    %v1964 = vld [vmem:[%s0 + $0x3f8] sm:$0x7f]
    %2093 = vrot.lane.b32.xlu0 %v1837, 12
    %v2094 = vpop.permute.xlu0 %2093
    %2095 = vrot.lane.b32.xlu0 %v1838, 12
    %v2096 = vpop.permute.xlu0 %2095
    %2097 = vrot.lane.b32.xlu0 %v1839, 12
    %v2098 = vpop.permute.xlu0 %2097
    %2099 = vrot.lane.b32.xlu0 %v1840, 12
    %v2100 = vpop.permute.xlu0 %2099
    %2101 = vrot.lane.b32.xlu0 %v1841, 12
    %v2102 = vpop.permute.xlu0 %2101
    %2103 = vrot.lane.b32.xlu0 %v1842, 12
    %v2104 = vpop.permute.xlu0 %2103
    %2105 = vrot.lane.b32.xlu0 %v1843, 12
    %v2106 = vpop.permute.xlu0 %2105
    %2107 = vrot.lane.b32.xlu0 %v1844, 12
    %v2108 = vpop.permute.xlu0 %2107
    %2109 = vrot.lane.b32.xlu0 %v1845, 12
    %v2110 = vpop.permute.xlu0 %2109
    %2111 = vrot.lane.b32.xlu0 %v1846, 12
    %v2112 = vpop.permute.xlu0 %2111
    %2113 = vrot.lane.b32.xlu0 %v1847, 12
    %v2114 = vpop.permute.xlu0 %2113
    %2115 = vrot.lane.b32.xlu0 %v1848, 12
    %v2116 = vpop.permute.xlu0 %2115
    %2117 = vrot.lane.b32.xlu0 %v1849, 12
    %v2118 = vpop.permute.xlu0 %2117
    %2119 = vrot.lane.b32.xlu0 %v1850, 12
    %v2120 = vpop.permute.xlu0 %2119
    %2121 = vrot.lane.b32.xlu0 %v1851, 12
    %v2122 = vpop.permute.xlu0 %2121
    %2123 = vrot.lane.b32.xlu0 %v1852, 12
    %v2124 = vpop.permute.xlu0 %2123
    %2125 = vrot.lane.b32.xlu0 %v1853, 12
    %v2126 = vpop.permute.xlu0 %2125
    %2127 = vrot.lane.b32.xlu0 %v1854, 12
    %v2128 = vpop.permute.xlu0 %2127
    %2129 = vrot.lane.b32.xlu0 %v1855, 12
    %v2130 = vpop.permute.xlu0 %2129
    %2131 = vrot.lane.b32.xlu0 %v1856, 12
    %v2132 = vpop.permute.xlu0 %2131
    %2133 = vrot.lane.b32.xlu0 %v1857, 12
    %v2134 = vpop.permute.xlu0 %2133
    %2135 = vrot.lane.b32.xlu0 %v1858, 12
    %v2136 = vpop.permute.xlu0 %2135
    %2137 = vrot.lane.b32.xlu0 %v1859, 12
    %v2138 = vpop.permute.xlu0 %2137
    %2139 = vrot.lane.b32.xlu0 %v1860, 12
    %v2140 = vpop.permute.xlu0 %2139
    %2141 = vrot.lane.b32.xlu0 %v1861, 12
    %v2142 = vpop.permute.xlu0 %2141
    %2143 = vrot.lane.b32.xlu0 %v1862, 12
    %v2144 = vpop.permute.xlu0 %2143
    %2145 = vrot.lane.b32.xlu0 %v1863, 12
    %v2146 = vpop.permute.xlu0 %2145
    %2147 = vrot.lane.b32.xlu0 %v1864, 12
    %v2148 = vpop.permute.xlu0 %2147
    %2149 = vrot.lane.b32.xlu0 %v1865, 12
    %v2150 = vpop.permute.xlu0 %2149
    %2151 = vrot.lane.b32.xlu0 %v1866, 12
    %v2152 = vpop.permute.xlu0 %2151
    %2153 = vrot.lane.b32.xlu0 %v1867, 12
    %v2154 = vpop.permute.xlu0 %2153
    %2155 = vrot.lane.b32.xlu0 %v1868, 12
    %v2156 = vpop.permute.xlu0 %2155
    %2157 = vrot.lane.b32.xlu0 %v1869, 12
    %v2158 = vpop.permute.xlu0 %2157
    %2159 = vrot.lane.b32.xlu0 %v1870, 12
    %v2160 = vpop.permute.xlu0 %2159
    %2161 = vrot.lane.b32.xlu0 %v1871, 12
    %v2162 = vpop.permute.xlu0 %2161
    %2163 = vrot.lane.b32.xlu0 %v1872, 12
    %v2164 = vpop.permute.xlu0 %2163
    %2165 = vrot.lane.b32.xlu0 %v1873, 12
    %v2166 = vpop.permute.xlu0 %2165
    %2167 = vrot.lane.b32.xlu0 %v1874, 12
    %v2168 = vpop.permute.xlu0 %2167
    %2169 = vrot.lane.b32.xlu0 %v1875, 12
    %v2170 = vpop.permute.xlu0 %2169
    %2171 = vrot.lane.b32.xlu0 %v1876, 12
    %v2172 = vpop.permute.xlu0 %2171
    %2173 = vrot.lane.b32.xlu0 %v1877, 12
    %v2174 = vpop.permute.xlu0 %2173
    %2175 = vrot.lane.b32.xlu0 %v1878, 12
    %v2176 = vpop.permute.xlu0 %2175
    %2177 = vrot.lane.b32.xlu0 %v1879, 12
    %v2178 = vpop.permute.xlu0 %2177
    %2179 = vrot.lane.b32.xlu0 %v1880, 12
    %v2180 = vpop.permute.xlu0 %2179
    %2181 = vrot.lane.b32.xlu0 %v1881, 12
    %v2182 = vpop.permute.xlu0 %2181
    %2183 = vrot.lane.b32.xlu0 %v1882, 12
    %v2184 = vpop.permute.xlu0 %2183
    %2185 = vrot.lane.b32.xlu0 %v1883, 12
    %v2186 = vpop.permute.xlu0 %2185
    %2187 = vrot.lane.b32.xlu0 %v1884, 12
    %v2188 = vpop.permute.xlu0 %2187
    %2189 = vrot.lane.b32.xlu0 %v1885, 12
    %v2190 = vpop.permute.xlu0 %2189
    %2191 = vrot.lane.b32.xlu0 %v1886, 12
    %v2192 = vpop.permute.xlu0 %2191
    %2193 = vrot.lane.b32.xlu0 %v1887, 12
    %v2194 = vpop.permute.xlu0 %2193
    %2195 = vrot.lane.b32.xlu0 %v1888, 12
    %v2196 = vpop.permute.xlu0 %2195
    %2197 = vrot.lane.b32.xlu0 %v1889, 12
    %v2198 = vpop.permute.xlu0 %2197
    %2199 = vrot.lane.b32.xlu0 %v1890, 12
    %v2200 = vpop.permute.xlu0 %2199
    %2201 = vrot.lane.b32.xlu0 %v1891, 12
    %v2202 = vpop.permute.xlu0 %2201
    %2203 = vrot.lane.b32.xlu0 %v1892, 12
    %v2204 = vpop.permute.xlu0 %2203
    %2205 = vrot.lane.b32.xlu0 %v1893, 12
    %v2206 = vpop.permute.xlu0 %2205
    %2207 = vrot.lane.b32.xlu0 %v1894, 12
    %v2208 = vpop.permute.xlu0 %2207
    %2209 = vrot.lane.b32.xlu0 %v1895, 12
    %v2210 = vpop.permute.xlu0 %2209
    %2211 = vrot.lane.b32.xlu0 %v1896, 12
    %v2212 = vpop.permute.xlu0 %2211
    %2213 = vrot.lane.b32.xlu0 %v1897, 12
    %v2214 = vpop.permute.xlu0 %2213
    %2215 = vrot.lane.b32.xlu0 %v1898, 12
    %v2216 = vpop.permute.xlu0 %2215
    %2217 = vrot.lane.b32.xlu0 %v1899, 12
    %v2218 = vpop.permute.xlu0 %2217
    %2219 = vrot.lane.b32.xlu0 %v1900, 12
    %v2220 = vpop.permute.xlu0 %2219
    %2221 = vrot.lane.b32.xlu0 %v1901, 12
    %v2222 = vpop.permute.xlu0 %2221
    %2223 = vrot.lane.b32.xlu0 %v1902, 12
    %v2224 = vpop.permute.xlu0 %2223
    %2225 = vrot.lane.b32.xlu0 %v1903, 12
    %v2226 = vpop.permute.xlu0 %2225
    %2227 = vrot.lane.b32.xlu0 %v1904, 12
    %v2228 = vpop.permute.xlu0 %2227
    %2229 = vrot.lane.b32.xlu0 %v1905, 12
    %v2230 = vpop.permute.xlu0 %2229
    %2231 = vrot.lane.b32.xlu0 %v1906, 12
    %v2232 = vpop.permute.xlu0 %2231
    %2233 = vrot.lane.b32.xlu0 %v1907, 12
    %v2234 = vpop.permute.xlu0 %2233
    %2235 = vrot.lane.b32.xlu0 %v1908, 12
    %v2236 = vpop.permute.xlu0 %2235
    %2237 = vrot.lane.b32.xlu0 %v1909, 12
    %v2238 = vpop.permute.xlu0 %2237
    %2239 = vrot.lane.b32.xlu0 %v1910, 12
    %v2240 = vpop.permute.xlu0 %2239
    %2241 = vrot.lane.b32.xlu0 %v1911, 12
    %v2242 = vpop.permute.xlu0 %2241
    %2243 = vrot.lane.b32.xlu0 %v1912, 12
    %v2244 = vpop.permute.xlu0 %2243
    %2245 = vrot.lane.b32.xlu0 %v1913, 12
    %v2246 = vpop.permute.xlu0 %2245
    %2247 = vrot.lane.b32.xlu0 %v1914, 12
    %v2248 = vpop.permute.xlu0 %2247
    %2249 = vrot.lane.b32.xlu0 %v1915, 12
    %v2250 = vpop.permute.xlu0 %2249
    %2251 = vrot.lane.b32.xlu0 %v1916, 12
    %v2252 = vpop.permute.xlu0 %2251
    %2253 = vrot.lane.b32.xlu0 %v1917, 12
    %v2254 = vpop.permute.xlu0 %2253
    %2255 = vrot.lane.b32.xlu0 %v1918, 12
    %v2256 = vpop.permute.xlu0 %2255
    %2257 = vrot.lane.b32.xlu0 %v1919, 12
    %v2258 = vpop.permute.xlu0 %2257
    %2259 = vrot.lane.b32.xlu0 %v1920, 12
    %v2260 = vpop.permute.xlu0 %2259
    %2261 = vrot.lane.b32.xlu0 %v1921, 12
    %v2262 = vpop.permute.xlu0 %2261
    %2263 = vrot.lane.b32.xlu0 %v1922, 12
    %v2264 = vpop.permute.xlu0 %2263
    %2265 = vrot.lane.b32.xlu0 %v1923, 12
    %v2266 = vpop.permute.xlu0 %2265
    %2267 = vrot.lane.b32.xlu0 %v1924, 12
    %v2268 = vpop.permute.xlu0 %2267
    %2269 = vrot.lane.b32.xlu0 %v1925, 12
    %v2270 = vpop.permute.xlu0 %2269
    %2271 = vrot.lane.b32.xlu0 %v1926, 12
    %v2272 = vpop.permute.xlu0 %2271
    %2273 = vrot.lane.b32.xlu0 %v1927, 12
    %v2274 = vpop.permute.xlu0 %2273
    %2275 = vrot.lane.b32.xlu0 %v1928, 12
    %v2276 = vpop.permute.xlu0 %2275
    %2277 = vrot.lane.b32.xlu0 %v1929, 12
    %v2278 = vpop.permute.xlu0 %2277
    %2279 = vrot.lane.b32.xlu0 %v1930, 12
    %v2280 = vpop.permute.xlu0 %2279
    %2281 = vrot.lane.b32.xlu0 %v1931, 12
    %v2282 = vpop.permute.xlu0 %2281
    %2283 = vrot.lane.b32.xlu0 %v1932, 12
    %v2284 = vpop.permute.xlu0 %2283
    %2285 = vrot.lane.b32.xlu0 %v1933, 12
    %v2286 = vpop.permute.xlu0 %2285
    %2287 = vrot.lane.b32.xlu0 %v1934, 12
    %v2288 = vpop.permute.xlu0 %2287
    %2289 = vrot.lane.b32.xlu0 %v1935, 12
    %v2290 = vpop.permute.xlu0 %2289
    %2291 = vrot.lane.b32.xlu0 %v1936, 12
    %v2292 = vpop.permute.xlu0 %2291
    %2293 = vrot.lane.b32.xlu0 %v1937, 12
    %v2294 = vpop.permute.xlu0 %2293
    %2295 = vrot.lane.b32.xlu0 %v1938, 12
    %v2296 = vpop.permute.xlu0 %2295
    %2297 = vrot.lane.b32.xlu0 %v1939, 12
    %v2298 = vpop.permute.xlu0 %2297
    %2299 = vrot.lane.b32.xlu0 %v1940, 12
    %v2300 = vpop.permute.xlu0 %2299
    %2301 = vrot.lane.b32.xlu0 %v1941, 12
    %v2302 = vpop.permute.xlu0 %2301
    %2303 = vrot.lane.b32.xlu0 %v1942, 12
    %v2304 = vpop.permute.xlu0 %2303
    %2305 = vrot.lane.b32.xlu0 %v1943, 12
    %v2306 = vpop.permute.xlu0 %2305
    %2307 = vrot.lane.b32.xlu0 %v1944, 12
    %v2308 = vpop.permute.xlu0 %2307
    %2309 = vrot.lane.b32.xlu0 %v1945, 12
    %v2310 = vpop.permute.xlu0 %2309
    %2311 = vrot.lane.b32.xlu0 %v1946, 12
    %v2312 = vpop.permute.xlu0 %2311
    %2313 = vrot.lane.b32.xlu0 %v1947, 12
    %v2314 = vpop.permute.xlu0 %2313
    %2315 = vrot.lane.b32.xlu0 %v1948, 12
    %v2316 = vpop.permute.xlu0 %2315
    %2317 = vrot.lane.b32.xlu0 %v1949, 12
    %v2318 = vpop.permute.xlu0 %2317
    %2319 = vrot.lane.b32.xlu0 %v1950, 12
    %v2320 = vpop.permute.xlu0 %2319
    %2321 = vrot.lane.b32.xlu0 %v1951, 12
    %v2322 = vpop.permute.xlu0 %2321
    %2323 = vrot.lane.b32.xlu0 %v1952, 12
    %v2324 = vpop.permute.xlu0 %2323
    %2325 = vrot.lane.b32.xlu0 %v1953, 12
    %v2326 = vpop.permute.xlu0 %2325
    %2327 = vrot.lane.b32.xlu0 %v1954, 12
    %v2328 = vpop.permute.xlu0 %2327
    %2329 = vrot.lane.b32.xlu0 %v1955, 12
    %v2330 = vpop.permute.xlu0 %2329
    %2331 = vrot.lane.b32.xlu0 %v1956, 12
    %v2332 = vpop.permute.xlu0 %2331
    %2333 = vrot.lane.b32.xlu0 %v1957, 12
    %v2334 = vpop.permute.xlu0 %2333
    %2335 = vrot.lane.b32.xlu0 %v1958, 12
    %v2336 = vpop.permute.xlu0 %2335
    %2337 = vrot.lane.b32.xlu0 %v1959, 12
    %v2338 = vpop.permute.xlu0 %2337
    %2339 = vrot.lane.b32.xlu0 %v1960, 12
    %v2340 = vpop.permute.xlu0 %2339
    %2341 = vrot.lane.b32.xlu0 %v1961, 12
    %v2342 = vpop.permute.xlu0 %2341
    %2343 = vrot.lane.b32.xlu0 %v1962, 12
    %v2344 = vpop.permute.xlu0 %2343
    %2345 = vrot.lane.b32.xlu0 %v1963, 12
    %v2346 = vpop.permute.xlu0 %2345
    %2347 = vrot.lane.b32.xlu0 %v1964, 12
    %v2348 = vpop.permute.xlu0 %2347
    %vm2477 = vcmask 130144
    %2478 = vst.msk [vmem:[#allocation2 + $0x1] sm:$0xff] %vm2477, %v2094
    %vm2479 = vcmask 129120
    %2480 = vst.msk [vmem:[#allocation2 + $0x9] sm:$0x7f] %vm2479, %v2096
    %2481 = vst.msk [vmem:[#allocation2 + $0x11] sm:$0xff] %vm2477, %v2098
    %2482 = vst.msk [vmem:[#allocation2 + $0x19] sm:$0x7f] %vm2479, %v2100
    %2483 = vst.msk [vmem:[#allocation2 + $0x21] sm:$0xff] %vm2477, %v2102
    %2484 = vst.msk [vmem:[#allocation2 + $0x29] sm:$0x7f] %vm2479, %v2104
    %2485 = vst.msk [vmem:[#allocation2 + $0x31] sm:$0xff] %vm2477, %v2106
    %2486 = vst.msk [vmem:[#allocation2 + $0x39] sm:$0x7f] %vm2479, %v2108
    %2487 = vst.msk [vmem:[#allocation2 + $0x41] sm:$0xff] %vm2477, %v2110
    %2488 = vst.msk [vmem:[#allocation2 + $0x49] sm:$0x7f] %vm2479, %v2112
    %2489 = vst.msk [vmem:[#allocation2 + $0x51] sm:$0xff] %vm2477, %v2114
    %2490 = vst.msk [vmem:[#allocation2 + $0x59] sm:$0x7f] %vm2479, %v2116
    %2491 = vst.msk [vmem:[#allocation2 + $0x61] sm:$0xff] %vm2477, %v2118
    %2492 = vst.msk [vmem:[#allocation2 + $0x69] sm:$0x7f] %vm2479, %v2120
    %2493 = vst.msk [vmem:[#allocation2 + $0x71] sm:$0xff] %vm2477, %v2122
    %2494 = vst.msk [vmem:[#allocation2 + $0x79] sm:$0x7f] %vm2479, %v2124
    %2495 = vst.msk [vmem:[#allocation2 + $0x81] sm:$0xff] %vm2477, %v2126
    %2496 = vst.msk [vmem:[#allocation2 + $0x89] sm:$0x7f] %vm2479, %v2128
    %2497 = vst.msk [vmem:[#allocation2 + $0x91] sm:$0xff] %vm2477, %v2130
    %2498 = vst.msk [vmem:[#allocation2 + $0x99] sm:$0x7f] %vm2479, %v2132
    %2499 = vst.msk [vmem:[#allocation2 + $0xa1] sm:$0xff] %vm2477, %v2134
    %2500 = vst.msk [vmem:[#allocation2 + $0xa9] sm:$0x7f] %vm2479, %v2136
    %2501 = vst.msk [vmem:[#allocation2 + $0xb1] sm:$0xff] %vm2477, %v2138
    %2502 = vst.msk [vmem:[#allocation2 + $0xb9] sm:$0x7f] %vm2479, %v2140
    %2503 = vst.msk [vmem:[#allocation2 + $0xc1] sm:$0xff] %vm2477, %v2142
    %2504 = vst.msk [vmem:[#allocation2 + $0xc9] sm:$0x7f] %vm2479, %v2144
    %2505 = vst.msk [vmem:[#allocation2 + $0xd1] sm:$0xff] %vm2477, %v2146
    %2506 = vst.msk [vmem:[#allocation2 + $0xd9] sm:$0x7f] %vm2479, %v2148
    %2507 = vst.msk [vmem:[#allocation2 + $0xe1] sm:$0xff] %vm2477, %v2150
    %2508 = vst.msk [vmem:[#allocation2 + $0xe9] sm:$0x7f] %vm2479, %v2152
    %2509 = vst.msk [vmem:[#allocation2 + $0xf1] sm:$0xff] %vm2477, %v2154
    %2510 = vst.msk [vmem:[#allocation2 + $0xf9] sm:$0x7f] %vm2479, %v2156
    %2511 = vst.msk [vmem:[#allocation2 + $0x101] sm:$0xff] %vm2477, %v2158
    %2512 = vst.msk [vmem:[#allocation2 + $0x109] sm:$0x7f] %vm2479, %v2160
    %2513 = vst.msk [vmem:[#allocation2 + $0x111] sm:$0xff] %vm2477, %v2162
    %2514 = vst.msk [vmem:[#allocation2 + $0x119] sm:$0x7f] %vm2479, %v2164
    %2515 = vst.msk [vmem:[#allocation2 + $0x121] sm:$0xff] %vm2477, %v2166
    %2516 = vst.msk [vmem:[#allocation2 + $0x129] sm:$0x7f] %vm2479, %v2168
    %2517 = vst.msk [vmem:[#allocation2 + $0x131] sm:$0xff] %vm2477, %v2170
    %2518 = vst.msk [vmem:[#allocation2 + $0x139] sm:$0x7f] %vm2479, %v2172
    %2519 = vst.msk [vmem:[#allocation2 + $0x141] sm:$0xff] %vm2477, %v2174
    %2520 = vst.msk [vmem:[#allocation2 + $0x149] sm:$0x7f] %vm2479, %v2176
    %2521 = vst.msk [vmem:[#allocation2 + $0x151] sm:$0xff] %vm2477, %v2178
    %2522 = vst.msk [vmem:[#allocation2 + $0x159] sm:$0x7f] %vm2479, %v2180
    %2523 = vst.msk [vmem:[#allocation2 + $0x161] sm:$0xff] %vm2477, %v2182
    %2524 = vst.msk [vmem:[#allocation2 + $0x169] sm:$0x7f] %vm2479, %v2184
    %2525 = vst.msk [vmem:[#allocation2 + $0x171] sm:$0xff] %vm2477, %v2186
    %2526 = vst.msk [vmem:[#allocation2 + $0x179] sm:$0x7f] %vm2479, %v2188
    %2527 = vst.msk [vmem:[#allocation2 + $0x181] sm:$0xff] %vm2477, %v2190
    %2528 = vst.msk [vmem:[#allocation2 + $0x189] sm:$0x7f] %vm2479, %v2192
    %2529 = vst.msk [vmem:[#allocation2 + $0x191] sm:$0xff] %vm2477, %v2194
    %2530 = vst.msk [vmem:[#allocation2 + $0x199] sm:$0x7f] %vm2479, %v2196
    %2531 = vst.msk [vmem:[#allocation2 + $0x1a1] sm:$0xff] %vm2477, %v2198
    %2532 = vst.msk [vmem:[#allocation2 + $0x1a9] sm:$0x7f] %vm2479, %v2200
    %2533 = vst.msk [vmem:[#allocation2 + $0x1b1] sm:$0xff] %vm2477, %v2202
    %2534 = vst.msk [vmem:[#allocation2 + $0x1b9] sm:$0x7f] %vm2479, %v2204
    %2535 = vst.msk [vmem:[#allocation2 + $0x1c1] sm:$0xff] %vm2477, %v2206
    %2536 = vst.msk [vmem:[#allocation2 + $0x1c9] sm:$0x7f] %vm2479, %v2208
    %2537 = vst.msk [vmem:[#allocation2 + $0x1d1] sm:$0xff] %vm2477, %v2210
    %2538 = vst.msk [vmem:[#allocation2 + $0x1d9] sm:$0x7f] %vm2479, %v2212
    %2539 = vst.msk [vmem:[#allocation2 + $0x1e1] sm:$0xff] %vm2477, %v2214
    %2540 = vst.msk [vmem:[#allocation2 + $0x1e9] sm:$0x7f] %vm2479, %v2216
    %2541 = vst.msk [vmem:[#allocation2 + $0x1f1] sm:$0xff] %vm2477, %v2218
    %2542 = vst.msk [vmem:[#allocation2 + $0x1f9] sm:$0x7f] %vm2479, %v2220
    %2543 = vst.msk [vmem:[#allocation2 + $0x201] sm:$0xff] %vm2477, %v2222
    %2544 = vst.msk [vmem:[#allocation2 + $0x209] sm:$0x7f] %vm2479, %v2224
    %2545 = vst.msk [vmem:[#allocation2 + $0x211] sm:$0xff] %vm2477, %v2226
    %2546 = vst.msk [vmem:[#allocation2 + $0x219] sm:$0x7f] %vm2479, %v2228
    %2547 = vst.msk [vmem:[#allocation2 + $0x221] sm:$0xff] %vm2477, %v2230
    %2548 = vst.msk [vmem:[#allocation2 + $0x229] sm:$0x7f] %vm2479, %v2232
    %2549 = vst.msk [vmem:[#allocation2 + $0x231] sm:$0xff] %vm2477, %v2234
    %2550 = vst.msk [vmem:[#allocation2 + $0x239] sm:$0x7f] %vm2479, %v2236
    %2551 = vst.msk [vmem:[#allocation2 + $0x241] sm:$0xff] %vm2477, %v2238
    %2552 = vst.msk [vmem:[#allocation2 + $0x249] sm:$0x7f] %vm2479, %v2240
    %2553 = vst.msk [vmem:[#allocation2 + $0x251] sm:$0xff] %vm2477, %v2242
    %2554 = vst.msk [vmem:[#allocation2 + $0x259] sm:$0x7f] %vm2479, %v2244
    %2555 = vst.msk [vmem:[#allocation2 + $0x261] sm:$0xff] %vm2477, %v2246
    %2556 = vst.msk [vmem:[#allocation2 + $0x269] sm:$0x7f] %vm2479, %v2248
    %2557 = vst.msk [vmem:[#allocation2 + $0x271] sm:$0xff] %vm2477, %v2250
    %2558 = vst.msk [vmem:[#allocation2 + $0x279] sm:$0x7f] %vm2479, %v2252
    %2559 = vst.msk [vmem:[#allocation2 + $0x281] sm:$0xff] %vm2477, %v2254
    %2560 = vst.msk [vmem:[#allocation2 + $0x289] sm:$0x7f] %vm2479, %v2256
    %2561 = vst.msk [vmem:[#allocation2 + $0x291] sm:$0xff] %vm2477, %v2258
    %2562 = vst.msk [vmem:[#allocation2 + $0x299] sm:$0x7f] %vm2479, %v2260
    %2563 = vst.msk [vmem:[#allocation2 + $0x2a1] sm:$0xff] %vm2477, %v2262
    %2564 = vst.msk [vmem:[#allocation2 + $0x2a9] sm:$0x7f] %vm2479, %v2264
    %2565 = vst.msk [vmem:[#allocation2 + $0x2b1] sm:$0xff] %vm2477, %v2266
    %2566 = vst.msk [vmem:[#allocation2 + $0x2b9] sm:$0x7f] %vm2479, %v2268
    %2567 = vst.msk [vmem:[#allocation2 + $0x2c1] sm:$0xff] %vm2477, %v2270
    %2568 = vst.msk [vmem:[#allocation2 + $0x2c9] sm:$0x7f] %vm2479, %v2272
    %2569 = vst.msk [vmem:[#allocation2 + $0x2d1] sm:$0xff] %vm2477, %v2274
    %2570 = vst.msk [vmem:[#allocation2 + $0x2d9] sm:$0x7f] %vm2479, %v2276
    %2571 = vst.msk [vmem:[#allocation2 + $0x2e1] sm:$0xff] %vm2477, %v2278
    %2572 = vst.msk [vmem:[#allocation2 + $0x2e9] sm:$0x7f] %vm2479, %v2280
    %2573 = vst.msk [vmem:[#allocation2 + $0x2f1] sm:$0xff] %vm2477, %v2282
    %2574 = vst.msk [vmem:[#allocation2 + $0x2f9] sm:$0x7f] %vm2479, %v2284
    %2575 = vst.msk [vmem:[#allocation2 + $0x301] sm:$0xff] %vm2477, %v2286
    %2576 = vst.msk [vmem:[#allocation2 + $0x309] sm:$0x7f] %vm2479, %v2288
    %2577 = vst.msk [vmem:[#allocation2 + $0x311] sm:$0xff] %vm2477, %v2290
    %2578 = vst.msk [vmem:[#allocation2 + $0x319] sm:$0x7f] %vm2479, %v2292
    %2579 = vst.msk [vmem:[#allocation2 + $0x321] sm:$0xff] %vm2477, %v2294
    %2580 = vst.msk [vmem:[#allocation2 + $0x329] sm:$0x7f] %vm2479, %v2296
    %2581 = vst.msk [vmem:[#allocation2 + $0x331] sm:$0xff] %vm2477, %v2298
    %2582 = vst.msk [vmem:[#allocation2 + $0x339] sm:$0x7f] %vm2479, %v2300
    %2583 = vst.msk [vmem:[#allocation2 + $0x341] sm:$0xff] %vm2477, %v2302
    %2584 = vst.msk [vmem:[#allocation2 + $0x349] sm:$0x7f] %vm2479, %v2304
    %2585 = vst.msk [vmem:[#allocation2 + $0x351] sm:$0xff] %vm2477, %v2306
    %2586 = vst.msk [vmem:[#allocation2 + $0x359] sm:$0x7f] %vm2479, %v2308
    %2587 = vst.msk [vmem:[#allocation2 + $0x361] sm:$0xff] %vm2477, %v2310
    %2588 = vst.msk [vmem:[#allocation2 + $0x369] sm:$0x7f] %vm2479, %v2312
    %2589 = vst.msk [vmem:[#allocation2 + $0x371] sm:$0xff] %vm2477, %v2314
    %2590 = vst.msk [vmem:[#allocation2 + $0x379] sm:$0x7f] %vm2479, %v2316
    %2591 = vst.msk [vmem:[#allocation2 + $0x381] sm:$0xff] %vm2477, %v2318
    %2592 = vst.msk [vmem:[#allocation2 + $0x389] sm:$0x7f] %vm2479, %v2320
    %2593 = vst.msk [vmem:[#allocation2 + $0x391] sm:$0xff] %vm2477, %v2322
    %2594 = vst.msk [vmem:[#allocation2 + $0x399] sm:$0x7f] %vm2479, %v2324
    %2595 = vst.msk [vmem:[#allocation2 + $0x3a1] sm:$0xff] %vm2477, %v2326
    %2596 = vst.msk [vmem:[#allocation2 + $0x3a9] sm:$0x7f] %vm2479, %v2328
    %2597 = vst.msk [vmem:[#allocation2 + $0x3b1] sm:$0xff] %vm2477, %v2330
    %2598 = vst.msk [vmem:[#allocation2 + $0x3b9] sm:$0x7f] %vm2479, %v2332
    %2599 = vst.msk [vmem:[#allocation2 + $0x3c1] sm:$0xff] %vm2477, %v2334
    %2600 = vst.msk [vmem:[#allocation2 + $0x3c9] sm:$0x7f] %vm2479, %v2336
    %2601 = vst.msk [vmem:[#allocation2 + $0x3d1] sm:$0xff] %vm2477, %v2338
    %2602 = vst.msk [vmem:[#allocation2 + $0x3d9] sm:$0x7f] %vm2479, %v2340
    %2603 = vst.msk [vmem:[#allocation2 + $0x3e1] sm:$0xff] %vm2477, %v2342
    %2604 = vst.msk [vmem:[#allocation2 + $0x3e9] sm:$0x7f] %vm2479, %v2344
    %2605 = vst.msk [vmem:[#allocation2 + $0x3f1] sm:$0xff] %vm2477, %v2346
    %2606 = vst.msk [vmem:[#allocation2 + $0x3f9] sm:$0x7f] %vm2479, %v2348
    %v2607 = vld [vmem:[%s0] sm:$0xff]
    %v2608 = vld [vmem:[%s0 + $0x8] sm:$0xff]
    %v2609 = vld [vmem:[%s0 + $0x10] sm:$0xff]
    %v2610 = vld [vmem:[%s0 + $0x18] sm:$0xff]
    %v2611 = vld [vmem:[%s0 + $0x20] sm:$0xff]
    %v2612 = vld [vmem:[%s0 + $0x28] sm:$0xff]
    %v2613 = vld [vmem:[%s0 + $0x30] sm:$0xff]
    %v2614 = vld [vmem:[%s0 + $0x38] sm:$0xff]
    %v2615 = vld [vmem:[%s0 + $0x40] sm:$0xff]
    %v2616 = vld [vmem:[%s0 + $0x48] sm:$0xff]
    %v2617 = vld [vmem:[%s0 + $0x50] sm:$0xff]
    %v2618 = vld [vmem:[%s0 + $0x58] sm:$0xff]
    %v2619 = vld [vmem:[%s0 + $0x60] sm:$0xff]
    %v2620 = vld [vmem:[%s0 + $0x68] sm:$0xff]
    %v2621 = vld [vmem:[%s0 + $0x70] sm:$0xff]
    %v2622 = vld [vmem:[%s0 + $0x78] sm:$0xff]
    %v2623 = vld [vmem:[%s0 + $0x80] sm:$0xff]
    %v2624 = vld [vmem:[%s0 + $0x88] sm:$0xff]
    %v2625 = vld [vmem:[%s0 + $0x90] sm:$0xff]
    %v2626 = vld [vmem:[%s0 + $0x98] sm:$0xff]
    %v2627 = vld [vmem:[%s0 + $0xa0] sm:$0xff]
    %v2628 = vld [vmem:[%s0 + $0xa8] sm:$0xff]
    %v2629 = vld [vmem:[%s0 + $0xb0] sm:$0xff]
    %v2630 = vld [vmem:[%s0 + $0xb8] sm:$0xff]
    %v2631 = vld [vmem:[%s0 + $0xc0] sm:$0xff]
    %v2632 = vld [vmem:[%s0 + $0xc8] sm:$0xff]
    %v2633 = vld [vmem:[%s0 + $0xd0] sm:$0xff]
    %v2634 = vld [vmem:[%s0 + $0xd8] sm:$0xff]
    %v2635 = vld [vmem:[%s0 + $0xe0] sm:$0xff]
    %v2636 = vld [vmem:[%s0 + $0xe8] sm:$0xff]
    %v2637 = vld [vmem:[%s0 + $0xf0] sm:$0xff]
    %v2638 = vld [vmem:[%s0 + $0xf8] sm:$0xff]
    %v2639 = vld [vmem:[%s0 + $0x100] sm:$0xff]
    %v2640 = vld [vmem:[%s0 + $0x108] sm:$0xff]
    %v2641 = vld [vmem:[%s0 + $0x110] sm:$0xff]
    %v2642 = vld [vmem:[%s0 + $0x118] sm:$0xff]
    %v2643 = vld [vmem:[%s0 + $0x120] sm:$0xff]
    %v2644 = vld [vmem:[%s0 + $0x128] sm:$0xff]
    %v2645 = vld [vmem:[%s0 + $0x130] sm:$0xff]
    %v2646 = vld [vmem:[%s0 + $0x138] sm:$0xff]
    %v2647 = vld [vmem:[%s0 + $0x140] sm:$0xff]
    %v2648 = vld [vmem:[%s0 + $0x148] sm:$0xff]
    %v2649 = vld [vmem:[%s0 + $0x150] sm:$0xff]
    %v2650 = vld [vmem:[%s0 + $0x158] sm:$0xff]
    %v2651 = vld [vmem:[%s0 + $0x160] sm:$0xff]
    %v2652 = vld [vmem:[%s0 + $0x168] sm:$0xff]
    %v2653 = vld [vmem:[%s0 + $0x170] sm:$0xff]
    %v2654 = vld [vmem:[%s0 + $0x178] sm:$0xff]
    %v2655 = vld [vmem:[%s0 + $0x180] sm:$0xff]
    %v2656 = vld [vmem:[%s0 + $0x188] sm:$0xff]
    %v2657 = vld [vmem:[%s0 + $0x190] sm:$0xff]
    %v2658 = vld [vmem:[%s0 + $0x198] sm:$0xff]
    %v2659 = vld [vmem:[%s0 + $0x1a0] sm:$0xff]
    %v2660 = vld [vmem:[%s0 + $0x1a8] sm:$0xff]
    %v2661 = vld [vmem:[%s0 + $0x1b0] sm:$0xff]
    %v2662 = vld [vmem:[%s0 + $0x1b8] sm:$0xff]
    %v2663 = vld [vmem:[%s0 + $0x1c0] sm:$0xff]
    %v2664 = vld [vmem:[%s0 + $0x1c8] sm:$0xff]
    %v2665 = vld [vmem:[%s0 + $0x1d0] sm:$0xff]
    %v2666 = vld [vmem:[%s0 + $0x1d8] sm:$0xff]
    %v2667 = vld [vmem:[%s0 + $0x1e0] sm:$0xff]
    %v2668 = vld [vmem:[%s0 + $0x1e8] sm:$0xff]
    %v2669 = vld [vmem:[%s0 + $0x1f0] sm:$0xff]
    %v2670 = vld [vmem:[%s0 + $0x1f8] sm:$0xff]
    %v2671 = vld [vmem:[%s0 + $0x200] sm:$0xff]
    %v2672 = vld [vmem:[%s0 + $0x208] sm:$0xff]
    %v2673 = vld [vmem:[%s0 + $0x210] sm:$0xff]
    %v2674 = vld [vmem:[%s0 + $0x218] sm:$0xff]
    %v2675 = vld [vmem:[%s0 + $0x220] sm:$0xff]
    %v2676 = vld [vmem:[%s0 + $0x228] sm:$0xff]
    %v2677 = vld [vmem:[%s0 + $0x230] sm:$0xff]
    %v2678 = vld [vmem:[%s0 + $0x238] sm:$0xff]
    %v2679 = vld [vmem:[%s0 + $0x240] sm:$0xff]
    %v2680 = vld [vmem:[%s0 + $0x248] sm:$0xff]
    %v2681 = vld [vmem:[%s0 + $0x250] sm:$0xff]
    %v2682 = vld [vmem:[%s0 + $0x258] sm:$0xff]
    %v2683 = vld [vmem:[%s0 + $0x260] sm:$0xff]
    %v2684 = vld [vmem:[%s0 + $0x268] sm:$0xff]
    %v2685 = vld [vmem:[%s0 + $0x270] sm:$0xff]
    %v2686 = vld [vmem:[%s0 + $0x278] sm:$0xff]
    %v2687 = vld [vmem:[%s0 + $0x280] sm:$0xff]
    %v2688 = vld [vmem:[%s0 + $0x288] sm:$0xff]
    %v2689 = vld [vmem:[%s0 + $0x290] sm:$0xff]
    %v2690 = vld [vmem:[%s0 + $0x298] sm:$0xff]
    %v2691 = vld [vmem:[%s0 + $0x2a0] sm:$0xff]
    %v2692 = vld [vmem:[%s0 + $0x2a8] sm:$0xff]
    %v2693 = vld [vmem:[%s0 + $0x2b0] sm:$0xff]
    %v2694 = vld [vmem:[%s0 + $0x2b8] sm:$0xff]
    %v2695 = vld [vmem:[%s0 + $0x2c0] sm:$0xff]
    %v2696 = vld [vmem:[%s0 + $0x2c8] sm:$0xff]
    %v2697 = vld [vmem:[%s0 + $0x2d0] sm:$0xff]
    %v2698 = vld [vmem:[%s0 + $0x2d8] sm:$0xff]
    %v2699 = vld [vmem:[%s0 + $0x2e0] sm:$0xff]
    %v2700 = vld [vmem:[%s0 + $0x2e8] sm:$0xff]
    %v2701 = vld [vmem:[%s0 + $0x2f0] sm:$0xff]
    %v2702 = vld [vmem:[%s0 + $0x2f8] sm:$0xff]
    %v2703 = vld [vmem:[%s0 + $0x300] sm:$0xff]
    %v2704 = vld [vmem:[%s0 + $0x308] sm:$0xff]
    %v2705 = vld [vmem:[%s0 + $0x310] sm:$0xff]
    %v2706 = vld [vmem:[%s0 + $0x318] sm:$0xff]
    %v2707 = vld [vmem:[%s0 + $0x320] sm:$0xff]
    %v2708 = vld [vmem:[%s0 + $0x328] sm:$0xff]
    %v2709 = vld [vmem:[%s0 + $0x330] sm:$0xff]
    %v2710 = vld [vmem:[%s0 + $0x338] sm:$0xff]
    %v2711 = vld [vmem:[%s0 + $0x340] sm:$0xff]
    %v2712 = vld [vmem:[%s0 + $0x348] sm:$0xff]
    %v2713 = vld [vmem:[%s0 + $0x350] sm:$0xff]
    %v2714 = vld [vmem:[%s0 + $0x358] sm:$0xff]
    %v2715 = vld [vmem:[%s0 + $0x360] sm:$0xff]
    %v2716 = vld [vmem:[%s0 + $0x368] sm:$0xff]
    %v2717 = vld [vmem:[%s0 + $0x370] sm:$0xff]
    %v2718 = vld [vmem:[%s0 + $0x378] sm:$0xff]
    %v2719 = vld [vmem:[%s0 + $0x380] sm:$0xff]
    %v2720 = vld [vmem:[%s0 + $0x388] sm:$0xff]
    %v2721 = vld [vmem:[%s0 + $0x390] sm:$0xff]
    %v2722 = vld [vmem:[%s0 + $0x398] sm:$0xff]
    %v2723 = vld [vmem:[%s0 + $0x3a0] sm:$0xff]
    %v2724 = vld [vmem:[%s0 + $0x3a8] sm:$0xff]
    %v2725 = vld [vmem:[%s0 + $0x3b0] sm:$0xff]
    %v2726 = vld [vmem:[%s0 + $0x3b8] sm:$0xff]
    %v2727 = vld [vmem:[%s0 + $0x3c0] sm:$0xff]
    %v2728 = vld [vmem:[%s0 + $0x3c8] sm:$0xff]
    %v2729 = vld [vmem:[%s0 + $0x3d0] sm:$0xff]
    %v2730 = vld [vmem:[%s0 + $0x3d8] sm:$0xff]
    %v2731 = vld [vmem:[%s0 + $0x3e0] sm:$0xff]
    %v2732 = vld [vmem:[%s0 + $0x3e8] sm:$0xff]
    %v2733 = vld [vmem:[%s0 + $0x3f0] sm:$0xff]
    %v2734 = vld [vmem:[%s0 + $0x3f8] sm:$0xff]
    %2863 = vrot.lane.b32.xlu0 %v2607, 16
    %v2864 = vpop.permute.xlu0 %2863
    %2865 = vrot.lane.b32.xlu0 %v2608, 16
    %v2866 = vpop.permute.xlu0 %2865
    %2867 = vrot.lane.b32.xlu0 %v2609, 16
    %v2868 = vpop.permute.xlu0 %2867
    %2869 = vrot.lane.b32.xlu0 %v2610, 16
    %v2870 = vpop.permute.xlu0 %2869
    %2871 = vrot.lane.b32.xlu0 %v2611, 16
    %v2872 = vpop.permute.xlu0 %2871
    %2873 = vrot.lane.b32.xlu0 %v2612, 16
    %v2874 = vpop.permute.xlu0 %2873
    %2875 = vrot.lane.b32.xlu0 %v2613, 16
    %v2876 = vpop.permute.xlu0 %2875
    %2877 = vrot.lane.b32.xlu0 %v2614, 16
    %v2878 = vpop.permute.xlu0 %2877
    %2879 = vrot.lane.b32.xlu0 %v2615, 16
    %v2880 = vpop.permute.xlu0 %2879
    %2881 = vrot.lane.b32.xlu0 %v2616, 16
    %v2882 = vpop.permute.xlu0 %2881
    %2883 = vrot.lane.b32.xlu0 %v2617, 16
    %v2884 = vpop.permute.xlu0 %2883
    %2885 = vrot.lane.b32.xlu0 %v2618, 16
    %v2886 = vpop.permute.xlu0 %2885
    %2887 = vrot.lane.b32.xlu0 %v2619, 16
    %v2888 = vpop.permute.xlu0 %2887
    %2889 = vrot.lane.b32.xlu0 %v2620, 16
    %v2890 = vpop.permute.xlu0 %2889
    %2891 = vrot.lane.b32.xlu0 %v2621, 16
    %v2892 = vpop.permute.xlu0 %2891
    %2893 = vrot.lane.b32.xlu0 %v2622, 16
    %v2894 = vpop.permute.xlu0 %2893
    %2895 = vrot.lane.b32.xlu0 %v2623, 16
    %v2896 = vpop.permute.xlu0 %2895
    %2897 = vrot.lane.b32.xlu0 %v2624, 16
    %v2898 = vpop.permute.xlu0 %2897
    %2899 = vrot.lane.b32.xlu0 %v2625, 16
    %v2900 = vpop.permute.xlu0 %2899
    %2901 = vrot.lane.b32.xlu0 %v2626, 16
    %v2902 = vpop.permute.xlu0 %2901
    %2903 = vrot.lane.b32.xlu0 %v2627, 16
    %v2904 = vpop.permute.xlu0 %2903
    %2905 = vrot.lane.b32.xlu0 %v2628, 16
    %v2906 = vpop.permute.xlu0 %2905
    %2907 = vrot.lane.b32.xlu0 %v2629, 16
    %v2908 = vpop.permute.xlu0 %2907
    %2909 = vrot.lane.b32.xlu0 %v2630, 16
    %v2910 = vpop.permute.xlu0 %2909
    %2911 = vrot.lane.b32.xlu0 %v2631, 16
    %v2912 = vpop.permute.xlu0 %2911
    %2913 = vrot.lane.b32.xlu0 %v2632, 16
    %v2914 = vpop.permute.xlu0 %2913
    %2915 = vrot.lane.b32.xlu0 %v2633, 16
    %v2916 = vpop.permute.xlu0 %2915
    %2917 = vrot.lane.b32.xlu0 %v2634, 16
    %v2918 = vpop.permute.xlu0 %2917
    %2919 = vrot.lane.b32.xlu0 %v2635, 16
    %v2920 = vpop.permute.xlu0 %2919
    %2921 = vrot.lane.b32.xlu0 %v2636, 16
    %v2922 = vpop.permute.xlu0 %2921
    %2923 = vrot.lane.b32.xlu0 %v2637, 16
    %v2924 = vpop.permute.xlu0 %2923
    %2925 = vrot.lane.b32.xlu0 %v2638, 16
    %v2926 = vpop.permute.xlu0 %2925
    %2927 = vrot.lane.b32.xlu0 %v2639, 16
    %v2928 = vpop.permute.xlu0 %2927
    %2929 = vrot.lane.b32.xlu0 %v2640, 16
    %v2930 = vpop.permute.xlu0 %2929
    %2931 = vrot.lane.b32.xlu0 %v2641, 16
    %v2932 = vpop.permute.xlu0 %2931
    %2933 = vrot.lane.b32.xlu0 %v2642, 16
    %v2934 = vpop.permute.xlu0 %2933
    %2935 = vrot.lane.b32.xlu0 %v2643, 16
    %v2936 = vpop.permute.xlu0 %2935
    %2937 = vrot.lane.b32.xlu0 %v2644, 16
    %v2938 = vpop.permute.xlu0 %2937
    %2939 = vrot.lane.b32.xlu0 %v2645, 16
    %v2940 = vpop.permute.xlu0 %2939
    %2941 = vrot.lane.b32.xlu0 %v2646, 16
    %v2942 = vpop.permute.xlu0 %2941
    %2943 = vrot.lane.b32.xlu0 %v2647, 16
    %v2944 = vpop.permute.xlu0 %2943
    %2945 = vrot.lane.b32.xlu0 %v2648, 16
    %v2946 = vpop.permute.xlu0 %2945
    %2947 = vrot.lane.b32.xlu0 %v2649, 16
    %v2948 = vpop.permute.xlu0 %2947
    %2949 = vrot.lane.b32.xlu0 %v2650, 16
    %v2950 = vpop.permute.xlu0 %2949
    %2951 = vrot.lane.b32.xlu0 %v2651, 16
    %v2952 = vpop.permute.xlu0 %2951
    %2953 = vrot.lane.b32.xlu0 %v2652, 16
    %v2954 = vpop.permute.xlu0 %2953
    %2955 = vrot.lane.b32.xlu0 %v2653, 16
    %v2956 = vpop.permute.xlu0 %2955
    %2957 = vrot.lane.b32.xlu0 %v2654, 16
    %v2958 = vpop.permute.xlu0 %2957
    %2959 = vrot.lane.b32.xlu0 %v2655, 16
    %v2960 = vpop.permute.xlu0 %2959
    %2961 = vrot.lane.b32.xlu0 %v2656, 16
    %v2962 = vpop.permute.xlu0 %2961
    %2963 = vrot.lane.b32.xlu0 %v2657, 16
    %v2964 = vpop.permute.xlu0 %2963
    %2965 = vrot.lane.b32.xlu0 %v2658, 16
    %v2966 = vpop.permute.xlu0 %2965
    %2967 = vrot.lane.b32.xlu0 %v2659, 16
    %v2968 = vpop.permute.xlu0 %2967
    %2969 = vrot.lane.b32.xlu0 %v2660, 16
    %v2970 = vpop.permute.xlu0 %2969
    %2971 = vrot.lane.b32.xlu0 %v2661, 16
    %v2972 = vpop.permute.xlu0 %2971
    %2973 = vrot.lane.b32.xlu0 %v2662, 16
    %v2974 = vpop.permute.xlu0 %2973
    %2975 = vrot.lane.b32.xlu0 %v2663, 16
    %v2976 = vpop.permute.xlu0 %2975
    %2977 = vrot.lane.b32.xlu0 %v2664, 16
    %v2978 = vpop.permute.xlu0 %2977
    %2979 = vrot.lane.b32.xlu0 %v2665, 16
    %v2980 = vpop.permute.xlu0 %2979
    %2981 = vrot.lane.b32.xlu0 %v2666, 16
    %v2982 = vpop.permute.xlu0 %2981
    %2983 = vrot.lane.b32.xlu0 %v2667, 16
    %v2984 = vpop.permute.xlu0 %2983
    %2985 = vrot.lane.b32.xlu0 %v2668, 16
    %v2986 = vpop.permute.xlu0 %2985
    %2987 = vrot.lane.b32.xlu0 %v2669, 16
    %v2988 = vpop.permute.xlu0 %2987
    %2989 = vrot.lane.b32.xlu0 %v2670, 16
    %v2990 = vpop.permute.xlu0 %2989
    %2991 = vrot.lane.b32.xlu0 %v2671, 16
    %v2992 = vpop.permute.xlu0 %2991
    %2993 = vrot.lane.b32.xlu0 %v2672, 16
    %v2994 = vpop.permute.xlu0 %2993
    %2995 = vrot.lane.b32.xlu0 %v2673, 16
    %v2996 = vpop.permute.xlu0 %2995
    %2997 = vrot.lane.b32.xlu0 %v2674, 16
    %v2998 = vpop.permute.xlu0 %2997
    %2999 = vrot.lane.b32.xlu0 %v2675, 16
    %v3000 = vpop.permute.xlu0 %2999
    %3001 = vrot.lane.b32.xlu0 %v2676, 16
    %v3002 = vpop.permute.xlu0 %3001
    %3003 = vrot.lane.b32.xlu0 %v2677, 16
    %v3004 = vpop.permute.xlu0 %3003
    %3005 = vrot.lane.b32.xlu0 %v2678, 16
    %v3006 = vpop.permute.xlu0 %3005
    %3007 = vrot.lane.b32.xlu0 %v2679, 16
    %v3008 = vpop.permute.xlu0 %3007
    %3009 = vrot.lane.b32.xlu0 %v2680, 16
    %v3010 = vpop.permute.xlu0 %3009
    %3011 = vrot.lane.b32.xlu0 %v2681, 16
    %v3012 = vpop.permute.xlu0 %3011
    %3013 = vrot.lane.b32.xlu0 %v2682, 16
    %v3014 = vpop.permute.xlu0 %3013
    %3015 = vrot.lane.b32.xlu0 %v2683, 16
    %v3016 = vpop.permute.xlu0 %3015
    %3017 = vrot.lane.b32.xlu0 %v2684, 16
    %v3018 = vpop.permute.xlu0 %3017
    %3019 = vrot.lane.b32.xlu0 %v2685, 16
    %v3020 = vpop.permute.xlu0 %3019
    %3021 = vrot.lane.b32.xlu0 %v2686, 16
    %v3022 = vpop.permute.xlu0 %3021
    %3023 = vrot.lane.b32.xlu0 %v2687, 16
    %v3024 = vpop.permute.xlu0 %3023
    %3025 = vrot.lane.b32.xlu0 %v2688, 16
    %v3026 = vpop.permute.xlu0 %3025
    %3027 = vrot.lane.b32.xlu0 %v2689, 16
    %v3028 = vpop.permute.xlu0 %3027
    %3029 = vrot.lane.b32.xlu0 %v2690, 16
    %v3030 = vpop.permute.xlu0 %3029
    %3031 = vrot.lane.b32.xlu0 %v2691, 16
    %v3032 = vpop.permute.xlu0 %3031
    %3033 = vrot.lane.b32.xlu0 %v2692, 16
    %v3034 = vpop.permute.xlu0 %3033
    %3035 = vrot.lane.b32.xlu0 %v2693, 16
    %v3036 = vpop.permute.xlu0 %3035
    %3037 = vrot.lane.b32.xlu0 %v2694, 16
    %v3038 = vpop.permute.xlu0 %3037
    %3039 = vrot.lane.b32.xlu0 %v2695, 16
    %v3040 = vpop.permute.xlu0 %3039
    %3041 = vrot.lane.b32.xlu0 %v2696, 16
    %v3042 = vpop.permute.xlu0 %3041
    %3043 = vrot.lane.b32.xlu0 %v2697, 16
    %v3044 = vpop.permute.xlu0 %3043
    %3045 = vrot.lane.b32.xlu0 %v2698, 16
    %v3046 = vpop.permute.xlu0 %3045
    %3047 = vrot.lane.b32.xlu0 %v2699, 16
    %v3048 = vpop.permute.xlu0 %3047
    %3049 = vrot.lane.b32.xlu0 %v2700, 16
    %v3050 = vpop.permute.xlu0 %3049
    %3051 = vrot.lane.b32.xlu0 %v2701, 16
    %v3052 = vpop.permute.xlu0 %3051
    %3053 = vrot.lane.b32.xlu0 %v2702, 16
    %v3054 = vpop.permute.xlu0 %3053
    %3055 = vrot.lane.b32.xlu0 %v2703, 16
    %v3056 = vpop.permute.xlu0 %3055
    %3057 = vrot.lane.b32.xlu0 %v2704, 16
    %v3058 = vpop.permute.xlu0 %3057
    %3059 = vrot.lane.b32.xlu0 %v2705, 16
    %v3060 = vpop.permute.xlu0 %3059
    %3061 = vrot.lane.b32.xlu0 %v2706, 16
    %v3062 = vpop.permute.xlu0 %3061
    %3063 = vrot.lane.b32.xlu0 %v2707, 16
    %v3064 = vpop.permute.xlu0 %3063
    %3065 = vrot.lane.b32.xlu0 %v2708, 16
    %v3066 = vpop.permute.xlu0 %3065
    %3067 = vrot.lane.b32.xlu0 %v2709, 16
    %v3068 = vpop.permute.xlu0 %3067
    %3069 = vrot.lane.b32.xlu0 %v2710, 16
    %v3070 = vpop.permute.xlu0 %3069
    %3071 = vrot.lane.b32.xlu0 %v2711, 16
    %v3072 = vpop.permute.xlu0 %3071
    %3073 = vrot.lane.b32.xlu0 %v2712, 16
    %v3074 = vpop.permute.xlu0 %3073
    %3075 = vrot.lane.b32.xlu0 %v2713, 16
    %v3076 = vpop.permute.xlu0 %3075
    %3077 = vrot.lane.b32.xlu0 %v2714, 16
    %v3078 = vpop.permute.xlu0 %3077
    %3079 = vrot.lane.b32.xlu0 %v2715, 16
    %v3080 = vpop.permute.xlu0 %3079
    %3081 = vrot.lane.b32.xlu0 %v2716, 16
    %v3082 = vpop.permute.xlu0 %3081
    %3083 = vrot.lane.b32.xlu0 %v2717, 16
    %v3084 = vpop.permute.xlu0 %3083
    %3085 = vrot.lane.b32.xlu0 %v2718, 16
    %v3086 = vpop.permute.xlu0 %3085
    %3087 = vrot.lane.b32.xlu0 %v2719, 16
    %v3088 = vpop.permute.xlu0 %3087
    %3089 = vrot.lane.b32.xlu0 %v2720, 16
    %v3090 = vpop.permute.xlu0 %3089
    %3091 = vrot.lane.b32.xlu0 %v2721, 16
    %v3092 = vpop.permute.xlu0 %3091
    %3093 = vrot.lane.b32.xlu0 %v2722, 16
    %v3094 = vpop.permute.xlu0 %3093
    %3095 = vrot.lane.b32.xlu0 %v2723, 16
    %v3096 = vpop.permute.xlu0 %3095
    %3097 = vrot.lane.b32.xlu0 %v2724, 16
    %v3098 = vpop.permute.xlu0 %3097
    %3099 = vrot.lane.b32.xlu0 %v2725, 16
    %v3100 = vpop.permute.xlu0 %3099
    %3101 = vrot.lane.b32.xlu0 %v2726, 16
    %v3102 = vpop.permute.xlu0 %3101
    %3103 = vrot.lane.b32.xlu0 %v2727, 16
    %v3104 = vpop.permute.xlu0 %3103
    %3105 = vrot.lane.b32.xlu0 %v2728, 16
    %v3106 = vpop.permute.xlu0 %3105
    %3107 = vrot.lane.b32.xlu0 %v2729, 16
    %v3108 = vpop.permute.xlu0 %3107
    %3109 = vrot.lane.b32.xlu0 %v2730, 16
    %v3110 = vpop.permute.xlu0 %3109
    %3111 = vrot.lane.b32.xlu0 %v2731, 16
    %v3112 = vpop.permute.xlu0 %3111
    %3113 = vrot.lane.b32.xlu0 %v2732, 16
    %v3114 = vpop.permute.xlu0 %3113
    %3115 = vrot.lane.b32.xlu0 %v2733, 16
    %v3116 = vpop.permute.xlu0 %3115
    %3117 = vrot.lane.b32.xlu0 %v2734, 16
    %v3118 = vpop.permute.xlu0 %3117
    %vm3247 = vcmask 162944
    %3248 = vst.msk [vmem:[#allocation2] sm:$0xff] %vm3247, %v2864
    %3249 = vst.msk [vmem:[#allocation2 + $0x8] sm:$0xff] %vm3247, %v2866
    %3250 = vst.msk [vmem:[#allocation2 + $0x10] sm:$0xff] %vm3247, %v2868
    %3251 = vst.msk [vmem:[#allocation2 + $0x18] sm:$0xff] %vm3247, %v2870
    %3252 = vst.msk [vmem:[#allocation2 + $0x20] sm:$0xff] %vm3247, %v2872
    %3253 = vst.msk [vmem:[#allocation2 + $0x28] sm:$0xff] %vm3247, %v2874
    %3254 = vst.msk [vmem:[#allocation2 + $0x30] sm:$0xff] %vm3247, %v2876
    %3255 = vst.msk [vmem:[#allocation2 + $0x38] sm:$0xff] %vm3247, %v2878
    %3256 = vst.msk [vmem:[#allocation2 + $0x40] sm:$0xff] %vm3247, %v2880
    %3257 = vst.msk [vmem:[#allocation2 + $0x48] sm:$0xff] %vm3247, %v2882
    %3258 = vst.msk [vmem:[#allocation2 + $0x50] sm:$0xff] %vm3247, %v2884
    %3259 = vst.msk [vmem:[#allocation2 + $0x58] sm:$0xff] %vm3247, %v2886
    %3260 = vst.msk [vmem:[#allocation2 + $0x60] sm:$0xff] %vm3247, %v2888
    %3261 = vst.msk [vmem:[#allocation2 + $0x68] sm:$0xff] %vm3247, %v2890
    %3262 = vst.msk [vmem:[#allocation2 + $0x70] sm:$0xff] %vm3247, %v2892
    %3263 = vst.msk [vmem:[#allocation2 + $0x78] sm:$0xff] %vm3247, %v2894
    %3264 = vst.msk [vmem:[#allocation2 + $0x80] sm:$0xff] %vm3247, %v2896
    %3265 = vst.msk [vmem:[#allocation2 + $0x88] sm:$0xff] %vm3247, %v2898
    %3266 = vst.msk [vmem:[#allocation2 + $0x90] sm:$0xff] %vm3247, %v2900
    %3267 = vst.msk [vmem:[#allocation2 + $0x98] sm:$0xff] %vm3247, %v2902
    %3268 = vst.msk [vmem:[#allocation2 + $0xa0] sm:$0xff] %vm3247, %v2904
    %3269 = vst.msk [vmem:[#allocation2 + $0xa8] sm:$0xff] %vm3247, %v2906
    %3270 = vst.msk [vmem:[#allocation2 + $0xb0] sm:$0xff] %vm3247, %v2908
    %3271 = vst.msk [vmem:[#allocation2 + $0xb8] sm:$0xff] %vm3247, %v2910
    %3272 = vst.msk [vmem:[#allocation2 + $0xc0] sm:$0xff] %vm3247, %v2912
    %3273 = vst.msk [vmem:[#allocation2 + $0xc8] sm:$0xff] %vm3247, %v2914
    %3274 = vst.msk [vmem:[#allocation2 + $0xd0] sm:$0xff] %vm3247, %v2916
    %3275 = vst.msk [vmem:[#allocation2 + $0xd8] sm:$0xff] %vm3247, %v2918
    %3276 = vst.msk [vmem:[#allocation2 + $0xe0] sm:$0xff] %vm3247, %v2920
    %3277 = vst.msk [vmem:[#allocation2 + $0xe8] sm:$0xff] %vm3247, %v2922
    %3278 = vst.msk [vmem:[#allocation2 + $0xf0] sm:$0xff] %vm3247, %v2924
    %3279 = vst.msk [vmem:[#allocation2 + $0xf8] sm:$0xff] %vm3247, %v2926
    %3280 = vst.msk [vmem:[#allocation2 + $0x100] sm:$0xff] %vm3247, %v2928
    %3281 = vst.msk [vmem:[#allocation2 + $0x108] sm:$0xff] %vm3247, %v2930
    %3282 = vst.msk [vmem:[#allocation2 + $0x110] sm:$0xff] %vm3247, %v2932
    %3283 = vst.msk [vmem:[#allocation2 + $0x118] sm:$0xff] %vm3247, %v2934
    %3284 = vst.msk [vmem:[#allocation2 + $0x120] sm:$0xff] %vm3247, %v2936
    %3285 = vst.msk [vmem:[#allocation2 + $0x128] sm:$0xff] %vm3247, %v2938
    %3286 = vst.msk [vmem:[#allocation2 + $0x130] sm:$0xff] %vm3247, %v2940
    %3287 = vst.msk [vmem:[#allocation2 + $0x138] sm:$0xff] %vm3247, %v2942
    %3288 = vst.msk [vmem:[#allocation2 + $0x140] sm:$0xff] %vm3247, %v2944
    %3289 = vst.msk [vmem:[#allocation2 + $0x148] sm:$0xff] %vm3247, %v2946
    %3290 = vst.msk [vmem:[#allocation2 + $0x150] sm:$0xff] %vm3247, %v2948
    %3291 = vst.msk [vmem:[#allocation2 + $0x158] sm:$0xff] %vm3247, %v2950
    %3292 = vst.msk [vmem:[#allocation2 + $0x160] sm:$0xff] %vm3247, %v2952
    %3293 = vst.msk [vmem:[#allocation2 + $0x168] sm:$0xff] %vm3247, %v2954
    %3294 = vst.msk [vmem:[#allocation2 + $0x170] sm:$0xff] %vm3247, %v2956
    %3295 = vst.msk [vmem:[#allocation2 + $0x178] sm:$0xff] %vm3247, %v2958
    %3296 = vst.msk [vmem:[#allocation2 + $0x180] sm:$0xff] %vm3247, %v2960
    %3297 = vst.msk [vmem:[#allocation2 + $0x188] sm:$0xff] %vm3247, %v2962
    %3298 = vst.msk [vmem:[#allocation2 + $0x190] sm:$0xff] %vm3247, %v2964
    %3299 = vst.msk [vmem:[#allocation2 + $0x198] sm:$0xff] %vm3247, %v2966
    %3300 = vst.msk [vmem:[#allocation2 + $0x1a0] sm:$0xff] %vm3247, %v2968
    %3301 = vst.msk [vmem:[#allocation2 + $0x1a8] sm:$0xff] %vm3247, %v2970
    %3302 = vst.msk [vmem:[#allocation2 + $0x1b0] sm:$0xff] %vm3247, %v2972
    %3303 = vst.msk [vmem:[#allocation2 + $0x1b8] sm:$0xff] %vm3247, %v2974
    %3304 = vst.msk [vmem:[#allocation2 + $0x1c0] sm:$0xff] %vm3247, %v2976
    %3305 = vst.msk [vmem:[#allocation2 + $0x1c8] sm:$0xff] %vm3247, %v2978
    %3306 = vst.msk [vmem:[#allocation2 + $0x1d0] sm:$0xff] %vm3247, %v2980
    %3307 = vst.msk [vmem:[#allocation2 + $0x1d8] sm:$0xff] %vm3247, %v2982
    %3308 = vst.msk [vmem:[#allocation2 + $0x1e0] sm:$0xff] %vm3247, %v2984
    %3309 = vst.msk [vmem:[#allocation2 + $0x1e8] sm:$0xff] %vm3247, %v2986
    %3310 = vst.msk [vmem:[#allocation2 + $0x1f0] sm:$0xff] %vm3247, %v2988
    %3311 = vst.msk [vmem:[#allocation2 + $0x1f8] sm:$0xff] %vm3247, %v2990
    %3312 = vst.msk [vmem:[#allocation2 + $0x200] sm:$0xff] %vm3247, %v2992
    %3313 = vst.msk [vmem:[#allocation2 + $0x208] sm:$0xff] %vm3247, %v2994
    %3314 = vst.msk [vmem:[#allocation2 + $0x210] sm:$0xff] %vm3247, %v2996
    %3315 = vst.msk [vmem:[#allocation2 + $0x218] sm:$0xff] %vm3247, %v2998
    %3316 = vst.msk [vmem:[#allocation2 + $0x220] sm:$0xff] %vm3247, %v3000
    %3317 = vst.msk [vmem:[#allocation2 + $0x228] sm:$0xff] %vm3247, %v3002
    %3318 = vst.msk [vmem:[#allocation2 + $0x230] sm:$0xff] %vm3247, %v3004
    %3319 = vst.msk [vmem:[#allocation2 + $0x238] sm:$0xff] %vm3247, %v3006
    %3320 = vst.msk [vmem:[#allocation2 + $0x240] sm:$0xff] %vm3247, %v3008
    %3321 = vst.msk [vmem:[#allocation2 + $0x248] sm:$0xff] %vm3247, %v3010
    %3322 = vst.msk [vmem:[#allocation2 + $0x250] sm:$0xff] %vm3247, %v3012
    %3323 = vst.msk [vmem:[#allocation2 + $0x258] sm:$0xff] %vm3247, %v3014
    %3324 = vst.msk [vmem:[#allocation2 + $0x260] sm:$0xff] %vm3247, %v3016
    %3325 = vst.msk [vmem:[#allocation2 + $0x268] sm:$0xff] %vm3247, %v3018
    %3326 = vst.msk [vmem:[#allocation2 + $0x270] sm:$0xff] %vm3247, %v3020
    %3327 = vst.msk [vmem:[#allocation2 + $0x278] sm:$0xff] %vm3247, %v3022
    %3328 = vst.msk [vmem:[#allocation2 + $0x280] sm:$0xff] %vm3247, %v3024
    %3329 = vst.msk [vmem:[#allocation2 + $0x288] sm:$0xff] %vm3247, %v3026
    %3330 = vst.msk [vmem:[#allocation2 + $0x290] sm:$0xff] %vm3247, %v3028
    %3331 = vst.msk [vmem:[#allocation2 + $0x298] sm:$0xff] %vm3247, %v3030
    %3332 = vst.msk [vmem:[#allocation2 + $0x2a0] sm:$0xff] %vm3247, %v3032
    %3333 = vst.msk [vmem:[#allocation2 + $0x2a8] sm:$0xff] %vm3247, %v3034
    %3334 = vst.msk [vmem:[#allocation2 + $0x2b0] sm:$0xff] %vm3247, %v3036
    %3335 = vst.msk [vmem:[#allocation2 + $0x2b8] sm:$0xff] %vm3247, %v3038
    %3336 = vst.msk [vmem:[#allocation2 + $0x2c0] sm:$0xff] %vm3247, %v3040
    %3337 = vst.msk [vmem:[#allocation2 + $0x2c8] sm:$0xff] %vm3247, %v3042
    %3338 = vst.msk [vmem:[#allocation2 + $0x2d0] sm:$0xff] %vm3247, %v3044
    %3339 = vst.msk [vmem:[#allocation2 + $0x2d8] sm:$0xff] %vm3247, %v3046
    %3340 = vst.msk [vmem:[#allocation2 + $0x2e0] sm:$0xff] %vm3247, %v3048
    %3341 = vst.msk [vmem:[#allocation2 + $0x2e8] sm:$0xff] %vm3247, %v3050
    %3342 = vst.msk [vmem:[#allocation2 + $0x2f0] sm:$0xff] %vm3247, %v3052
    %3343 = vst.msk [vmem:[#allocation2 + $0x2f8] sm:$0xff] %vm3247, %v3054
    %3344 = vst.msk [vmem:[#allocation2 + $0x300] sm:$0xff] %vm3247, %v3056
    %3345 = vst.msk [vmem:[#allocation2 + $0x308] sm:$0xff] %vm3247, %v3058
    %3346 = vst.msk [vmem:[#allocation2 + $0x310] sm:$0xff] %vm3247, %v3060
    %3347 = vst.msk [vmem:[#allocation2 + $0x318] sm:$0xff] %vm3247, %v3062
    %3348 = vst.msk [vmem:[#allocation2 + $0x320] sm:$0xff] %vm3247, %v3064
    %3349 = vst.msk [vmem:[#allocation2 + $0x328] sm:$0xff] %vm3247, %v3066
    %3350 = vst.msk [vmem:[#allocation2 + $0x330] sm:$0xff] %vm3247, %v3068
    %3351 = vst.msk [vmem:[#allocation2 + $0x338] sm:$0xff] %vm3247, %v3070
    %3352 = vst.msk [vmem:[#allocation2 + $0x340] sm:$0xff] %vm3247, %v3072
    %3353 = vst.msk [vmem:[#allocation2 + $0x348] sm:$0xff] %vm3247, %v3074
    %3354 = vst.msk [vmem:[#allocation2 + $0x350] sm:$0xff] %vm3247, %v3076
    %3355 = vst.msk [vmem:[#allocation2 + $0x358] sm:$0xff] %vm3247, %v3078
    %3356 = vst.msk [vmem:[#allocation2 + $0x360] sm:$0xff] %vm3247, %v3080
    %3357 = vst.msk [vmem:[#allocation2 + $0x368] sm:$0xff] %vm3247, %v3082
    %3358 = vst.msk [vmem:[#allocation2 + $0x370] sm:$0xff] %vm3247, %v3084
    %3359 = vst.msk [vmem:[#allocation2 + $0x378] sm:$0xff] %vm3247, %v3086
    %3360 = vst.msk [vmem:[#allocation2 + $0x380] sm:$0xff] %vm3247, %v3088
    %3361 = vst.msk [vmem:[#allocation2 + $0x388] sm:$0xff] %vm3247, %v3090
    %3362 = vst.msk [vmem:[#allocation2 + $0x390] sm:$0xff] %vm3247, %v3092
    %3363 = vst.msk [vmem:[#allocation2 + $0x398] sm:$0xff] %vm3247, %v3094
    %3364 = vst.msk [vmem:[#allocation2 + $0x3a0] sm:$0xff] %vm3247, %v3096
    %3365 = vst.msk [vmem:[#allocation2 + $0x3a8] sm:$0xff] %vm3247, %v3098
    %3366 = vst.msk [vmem:[#allocation2 + $0x3b0] sm:$0xff] %vm3247, %v3100
    %3367 = vst.msk [vmem:[#allocation2 + $0x3b8] sm:$0xff] %vm3247, %v3102
    %3368 = vst.msk [vmem:[#allocation2 + $0x3c0] sm:$0xff] %vm3247, %v3104
    %3369 = vst.msk [vmem:[#allocation2 + $0x3c8] sm:$0xff] %vm3247, %v3106
    %3370 = vst.msk [vmem:[#allocation2 + $0x3d0] sm:$0xff] %vm3247, %v3108
    %3371 = vst.msk [vmem:[#allocation2 + $0x3d8] sm:$0xff] %vm3247, %v3110
    %3372 = vst.msk [vmem:[#allocation2 + $0x3e0] sm:$0xff] %vm3247, %v3112
    %3373 = vst.msk [vmem:[#allocation2 + $0x3e8] sm:$0xff] %vm3247, %v3114
    %3374 = vst.msk [vmem:[#allocation2 + $0x3f0] sm:$0xff] %vm3247, %v3116
    %3375 = vst.msk [vmem:[#allocation2 + $0x3f8] sm:$0xff] %vm3247, %v3118
    %v3376 = vld [vmem:[%s0 + $0x1] sm:$0xff]
    %v3377 = vld [vmem:[%s0 + $0x9] sm:$0x7f]
    %v3378 = vld [vmem:[%s0 + $0x11] sm:$0xff]
    %v3379 = vld [vmem:[%s0 + $0x19] sm:$0x7f]
    %v3380 = vld [vmem:[%s0 + $0x21] sm:$0xff]
    %v3381 = vld [vmem:[%s0 + $0x29] sm:$0x7f]
    %v3382 = vld [vmem:[%s0 + $0x31] sm:$0xff]
    %v3383 = vld [vmem:[%s0 + $0x39] sm:$0x7f]
    %v3384 = vld [vmem:[%s0 + $0x41] sm:$0xff]
    %v3385 = vld [vmem:[%s0 + $0x49] sm:$0x7f]
    %v3386 = vld [vmem:[%s0 + $0x51] sm:$0xff]
    %v3387 = vld [vmem:[%s0 + $0x59] sm:$0x7f]
    %v3388 = vld [vmem:[%s0 + $0x61] sm:$0xff]
    %v3389 = vld [vmem:[%s0 + $0x69] sm:$0x7f]
    %v3390 = vld [vmem:[%s0 + $0x71] sm:$0xff]
    %v3391 = vld [vmem:[%s0 + $0x79] sm:$0x7f]
    %v3392 = vld [vmem:[%s0 + $0x81] sm:$0xff]
    %v3393 = vld [vmem:[%s0 + $0x89] sm:$0x7f]
    %v3394 = vld [vmem:[%s0 + $0x91] sm:$0xff]
    %v3395 = vld [vmem:[%s0 + $0x99] sm:$0x7f]
    %v3396 = vld [vmem:[%s0 + $0xa1] sm:$0xff]
    %v3397 = vld [vmem:[%s0 + $0xa9] sm:$0x7f]
    %v3398 = vld [vmem:[%s0 + $0xb1] sm:$0xff]
    %v3399 = vld [vmem:[%s0 + $0xb9] sm:$0x7f]
    %v3400 = vld [vmem:[%s0 + $0xc1] sm:$0xff]
    %v3401 = vld [vmem:[%s0 + $0xc9] sm:$0x7f]
    %v3402 = vld [vmem:[%s0 + $0xd1] sm:$0xff]
    %v3403 = vld [vmem:[%s0 + $0xd9] sm:$0x7f]
    %v3404 = vld [vmem:[%s0 + $0xe1] sm:$0xff]
    %v3405 = vld [vmem:[%s0 + $0xe9] sm:$0x7f]
    %v3406 = vld [vmem:[%s0 + $0xf1] sm:$0xff]
    %v3407 = vld [vmem:[%s0 + $0xf9] sm:$0x7f]
    %v3408 = vld [vmem:[%s0 + $0x101] sm:$0xff]
    %v3409 = vld [vmem:[%s0 + $0x109] sm:$0x7f]
    %v3410 = vld [vmem:[%s0 + $0x111] sm:$0xff]
    %v3411 = vld [vmem:[%s0 + $0x119] sm:$0x7f]
    %v3412 = vld [vmem:[%s0 + $0x121] sm:$0xff]
    %v3413 = vld [vmem:[%s0 + $0x129] sm:$0x7f]
    %v3414 = vld [vmem:[%s0 + $0x131] sm:$0xff]
    %v3415 = vld [vmem:[%s0 + $0x139] sm:$0x7f]
    %v3416 = vld [vmem:[%s0 + $0x141] sm:$0xff]
    %v3417 = vld [vmem:[%s0 + $0x149] sm:$0x7f]
    %v3418 = vld [vmem:[%s0 + $0x151] sm:$0xff]
    %v3419 = vld [vmem:[%s0 + $0x159] sm:$0x7f]
    %v3420 = vld [vmem:[%s0 + $0x161] sm:$0xff]
    %v3421 = vld [vmem:[%s0 + $0x169] sm:$0x7f]
    %v3422 = vld [vmem:[%s0 + $0x171] sm:$0xff]
    %v3423 = vld [vmem:[%s0 + $0x179] sm:$0x7f]
    %v3424 = vld [vmem:[%s0 + $0x181] sm:$0xff]
    %v3425 = vld [vmem:[%s0 + $0x189] sm:$0x7f]
    %v3426 = vld [vmem:[%s0 + $0x191] sm:$0xff]
    %v3427 = vld [vmem:[%s0 + $0x199] sm:$0x7f]
    %v3428 = vld [vmem:[%s0 + $0x1a1] sm:$0xff]
    %v3429 = vld [vmem:[%s0 + $0x1a9] sm:$0x7f]
    %v3430 = vld [vmem:[%s0 + $0x1b1] sm:$0xff]
    %v3431 = vld [vmem:[%s0 + $0x1b9] sm:$0x7f]
    %v3432 = vld [vmem:[%s0 + $0x1c1] sm:$0xff]
    %v3433 = vld [vmem:[%s0 + $0x1c9] sm:$0x7f]
    %v3434 = vld [vmem:[%s0 + $0x1d1] sm:$0xff]
    %v3435 = vld [vmem:[%s0 + $0x1d9] sm:$0x7f]
    %v3436 = vld [vmem:[%s0 + $0x1e1] sm:$0xff]
    %v3437 = vld [vmem:[%s0 + $0x1e9] sm:$0x7f]
    %v3438 = vld [vmem:[%s0 + $0x1f1] sm:$0xff]
    %v3439 = vld [vmem:[%s0 + $0x1f9] sm:$0x7f]
    %v3440 = vld [vmem:[%s0 + $0x201] sm:$0xff]
    %v3441 = vld [vmem:[%s0 + $0x209] sm:$0x7f]
    %v3442 = vld [vmem:[%s0 + $0x211] sm:$0xff]
    %v3443 = vld [vmem:[%s0 + $0x219] sm:$0x7f]
    %v3444 = vld [vmem:[%s0 + $0x221] sm:$0xff]
    %v3445 = vld [vmem:[%s0 + $0x229] sm:$0x7f]
    %v3446 = vld [vmem:[%s0 + $0x231] sm:$0xff]
    %v3447 = vld [vmem:[%s0 + $0x239] sm:$0x7f]
    %v3448 = vld [vmem:[%s0 + $0x241] sm:$0xff]
    %v3449 = vld [vmem:[%s0 + $0x249] sm:$0x7f]
    %v3450 = vld [vmem:[%s0 + $0x251] sm:$0xff]
    %v3451 = vld [vmem:[%s0 + $0x259] sm:$0x7f]
    %v3452 = vld [vmem:[%s0 + $0x261] sm:$0xff]
    %v3453 = vld [vmem:[%s0 + $0x269] sm:$0x7f]
    %v3454 = vld [vmem:[%s0 + $0x271] sm:$0xff]
    %v3455 = vld [vmem:[%s0 + $0x279] sm:$0x7f]
    %v3456 = vld [vmem:[%s0 + $0x281] sm:$0xff]
    %v3457 = vld [vmem:[%s0 + $0x289] sm:$0x7f]
    %v3458 = vld [vmem:[%s0 + $0x291] sm:$0xff]
    %v3459 = vld [vmem:[%s0 + $0x299] sm:$0x7f]
    %v3460 = vld [vmem:[%s0 + $0x2a1] sm:$0xff]
    %v3461 = vld [vmem:[%s0 + $0x2a9] sm:$0x7f]
    %v3462 = vld [vmem:[%s0 + $0x2b1] sm:$0xff]
    %v3463 = vld [vmem:[%s0 + $0x2b9] sm:$0x7f]
    %v3464 = vld [vmem:[%s0 + $0x2c1] sm:$0xff]
    %v3465 = vld [vmem:[%s0 + $0x2c9] sm:$0x7f]
    %v3466 = vld [vmem:[%s0 + $0x2d1] sm:$0xff]
    %v3467 = vld [vmem:[%s0 + $0x2d9] sm:$0x7f]
    %v3468 = vld [vmem:[%s0 + $0x2e1] sm:$0xff]
    %v3469 = vld [vmem:[%s0 + $0x2e9] sm:$0x7f]
    %v3470 = vld [vmem:[%s0 + $0x2f1] sm:$0xff]
    %v3471 = vld [vmem:[%s0 + $0x2f9] sm:$0x7f]
    %v3472 = vld [vmem:[%s0 + $0x301] sm:$0xff]
    %v3473 = vld [vmem:[%s0 + $0x309] sm:$0x7f]
    %v3474 = vld [vmem:[%s0 + $0x311] sm:$0xff]
    %v3475 = vld [vmem:[%s0 + $0x319] sm:$0x7f]
    %v3476 = vld [vmem:[%s0 + $0x321] sm:$0xff]
    %v3477 = vld [vmem:[%s0 + $0x329] sm:$0x7f]
    %v3478 = vld [vmem:[%s0 + $0x331] sm:$0xff]
    %v3479 = vld [vmem:[%s0 + $0x339] sm:$0x7f]
    %v3480 = vld [vmem:[%s0 + $0x341] sm:$0xff]
    %v3481 = vld [vmem:[%s0 + $0x349] sm:$0x7f]
    %v3482 = vld [vmem:[%s0 + $0x351] sm:$0xff]
    %v3483 = vld [vmem:[%s0 + $0x359] sm:$0x7f]
    %v3484 = vld [vmem:[%s0 + $0x361] sm:$0xff]
    %v3485 = vld [vmem:[%s0 + $0x369] sm:$0x7f]
    %v3486 = vld [vmem:[%s0 + $0x371] sm:$0xff]
    %v3487 = vld [vmem:[%s0 + $0x379] sm:$0x7f]
    %v3488 = vld [vmem:[%s0 + $0x381] sm:$0xff]
    %v3489 = vld [vmem:[%s0 + $0x389] sm:$0x7f]
    %v3490 = vld [vmem:[%s0 + $0x391] sm:$0xff]
    %v3491 = vld [vmem:[%s0 + $0x399] sm:$0x7f]
    %v3492 = vld [vmem:[%s0 + $0x3a1] sm:$0xff]
    %v3493 = vld [vmem:[%s0 + $0x3a9] sm:$0x7f]
    %v3494 = vld [vmem:[%s0 + $0x3b1] sm:$0xff]
    %v3495 = vld [vmem:[%s0 + $0x3b9] sm:$0x7f]
    %v3496 = vld [vmem:[%s0 + $0x3c1] sm:$0xff]
    %v3497 = vld [vmem:[%s0 + $0x3c9] sm:$0x7f]
    %v3498 = vld [vmem:[%s0 + $0x3d1] sm:$0xff]
    %v3499 = vld [vmem:[%s0 + $0x3d9] sm:$0x7f]
    %v3500 = vld [vmem:[%s0 + $0x3e1] sm:$0xff]
    %v3501 = vld [vmem:[%s0 + $0x3e9] sm:$0x7f]
    %v3502 = vld [vmem:[%s0 + $0x3f1] sm:$0xff]
    %v3503 = vld [vmem:[%s0 + $0x3f9] sm:$0x7f]
    %3632 = vrot.lane.b32.xlu0 %v3376, 20
    %v3633 = vpop.permute.xlu0 %3632
    %3634 = vrot.lane.b32.xlu0 %v3377, 20
    %v3635 = vpop.permute.xlu0 %3634
    %3636 = vrot.lane.b32.xlu0 %v3378, 20
    %v3637 = vpop.permute.xlu0 %3636
    %3638 = vrot.lane.b32.xlu0 %v3379, 20
    %v3639 = vpop.permute.xlu0 %3638
    %3640 = vrot.lane.b32.xlu0 %v3380, 20
    %v3641 = vpop.permute.xlu0 %3640
    %3642 = vrot.lane.b32.xlu0 %v3381, 20
    %v3643 = vpop.permute.xlu0 %3642
    %3644 = vrot.lane.b32.xlu0 %v3382, 20
    %v3645 = vpop.permute.xlu0 %3644
    %3646 = vrot.lane.b32.xlu0 %v3383, 20
    %v3647 = vpop.permute.xlu0 %3646
    %3648 = vrot.lane.b32.xlu0 %v3384, 20
    %v3649 = vpop.permute.xlu0 %3648
    %3650 = vrot.lane.b32.xlu0 %v3385, 20
    %v3651 = vpop.permute.xlu0 %3650
    %3652 = vrot.lane.b32.xlu0 %v3386, 20
    %v3653 = vpop.permute.xlu0 %3652
    %3654 = vrot.lane.b32.xlu0 %v3387, 20
    %v3655 = vpop.permute.xlu0 %3654
    %3656 = vrot.lane.b32.xlu0 %v3388, 20
    %v3657 = vpop.permute.xlu0 %3656
    %3658 = vrot.lane.b32.xlu0 %v3389, 20
    %v3659 = vpop.permute.xlu0 %3658
    %3660 = vrot.lane.b32.xlu0 %v3390, 20
    %v3661 = vpop.permute.xlu0 %3660
    %3662 = vrot.lane.b32.xlu0 %v3391, 20
    %v3663 = vpop.permute.xlu0 %3662
    %3664 = vrot.lane.b32.xlu0 %v3392, 20
    %v3665 = vpop.permute.xlu0 %3664
    %3666 = vrot.lane.b32.xlu0 %v3393, 20
    %v3667 = vpop.permute.xlu0 %3666
    %3668 = vrot.lane.b32.xlu0 %v3394, 20
    %v3669 = vpop.permute.xlu0 %3668
    %3670 = vrot.lane.b32.xlu0 %v3395, 20
    %v3671 = vpop.permute.xlu0 %3670
    %3672 = vrot.lane.b32.xlu0 %v3396, 20
    %v3673 = vpop.permute.xlu0 %3672
    %3674 = vrot.lane.b32.xlu0 %v3397, 20
    %v3675 = vpop.permute.xlu0 %3674
    %3676 = vrot.lane.b32.xlu0 %v3398, 20
    %v3677 = vpop.permute.xlu0 %3676
    %3678 = vrot.lane.b32.xlu0 %v3399, 20
    %v3679 = vpop.permute.xlu0 %3678
    %3680 = vrot.lane.b32.xlu0 %v3400, 20
    %v3681 = vpop.permute.xlu0 %3680
    %3682 = vrot.lane.b32.xlu0 %v3401, 20
    %v3683 = vpop.permute.xlu0 %3682
    %3684 = vrot.lane.b32.xlu0 %v3402, 20
    %v3685 = vpop.permute.xlu0 %3684
    %3686 = vrot.lane.b32.xlu0 %v3403, 20
    %v3687 = vpop.permute.xlu0 %3686
    %3688 = vrot.lane.b32.xlu0 %v3404, 20
    %v3689 = vpop.permute.xlu0 %3688
    %3690 = vrot.lane.b32.xlu0 %v3405, 20
    %v3691 = vpop.permute.xlu0 %3690
    %3692 = vrot.lane.b32.xlu0 %v3406, 20
    %v3693 = vpop.permute.xlu0 %3692
    %3694 = vrot.lane.b32.xlu0 %v3407, 20
    %v3695 = vpop.permute.xlu0 %3694
    %3696 = vrot.lane.b32.xlu0 %v3408, 20
    %v3697 = vpop.permute.xlu0 %3696
    %3698 = vrot.lane.b32.xlu0 %v3409, 20
    %v3699 = vpop.permute.xlu0 %3698
    %3700 = vrot.lane.b32.xlu0 %v3410, 20
    %v3701 = vpop.permute.xlu0 %3700
    %3702 = vrot.lane.b32.xlu0 %v3411, 20
    %v3703 = vpop.permute.xlu0 %3702
    %3704 = vrot.lane.b32.xlu0 %v3412, 20
    %v3705 = vpop.permute.xlu0 %3704
    %3706 = vrot.lane.b32.xlu0 %v3413, 20
    %v3707 = vpop.permute.xlu0 %3706
    %3708 = vrot.lane.b32.xlu0 %v3414, 20
    %v3709 = vpop.permute.xlu0 %3708
    %3710 = vrot.lane.b32.xlu0 %v3415, 20
    %v3711 = vpop.permute.xlu0 %3710
    %3712 = vrot.lane.b32.xlu0 %v3416, 20
    %v3713 = vpop.permute.xlu0 %3712
    %3714 = vrot.lane.b32.xlu0 %v3417, 20
    %v3715 = vpop.permute.xlu0 %3714
    %3716 = vrot.lane.b32.xlu0 %v3418, 20
    %v3717 = vpop.permute.xlu0 %3716
    %3718 = vrot.lane.b32.xlu0 %v3419, 20
    %v3719 = vpop.permute.xlu0 %3718
    %3720 = vrot.lane.b32.xlu0 %v3420, 20
    %v3721 = vpop.permute.xlu0 %3720
    %3722 = vrot.lane.b32.xlu0 %v3421, 20
    %v3723 = vpop.permute.xlu0 %3722
    %3724 = vrot.lane.b32.xlu0 %v3422, 20
    %v3725 = vpop.permute.xlu0 %3724
    %3726 = vrot.lane.b32.xlu0 %v3423, 20
    %v3727 = vpop.permute.xlu0 %3726
    %3728 = vrot.lane.b32.xlu0 %v3424, 20
    %v3729 = vpop.permute.xlu0 %3728
    %3730 = vrot.lane.b32.xlu0 %v3425, 20
    %v3731 = vpop.permute.xlu0 %3730
    %3732 = vrot.lane.b32.xlu0 %v3426, 20
    %v3733 = vpop.permute.xlu0 %3732
    %3734 = vrot.lane.b32.xlu0 %v3427, 20
    %v3735 = vpop.permute.xlu0 %3734
    %3736 = vrot.lane.b32.xlu0 %v3428, 20
    %v3737 = vpop.permute.xlu0 %3736
    %3738 = vrot.lane.b32.xlu0 %v3429, 20
    %v3739 = vpop.permute.xlu0 %3738
    %3740 = vrot.lane.b32.xlu0 %v3430, 20
    %v3741 = vpop.permute.xlu0 %3740
    %3742 = vrot.lane.b32.xlu0 %v3431, 20
    %v3743 = vpop.permute.xlu0 %3742
    %3744 = vrot.lane.b32.xlu0 %v3432, 20
    %v3745 = vpop.permute.xlu0 %3744
    %3746 = vrot.lane.b32.xlu0 %v3433, 20
    %v3747 = vpop.permute.xlu0 %3746
    %3748 = vrot.lane.b32.xlu0 %v3434, 20
    %v3749 = vpop.permute.xlu0 %3748
    %3750 = vrot.lane.b32.xlu0 %v3435, 20
    %v3751 = vpop.permute.xlu0 %3750
    %3752 = vrot.lane.b32.xlu0 %v3436, 20
    %v3753 = vpop.permute.xlu0 %3752
    %3754 = vrot.lane.b32.xlu0 %v3437, 20
    %v3755 = vpop.permute.xlu0 %3754
    %3756 = vrot.lane.b32.xlu0 %v3438, 20
    %v3757 = vpop.permute.xlu0 %3756
    %3758 = vrot.lane.b32.xlu0 %v3439, 20
    %v3759 = vpop.permute.xlu0 %3758
    %3760 = vrot.lane.b32.xlu0 %v3440, 20
    %v3761 = vpop.permute.xlu0 %3760
    %3762 = vrot.lane.b32.xlu0 %v3441, 20
    %v3763 = vpop.permute.xlu0 %3762
    %3764 = vrot.lane.b32.xlu0 %v3442, 20
    %v3765 = vpop.permute.xlu0 %3764
    %3766 = vrot.lane.b32.xlu0 %v3443, 20
    %v3767 = vpop.permute.xlu0 %3766
    %3768 = vrot.lane.b32.xlu0 %v3444, 20
    %v3769 = vpop.permute.xlu0 %3768
    %3770 = vrot.lane.b32.xlu0 %v3445, 20
    %v3771 = vpop.permute.xlu0 %3770
    %3772 = vrot.lane.b32.xlu0 %v3446, 20
    %v3773 = vpop.permute.xlu0 %3772
    %3774 = vrot.lane.b32.xlu0 %v3447, 20
    %v3775 = vpop.permute.xlu0 %3774
    %3776 = vrot.lane.b32.xlu0 %v3448, 20
    %v3777 = vpop.permute.xlu0 %3776
    %3778 = vrot.lane.b32.xlu0 %v3449, 20
    %v3779 = vpop.permute.xlu0 %3778
    %3780 = vrot.lane.b32.xlu0 %v3450, 20
    %v3781 = vpop.permute.xlu0 %3780
    %3782 = vrot.lane.b32.xlu0 %v3451, 20
    %v3783 = vpop.permute.xlu0 %3782
    %3784 = vrot.lane.b32.xlu0 %v3452, 20
    %v3785 = vpop.permute.xlu0 %3784
    %3786 = vrot.lane.b32.xlu0 %v3453, 20
    %v3787 = vpop.permute.xlu0 %3786
    %3788 = vrot.lane.b32.xlu0 %v3454, 20
    %v3789 = vpop.permute.xlu0 %3788
    %3790 = vrot.lane.b32.xlu0 %v3455, 20
    %v3791 = vpop.permute.xlu0 %3790
    %3792 = vrot.lane.b32.xlu0 %v3456, 20
    %v3793 = vpop.permute.xlu0 %3792
    %3794 = vrot.lane.b32.xlu0 %v3457, 20
    %v3795 = vpop.permute.xlu0 %3794
    %3796 = vrot.lane.b32.xlu0 %v3458, 20
    %v3797 = vpop.permute.xlu0 %3796
    %3798 = vrot.lane.b32.xlu0 %v3459, 20
    %v3799 = vpop.permute.xlu0 %3798
    %3800 = vrot.lane.b32.xlu0 %v3460, 20
    %v3801 = vpop.permute.xlu0 %3800
    %3802 = vrot.lane.b32.xlu0 %v3461, 20
    %v3803 = vpop.permute.xlu0 %3802
    %3804 = vrot.lane.b32.xlu0 %v3462, 20
    %v3805 = vpop.permute.xlu0 %3804
    %3806 = vrot.lane.b32.xlu0 %v3463, 20
    %v3807 = vpop.permute.xlu0 %3806
    %3808 = vrot.lane.b32.xlu0 %v3464, 20
    %v3809 = vpop.permute.xlu0 %3808
    %3810 = vrot.lane.b32.xlu0 %v3465, 20
    %v3811 = vpop.permute.xlu0 %3810
    %3812 = vrot.lane.b32.xlu0 %v3466, 20
    %v3813 = vpop.permute.xlu0 %3812
    %3814 = vrot.lane.b32.xlu0 %v3467, 20
    %v3815 = vpop.permute.xlu0 %3814
    %3816 = vrot.lane.b32.xlu0 %v3468, 20
    %v3817 = vpop.permute.xlu0 %3816
    %3818 = vrot.lane.b32.xlu0 %v3469, 20
    %v3819 = vpop.permute.xlu0 %3818
    %3820 = vrot.lane.b32.xlu0 %v3470, 20
    %v3821 = vpop.permute.xlu0 %3820
    %3822 = vrot.lane.b32.xlu0 %v3471, 20
    %v3823 = vpop.permute.xlu0 %3822
    %3824 = vrot.lane.b32.xlu0 %v3472, 20
    %v3825 = vpop.permute.xlu0 %3824
    %3826 = vrot.lane.b32.xlu0 %v3473, 20
    %v3827 = vpop.permute.xlu0 %3826
    %3828 = vrot.lane.b32.xlu0 %v3474, 20
    %v3829 = vpop.permute.xlu0 %3828
    %3830 = vrot.lane.b32.xlu0 %v3475, 20
    %v3831 = vpop.permute.xlu0 %3830
    %3832 = vrot.lane.b32.xlu0 %v3476, 20
    %v3833 = vpop.permute.xlu0 %3832
    %3834 = vrot.lane.b32.xlu0 %v3477, 20
    %v3835 = vpop.permute.xlu0 %3834
    %3836 = vrot.lane.b32.xlu0 %v3478, 20
    %v3837 = vpop.permute.xlu0 %3836
    %3838 = vrot.lane.b32.xlu0 %v3479, 20
    %v3839 = vpop.permute.xlu0 %3838
    %3840 = vrot.lane.b32.xlu0 %v3480, 20
    %v3841 = vpop.permute.xlu0 %3840
    %3842 = vrot.lane.b32.xlu0 %v3481, 20
    %v3843 = vpop.permute.xlu0 %3842
    %3844 = vrot.lane.b32.xlu0 %v3482, 20
    %v3845 = vpop.permute.xlu0 %3844
    %3846 = vrot.lane.b32.xlu0 %v3483, 20
    %v3847 = vpop.permute.xlu0 %3846
    %3848 = vrot.lane.b32.xlu0 %v3484, 20
    %v3849 = vpop.permute.xlu0 %3848
    %3850 = vrot.lane.b32.xlu0 %v3485, 20
    %v3851 = vpop.permute.xlu0 %3850
    %3852 = vrot.lane.b32.xlu0 %v3486, 20
    %v3853 = vpop.permute.xlu0 %3852
    %3854 = vrot.lane.b32.xlu0 %v3487, 20
    %v3855 = vpop.permute.xlu0 %3854
    %3856 = vrot.lane.b32.xlu0 %v3488, 20
    %v3857 = vpop.permute.xlu0 %3856
    %3858 = vrot.lane.b32.xlu0 %v3489, 20
    %v3859 = vpop.permute.xlu0 %3858
    %3860 = vrot.lane.b32.xlu0 %v3490, 20
    %v3861 = vpop.permute.xlu0 %3860
    %3862 = vrot.lane.b32.xlu0 %v3491, 20
    %v3863 = vpop.permute.xlu0 %3862
    %3864 = vrot.lane.b32.xlu0 %v3492, 20
    %v3865 = vpop.permute.xlu0 %3864
    %3866 = vrot.lane.b32.xlu0 %v3493, 20
    %v3867 = vpop.permute.xlu0 %3866
    %3868 = vrot.lane.b32.xlu0 %v3494, 20
    %v3869 = vpop.permute.xlu0 %3868
    %3870 = vrot.lane.b32.xlu0 %v3495, 20
    %v3871 = vpop.permute.xlu0 %3870
    %3872 = vrot.lane.b32.xlu0 %v3496, 20
    %v3873 = vpop.permute.xlu0 %3872
    %3874 = vrot.lane.b32.xlu0 %v3497, 20
    %v3875 = vpop.permute.xlu0 %3874
    %3876 = vrot.lane.b32.xlu0 %v3498, 20
    %v3877 = vpop.permute.xlu0 %3876
    %3878 = vrot.lane.b32.xlu0 %v3499, 20
    %v3879 = vpop.permute.xlu0 %3878
    %3880 = vrot.lane.b32.xlu0 %v3500, 20
    %v3881 = vpop.permute.xlu0 %3880
    %3882 = vrot.lane.b32.xlu0 %v3501, 20
    %v3883 = vpop.permute.xlu0 %3882
    %3884 = vrot.lane.b32.xlu0 %v3502, 20
    %v3885 = vpop.permute.xlu0 %3884
    %3886 = vrot.lane.b32.xlu0 %v3503, 20
    %v3887 = vpop.permute.xlu0 %3886
    %vm4016 = vcmask 195744
    %4017 = vst.msk [vmem:[#allocation2] sm:$0xff] %vm4016, %v3633
    %vm4018 = vcmask 194720
    %4019 = vst.msk [vmem:[#allocation2 + $0x8] sm:$0x7f] %vm4018, %v3635
    %4020 = vst.msk [vmem:[#allocation2 + $0x10] sm:$0xff] %vm4016, %v3637
    %4021 = vst.msk [vmem:[#allocation2 + $0x18] sm:$0x7f] %vm4018, %v3639
    %4022 = vst.msk [vmem:[#allocation2 + $0x20] sm:$0xff] %vm4016, %v3641
    %4023 = vst.msk [vmem:[#allocation2 + $0x28] sm:$0x7f] %vm4018, %v3643
    %4024 = vst.msk [vmem:[#allocation2 + $0x30] sm:$0xff] %vm4016, %v3645
    %4025 = vst.msk [vmem:[#allocation2 + $0x38] sm:$0x7f] %vm4018, %v3647
    %4026 = vst.msk [vmem:[#allocation2 + $0x40] sm:$0xff] %vm4016, %v3649
    %4027 = vst.msk [vmem:[#allocation2 + $0x48] sm:$0x7f] %vm4018, %v3651
    %4028 = vst.msk [vmem:[#allocation2 + $0x50] sm:$0xff] %vm4016, %v3653
    %4029 = vst.msk [vmem:[#allocation2 + $0x58] sm:$0x7f] %vm4018, %v3655
    %4030 = vst.msk [vmem:[#allocation2 + $0x60] sm:$0xff] %vm4016, %v3657
    %4031 = vst.msk [vmem:[#allocation2 + $0x68] sm:$0x7f] %vm4018, %v3659
    %4032 = vst.msk [vmem:[#allocation2 + $0x70] sm:$0xff] %vm4016, %v3661
    %4033 = vst.msk [vmem:[#allocation2 + $0x78] sm:$0x7f] %vm4018, %v3663
    %4034 = vst.msk [vmem:[#allocation2 + $0x80] sm:$0xff] %vm4016, %v3665
    %4035 = vst.msk [vmem:[#allocation2 + $0x88] sm:$0x7f] %vm4018, %v3667
    %4036 = vst.msk [vmem:[#allocation2 + $0x90] sm:$0xff] %vm4016, %v3669
    %4037 = vst.msk [vmem:[#allocation2 + $0x98] sm:$0x7f] %vm4018, %v3671
    %4038 = vst.msk [vmem:[#allocation2 + $0xa0] sm:$0xff] %vm4016, %v3673
    %4039 = vst.msk [vmem:[#allocation2 + $0xa8] sm:$0x7f] %vm4018, %v3675
    %4040 = vst.msk [vmem:[#allocation2 + $0xb0] sm:$0xff] %vm4016, %v3677
    %4041 = vst.msk [vmem:[#allocation2 + $0xb8] sm:$0x7f] %vm4018, %v3679
    %4042 = vst.msk [vmem:[#allocation2 + $0xc0] sm:$0xff] %vm4016, %v3681
    %4043 = vst.msk [vmem:[#allocation2 + $0xc8] sm:$0x7f] %vm4018, %v3683
    %4044 = vst.msk [vmem:[#allocation2 + $0xd0] sm:$0xff] %vm4016, %v3685
    %4045 = vst.msk [vmem:[#allocation2 + $0xd8] sm:$0x7f] %vm4018, %v3687
    %4046 = vst.msk [vmem:[#allocation2 + $0xe0] sm:$0xff] %vm4016, %v3689
    %4047 = vst.msk [vmem:[#allocation2 + $0xe8] sm:$0x7f] %vm4018, %v3691
    %4048 = vst.msk [vmem:[#allocation2 + $0xf0] sm:$0xff] %vm4016, %v3693
    %4049 = vst.msk [vmem:[#allocation2 + $0xf8] sm:$0x7f] %vm4018, %v3695
    %4050 = vst.msk [vmem:[#allocation2 + $0x100] sm:$0xff] %vm4016, %v3697
    %4051 = vst.msk [vmem:[#allocation2 + $0x108] sm:$0x7f] %vm4018, %v3699
    %4052 = vst.msk [vmem:[#allocation2 + $0x110] sm:$0xff] %vm4016, %v3701
    %4053 = vst.msk [vmem:[#allocation2 + $0x118] sm:$0x7f] %vm4018, %v3703
    %4054 = vst.msk [vmem:[#allocation2 + $0x120] sm:$0xff] %vm4016, %v3705
    %4055 = vst.msk [vmem:[#allocation2 + $0x128] sm:$0x7f] %vm4018, %v3707
    %4056 = vst.msk [vmem:[#allocation2 + $0x130] sm:$0xff] %vm4016, %v3709
    %4057 = vst.msk [vmem:[#allocation2 + $0x138] sm:$0x7f] %vm4018, %v3711
    %4058 = vst.msk [vmem:[#allocation2 + $0x140] sm:$0xff] %vm4016, %v3713
    %4059 = vst.msk [vmem:[#allocation2 + $0x148] sm:$0x7f] %vm4018, %v3715
    %4060 = vst.msk [vmem:[#allocation2 + $0x150] sm:$0xff] %vm4016, %v3717
    %4061 = vst.msk [vmem:[#allocation2 + $0x158] sm:$0x7f] %vm4018, %v3719
    %4062 = vst.msk [vmem:[#allocation2 + $0x160] sm:$0xff] %vm4016, %v3721
    %4063 = vst.msk [vmem:[#allocation2 + $0x168] sm:$0x7f] %vm4018, %v3723
    %4064 = vst.msk [vmem:[#allocation2 + $0x170] sm:$0xff] %vm4016, %v3725
    %4065 = vst.msk [vmem:[#allocation2 + $0x178] sm:$0x7f] %vm4018, %v3727
    %4066 = vst.msk [vmem:[#allocation2 + $0x180] sm:$0xff] %vm4016, %v3729
    %4067 = vst.msk [vmem:[#allocation2 + $0x188] sm:$0x7f] %vm4018, %v3731
    %4068 = vst.msk [vmem:[#allocation2 + $0x190] sm:$0xff] %vm4016, %v3733
    %4069 = vst.msk [vmem:[#allocation2 + $0x198] sm:$0x7f] %vm4018, %v3735
    %4070 = vst.msk [vmem:[#allocation2 + $0x1a0] sm:$0xff] %vm4016, %v3737
    %4071 = vst.msk [vmem:[#allocation2 + $0x1a8] sm:$0x7f] %vm4018, %v3739
    %4072 = vst.msk [vmem:[#allocation2 + $0x1b0] sm:$0xff] %vm4016, %v3741
    %4073 = vst.msk [vmem:[#allocation2 + $0x1b8] sm:$0x7f] %vm4018, %v3743
    %4074 = vst.msk [vmem:[#allocation2 + $0x1c0] sm:$0xff] %vm4016, %v3745
    %4075 = vst.msk [vmem:[#allocation2 + $0x1c8] sm:$0x7f] %vm4018, %v3747
    %4076 = vst.msk [vmem:[#allocation2 + $0x1d0] sm:$0xff] %vm4016, %v3749
    %4077 = vst.msk [vmem:[#allocation2 + $0x1d8] sm:$0x7f] %vm4018, %v3751
    %4078 = vst.msk [vmem:[#allocation2 + $0x1e0] sm:$0xff] %vm4016, %v3753
    %4079 = vst.msk [vmem:[#allocation2 + $0x1e8] sm:$0x7f] %vm4018, %v3755
    %4080 = vst.msk [vmem:[#allocation2 + $0x1f0] sm:$0xff] %vm4016, %v3757
    %4081 = vst.msk [vmem:[#allocation2 + $0x1f8] sm:$0x7f] %vm4018, %v3759
    %4082 = vst.msk [vmem:[#allocation2 + $0x200] sm:$0xff] %vm4016, %v3761
    %4083 = vst.msk [vmem:[#allocation2 + $0x208] sm:$0x7f] %vm4018, %v3763
    %4084 = vst.msk [vmem:[#allocation2 + $0x210] sm:$0xff] %vm4016, %v3765
    %4085 = vst.msk [vmem:[#allocation2 + $0x218] sm:$0x7f] %vm4018, %v3767
    %4086 = vst.msk [vmem:[#allocation2 + $0x220] sm:$0xff] %vm4016, %v3769
    %4087 = vst.msk [vmem:[#allocation2 + $0x228] sm:$0x7f] %vm4018, %v3771
    %4088 = vst.msk [vmem:[#allocation2 + $0x230] sm:$0xff] %vm4016, %v3773
    %4089 = vst.msk [vmem:[#allocation2 + $0x238] sm:$0x7f] %vm4018, %v3775
    %4090 = vst.msk [vmem:[#allocation2 + $0x240] sm:$0xff] %vm4016, %v3777
    %4091 = vst.msk [vmem:[#allocation2 + $0x248] sm:$0x7f] %vm4018, %v3779
    %4092 = vst.msk [vmem:[#allocation2 + $0x250] sm:$0xff] %vm4016, %v3781
    %4093 = vst.msk [vmem:[#allocation2 + $0x258] sm:$0x7f] %vm4018, %v3783
    %4094 = vst.msk [vmem:[#allocation2 + $0x260] sm:$0xff] %vm4016, %v3785
    %4095 = vst.msk [vmem:[#allocation2 + $0x268] sm:$0x7f] %vm4018, %v3787
    %4096 = vst.msk [vmem:[#allocation2 + $0x270] sm:$0xff] %vm4016, %v3789
    %4097 = vst.msk [vmem:[#allocation2 + $0x278] sm:$0x7f] %vm4018, %v3791
    %4098 = vst.msk [vmem:[#allocation2 + $0x280] sm:$0xff] %vm4016, %v3793
    %4099 = vst.msk [vmem:[#allocation2 + $0x288] sm:$0x7f] %vm4018, %v3795
    %4100 = vst.msk [vmem:[#allocation2 + $0x290] sm:$0xff] %vm4016, %v3797
    %4101 = vst.msk [vmem:[#allocation2 + $0x298] sm:$0x7f] %vm4018, %v3799
    %4102 = vst.msk [vmem:[#allocation2 + $0x2a0] sm:$0xff] %vm4016, %v3801
    %4103 = vst.msk [vmem:[#allocation2 + $0x2a8] sm:$0x7f] %vm4018, %v3803
    %4104 = vst.msk [vmem:[#allocation2 + $0x2b0] sm:$0xff] %vm4016, %v3805
    %4105 = vst.msk [vmem:[#allocation2 + $0x2b8] sm:$0x7f] %vm4018, %v3807
    %4106 = vst.msk [vmem:[#allocation2 + $0x2c0] sm:$0xff] %vm4016, %v3809
    %4107 = vst.msk [vmem:[#allocation2 + $0x2c8] sm:$0x7f] %vm4018, %v3811
    %4108 = vst.msk [vmem:[#allocation2 + $0x2d0] sm:$0xff] %vm4016, %v3813
    %4109 = vst.msk [vmem:[#allocation2 + $0x2d8] sm:$0x7f] %vm4018, %v3815
    %4110 = vst.msk [vmem:[#allocation2 + $0x2e0] sm:$0xff] %vm4016, %v3817
    %4111 = vst.msk [vmem:[#allocation2 + $0x2e8] sm:$0x7f] %vm4018, %v3819
    %4112 = vst.msk [vmem:[#allocation2 + $0x2f0] sm:$0xff] %vm4016, %v3821
    %4113 = vst.msk [vmem:[#allocation2 + $0x2f8] sm:$0x7f] %vm4018, %v3823
    %4114 = vst.msk [vmem:[#allocation2 + $0x300] sm:$0xff] %vm4016, %v3825
    %4115 = vst.msk [vmem:[#allocation2 + $0x308] sm:$0x7f] %vm4018, %v3827
    %4116 = vst.msk [vmem:[#allocation2 + $0x310] sm:$0xff] %vm4016, %v3829
    %4117 = vst.msk [vmem:[#allocation2 + $0x318] sm:$0x7f] %vm4018, %v3831
    %4118 = vst.msk [vmem:[#allocation2 + $0x320] sm:$0xff] %vm4016, %v3833
    %4119 = vst.msk [vmem:[#allocation2 + $0x328] sm:$0x7f] %vm4018, %v3835
    %4120 = vst.msk [vmem:[#allocation2 + $0x330] sm:$0xff] %vm4016, %v3837
    %4121 = vst.msk [vmem:[#allocation2 + $0x338] sm:$0x7f] %vm4018, %v3839
    %4122 = vst.msk [vmem:[#allocation2 + $0x340] sm:$0xff] %vm4016, %v3841
    %4123 = vst.msk [vmem:[#allocation2 + $0x348] sm:$0x7f] %vm4018, %v3843
    %4124 = vst.msk [vmem:[#allocation2 + $0x350] sm:$0xff] %vm4016, %v3845
    %4125 = vst.msk [vmem:[#allocation2 + $0x358] sm:$0x7f] %vm4018, %v3847
    %4126 = vst.msk [vmem:[#allocation2 + $0x360] sm:$0xff] %vm4016, %v3849
    %4127 = vst.msk [vmem:[#allocation2 + $0x368] sm:$0x7f] %vm4018, %v3851
    %4128 = vst.msk [vmem:[#allocation2 + $0x370] sm:$0xff] %vm4016, %v3853
    %4129 = vst.msk [vmem:[#allocation2 + $0x378] sm:$0x7f] %vm4018, %v3855
    %4130 = vst.msk [vmem:[#allocation2 + $0x380] sm:$0xff] %vm4016, %v3857
    %4131 = vst.msk [vmem:[#allocation2 + $0x388] sm:$0x7f] %vm4018, %v3859
    %4132 = vst.msk [vmem:[#allocation2 + $0x390] sm:$0xff] %vm4016, %v3861
    %4133 = vst.msk [vmem:[#allocation2 + $0x398] sm:$0x7f] %vm4018, %v3863
    %4134 = vst.msk [vmem:[#allocation2 + $0x3a0] sm:$0xff] %vm4016, %v3865
    %4135 = vst.msk [vmem:[#allocation2 + $0x3a8] sm:$0x7f] %vm4018, %v3867
    %4136 = vst.msk [vmem:[#allocation2 + $0x3b0] sm:$0xff] %vm4016, %v3869
    %4137 = vst.msk [vmem:[#allocation2 + $0x3b8] sm:$0x7f] %vm4018, %v3871
    %4138 = vst.msk [vmem:[#allocation2 + $0x3c0] sm:$0xff] %vm4016, %v3873
    %4139 = vst.msk [vmem:[#allocation2 + $0x3c8] sm:$0x7f] %vm4018, %v3875
    %4140 = vst.msk [vmem:[#allocation2 + $0x3d0] sm:$0xff] %vm4016, %v3877
    %4141 = vst.msk [vmem:[#allocation2 + $0x3d8] sm:$0x7f] %vm4018, %v3879
    %4142 = vst.msk [vmem:[#allocation2 + $0x3e0] sm:$0xff] %vm4016, %v3881
    %4143 = vst.msk [vmem:[#allocation2 + $0x3e8] sm:$0x7f] %vm4018, %v3883
    %4144 = vst.msk [vmem:[#allocation2 + $0x3f0] sm:$0xff] %vm4016, %v3885
    %4145 = vst.msk [vmem:[#allocation2 + $0x3f8] sm:$0x7f] %vm4018, %v3887
    %s4146 = scalar_lea.vmem %s0, 16
    %v4147 = vld [vmem:[%s4146] sm:$0xff]
    %v4148 = vld [vmem:[%s4146 + $0x8] sm:$0x7f]
    %v4149 = vld [vmem:[%s4146 + $0x10] sm:$0xff]
    %v4150 = vld [vmem:[%s4146 + $0x18] sm:$0x7f]
    %v4151 = vld [vmem:[%s4146 + $0x20] sm:$0xff]
    %v4152 = vld [vmem:[%s4146 + $0x28] sm:$0x7f]
    %v4153 = vld [vmem:[%s4146 + $0x30] sm:$0xff]
    %v4154 = vld [vmem:[%s4146 + $0x38] sm:$0x7f]
    %v4155 = vld [vmem:[%s4146 + $0x40] sm:$0xff]
    %v4156 = vld [vmem:[%s4146 + $0x48] sm:$0x7f]
    %v4157 = vld [vmem:[%s4146 + $0x50] sm:$0xff]
    %v4158 = vld [vmem:[%s4146 + $0x58] sm:$0x7f]
    %v4159 = vld [vmem:[%s4146 + $0x60] sm:$0xff]
    %v4160 = vld [vmem:[%s4146 + $0x68] sm:$0x7f]
    %v4161 = vld [vmem:[%s4146 + $0x70] sm:$0xff]
    %v4162 = vld [vmem:[%s4146 + $0x78] sm:$0x7f]
    %v4163 = vld [vmem:[%s4146 + $0x80] sm:$0xff]
    %v4164 = vld [vmem:[%s4146 + $0x88] sm:$0x7f]
    %v4165 = vld [vmem:[%s4146 + $0x90] sm:$0xff]
    %v4166 = vld [vmem:[%s4146 + $0x98] sm:$0x7f]
    %v4167 = vld [vmem:[%s4146 + $0xa0] sm:$0xff]
    %v4168 = vld [vmem:[%s4146 + $0xa8] sm:$0x7f]
    %v4169 = vld [vmem:[%s4146 + $0xb0] sm:$0xff]
    %v4170 = vld [vmem:[%s4146 + $0xb8] sm:$0x7f]
    %v4171 = vld [vmem:[%s4146 + $0xc0] sm:$0xff]
    %v4172 = vld [vmem:[%s4146 + $0xc8] sm:$0x7f]
    %v4173 = vld [vmem:[%s4146 + $0xd0] sm:$0xff]
    %v4174 = vld [vmem:[%s4146 + $0xd8] sm:$0x7f]
    %v4175 = vld [vmem:[%s4146 + $0xe0] sm:$0xff]
    %v4176 = vld [vmem:[%s4146 + $0xe8] sm:$0x7f]
    %v4177 = vld [vmem:[%s4146 + $0x100] sm:$0xff]
    %v4178 = vld [vmem:[%s4146 + $0x108] sm:$0x7f]
    %v4179 = vld [vmem:[%s4146 + $0x110] sm:$0xff]
    %v4180 = vld [vmem:[%s4146 + $0x118] sm:$0x7f]
    %v4181 = vld [vmem:[%s4146 + $0x120] sm:$0xff]
    %v4182 = vld [vmem:[%s4146 + $0x128] sm:$0x7f]
    %v4183 = vld [vmem:[%s4146 + $0x130] sm:$0xff]
    %v4184 = vld [vmem:[%s4146 + $0x138] sm:$0x7f]
    %v4185 = vld [vmem:[%s4146 + $0x140] sm:$0xff]
    %v4186 = vld [vmem:[%s4146 + $0x148] sm:$0x7f]
    %v4187 = vld [vmem:[%s4146 + $0x150] sm:$0xff]
    %v4188 = vld [vmem:[%s4146 + $0x158] sm:$0x7f]
    %v4189 = vld [vmem:[%s4146 + $0x160] sm:$0xff]
    %v4190 = vld [vmem:[%s4146 + $0x168] sm:$0x7f]
    %v4191 = vld [vmem:[%s4146 + $0x170] sm:$0xff]
    %v4192 = vld [vmem:[%s4146 + $0x178] sm:$0x7f]
    %v4193 = vld [vmem:[%s4146 + $0x180] sm:$0xff]
    %v4194 = vld [vmem:[%s4146 + $0x188] sm:$0x7f]
    %v4195 = vld [vmem:[%s4146 + $0x190] sm:$0xff]
    %v4196 = vld [vmem:[%s4146 + $0x198] sm:$0x7f]
    %v4197 = vld [vmem:[%s4146 + $0x1a0] sm:$0xff]
    %v4198 = vld [vmem:[%s4146 + $0x1a8] sm:$0x7f]
    %v4199 = vld [vmem:[%s4146 + $0x1b0] sm:$0xff]
    %v4200 = vld [vmem:[%s4146 + $0x1b8] sm:$0x7f]
    %v4201 = vld [vmem:[%s4146 + $0x1c0] sm:$0xff]
    %v4202 = vld [vmem:[%s4146 + $0x1c8] sm:$0x7f]
    %v4203 = vld [vmem:[%s4146 + $0x1d0] sm:$0xff]
    %v4204 = vld [vmem:[%s4146 + $0x1d8] sm:$0x7f]
    %v4205 = vld [vmem:[%s4146 + $0x1e0] sm:$0xff]
    %v4206 = vld [vmem:[%s4146 + $0x1e8] sm:$0x7f]
    %v4207 = vld [vmem:[%s4146 + $0x200] sm:$0xff]
    %v4208 = vld [vmem:[%s4146 + $0x208] sm:$0x7f]
    %v4209 = vld [vmem:[%s4146 + $0x210] sm:$0xff]
    %v4210 = vld [vmem:[%s4146 + $0x218] sm:$0x7f]
    %v4211 = vld [vmem:[%s4146 + $0x220] sm:$0xff]
    %v4212 = vld [vmem:[%s4146 + $0x228] sm:$0x7f]
    %v4213 = vld [vmem:[%s4146 + $0x230] sm:$0xff]
    %v4214 = vld [vmem:[%s4146 + $0x238] sm:$0x7f]
    %v4215 = vld [vmem:[%s4146 + $0x240] sm:$0xff]
    %v4216 = vld [vmem:[%s4146 + $0x248] sm:$0x7f]
    %v4217 = vld [vmem:[%s4146 + $0x250] sm:$0xff]
    %v4218 = vld [vmem:[%s4146 + $0x258] sm:$0x7f]
    %v4219 = vld [vmem:[%s4146 + $0x260] sm:$0xff]
    %v4220 = vld [vmem:[%s4146 + $0x268] sm:$0x7f]
    %v4221 = vld [vmem:[%s4146 + $0x270] sm:$0xff]
    %v4222 = vld [vmem:[%s4146 + $0x278] sm:$0x7f]
    %v4223 = vld [vmem:[%s4146 + $0x280] sm:$0xff]
    %v4224 = vld [vmem:[%s4146 + $0x288] sm:$0x7f]
    %v4225 = vld [vmem:[%s4146 + $0x290] sm:$0xff]
    %v4226 = vld [vmem:[%s4146 + $0x298] sm:$0x7f]
    %v4227 = vld [vmem:[%s4146 + $0x2a0] sm:$0xff]
    %v4228 = vld [vmem:[%s4146 + $0x2a8] sm:$0x7f]
    %v4229 = vld [vmem:[%s4146 + $0x2b0] sm:$0xff]
    %v4230 = vld [vmem:[%s4146 + $0x2b8] sm:$0x7f]
    %v4231 = vld [vmem:[%s4146 + $0x2c0] sm:$0xff]
    %v4232 = vld [vmem:[%s4146 + $0x2c8] sm:$0x7f]
    %v4233 = vld [vmem:[%s4146 + $0x2d0] sm:$0xff]
    %v4234 = vld [vmem:[%s4146 + $0x2d8] sm:$0x7f]
    %v4235 = vld [vmem:[%s4146 + $0x2e0] sm:$0xff]
    %v4236 = vld [vmem:[%s4146 + $0x2e8] sm:$0x7f]
    %v4237 = vld [vmem:[%s4146 + $0x300] sm:$0xff]
    %v4238 = vld [vmem:[%s4146 + $0x308] sm:$0x7f]
    %v4239 = vld [vmem:[%s4146 + $0x310] sm:$0xff]
    %v4240 = vld [vmem:[%s4146 + $0x318] sm:$0x7f]
    %v4241 = vld [vmem:[%s4146 + $0x320] sm:$0xff]
    %v4242 = vld [vmem:[%s4146 + $0x328] sm:$0x7f]
    %v4243 = vld [vmem:[%s4146 + $0x330] sm:$0xff]
    %v4244 = vld [vmem:[%s4146 + $0x338] sm:$0x7f]
    %v4245 = vld [vmem:[%s4146 + $0x340] sm:$0xff]
    %v4246 = vld [vmem:[%s4146 + $0x348] sm:$0x7f]
    %v4247 = vld [vmem:[%s4146 + $0x350] sm:$0xff]
    %v4248 = vld [vmem:[%s4146 + $0x358] sm:$0x7f]
    %v4249 = vld [vmem:[%s4146 + $0x360] sm:$0xff]
    %v4250 = vld [vmem:[%s4146 + $0x368] sm:$0x7f]
    %v4251 = vld [vmem:[%s4146 + $0x370] sm:$0xff]
    %v4252 = vld [vmem:[%s4146 + $0x378] sm:$0x7f]
    %v4253 = vld [vmem:[%s4146 + $0x380] sm:$0xff]
    %v4254 = vld [vmem:[%s4146 + $0x388] sm:$0x7f]
    %v4255 = vld [vmem:[%s4146 + $0x390] sm:$0xff]
    %v4256 = vld [vmem:[%s4146 + $0x398] sm:$0x7f]
    %v4257 = vld [vmem:[%s4146 + $0x3a0] sm:$0xff]
    %v4258 = vld [vmem:[%s4146 + $0x3a8] sm:$0x7f]
    %v4259 = vld [vmem:[%s4146 + $0x3b0] sm:$0xff]
    %v4260 = vld [vmem:[%s4146 + $0x3b8] sm:$0x7f]
    %v4261 = vld [vmem:[%s4146 + $0x3c0] sm:$0xff]
    %v4262 = vld [vmem:[%s4146 + $0x3c8] sm:$0x7f]
    %v4263 = vld [vmem:[%s4146 + $0x3d0] sm:$0xff]
    %v4264 = vld [vmem:[%s4146 + $0x3d8] sm:$0x7f]
    %v4265 = vld [vmem:[%s4146 + $0x3e0] sm:$0xff]
    %v4266 = vld [vmem:[%s4146 + $0x3e8] sm:$0x7f]
    %4387 = vrot.lane.b32.xlu0 %v4147, 24
    %v4388 = vpop.permute.xlu0 %4387
    %4389 = vrot.lane.b32.xlu0 %v4148, 24
    %v4390 = vpop.permute.xlu0 %4389
    %4391 = vrot.lane.b32.xlu0 %v4149, 24
    %v4392 = vpop.permute.xlu0 %4391
    %4393 = vrot.lane.b32.xlu0 %v4150, 24
    %v4394 = vpop.permute.xlu0 %4393
    %4395 = vrot.lane.b32.xlu0 %v4151, 24
    %v4396 = vpop.permute.xlu0 %4395
    %4397 = vrot.lane.b32.xlu0 %v4152, 24
    %v4398 = vpop.permute.xlu0 %4397
    %4399 = vrot.lane.b32.xlu0 %v4153, 24
    %v4400 = vpop.permute.xlu0 %4399
    %4401 = vrot.lane.b32.xlu0 %v4154, 24
    %v4402 = vpop.permute.xlu0 %4401
    %4403 = vrot.lane.b32.xlu0 %v4155, 24
    %v4404 = vpop.permute.xlu0 %4403
    %4405 = vrot.lane.b32.xlu0 %v4156, 24
    %v4406 = vpop.permute.xlu0 %4405
    %4407 = vrot.lane.b32.xlu0 %v4157, 24
    %v4408 = vpop.permute.xlu0 %4407
    %4409 = vrot.lane.b32.xlu0 %v4158, 24
    %v4410 = vpop.permute.xlu0 %4409
    %4411 = vrot.lane.b32.xlu0 %v4159, 24
    %v4412 = vpop.permute.xlu0 %4411
    %4413 = vrot.lane.b32.xlu0 %v4160, 24
    %v4414 = vpop.permute.xlu0 %4413
    %4415 = vrot.lane.b32.xlu0 %v4161, 24
    %v4416 = vpop.permute.xlu0 %4415
    %4417 = vrot.lane.b32.xlu0 %v4162, 24
    %v4418 = vpop.permute.xlu0 %4417
    %4419 = vrot.lane.b32.xlu0 %v4163, 24
    %v4420 = vpop.permute.xlu0 %4419
    %4421 = vrot.lane.b32.xlu0 %v4164, 24
    %v4422 = vpop.permute.xlu0 %4421
    %4423 = vrot.lane.b32.xlu0 %v4165, 24
    %v4424 = vpop.permute.xlu0 %4423
    %4425 = vrot.lane.b32.xlu0 %v4166, 24
    %v4426 = vpop.permute.xlu0 %4425
    %4427 = vrot.lane.b32.xlu0 %v4167, 24
    %v4428 = vpop.permute.xlu0 %4427
    %4429 = vrot.lane.b32.xlu0 %v4168, 24
    %v4430 = vpop.permute.xlu0 %4429
    %4431 = vrot.lane.b32.xlu0 %v4169, 24
    %v4432 = vpop.permute.xlu0 %4431
    %4433 = vrot.lane.b32.xlu0 %v4170, 24
    %v4434 = vpop.permute.xlu0 %4433
    %4435 = vrot.lane.b32.xlu0 %v4171, 24
    %v4436 = vpop.permute.xlu0 %4435
    %4437 = vrot.lane.b32.xlu0 %v4172, 24
    %v4438 = vpop.permute.xlu0 %4437
    %4439 = vrot.lane.b32.xlu0 %v4173, 24
    %v4440 = vpop.permute.xlu0 %4439
    %4441 = vrot.lane.b32.xlu0 %v4174, 24
    %v4442 = vpop.permute.xlu0 %4441
    %4443 = vrot.lane.b32.xlu0 %v4175, 24
    %v4444 = vpop.permute.xlu0 %4443
    %4445 = vrot.lane.b32.xlu0 %v4176, 24
    %v4446 = vpop.permute.xlu0 %4445
    %4447 = vrot.lane.b32.xlu0 %v4177, 24
    %v4448 = vpop.permute.xlu0 %4447
    %4449 = vrot.lane.b32.xlu0 %v4178, 24
    %v4450 = vpop.permute.xlu0 %4449
    %4451 = vrot.lane.b32.xlu0 %v4179, 24
    %v4452 = vpop.permute.xlu0 %4451
    %4453 = vrot.lane.b32.xlu0 %v4180, 24
    %v4454 = vpop.permute.xlu0 %4453
    %4455 = vrot.lane.b32.xlu0 %v4181, 24
    %v4456 = vpop.permute.xlu0 %4455
    %4457 = vrot.lane.b32.xlu0 %v4182, 24
    %v4458 = vpop.permute.xlu0 %4457
    %4459 = vrot.lane.b32.xlu0 %v4183, 24
    %v4460 = vpop.permute.xlu0 %4459
    %4461 = vrot.lane.b32.xlu0 %v4184, 24
    %v4462 = vpop.permute.xlu0 %4461
    %4463 = vrot.lane.b32.xlu0 %v4185, 24
    %v4464 = vpop.permute.xlu0 %4463
    %4465 = vrot.lane.b32.xlu0 %v4186, 24
    %v4466 = vpop.permute.xlu0 %4465
    %4467 = vrot.lane.b32.xlu0 %v4187, 24
    %v4468 = vpop.permute.xlu0 %4467
    %4469 = vrot.lane.b32.xlu0 %v4188, 24
    %v4470 = vpop.permute.xlu0 %4469
    %4471 = vrot.lane.b32.xlu0 %v4189, 24
    %v4472 = vpop.permute.xlu0 %4471
    %4473 = vrot.lane.b32.xlu0 %v4190, 24
    %v4474 = vpop.permute.xlu0 %4473
    %4475 = vrot.lane.b32.xlu0 %v4191, 24
    %v4476 = vpop.permute.xlu0 %4475
    %4477 = vrot.lane.b32.xlu0 %v4192, 24
    %v4478 = vpop.permute.xlu0 %4477
    %4479 = vrot.lane.b32.xlu0 %v4193, 24
    %v4480 = vpop.permute.xlu0 %4479
    %4481 = vrot.lane.b32.xlu0 %v4194, 24
    %v4482 = vpop.permute.xlu0 %4481
    %4483 = vrot.lane.b32.xlu0 %v4195, 24
    %v4484 = vpop.permute.xlu0 %4483
    %4485 = vrot.lane.b32.xlu0 %v4196, 24
    %v4486 = vpop.permute.xlu0 %4485
    %4487 = vrot.lane.b32.xlu0 %v4197, 24
    %v4488 = vpop.permute.xlu0 %4487
    %4489 = vrot.lane.b32.xlu0 %v4198, 24
    %v4490 = vpop.permute.xlu0 %4489
    %4491 = vrot.lane.b32.xlu0 %v4199, 24
    %v4492 = vpop.permute.xlu0 %4491
    %4493 = vrot.lane.b32.xlu0 %v4200, 24
    %v4494 = vpop.permute.xlu0 %4493
    %4495 = vrot.lane.b32.xlu0 %v4201, 24
    %v4496 = vpop.permute.xlu0 %4495
    %4497 = vrot.lane.b32.xlu0 %v4202, 24
    %v4498 = vpop.permute.xlu0 %4497
    %4499 = vrot.lane.b32.xlu0 %v4203, 24
    %v4500 = vpop.permute.xlu0 %4499
    %4501 = vrot.lane.b32.xlu0 %v4204, 24
    %v4502 = vpop.permute.xlu0 %4501
    %4503 = vrot.lane.b32.xlu0 %v4205, 24
    %v4504 = vpop.permute.xlu0 %4503
    %4505 = vrot.lane.b32.xlu0 %v4206, 24
    %v4506 = vpop.permute.xlu0 %4505
    %4507 = vrot.lane.b32.xlu0 %v4207, 24
    %v4508 = vpop.permute.xlu0 %4507
    %4509 = vrot.lane.b32.xlu0 %v4208, 24
    %v4510 = vpop.permute.xlu0 %4509
    %4511 = vrot.lane.b32.xlu0 %v4209, 24
    %v4512 = vpop.permute.xlu0 %4511
    %4513 = vrot.lane.b32.xlu0 %v4210, 24
    %v4514 = vpop.permute.xlu0 %4513
    %4515 = vrot.lane.b32.xlu0 %v4211, 24
    %v4516 = vpop.permute.xlu0 %4515
    %4517 = vrot.lane.b32.xlu0 %v4212, 24
    %v4518 = vpop.permute.xlu0 %4517
    %4519 = vrot.lane.b32.xlu0 %v4213, 24
    %v4520 = vpop.permute.xlu0 %4519
    %4521 = vrot.lane.b32.xlu0 %v4214, 24
    %v4522 = vpop.permute.xlu0 %4521
    %4523 = vrot.lane.b32.xlu0 %v4215, 24
    %v4524 = vpop.permute.xlu0 %4523
    %4525 = vrot.lane.b32.xlu0 %v4216, 24
    %v4526 = vpop.permute.xlu0 %4525
    %4527 = vrot.lane.b32.xlu0 %v4217, 24
    %v4528 = vpop.permute.xlu0 %4527
    %4529 = vrot.lane.b32.xlu0 %v4218, 24
    %v4530 = vpop.permute.xlu0 %4529
    %4531 = vrot.lane.b32.xlu0 %v4219, 24
    %v4532 = vpop.permute.xlu0 %4531
    %4533 = vrot.lane.b32.xlu0 %v4220, 24
    %v4534 = vpop.permute.xlu0 %4533
    %4535 = vrot.lane.b32.xlu0 %v4221, 24
    %v4536 = vpop.permute.xlu0 %4535
    %4537 = vrot.lane.b32.xlu0 %v4222, 24
    %v4538 = vpop.permute.xlu0 %4537
    %4539 = vrot.lane.b32.xlu0 %v4223, 24
    %v4540 = vpop.permute.xlu0 %4539
    %4541 = vrot.lane.b32.xlu0 %v4224, 24
    %v4542 = vpop.permute.xlu0 %4541
    %4543 = vrot.lane.b32.xlu0 %v4225, 24
    %v4544 = vpop.permute.xlu0 %4543
    %4545 = vrot.lane.b32.xlu0 %v4226, 24
    %v4546 = vpop.permute.xlu0 %4545
    %4547 = vrot.lane.b32.xlu0 %v4227, 24
    %v4548 = vpop.permute.xlu0 %4547
    %4549 = vrot.lane.b32.xlu0 %v4228, 24
    %v4550 = vpop.permute.xlu0 %4549
    %4551 = vrot.lane.b32.xlu0 %v4229, 24
    %v4552 = vpop.permute.xlu0 %4551
    %4553 = vrot.lane.b32.xlu0 %v4230, 24
    %v4554 = vpop.permute.xlu0 %4553
    %4555 = vrot.lane.b32.xlu0 %v4231, 24
    %v4556 = vpop.permute.xlu0 %4555
    %4557 = vrot.lane.b32.xlu0 %v4232, 24
    %v4558 = vpop.permute.xlu0 %4557
    %4559 = vrot.lane.b32.xlu0 %v4233, 24
    %v4560 = vpop.permute.xlu0 %4559
    %4561 = vrot.lane.b32.xlu0 %v4234, 24
    %v4562 = vpop.permute.xlu0 %4561
    %4563 = vrot.lane.b32.xlu0 %v4235, 24
    %v4564 = vpop.permute.xlu0 %4563
    %4565 = vrot.lane.b32.xlu0 %v4236, 24
    %v4566 = vpop.permute.xlu0 %4565
    %4567 = vrot.lane.b32.xlu0 %v4237, 24
    %v4568 = vpop.permute.xlu0 %4567
    %4569 = vrot.lane.b32.xlu0 %v4238, 24
    %v4570 = vpop.permute.xlu0 %4569
    %4571 = vrot.lane.b32.xlu0 %v4239, 24
    %v4572 = vpop.permute.xlu0 %4571
    %4573 = vrot.lane.b32.xlu0 %v4240, 24
    %v4574 = vpop.permute.xlu0 %4573
    %4575 = vrot.lane.b32.xlu0 %v4241, 24
    %v4576 = vpop.permute.xlu0 %4575
    %4577 = vrot.lane.b32.xlu0 %v4242, 24
    %v4578 = vpop.permute.xlu0 %4577
    %4579 = vrot.lane.b32.xlu0 %v4243, 24
    %v4580 = vpop.permute.xlu0 %4579
    %4581 = vrot.lane.b32.xlu0 %v4244, 24
    %v4582 = vpop.permute.xlu0 %4581
    %4583 = vrot.lane.b32.xlu0 %v4245, 24
    %v4584 = vpop.permute.xlu0 %4583
    %4585 = vrot.lane.b32.xlu0 %v4246, 24
    %v4586 = vpop.permute.xlu0 %4585
    %4587 = vrot.lane.b32.xlu0 %v4247, 24
    %v4588 = vpop.permute.xlu0 %4587
    %4589 = vrot.lane.b32.xlu0 %v4248, 24
    %v4590 = vpop.permute.xlu0 %4589
    %4591 = vrot.lane.b32.xlu0 %v4249, 24
    %v4592 = vpop.permute.xlu0 %4591
    %4593 = vrot.lane.b32.xlu0 %v4250, 24
    %v4594 = vpop.permute.xlu0 %4593
    %4595 = vrot.lane.b32.xlu0 %v4251, 24
    %v4596 = vpop.permute.xlu0 %4595
    %4597 = vrot.lane.b32.xlu0 %v4252, 24
    %v4598 = vpop.permute.xlu0 %4597
    %4599 = vrot.lane.b32.xlu0 %v4253, 24
    %v4600 = vpop.permute.xlu0 %4599
    %4601 = vrot.lane.b32.xlu0 %v4254, 24
    %v4602 = vpop.permute.xlu0 %4601
    %4603 = vrot.lane.b32.xlu0 %v4255, 24
    %v4604 = vpop.permute.xlu0 %4603
    %4605 = vrot.lane.b32.xlu0 %v4256, 24
    %v4606 = vpop.permute.xlu0 %4605
    %4607 = vrot.lane.b32.xlu0 %v4257, 24
    %v4608 = vpop.permute.xlu0 %4607
    %4609 = vrot.lane.b32.xlu0 %v4258, 24
    %v4610 = vpop.permute.xlu0 %4609
    %4611 = vrot.lane.b32.xlu0 %v4259, 24
    %v4612 = vpop.permute.xlu0 %4611
    %4613 = vrot.lane.b32.xlu0 %v4260, 24
    %v4614 = vpop.permute.xlu0 %4613
    %4615 = vrot.lane.b32.xlu0 %v4261, 24
    %v4616 = vpop.permute.xlu0 %4615
    %4617 = vrot.lane.b32.xlu0 %v4262, 24
    %v4618 = vpop.permute.xlu0 %4617
    %4619 = vrot.lane.b32.xlu0 %v4263, 24
    %v4620 = vpop.permute.xlu0 %4619
    %4621 = vrot.lane.b32.xlu0 %v4264, 24
    %v4622 = vpop.permute.xlu0 %4621
    %4623 = vrot.lane.b32.xlu0 %v4265, 24
    %v4624 = vpop.permute.xlu0 %4623
    %4625 = vrot.lane.b32.xlu0 %v4266, 24
    %v4626 = vpop.permute.xlu0 %4625
    %vm4747 = vcmask 228544
    %4748 = vst.msk [vmem:[#allocation2 + $0x1] sm:$0xff] %vm4747, %v4388
    %vm4749 = vcmask 227520
    %4750 = vst.msk [vmem:[#allocation2 + $0x9] sm:$0x7f] %vm4749, %v4390
    %4751 = vst.msk [vmem:[#allocation2 + $0x11] sm:$0xff] %vm4747, %v4392
    %4752 = vst.msk [vmem:[#allocation2 + $0x19] sm:$0x7f] %vm4749, %v4394
    %4753 = vst.msk [vmem:[#allocation2 + $0x21] sm:$0xff] %vm4747, %v4396
    %4754 = vst.msk [vmem:[#allocation2 + $0x29] sm:$0x7f] %vm4749, %v4398
    %4755 = vst.msk [vmem:[#allocation2 + $0x31] sm:$0xff] %vm4747, %v4400
    %4756 = vst.msk [vmem:[#allocation2 + $0x39] sm:$0x7f] %vm4749, %v4402
    %4757 = vst.msk [vmem:[#allocation2 + $0x41] sm:$0xff] %vm4747, %v4404
    %4758 = vst.msk [vmem:[#allocation2 + $0x49] sm:$0x7f] %vm4749, %v4406
    %4759 = vst.msk [vmem:[#allocation2 + $0x51] sm:$0xff] %vm4747, %v4408
    %4760 = vst.msk [vmem:[#allocation2 + $0x59] sm:$0x7f] %vm4749, %v4410
    %4761 = vst.msk [vmem:[#allocation2 + $0x61] sm:$0xff] %vm4747, %v4412
    %4762 = vst.msk [vmem:[#allocation2 + $0x69] sm:$0x7f] %vm4749, %v4414
    %4763 = vst.msk [vmem:[#allocation2 + $0x71] sm:$0xff] %vm4747, %v4416
    %4764 = vst.msk [vmem:[#allocation2 + $0x79] sm:$0x7f] %vm4749, %v4418
    %4765 = vst.msk [vmem:[#allocation2 + $0x81] sm:$0xff] %vm4747, %v4420
    %4766 = vst.msk [vmem:[#allocation2 + $0x89] sm:$0x7f] %vm4749, %v4422
    %4767 = vst.msk [vmem:[#allocation2 + $0x91] sm:$0xff] %vm4747, %v4424
    %4768 = vst.msk [vmem:[#allocation2 + $0x99] sm:$0x7f] %vm4749, %v4426
    %4769 = vst.msk [vmem:[#allocation2 + $0xa1] sm:$0xff] %vm4747, %v4428
    %4770 = vst.msk [vmem:[#allocation2 + $0xa9] sm:$0x7f] %vm4749, %v4430
    %4771 = vst.msk [vmem:[#allocation2 + $0xb1] sm:$0xff] %vm4747, %v4432
    %4772 = vst.msk [vmem:[#allocation2 + $0xb9] sm:$0x7f] %vm4749, %v4434
    %4773 = vst.msk [vmem:[#allocation2 + $0xc1] sm:$0xff] %vm4747, %v4436
    %4774 = vst.msk [vmem:[#allocation2 + $0xc9] sm:$0x7f] %vm4749, %v4438
    %4775 = vst.msk [vmem:[#allocation2 + $0xd1] sm:$0xff] %vm4747, %v4440
    %4776 = vst.msk [vmem:[#allocation2 + $0xd9] sm:$0x7f] %vm4749, %v4442
    %4777 = vst.msk [vmem:[#allocation2 + $0xe1] sm:$0xff] %vm4747, %v4444
    %4778 = vst.msk [vmem:[#allocation2 + $0xe9] sm:$0x7f] %vm4749, %v4446
    %4779 = vst.msk [vmem:[#allocation2 + $0x101] sm:$0xff] %vm4747, %v4448
    %4780 = vst.msk [vmem:[#allocation2 + $0x109] sm:$0x7f] %vm4749, %v4450
    %4781 = vst.msk [vmem:[#allocation2 + $0x111] sm:$0xff] %vm4747, %v4452
    %4782 = vst.msk [vmem:[#allocation2 + $0x119] sm:$0x7f] %vm4749, %v4454
    %4783 = vst.msk [vmem:[#allocation2 + $0x121] sm:$0xff] %vm4747, %v4456
    %4784 = vst.msk [vmem:[#allocation2 + $0x129] sm:$0x7f] %vm4749, %v4458
    %4785 = vst.msk [vmem:[#allocation2 + $0x131] sm:$0xff] %vm4747, %v4460
    %4786 = vst.msk [vmem:[#allocation2 + $0x139] sm:$0x7f] %vm4749, %v4462
    %4787 = vst.msk [vmem:[#allocation2 + $0x141] sm:$0xff] %vm4747, %v4464
    %4788 = vst.msk [vmem:[#allocation2 + $0x149] sm:$0x7f] %vm4749, %v4466
    %4789 = vst.msk [vmem:[#allocation2 + $0x151] sm:$0xff] %vm4747, %v4468
    %4790 = vst.msk [vmem:[#allocation2 + $0x159] sm:$0x7f] %vm4749, %v4470
    %4791 = vst.msk [vmem:[#allocation2 + $0x161] sm:$0xff] %vm4747, %v4472
    %4792 = vst.msk [vmem:[#allocation2 + $0x169] sm:$0x7f] %vm4749, %v4474
    %4793 = vst.msk [vmem:[#allocation2 + $0x171] sm:$0xff] %vm4747, %v4476
    %4794 = vst.msk [vmem:[#allocation2 + $0x179] sm:$0x7f] %vm4749, %v4478
    %4795 = vst.msk [vmem:[#allocation2 + $0x181] sm:$0xff] %vm4747, %v4480
    %4796 = vst.msk [vmem:[#allocation2 + $0x189] sm:$0x7f] %vm4749, %v4482
    %4797 = vst.msk [vmem:[#allocation2 + $0x191] sm:$0xff] %vm4747, %v4484
    %4798 = vst.msk [vmem:[#allocation2 + $0x199] sm:$0x7f] %vm4749, %v4486
    %4799 = vst.msk [vmem:[#allocation2 + $0x1a1] sm:$0xff] %vm4747, %v4488
    %4800 = vst.msk [vmem:[#allocation2 + $0x1a9] sm:$0x7f] %vm4749, %v4490
    %4801 = vst.msk [vmem:[#allocation2 + $0x1b1] sm:$0xff] %vm4747, %v4492
    %4802 = vst.msk [vmem:[#allocation2 + $0x1b9] sm:$0x7f] %vm4749, %v4494
    %4803 = vst.msk [vmem:[#allocation2 + $0x1c1] sm:$0xff] %vm4747, %v4496
    %4804 = vst.msk [vmem:[#allocation2 + $0x1c9] sm:$0x7f] %vm4749, %v4498
    %4805 = vst.msk [vmem:[#allocation2 + $0x1d1] sm:$0xff] %vm4747, %v4500
    %4806 = vst.msk [vmem:[#allocation2 + $0x1d9] sm:$0x7f] %vm4749, %v4502
    %4807 = vst.msk [vmem:[#allocation2 + $0x1e1] sm:$0xff] %vm4747, %v4504
    %4808 = vst.msk [vmem:[#allocation2 + $0x1e9] sm:$0x7f] %vm4749, %v4506
    %4809 = vst.msk [vmem:[#allocation2 + $0x201] sm:$0xff] %vm4747, %v4508
    %4810 = vst.msk [vmem:[#allocation2 + $0x209] sm:$0x7f] %vm4749, %v4510
    %4811 = vst.msk [vmem:[#allocation2 + $0x211] sm:$0xff] %vm4747, %v4512
    %4812 = vst.msk [vmem:[#allocation2 + $0x219] sm:$0x7f] %vm4749, %v4514
    %4813 = vst.msk [vmem:[#allocation2 + $0x221] sm:$0xff] %vm4747, %v4516
    %4814 = vst.msk [vmem:[#allocation2 + $0x229] sm:$0x7f] %vm4749, %v4518
    %4815 = vst.msk [vmem:[#allocation2 + $0x231] sm:$0xff] %vm4747, %v4520
    %4816 = vst.msk [vmem:[#allocation2 + $0x239] sm:$0x7f] %vm4749, %v4522
    %4817 = vst.msk [vmem:[#allocation2 + $0x241] sm:$0xff] %vm4747, %v4524
    %4818 = vst.msk [vmem:[#allocation2 + $0x249] sm:$0x7f] %vm4749, %v4526
    %4819 = vst.msk [vmem:[#allocation2 + $0x251] sm:$0xff] %vm4747, %v4528
    %4820 = vst.msk [vmem:[#allocation2 + $0x259] sm:$0x7f] %vm4749, %v4530
    %4821 = vst.msk [vmem:[#allocation2 + $0x261] sm:$0xff] %vm4747, %v4532
    %4822 = vst.msk [vmem:[#allocation2 + $0x269] sm:$0x7f] %vm4749, %v4534
    %4823 = vst.msk [vmem:[#allocation2 + $0x271] sm:$0xff] %vm4747, %v4536
    %4824 = vst.msk [vmem:[#allocation2 + $0x279] sm:$0x7f] %vm4749, %v4538
    %4825 = vst.msk [vmem:[#allocation2 + $0x281] sm:$0xff] %vm4747, %v4540
    %4826 = vst.msk [vmem:[#allocation2 + $0x289] sm:$0x7f] %vm4749, %v4542
    %4827 = vst.msk [vmem:[#allocation2 + $0x291] sm:$0xff] %vm4747, %v4544
    %4828 = vst.msk [vmem:[#allocation2 + $0x299] sm:$0x7f] %vm4749, %v4546
    %4829 = vst.msk [vmem:[#allocation2 + $0x2a1] sm:$0xff] %vm4747, %v4548
    %4830 = vst.msk [vmem:[#allocation2 + $0x2a9] sm:$0x7f] %vm4749, %v4550
    %4831 = vst.msk [vmem:[#allocation2 + $0x2b1] sm:$0xff] %vm4747, %v4552
    %4832 = vst.msk [vmem:[#allocation2 + $0x2b9] sm:$0x7f] %vm4749, %v4554
    %4833 = vst.msk [vmem:[#allocation2 + $0x2c1] sm:$0xff] %vm4747, %v4556
    %4834 = vst.msk [vmem:[#allocation2 + $0x2c9] sm:$0x7f] %vm4749, %v4558
    %4835 = vst.msk [vmem:[#allocation2 + $0x2d1] sm:$0xff] %vm4747, %v4560
    %4836 = vst.msk [vmem:[#allocation2 + $0x2d9] sm:$0x7f] %vm4749, %v4562
    %4837 = vst.msk [vmem:[#allocation2 + $0x2e1] sm:$0xff] %vm4747, %v4564
    %4838 = vst.msk [vmem:[#allocation2 + $0x2e9] sm:$0x7f] %vm4749, %v4566
    %4839 = vst.msk [vmem:[#allocation2 + $0x301] sm:$0xff] %vm4747, %v4568
    %4840 = vst.msk [vmem:[#allocation2 + $0x309] sm:$0x7f] %vm4749, %v4570
    %4841 = vst.msk [vmem:[#allocation2 + $0x311] sm:$0xff] %vm4747, %v4572
    %4842 = vst.msk [vmem:[#allocation2 + $0x319] sm:$0x7f] %vm4749, %v4574
    %4843 = vst.msk [vmem:[#allocation2 + $0x321] sm:$0xff] %vm4747, %v4576
    %4844 = vst.msk [vmem:[#allocation2 + $0x329] sm:$0x7f] %vm4749, %v4578
    %4845 = vst.msk [vmem:[#allocation2 + $0x331] sm:$0xff] %vm4747, %v4580
    %4846 = vst.msk [vmem:[#allocation2 + $0x339] sm:$0x7f] %vm4749, %v4582
    %4847 = vst.msk [vmem:[#allocation2 + $0x341] sm:$0xff] %vm4747, %v4584
    %4848 = vst.msk [vmem:[#allocation2 + $0x349] sm:$0x7f] %vm4749, %v4586
    %4849 = vst.msk [vmem:[#allocation2 + $0x351] sm:$0xff] %vm4747, %v4588
    %4850 = vst.msk [vmem:[#allocation2 + $0x359] sm:$0x7f] %vm4749, %v4590
    %4851 = vst.msk [vmem:[#allocation2 + $0x361] sm:$0xff] %vm4747, %v4592
    %4852 = vst.msk [vmem:[#allocation2 + $0x369] sm:$0x7f] %vm4749, %v4594
    %4853 = vst.msk [vmem:[#allocation2 + $0x371] sm:$0xff] %vm4747, %v4596
    %4854 = vst.msk [vmem:[#allocation2 + $0x379] sm:$0x7f] %vm4749, %v4598
    %4855 = vst.msk [vmem:[#allocation2 + $0x381] sm:$0xff] %vm4747, %v4600
    %4856 = vst.msk [vmem:[#allocation2 + $0x389] sm:$0x7f] %vm4749, %v4602
    %4857 = vst.msk [vmem:[#allocation2 + $0x391] sm:$0xff] %vm4747, %v4604
    %4858 = vst.msk [vmem:[#allocation2 + $0x399] sm:$0x7f] %vm4749, %v4606
    %4859 = vst.msk [vmem:[#allocation2 + $0x3a1] sm:$0xff] %vm4747, %v4608
    %4860 = vst.msk [vmem:[#allocation2 + $0x3a9] sm:$0x7f] %vm4749, %v4610
    %4861 = vst.msk [vmem:[#allocation2 + $0x3b1] sm:$0xff] %vm4747, %v4612
    %4862 = vst.msk [vmem:[#allocation2 + $0x3b9] sm:$0x7f] %vm4749, %v4614
    %4863 = vst.msk [vmem:[#allocation2 + $0x3c1] sm:$0xff] %vm4747, %v4616
    %4864 = vst.msk [vmem:[#allocation2 + $0x3c9] sm:$0x7f] %vm4749, %v4618
    %4865 = vst.msk [vmem:[#allocation2 + $0x3d1] sm:$0xff] %vm4747, %v4620
    %4866 = vst.msk [vmem:[#allocation2 + $0x3d9] sm:$0x7f] %vm4749, %v4622
    %4867 = vst.msk [vmem:[#allocation2 + $0x3e1] sm:$0xff] %vm4747, %v4624
    %4868 = vst.msk [vmem:[#allocation2 + $0x3e9] sm:$0x7f] %vm4749, %v4626
    %v4869 = vld [vmem:[%s4146] sm:$0xff]
    %v4870 = vld [vmem:[%s4146 + $0x8] sm:$0xff]
    %v4871 = vld [vmem:[%s4146 + $0x10] sm:$0xff]
    %v4872 = vld [vmem:[%s4146 + $0x18] sm:$0xff]
    %v4873 = vld [vmem:[%s4146 + $0x20] sm:$0xff]
    %v4874 = vld [vmem:[%s4146 + $0x28] sm:$0xff]
    %v4875 = vld [vmem:[%s4146 + $0x30] sm:$0xff]
    %v4876 = vld [vmem:[%s4146 + $0x38] sm:$0xff]
    %v4877 = vld [vmem:[%s4146 + $0x40] sm:$0xff]
    %v4878 = vld [vmem:[%s4146 + $0x48] sm:$0xff]
    %v4879 = vld [vmem:[%s4146 + $0x50] sm:$0xff]
    %v4880 = vld [vmem:[%s4146 + $0x58] sm:$0xff]
    %v4881 = vld [vmem:[%s4146 + $0x60] sm:$0xff]
    %v4882 = vld [vmem:[%s4146 + $0x68] sm:$0xff]
    %v4883 = vld [vmem:[%s4146 + $0x70] sm:$0xff]
    %v4884 = vld [vmem:[%s4146 + $0x78] sm:$0xff]
    %v4885 = vld [vmem:[%s4146 + $0x80] sm:$0xff]
    %v4886 = vld [vmem:[%s4146 + $0x88] sm:$0xff]
    %v4887 = vld [vmem:[%s4146 + $0x90] sm:$0xff]
    %v4888 = vld [vmem:[%s4146 + $0x98] sm:$0xff]
    %v4889 = vld [vmem:[%s4146 + $0xa0] sm:$0xff]
    %v4890 = vld [vmem:[%s4146 + $0xa8] sm:$0xff]
    %v4891 = vld [vmem:[%s4146 + $0xb0] sm:$0xff]
    %v4892 = vld [vmem:[%s4146 + $0xb8] sm:$0xff]
    %v4893 = vld [vmem:[%s4146 + $0xc0] sm:$0xff]
    %v4894 = vld [vmem:[%s4146 + $0xc8] sm:$0xff]
    %v4895 = vld [vmem:[%s4146 + $0xd0] sm:$0xff]
    %v4896 = vld [vmem:[%s4146 + $0xd8] sm:$0xff]
    %v4897 = vld [vmem:[%s4146 + $0xe0] sm:$0xff]
    %v4898 = vld [vmem:[%s4146 + $0xe8] sm:$0xff]
    %v4899 = vld [vmem:[%s4146 + $0x100] sm:$0xff]
    %v4900 = vld [vmem:[%s4146 + $0x108] sm:$0xff]
    %v4901 = vld [vmem:[%s4146 + $0x110] sm:$0xff]
    %v4902 = vld [vmem:[%s4146 + $0x118] sm:$0xff]
    %v4903 = vld [vmem:[%s4146 + $0x120] sm:$0xff]
    %v4904 = vld [vmem:[%s4146 + $0x128] sm:$0xff]
    %v4905 = vld [vmem:[%s4146 + $0x130] sm:$0xff]
    %v4906 = vld [vmem:[%s4146 + $0x138] sm:$0xff]
    %v4907 = vld [vmem:[%s4146 + $0x140] sm:$0xff]
    %v4908 = vld [vmem:[%s4146 + $0x148] sm:$0xff]
    %v4909 = vld [vmem:[%s4146 + $0x150] sm:$0xff]
    %v4910 = vld [vmem:[%s4146 + $0x158] sm:$0xff]
    %v4911 = vld [vmem:[%s4146 + $0x160] sm:$0xff]
    %v4912 = vld [vmem:[%s4146 + $0x168] sm:$0xff]
    %v4913 = vld [vmem:[%s4146 + $0x170] sm:$0xff]
    %v4914 = vld [vmem:[%s4146 + $0x178] sm:$0xff]
    %v4915 = vld [vmem:[%s4146 + $0x180] sm:$0xff]
    %v4916 = vld [vmem:[%s4146 + $0x188] sm:$0xff]
    %v4917 = vld [vmem:[%s4146 + $0x190] sm:$0xff]
    %v4918 = vld [vmem:[%s4146 + $0x198] sm:$0xff]
    %v4919 = vld [vmem:[%s4146 + $0x1a0] sm:$0xff]
    %v4920 = vld [vmem:[%s4146 + $0x1a8] sm:$0xff]
    %v4921 = vld [vmem:[%s4146 + $0x1b0] sm:$0xff]
    %v4922 = vld [vmem:[%s4146 + $0x1b8] sm:$0xff]
    %v4923 = vld [vmem:[%s4146 + $0x1c0] sm:$0xff]
    %v4924 = vld [vmem:[%s4146 + $0x1c8] sm:$0xff]
    %v4925 = vld [vmem:[%s4146 + $0x1d0] sm:$0xff]
    %v4926 = vld [vmem:[%s4146 + $0x1d8] sm:$0xff]
    %v4927 = vld [vmem:[%s4146 + $0x1e0] sm:$0xff]
    %v4928 = vld [vmem:[%s4146 + $0x1e8] sm:$0xff]
    %v4929 = vld [vmem:[%s4146 + $0x200] sm:$0xff]
    %v4930 = vld [vmem:[%s4146 + $0x208] sm:$0xff]
    %v4931 = vld [vmem:[%s4146 + $0x210] sm:$0xff]
    %v4932 = vld [vmem:[%s4146 + $0x218] sm:$0xff]
    %v4933 = vld [vmem:[%s4146 + $0x220] sm:$0xff]
    %v4934 = vld [vmem:[%s4146 + $0x228] sm:$0xff]
    %v4935 = vld [vmem:[%s4146 + $0x230] sm:$0xff]
    %v4936 = vld [vmem:[%s4146 + $0x238] sm:$0xff]
    %v4937 = vld [vmem:[%s4146 + $0x240] sm:$0xff]
    %v4938 = vld [vmem:[%s4146 + $0x248] sm:$0xff]
    %v4939 = vld [vmem:[%s4146 + $0x250] sm:$0xff]
    %v4940 = vld [vmem:[%s4146 + $0x258] sm:$0xff]
    %v4941 = vld [vmem:[%s4146 + $0x260] sm:$0xff]
    %v4942 = vld [vmem:[%s4146 + $0x268] sm:$0xff]
    %v4943 = vld [vmem:[%s4146 + $0x270] sm:$0xff]
    %v4944 = vld [vmem:[%s4146 + $0x278] sm:$0xff]
    %v4945 = vld [vmem:[%s4146 + $0x280] sm:$0xff]
    %v4946 = vld [vmem:[%s4146 + $0x288] sm:$0xff]
    %v4947 = vld [vmem:[%s4146 + $0x290] sm:$0xff]
    %v4948 = vld [vmem:[%s4146 + $0x298] sm:$0xff]
    %v4949 = vld [vmem:[%s4146 + $0x2a0] sm:$0xff]
    %v4950 = vld [vmem:[%s4146 + $0x2a8] sm:$0xff]
    %v4951 = vld [vmem:[%s4146 + $0x2b0] sm:$0xff]
    %v4952 = vld [vmem:[%s4146 + $0x2b8] sm:$0xff]
    %v4953 = vld [vmem:[%s4146 + $0x2c0] sm:$0xff]
    %v4954 = vld [vmem:[%s4146 + $0x2c8] sm:$0xff]
    %v4955 = vld [vmem:[%s4146 + $0x2d0] sm:$0xff]
    %v4956 = vld [vmem:[%s4146 + $0x2d8] sm:$0xff]
    %v4957 = vld [vmem:[%s4146 + $0x2e0] sm:$0xff]
    %v4958 = vld [vmem:[%s4146 + $0x2e8] sm:$0xff]
    %v4959 = vld [vmem:[%s4146 + $0x300] sm:$0xff]
    %v4960 = vld [vmem:[%s4146 + $0x308] sm:$0xff]
    %v4961 = vld [vmem:[%s4146 + $0x310] sm:$0xff]
    %v4962 = vld [vmem:[%s4146 + $0x318] sm:$0xff]
    %v4963 = vld [vmem:[%s4146 + $0x320] sm:$0xff]
    %v4964 = vld [vmem:[%s4146 + $0x328] sm:$0xff]
    %v4965 = vld [vmem:[%s4146 + $0x330] sm:$0xff]
    %v4966 = vld [vmem:[%s4146 + $0x338] sm:$0xff]
    %v4967 = vld [vmem:[%s4146 + $0x340] sm:$0xff]
    %v4968 = vld [vmem:[%s4146 + $0x348] sm:$0xff]
    %v4969 = vld [vmem:[%s4146 + $0x350] sm:$0xff]
    %v4970 = vld [vmem:[%s4146 + $0x358] sm:$0xff]
    %v4971 = vld [vmem:[%s4146 + $0x360] sm:$0xff]
    %v4972 = vld [vmem:[%s4146 + $0x368] sm:$0xff]
    %v4973 = vld [vmem:[%s4146 + $0x370] sm:$0xff]
    %v4974 = vld [vmem:[%s4146 + $0x378] sm:$0xff]
    %v4975 = vld [vmem:[%s4146 + $0x380] sm:$0xff]
    %v4976 = vld [vmem:[%s4146 + $0x388] sm:$0xff]
    %v4977 = vld [vmem:[%s4146 + $0x390] sm:$0xff]
    %v4978 = vld [vmem:[%s4146 + $0x398] sm:$0xff]
    %v4979 = vld [vmem:[%s4146 + $0x3a0] sm:$0xff]
    %v4980 = vld [vmem:[%s4146 + $0x3a8] sm:$0xff]
    %v4981 = vld [vmem:[%s4146 + $0x3b0] sm:$0xff]
    %v4982 = vld [vmem:[%s4146 + $0x3b8] sm:$0xff]
    %v4983 = vld [vmem:[%s4146 + $0x3c0] sm:$0xff]
    %v4984 = vld [vmem:[%s4146 + $0x3c8] sm:$0xff]
    %v4985 = vld [vmem:[%s4146 + $0x3d0] sm:$0xff]
    %v4986 = vld [vmem:[%s4146 + $0x3d8] sm:$0xff]
    %v4987 = vld [vmem:[%s4146 + $0x3e0] sm:$0xff]
    %v4988 = vld [vmem:[%s4146 + $0x3e8] sm:$0xff]
    %5109 = vrot.lane.b32.xlu0 %v4869, 28
    %v5110 = vpop.permute.xlu0 %5109
    %5111 = vrot.lane.b32.xlu0 %v4870, 28
    %v5112 = vpop.permute.xlu0 %5111
    %5113 = vrot.lane.b32.xlu0 %v4871, 28
    %v5114 = vpop.permute.xlu0 %5113
    %5115 = vrot.lane.b32.xlu0 %v4872, 28
    %v5116 = vpop.permute.xlu0 %5115
    %5117 = vrot.lane.b32.xlu0 %v4873, 28
    %v5118 = vpop.permute.xlu0 %5117
    %5119 = vrot.lane.b32.xlu0 %v4874, 28
    %v5120 = vpop.permute.xlu0 %5119
    %5121 = vrot.lane.b32.xlu0 %v4875, 28
    %v5122 = vpop.permute.xlu0 %5121
    %5123 = vrot.lane.b32.xlu0 %v4876, 28
    %v5124 = vpop.permute.xlu0 %5123
    %5125 = vrot.lane.b32.xlu0 %v4877, 28
    %v5126 = vpop.permute.xlu0 %5125
    %5127 = vrot.lane.b32.xlu0 %v4878, 28
    %v5128 = vpop.permute.xlu0 %5127
    %5129 = vrot.lane.b32.xlu0 %v4879, 28
    %v5130 = vpop.permute.xlu0 %5129
    %5131 = vrot.lane.b32.xlu0 %v4880, 28
    %v5132 = vpop.permute.xlu0 %5131
    %5133 = vrot.lane.b32.xlu0 %v4881, 28
    %v5134 = vpop.permute.xlu0 %5133
    %5135 = vrot.lane.b32.xlu0 %v4882, 28
    %v5136 = vpop.permute.xlu0 %5135
    %5137 = vrot.lane.b32.xlu0 %v4883, 28
    %v5138 = vpop.permute.xlu0 %5137
    %5139 = vrot.lane.b32.xlu0 %v4884, 28
    %v5140 = vpop.permute.xlu0 %5139
    %5141 = vrot.lane.b32.xlu0 %v4885, 28
    %v5142 = vpop.permute.xlu0 %5141
    %5143 = vrot.lane.b32.xlu0 %v4886, 28
    %v5144 = vpop.permute.xlu0 %5143
    %5145 = vrot.lane.b32.xlu0 %v4887, 28
    %v5146 = vpop.permute.xlu0 %5145
    %5147 = vrot.lane.b32.xlu0 %v4888, 28
    %v5148 = vpop.permute.xlu0 %5147
    %5149 = vrot.lane.b32.xlu0 %v4889, 28
    %v5150 = vpop.permute.xlu0 %5149
    %5151 = vrot.lane.b32.xlu0 %v4890, 28
    %v5152 = vpop.permute.xlu0 %5151
    %5153 = vrot.lane.b32.xlu0 %v4891, 28
    %v5154 = vpop.permute.xlu0 %5153
    %5155 = vrot.lane.b32.xlu0 %v4892, 28
    %v5156 = vpop.permute.xlu0 %5155
    %5157 = vrot.lane.b32.xlu0 %v4893, 28
    %v5158 = vpop.permute.xlu0 %5157
    %5159 = vrot.lane.b32.xlu0 %v4894, 28
    %v5160 = vpop.permute.xlu0 %5159
    %5161 = vrot.lane.b32.xlu0 %v4895, 28
    %v5162 = vpop.permute.xlu0 %5161
    %5163 = vrot.lane.b32.xlu0 %v4896, 28
    %v5164 = vpop.permute.xlu0 %5163
    %5165 = vrot.lane.b32.xlu0 %v4897, 28
    %v5166 = vpop.permute.xlu0 %5165
    %5167 = vrot.lane.b32.xlu0 %v4898, 28
    %v5168 = vpop.permute.xlu0 %5167
    %5169 = vrot.lane.b32.xlu0 %v4899, 28
    %v5170 = vpop.permute.xlu0 %5169
    %5171 = vrot.lane.b32.xlu0 %v4900, 28
    %v5172 = vpop.permute.xlu0 %5171
    %5173 = vrot.lane.b32.xlu0 %v4901, 28
    %v5174 = vpop.permute.xlu0 %5173
    %5175 = vrot.lane.b32.xlu0 %v4902, 28
    %v5176 = vpop.permute.xlu0 %5175
    %5177 = vrot.lane.b32.xlu0 %v4903, 28
    %v5178 = vpop.permute.xlu0 %5177
    %5179 = vrot.lane.b32.xlu0 %v4904, 28
    %v5180 = vpop.permute.xlu0 %5179
    %5181 = vrot.lane.b32.xlu0 %v4905, 28
    %v5182 = vpop.permute.xlu0 %5181
    %5183 = vrot.lane.b32.xlu0 %v4906, 28
    %v5184 = vpop.permute.xlu0 %5183
    %5185 = vrot.lane.b32.xlu0 %v4907, 28
    %v5186 = vpop.permute.xlu0 %5185
    %5187 = vrot.lane.b32.xlu0 %v4908, 28
    %v5188 = vpop.permute.xlu0 %5187
    %5189 = vrot.lane.b32.xlu0 %v4909, 28
    %v5190 = vpop.permute.xlu0 %5189
    %5191 = vrot.lane.b32.xlu0 %v4910, 28
    %v5192 = vpop.permute.xlu0 %5191
    %5193 = vrot.lane.b32.xlu0 %v4911, 28
    %v5194 = vpop.permute.xlu0 %5193
    %5195 = vrot.lane.b32.xlu0 %v4912, 28
    %v5196 = vpop.permute.xlu0 %5195
    %5197 = vrot.lane.b32.xlu0 %v4913, 28
    %v5198 = vpop.permute.xlu0 %5197
    %5199 = vrot.lane.b32.xlu0 %v4914, 28
    %v5200 = vpop.permute.xlu0 %5199
    %5201 = vrot.lane.b32.xlu0 %v4915, 28
    %v5202 = vpop.permute.xlu0 %5201
    %5203 = vrot.lane.b32.xlu0 %v4916, 28
    %v5204 = vpop.permute.xlu0 %5203
    %5205 = vrot.lane.b32.xlu0 %v4917, 28
    %v5206 = vpop.permute.xlu0 %5205
    %5207 = vrot.lane.b32.xlu0 %v4918, 28
    %v5208 = vpop.permute.xlu0 %5207
    %5209 = vrot.lane.b32.xlu0 %v4919, 28
    %v5210 = vpop.permute.xlu0 %5209
    %5211 = vrot.lane.b32.xlu0 %v4920, 28
    %v5212 = vpop.permute.xlu0 %5211
    %5213 = vrot.lane.b32.xlu0 %v4921, 28
    %v5214 = vpop.permute.xlu0 %5213
    %5215 = vrot.lane.b32.xlu0 %v4922, 28
    %v5216 = vpop.permute.xlu0 %5215
    %5217 = vrot.lane.b32.xlu0 %v4923, 28
    %v5218 = vpop.permute.xlu0 %5217
    %5219 = vrot.lane.b32.xlu0 %v4924, 28
    %v5220 = vpop.permute.xlu0 %5219
    %5221 = vrot.lane.b32.xlu0 %v4925, 28
    %v5222 = vpop.permute.xlu0 %5221
    %5223 = vrot.lane.b32.xlu0 %v4926, 28
    %v5224 = vpop.permute.xlu0 %5223
    %5225 = vrot.lane.b32.xlu0 %v4927, 28
    %v5226 = vpop.permute.xlu0 %5225
    %5227 = vrot.lane.b32.xlu0 %v4928, 28
    %v5228 = vpop.permute.xlu0 %5227
    %5229 = vrot.lane.b32.xlu0 %v4929, 28
    %v5230 = vpop.permute.xlu0 %5229
    %5231 = vrot.lane.b32.xlu0 %v4930, 28
    %v5232 = vpop.permute.xlu0 %5231
    %5233 = vrot.lane.b32.xlu0 %v4931, 28
    %v5234 = vpop.permute.xlu0 %5233
    %5235 = vrot.lane.b32.xlu0 %v4932, 28
    %v5236 = vpop.permute.xlu0 %5235
    %5237 = vrot.lane.b32.xlu0 %v4933, 28
    %v5238 = vpop.permute.xlu0 %5237
    %5239 = vrot.lane.b32.xlu0 %v4934, 28
    %v5240 = vpop.permute.xlu0 %5239
    %5241 = vrot.lane.b32.xlu0 %v4935, 28
    %v5242 = vpop.permute.xlu0 %5241
    %5243 = vrot.lane.b32.xlu0 %v4936, 28
    %v5244 = vpop.permute.xlu0 %5243
    %5245 = vrot.lane.b32.xlu0 %v4937, 28
    %v5246 = vpop.permute.xlu0 %5245
    %5247 = vrot.lane.b32.xlu0 %v4938, 28
    %v5248 = vpop.permute.xlu0 %5247
    %5249 = vrot.lane.b32.xlu0 %v4939, 28
    %v5250 = vpop.permute.xlu0 %5249
    %5251 = vrot.lane.b32.xlu0 %v4940, 28
    %v5252 = vpop.permute.xlu0 %5251
    %5253 = vrot.lane.b32.xlu0 %v4941, 28
    %v5254 = vpop.permute.xlu0 %5253
    %5255 = vrot.lane.b32.xlu0 %v4942, 28
    %v5256 = vpop.permute.xlu0 %5255
    %5257 = vrot.lane.b32.xlu0 %v4943, 28
    %v5258 = vpop.permute.xlu0 %5257
    %5259 = vrot.lane.b32.xlu0 %v4944, 28
    %v5260 = vpop.permute.xlu0 %5259
    %5261 = vrot.lane.b32.xlu0 %v4945, 28
    %v5262 = vpop.permute.xlu0 %5261
    %5263 = vrot.lane.b32.xlu0 %v4946, 28
    %v5264 = vpop.permute.xlu0 %5263
    %5265 = vrot.lane.b32.xlu0 %v4947, 28
    %v5266 = vpop.permute.xlu0 %5265
    %5267 = vrot.lane.b32.xlu0 %v4948, 28
    %v5268 = vpop.permute.xlu0 %5267
    %5269 = vrot.lane.b32.xlu0 %v4949, 28
    %v5270 = vpop.permute.xlu0 %5269
    %5271 = vrot.lane.b32.xlu0 %v4950, 28
    %v5272 = vpop.permute.xlu0 %5271
    %5273 = vrot.lane.b32.xlu0 %v4951, 28
    %v5274 = vpop.permute.xlu0 %5273
    %5275 = vrot.lane.b32.xlu0 %v4952, 28
    %v5276 = vpop.permute.xlu0 %5275
    %5277 = vrot.lane.b32.xlu0 %v4953, 28
    %v5278 = vpop.permute.xlu0 %5277
    %5279 = vrot.lane.b32.xlu0 %v4954, 28
    %v5280 = vpop.permute.xlu0 %5279
    %5281 = vrot.lane.b32.xlu0 %v4955, 28
    %v5282 = vpop.permute.xlu0 %5281
    %5283 = vrot.lane.b32.xlu0 %v4956, 28
    %v5284 = vpop.permute.xlu0 %5283
    %5285 = vrot.lane.b32.xlu0 %v4957, 28
    %v5286 = vpop.permute.xlu0 %5285
    %5287 = vrot.lane.b32.xlu0 %v4958, 28
    %v5288 = vpop.permute.xlu0 %5287
    %5289 = vrot.lane.b32.xlu0 %v4959, 28
    %v5290 = vpop.permute.xlu0 %5289
    %5291 = vrot.lane.b32.xlu0 %v4960, 28
    %v5292 = vpop.permute.xlu0 %5291
    %5293 = vrot.lane.b32.xlu0 %v4961, 28
    %v5294 = vpop.permute.xlu0 %5293
    %5295 = vrot.lane.b32.xlu0 %v4962, 28
    %v5296 = vpop.permute.xlu0 %5295
    %5297 = vrot.lane.b32.xlu0 %v4963, 28
    %v5298 = vpop.permute.xlu0 %5297
    %5299 = vrot.lane.b32.xlu0 %v4964, 28
    %v5300 = vpop.permute.xlu0 %5299
    %5301 = vrot.lane.b32.xlu0 %v4965, 28
    %v5302 = vpop.permute.xlu0 %5301
    %5303 = vrot.lane.b32.xlu0 %v4966, 28
    %v5304 = vpop.permute.xlu0 %5303
    %5305 = vrot.lane.b32.xlu0 %v4967, 28
    %v5306 = vpop.permute.xlu0 %5305
    %5307 = vrot.lane.b32.xlu0 %v4968, 28
    %v5308 = vpop.permute.xlu0 %5307
    %5309 = vrot.lane.b32.xlu0 %v4969, 28
    %v5310 = vpop.permute.xlu0 %5309
    %5311 = vrot.lane.b32.xlu0 %v4970, 28
    %v5312 = vpop.permute.xlu0 %5311
    %5313 = vrot.lane.b32.xlu0 %v4971, 28
    %v5314 = vpop.permute.xlu0 %5313
    %5315 = vrot.lane.b32.xlu0 %v4972, 28
    %v5316 = vpop.permute.xlu0 %5315
    %5317 = vrot.lane.b32.xlu0 %v4973, 28
    %v5318 = vpop.permute.xlu0 %5317
    %5319 = vrot.lane.b32.xlu0 %v4974, 28
    %v5320 = vpop.permute.xlu0 %5319
    %5321 = vrot.lane.b32.xlu0 %v4975, 28
    %v5322 = vpop.permute.xlu0 %5321
    %5323 = vrot.lane.b32.xlu0 %v4976, 28
    %v5324 = vpop.permute.xlu0 %5323
    %5325 = vrot.lane.b32.xlu0 %v4977, 28
    %v5326 = vpop.permute.xlu0 %5325
    %5327 = vrot.lane.b32.xlu0 %v4978, 28
    %v5328 = vpop.permute.xlu0 %5327
    %5329 = vrot.lane.b32.xlu0 %v4979, 28
    %v5330 = vpop.permute.xlu0 %5329
    %5331 = vrot.lane.b32.xlu0 %v4980, 28
    %v5332 = vpop.permute.xlu0 %5331
    %5333 = vrot.lane.b32.xlu0 %v4981, 28
    %v5334 = vpop.permute.xlu0 %5333
    %5335 = vrot.lane.b32.xlu0 %v4982, 28
    %v5336 = vpop.permute.xlu0 %5335
    %5337 = vrot.lane.b32.xlu0 %v4983, 28
    %v5338 = vpop.permute.xlu0 %5337
    %5339 = vrot.lane.b32.xlu0 %v4984, 28
    %v5340 = vpop.permute.xlu0 %5339
    %5341 = vrot.lane.b32.xlu0 %v4985, 28
    %v5342 = vpop.permute.xlu0 %5341
    %5343 = vrot.lane.b32.xlu0 %v4986, 28
    %v5344 = vpop.permute.xlu0 %5343
    %5345 = vrot.lane.b32.xlu0 %v4987, 28
    %v5346 = vpop.permute.xlu0 %5345
    %5347 = vrot.lane.b32.xlu0 %v4988, 28
    %v5348 = vpop.permute.xlu0 %5347
    %vm5469 = vcmask 261344
    %5470 = vst.msk [vmem:[#allocation2] sm:$0xff] %vm5469, %v5110
    %5471 = vst.msk [vmem:[#allocation2 + $0x8] sm:$0xff] %vm5469, %v5112
    %5472 = vst.msk [vmem:[#allocation2 + $0x10] sm:$0xff] %vm5469, %v5114
    %5473 = vst.msk [vmem:[#allocation2 + $0x18] sm:$0xff] %vm5469, %v5116
    %5474 = vst.msk [vmem:[#allocation2 + $0x20] sm:$0xff] %vm5469, %v5118
    %5475 = vst.msk [vmem:[#allocation2 + $0x28] sm:$0xff] %vm5469, %v5120
    %5476 = vst.msk [vmem:[#allocation2 + $0x30] sm:$0xff] %vm5469, %v5122
    %5477 = vst.msk [vmem:[#allocation2 + $0x38] sm:$0xff] %vm5469, %v5124
    %5478 = vst.msk [vmem:[#allocation2 + $0x40] sm:$0xff] %vm5469, %v5126
    %5479 = vst.msk [vmem:[#allocation2 + $0x48] sm:$0xff] %vm5469, %v5128
    %5480 = vst.msk [vmem:[#allocation2 + $0x50] sm:$0xff] %vm5469, %v5130
    %5481 = vst.msk [vmem:[#allocation2 + $0x58] sm:$0xff] %vm5469, %v5132
    %5482 = vst.msk [vmem:[#allocation2 + $0x60] sm:$0xff] %vm5469, %v5134
    %5483 = vst.msk [vmem:[#allocation2 + $0x68] sm:$0xff] %vm5469, %v5136
    %5484 = vst.msk [vmem:[#allocation2 + $0x70] sm:$0xff] %vm5469, %v5138
    %5485 = vst.msk [vmem:[#allocation2 + $0x78] sm:$0xff] %vm5469, %v5140
    %5486 = vst.msk [vmem:[#allocation2 + $0x80] sm:$0xff] %vm5469, %v5142
    %5487 = vst.msk [vmem:[#allocation2 + $0x88] sm:$0xff] %vm5469, %v5144
    %5488 = vst.msk [vmem:[#allocation2 + $0x90] sm:$0xff] %vm5469, %v5146
    %5489 = vst.msk [vmem:[#allocation2 + $0x98] sm:$0xff] %vm5469, %v5148
    %5490 = vst.msk [vmem:[#allocation2 + $0xa0] sm:$0xff] %vm5469, %v5150
    %5491 = vst.msk [vmem:[#allocation2 + $0xa8] sm:$0xff] %vm5469, %v5152
    %5492 = vst.msk [vmem:[#allocation2 + $0xb0] sm:$0xff] %vm5469, %v5154
    %5493 = vst.msk [vmem:[#allocation2 + $0xb8] sm:$0xff] %vm5469, %v5156
    %5494 = vst.msk [vmem:[#allocation2 + $0xc0] sm:$0xff] %vm5469, %v5158
    %5495 = vst.msk [vmem:[#allocation2 + $0xc8] sm:$0xff] %vm5469, %v5160
    %5496 = vst.msk [vmem:[#allocation2 + $0xd0] sm:$0xff] %vm5469, %v5162
    %5497 = vst.msk [vmem:[#allocation2 + $0xd8] sm:$0xff] %vm5469, %v5164
    %5498 = vst.msk [vmem:[#allocation2 + $0xe0] sm:$0xff] %vm5469, %v5166
    %5499 = vst.msk [vmem:[#allocation2 + $0xe8] sm:$0xff] %vm5469, %v5168
    %5500 = vst.msk [vmem:[#allocation2 + $0x100] sm:$0xff] %vm5469, %v5170
    %5501 = vst.msk [vmem:[#allocation2 + $0x108] sm:$0xff] %vm5469, %v5172
    %5502 = vst.msk [vmem:[#allocation2 + $0x110] sm:$0xff] %vm5469, %v5174
    %5503 = vst.msk [vmem:[#allocation2 + $0x118] sm:$0xff] %vm5469, %v5176
    %5504 = vst.msk [vmem:[#allocation2 + $0x120] sm:$0xff] %vm5469, %v5178
    %5505 = vst.msk [vmem:[#allocation2 + $0x128] sm:$0xff] %vm5469, %v5180
    %5506 = vst.msk [vmem:[#allocation2 + $0x130] sm:$0xff] %vm5469, %v5182
    %5507 = vst.msk [vmem:[#allocation2 + $0x138] sm:$0xff] %vm5469, %v5184
    %5508 = vst.msk [vmem:[#allocation2 + $0x140] sm:$0xff] %vm5469, %v5186
    %5509 = vst.msk [vmem:[#allocation2 + $0x148] sm:$0xff] %vm5469, %v5188
    %5510 = vst.msk [vmem:[#allocation2 + $0x150] sm:$0xff] %vm5469, %v5190
    %5511 = vst.msk [vmem:[#allocation2 + $0x158] sm:$0xff] %vm5469, %v5192
    %5512 = vst.msk [vmem:[#allocation2 + $0x160] sm:$0xff] %vm5469, %v5194
    %5513 = vst.msk [vmem:[#allocation2 + $0x168] sm:$0xff] %vm5469, %v5196
    %5514 = vst.msk [vmem:[#allocation2 + $0x170] sm:$0xff] %vm5469, %v5198
    %5515 = vst.msk [vmem:[#allocation2 + $0x178] sm:$0xff] %vm5469, %v5200
    %5516 = vst.msk [vmem:[#allocation2 + $0x180] sm:$0xff] %vm5469, %v5202
    %5517 = vst.msk [vmem:[#allocation2 + $0x188] sm:$0xff] %vm5469, %v5204
    %5518 = vst.msk [vmem:[#allocation2 + $0x190] sm:$0xff] %vm5469, %v5206
    %5519 = vst.msk [vmem:[#allocation2 + $0x198] sm:$0xff] %vm5469, %v5208
    %5520 = vst.msk [vmem:[#allocation2 + $0x1a0] sm:$0xff] %vm5469, %v5210
    %5521 = vst.msk [vmem:[#allocation2 + $0x1a8] sm:$0xff] %vm5469, %v5212
    %5522 = vst.msk [vmem:[#allocation2 + $0x1b0] sm:$0xff] %vm5469, %v5214
    %5523 = vst.msk [vmem:[#allocation2 + $0x1b8] sm:$0xff] %vm5469, %v5216
    %5524 = vst.msk [vmem:[#allocation2 + $0x1c0] sm:$0xff] %vm5469, %v5218
    %5525 = vst.msk [vmem:[#allocation2 + $0x1c8] sm:$0xff] %vm5469, %v5220
    %5526 = vst.msk [vmem:[#allocation2 + $0x1d0] sm:$0xff] %vm5469, %v5222
    %5527 = vst.msk [vmem:[#allocation2 + $0x1d8] sm:$0xff] %vm5469, %v5224
    %5528 = vst.msk [vmem:[#allocation2 + $0x1e0] sm:$0xff] %vm5469, %v5226
    %5529 = vst.msk [vmem:[#allocation2 + $0x1e8] sm:$0xff] %vm5469, %v5228
    %5530 = vst.msk [vmem:[#allocation2 + $0x200] sm:$0xff] %vm5469, %v5230
    %5531 = vst.msk [vmem:[#allocation2 + $0x208] sm:$0xff] %vm5469, %v5232
    %5532 = vst.msk [vmem:[#allocation2 + $0x210] sm:$0xff] %vm5469, %v5234
    %5533 = vst.msk [vmem:[#allocation2 + $0x218] sm:$0xff] %vm5469, %v5236
    %5534 = vst.msk [vmem:[#allocation2 + $0x220] sm:$0xff] %vm5469, %v5238
    %5535 = vst.msk [vmem:[#allocation2 + $0x228] sm:$0xff] %vm5469, %v5240
    %5536 = vst.msk [vmem:[#allocation2 + $0x230] sm:$0xff] %vm5469, %v5242
    %5537 = vst.msk [vmem:[#allocation2 + $0x238] sm:$0xff] %vm5469, %v5244
    %5538 = vst.msk [vmem:[#allocation2 + $0x240] sm:$0xff] %vm5469, %v5246
    %5539 = vst.msk [vmem:[#allocation2 + $0x248] sm:$0xff] %vm5469, %v5248
    %5540 = vst.msk [vmem:[#allocation2 + $0x250] sm:$0xff] %vm5469, %v5250
    %5541 = vst.msk [vmem:[#allocation2 + $0x258] sm:$0xff] %vm5469, %v5252
    %5542 = vst.msk [vmem:[#allocation2 + $0x260] sm:$0xff] %vm5469, %v5254
    %5543 = vst.msk [vmem:[#allocation2 + $0x268] sm:$0xff] %vm5469, %v5256
    %5544 = vst.msk [vmem:[#allocation2 + $0x270] sm:$0xff] %vm5469, %v5258
    %5545 = vst.msk [vmem:[#allocation2 + $0x278] sm:$0xff] %vm5469, %v5260
    %5546 = vst.msk [vmem:[#allocation2 + $0x280] sm:$0xff] %vm5469, %v5262
    %5547 = vst.msk [vmem:[#allocation2 + $0x288] sm:$0xff] %vm5469, %v5264
    %5548 = vst.msk [vmem:[#allocation2 + $0x290] sm:$0xff] %vm5469, %v5266
    %5549 = vst.msk [vmem:[#allocation2 + $0x298] sm:$0xff] %vm5469, %v5268
    %5550 = vst.msk [vmem:[#allocation2 + $0x2a0] sm:$0xff] %vm5469, %v5270
    %5551 = vst.msk [vmem:[#allocation2 + $0x2a8] sm:$0xff] %vm5469, %v5272
    %5552 = vst.msk [vmem:[#allocation2 + $0x2b0] sm:$0xff] %vm5469, %v5274
    %5553 = vst.msk [vmem:[#allocation2 + $0x2b8] sm:$0xff] %vm5469, %v5276
    %5554 = vst.msk [vmem:[#allocation2 + $0x2c0] sm:$0xff] %vm5469, %v5278
    %5555 = vst.msk [vmem:[#allocation2 + $0x2c8] sm:$0xff] %vm5469, %v5280
    %5556 = vst.msk [vmem:[#allocation2 + $0x2d0] sm:$0xff] %vm5469, %v5282
    %5557 = vst.msk [vmem:[#allocation2 + $0x2d8] sm:$0xff] %vm5469, %v5284
    %5558 = vst.msk [vmem:[#allocation2 + $0x2e0] sm:$0xff] %vm5469, %v5286
    %5559 = vst.msk [vmem:[#allocation2 + $0x2e8] sm:$0xff] %vm5469, %v5288
    %5560 = vst.msk [vmem:[#allocation2 + $0x300] sm:$0xff] %vm5469, %v5290
    %5561 = vst.msk [vmem:[#allocation2 + $0x308] sm:$0xff] %vm5469, %v5292
    %5562 = vst.msk [vmem:[#allocation2 + $0x310] sm:$0xff] %vm5469, %v5294
    %5563 = vst.msk [vmem:[#allocation2 + $0x318] sm:$0xff] %vm5469, %v5296
    %5564 = vst.msk [vmem:[#allocation2 + $0x320] sm:$0xff] %vm5469, %v5298
    %5565 = vst.msk [vmem:[#allocation2 + $0x328] sm:$0xff] %vm5469, %v5300
    %5566 = vst.msk [vmem:[#allocation2 + $0x330] sm:$0xff] %vm5469, %v5302
    %5567 = vst.msk [vmem:[#allocation2 + $0x338] sm:$0xff] %vm5469, %v5304
    %5568 = vst.msk [vmem:[#allocation2 + $0x340] sm:$0xff] %vm5469, %v5306
    %5569 = vst.msk [vmem:[#allocation2 + $0x348] sm:$0xff] %vm5469, %v5308
    %5570 = vst.msk [vmem:[#allocation2 + $0x350] sm:$0xff] %vm5469, %v5310
    %5571 = vst.msk [vmem:[#allocation2 + $0x358] sm:$0xff] %vm5469, %v5312
    %5572 = vst.msk [vmem:[#allocation2 + $0x360] sm:$0xff] %vm5469, %v5314
    %5573 = vst.msk [vmem:[#allocation2 + $0x368] sm:$0xff] %vm5469, %v5316
    %5574 = vst.msk [vmem:[#allocation2 + $0x370] sm:$0xff] %vm5469, %v5318
    %5575 = vst.msk [vmem:[#allocation2 + $0x378] sm:$0xff] %vm5469, %v5320
    %5576 = vst.msk [vmem:[#allocation2 + $0x380] sm:$0xff] %vm5469, %v5322
    %5577 = vst.msk [vmem:[#allocation2 + $0x388] sm:$0xff] %vm5469, %v5324
    %5578 = vst.msk [vmem:[#allocation2 + $0x390] sm:$0xff] %vm5469, %v5326
    %5579 = vst.msk [vmem:[#allocation2 + $0x398] sm:$0xff] %vm5469, %v5328
    %5580 = vst.msk [vmem:[#allocation2 + $0x3a0] sm:$0xff] %vm5469, %v5330
    %5581 = vst.msk [vmem:[#allocation2 + $0x3a8] sm:$0xff] %vm5469, %v5332
    %5582 = vst.msk [vmem:[#allocation2 + $0x3b0] sm:$0xff] %vm5469, %v5334
    %5583 = vst.msk [vmem:[#allocation2 + $0x3b8] sm:$0xff] %vm5469, %v5336
    %5584 = vst.msk [vmem:[#allocation2 + $0x3c0] sm:$0xff] %vm5469, %v5338
    %5585 = vst.msk [vmem:[#allocation2 + $0x3c8] sm:$0xff] %vm5469, %v5340
    %5586 = vst.msk [vmem:[#allocation2 + $0x3d0] sm:$0xff] %vm5469, %v5342
    %5587 = vst.msk [vmem:[#allocation2 + $0x3d8] sm:$0xff] %vm5469, %v5344
    %5588 = vst.msk [vmem:[#allocation2 + $0x3e0] sm:$0xff] %vm5469, %v5346
    %5589 = vst.msk [vmem:[#allocation2 + $0x3e8] sm:$0xff] %vm5469, %v5348
    %v5590 = vld [vmem:[%s4146 + $0x1] sm:$0xff]
    %v5591 = vld [vmem:[%s4146 + $0x9] sm:$0x7f]
    %v5592 = vld [vmem:[%s4146 + $0x11] sm:$0xff]
    %v5593 = vld [vmem:[%s4146 + $0x19] sm:$0x7f]
    %v5594 = vld [vmem:[%s4146 + $0x21] sm:$0xff]
    %v5595 = vld [vmem:[%s4146 + $0x29] sm:$0x7f]
    %v5596 = vld [vmem:[%s4146 + $0x31] sm:$0xff]
    %v5597 = vld [vmem:[%s4146 + $0x39] sm:$0x7f]
    %v5598 = vld [vmem:[%s4146 + $0x41] sm:$0xff]
    %v5599 = vld [vmem:[%s4146 + $0x49] sm:$0x7f]
    %v5600 = vld [vmem:[%s4146 + $0x51] sm:$0xff]
    %v5601 = vld [vmem:[%s4146 + $0x59] sm:$0x7f]
    %v5602 = vld [vmem:[%s4146 + $0x61] sm:$0xff]
    %v5603 = vld [vmem:[%s4146 + $0x69] sm:$0x7f]
    %v5604 = vld [vmem:[%s4146 + $0x71] sm:$0xff]
    %v5605 = vld [vmem:[%s4146 + $0x79] sm:$0x7f]
    %v5606 = vld [vmem:[%s4146 + $0x81] sm:$0xff]
    %v5607 = vld [vmem:[%s4146 + $0x89] sm:$0x7f]
    %v5608 = vld [vmem:[%s4146 + $0x91] sm:$0xff]
    %v5609 = vld [vmem:[%s4146 + $0x99] sm:$0x7f]
    %v5610 = vld [vmem:[%s4146 + $0xa1] sm:$0xff]
    %v5611 = vld [vmem:[%s4146 + $0xa9] sm:$0x7f]
    %v5612 = vld [vmem:[%s4146 + $0xb1] sm:$0xff]
    %v5613 = vld [vmem:[%s4146 + $0xb9] sm:$0x7f]
    %v5614 = vld [vmem:[%s4146 + $0xc1] sm:$0xff]
    %v5615 = vld [vmem:[%s4146 + $0xc9] sm:$0x7f]
    %v5616 = vld [vmem:[%s4146 + $0xd1] sm:$0xff]
    %v5617 = vld [vmem:[%s4146 + $0xd9] sm:$0x7f]
    %v5618 = vld [vmem:[%s4146 + $0xe1] sm:$0xff]
    %v5619 = vld [vmem:[%s4146 + $0xe9] sm:$0x7f]
    %v5620 = vld [vmem:[%s4146 + $0x101] sm:$0xff]
    %v5621 = vld [vmem:[%s4146 + $0x109] sm:$0x7f]
    %v5622 = vld [vmem:[%s4146 + $0x111] sm:$0xff]
    %v5623 = vld [vmem:[%s4146 + $0x119] sm:$0x7f]
    %v5624 = vld [vmem:[%s4146 + $0x121] sm:$0xff]
    %v5625 = vld [vmem:[%s4146 + $0x129] sm:$0x7f]
    %v5626 = vld [vmem:[%s4146 + $0x131] sm:$0xff]
    %v5627 = vld [vmem:[%s4146 + $0x139] sm:$0x7f]
    %v5628 = vld [vmem:[%s4146 + $0x141] sm:$0xff]
    %v5629 = vld [vmem:[%s4146 + $0x149] sm:$0x7f]
    %v5630 = vld [vmem:[%s4146 + $0x151] sm:$0xff]
    %v5631 = vld [vmem:[%s4146 + $0x159] sm:$0x7f]
    %v5632 = vld [vmem:[%s4146 + $0x161] sm:$0xff]
    %v5633 = vld [vmem:[%s4146 + $0x169] sm:$0x7f]
    %v5634 = vld [vmem:[%s4146 + $0x171] sm:$0xff]
    %v5635 = vld [vmem:[%s4146 + $0x179] sm:$0x7f]
    %v5636 = vld [vmem:[%s4146 + $0x181] sm:$0xff]
    %v5637 = vld [vmem:[%s4146 + $0x189] sm:$0x7f]
    %v5638 = vld [vmem:[%s4146 + $0x191] sm:$0xff]
    %v5639 = vld [vmem:[%s4146 + $0x199] sm:$0x7f]
    %v5640 = vld [vmem:[%s4146 + $0x1a1] sm:$0xff]
    %v5641 = vld [vmem:[%s4146 + $0x1a9] sm:$0x7f]
    %v5642 = vld [vmem:[%s4146 + $0x1b1] sm:$0xff]
    %v5643 = vld [vmem:[%s4146 + $0x1b9] sm:$0x7f]
    %v5644 = vld [vmem:[%s4146 + $0x1c1] sm:$0xff]
    %v5645 = vld [vmem:[%s4146 + $0x1c9] sm:$0x7f]
    %v5646 = vld [vmem:[%s4146 + $0x1d1] sm:$0xff]
    %v5647 = vld [vmem:[%s4146 + $0x1d9] sm:$0x7f]
    %v5648 = vld [vmem:[%s4146 + $0x1e1] sm:$0xff]
    %v5649 = vld [vmem:[%s4146 + $0x1e9] sm:$0x7f]
    %v5650 = vld [vmem:[%s4146 + $0x201] sm:$0xff]
    %v5651 = vld [vmem:[%s4146 + $0x209] sm:$0x7f]
    %v5652 = vld [vmem:[%s4146 + $0x211] sm:$0xff]
    %v5653 = vld [vmem:[%s4146 + $0x219] sm:$0x7f]
    %v5654 = vld [vmem:[%s4146 + $0x221] sm:$0xff]
    %v5655 = vld [vmem:[%s4146 + $0x229] sm:$0x7f]
    %v5656 = vld [vmem:[%s4146 + $0x231] sm:$0xff]
    %v5657 = vld [vmem:[%s4146 + $0x239] sm:$0x7f]
    %v5658 = vld [vmem:[%s4146 + $0x241] sm:$0xff]
    %v5659 = vld [vmem:[%s4146 + $0x249] sm:$0x7f]
    %v5660 = vld [vmem:[%s4146 + $0x251] sm:$0xff]
    %v5661 = vld [vmem:[%s4146 + $0x259] sm:$0x7f]
    %v5662 = vld [vmem:[%s4146 + $0x261] sm:$0xff]
    %v5663 = vld [vmem:[%s4146 + $0x269] sm:$0x7f]
    %v5664 = vld [vmem:[%s4146 + $0x271] sm:$0xff]
    %v5665 = vld [vmem:[%s4146 + $0x279] sm:$0x7f]
    %v5666 = vld [vmem:[%s4146 + $0x281] sm:$0xff]
    %v5667 = vld [vmem:[%s4146 + $0x289] sm:$0x7f]
    %v5668 = vld [vmem:[%s4146 + $0x291] sm:$0xff]
    %v5669 = vld [vmem:[%s4146 + $0x299] sm:$0x7f]
    %v5670 = vld [vmem:[%s4146 + $0x2a1] sm:$0xff]
    %v5671 = vld [vmem:[%s4146 + $0x2a9] sm:$0x7f]
    %v5672 = vld [vmem:[%s4146 + $0x2b1] sm:$0xff]
    %v5673 = vld [vmem:[%s4146 + $0x2b9] sm:$0x7f]
    %v5674 = vld [vmem:[%s4146 + $0x2c1] sm:$0xff]
    %v5675 = vld [vmem:[%s4146 + $0x2c9] sm:$0x7f]
    %v5676 = vld [vmem:[%s4146 + $0x2d1] sm:$0xff]
    %v5677 = vld [vmem:[%s4146 + $0x2d9] sm:$0x7f]
    %v5678 = vld [vmem:[%s4146 + $0x2e1] sm:$0xff]
    %v5679 = vld [vmem:[%s4146 + $0x2e9] sm:$0x7f]
    %v5680 = vld [vmem:[%s4146 + $0x301] sm:$0xff]
    %v5681 = vld [vmem:[%s4146 + $0x309] sm:$0x7f]
    %v5682 = vld [vmem:[%s4146 + $0x311] sm:$0xff]
    %v5683 = vld [vmem:[%s4146 + $0x319] sm:$0x7f]
    %v5684 = vld [vmem:[%s4146 + $0x321] sm:$0xff]
    %v5685 = vld [vmem:[%s4146 + $0x329] sm:$0x7f]
    %v5686 = vld [vmem:[%s4146 + $0x331] sm:$0xff]
    %v5687 = vld [vmem:[%s4146 + $0x339] sm:$0x7f]
    %v5688 = vld [vmem:[%s4146 + $0x341] sm:$0xff]
    %v5689 = vld [vmem:[%s4146 + $0x349] sm:$0x7f]
    %v5690 = vld [vmem:[%s4146 + $0x351] sm:$0xff]
    %v5691 = vld [vmem:[%s4146 + $0x359] sm:$0x7f]
    %v5692 = vld [vmem:[%s4146 + $0x361] sm:$0xff]
    %v5693 = vld [vmem:[%s4146 + $0x369] sm:$0x7f]
    %v5694 = vld [vmem:[%s4146 + $0x371] sm:$0xff]
    %v5695 = vld [vmem:[%s4146 + $0x379] sm:$0x7f]
    %v5696 = vld [vmem:[%s4146 + $0x381] sm:$0xff]
    %v5697 = vld [vmem:[%s4146 + $0x389] sm:$0x7f]
    %v5698 = vld [vmem:[%s4146 + $0x391] sm:$0xff]
    %v5699 = vld [vmem:[%s4146 + $0x399] sm:$0x7f]
    %v5700 = vld [vmem:[%s4146 + $0x3a1] sm:$0xff]
    %v5701 = vld [vmem:[%s4146 + $0x3a9] sm:$0x7f]
    %v5702 = vld [vmem:[%s4146 + $0x3b1] sm:$0xff]
    %v5703 = vld [vmem:[%s4146 + $0x3b9] sm:$0x7f]
    %v5704 = vld [vmem:[%s4146 + $0x3c1] sm:$0xff]
    %v5705 = vld [vmem:[%s4146 + $0x3c9] sm:$0x7f]
    %v5706 = vld [vmem:[%s4146 + $0x3d1] sm:$0xff]
    %v5707 = vld [vmem:[%s4146 + $0x3d9] sm:$0x7f]
    %v5708 = vld [vmem:[%s4146 + $0x3e1] sm:$0xff]
    %v5709 = vld [vmem:[%s4146 + $0x3e9] sm:$0x7f]
    %5830 = vrot.lane.b32.xlu0 %v5590, 32
    %v5831 = vpop.permute.xlu0 %5830
    %5832 = vrot.lane.b32.xlu0 %v5591, 32
    %v5833 = vpop.permute.xlu0 %5832
    %5834 = vrot.lane.b32.xlu0 %v5592, 32
    %v5835 = vpop.permute.xlu0 %5834
    %5836 = vrot.lane.b32.xlu0 %v5593, 32
    %v5837 = vpop.permute.xlu0 %5836
    %5838 = vrot.lane.b32.xlu0 %v5594, 32
    %v5839 = vpop.permute.xlu0 %5838
    %5840 = vrot.lane.b32.xlu0 %v5595, 32
    %v5841 = vpop.permute.xlu0 %5840
    %5842 = vrot.lane.b32.xlu0 %v5596, 32
    %v5843 = vpop.permute.xlu0 %5842
    %5844 = vrot.lane.b32.xlu0 %v5597, 32
    %v5845 = vpop.permute.xlu0 %5844
    %5846 = vrot.lane.b32.xlu0 %v5598, 32
    %v5847 = vpop.permute.xlu0 %5846
    %5848 = vrot.lane.b32.xlu0 %v5599, 32
    %v5849 = vpop.permute.xlu0 %5848
    %5850 = vrot.lane.b32.xlu0 %v5600, 32
    %v5851 = vpop.permute.xlu0 %5850
    %5852 = vrot.lane.b32.xlu0 %v5601, 32
    %v5853 = vpop.permute.xlu0 %5852
    %5854 = vrot.lane.b32.xlu0 %v5602, 32
    %v5855 = vpop.permute.xlu0 %5854
    %5856 = vrot.lane.b32.xlu0 %v5603, 32
    %v5857 = vpop.permute.xlu0 %5856
    %5858 = vrot.lane.b32.xlu0 %v5604, 32
    %v5859 = vpop.permute.xlu0 %5858
    %5860 = vrot.lane.b32.xlu0 %v5605, 32
    %v5861 = vpop.permute.xlu0 %5860
    %5862 = vrot.lane.b32.xlu0 %v5606, 32
    %v5863 = vpop.permute.xlu0 %5862
    %5864 = vrot.lane.b32.xlu0 %v5607, 32
    %v5865 = vpop.permute.xlu0 %5864
    %5866 = vrot.lane.b32.xlu0 %v5608, 32
    %v5867 = vpop.permute.xlu0 %5866
    %5868 = vrot.lane.b32.xlu0 %v5609, 32
    %v5869 = vpop.permute.xlu0 %5868
    %5870 = vrot.lane.b32.xlu0 %v5610, 32
    %v5871 = vpop.permute.xlu0 %5870
    %5872 = vrot.lane.b32.xlu0 %v5611, 32
    %v5873 = vpop.permute.xlu0 %5872
    %5874 = vrot.lane.b32.xlu0 %v5612, 32
    %v5875 = vpop.permute.xlu0 %5874
    %5876 = vrot.lane.b32.xlu0 %v5613, 32
    %v5877 = vpop.permute.xlu0 %5876
    %5878 = vrot.lane.b32.xlu0 %v5614, 32
    %v5879 = vpop.permute.xlu0 %5878
    %5880 = vrot.lane.b32.xlu0 %v5615, 32
    %v5881 = vpop.permute.xlu0 %5880
    %5882 = vrot.lane.b32.xlu0 %v5616, 32
    %v5883 = vpop.permute.xlu0 %5882
    %5884 = vrot.lane.b32.xlu0 %v5617, 32
    %v5885 = vpop.permute.xlu0 %5884
    %5886 = vrot.lane.b32.xlu0 %v5618, 32
    %v5887 = vpop.permute.xlu0 %5886
    %5888 = vrot.lane.b32.xlu0 %v5619, 32
    %v5889 = vpop.permute.xlu0 %5888
    %5890 = vrot.lane.b32.xlu0 %v5620, 32
    %v5891 = vpop.permute.xlu0 %5890
    %5892 = vrot.lane.b32.xlu0 %v5621, 32
    %v5893 = vpop.permute.xlu0 %5892
    %5894 = vrot.lane.b32.xlu0 %v5622, 32
    %v5895 = vpop.permute.xlu0 %5894
    %5896 = vrot.lane.b32.xlu0 %v5623, 32
    %v5897 = vpop.permute.xlu0 %5896
    %5898 = vrot.lane.b32.xlu0 %v5624, 32
    %v5899 = vpop.permute.xlu0 %5898
    %5900 = vrot.lane.b32.xlu0 %v5625, 32
    %v5901 = vpop.permute.xlu0 %5900
    %5902 = vrot.lane.b32.xlu0 %v5626, 32
    %v5903 = vpop.permute.xlu0 %5902
    %5904 = vrot.lane.b32.xlu0 %v5627, 32
    %v5905 = vpop.permute.xlu0 %5904
    %5906 = vrot.lane.b32.xlu0 %v5628, 32
    %v5907 = vpop.permute.xlu0 %5906
    %5908 = vrot.lane.b32.xlu0 %v5629, 32
    %v5909 = vpop.permute.xlu0 %5908
    %5910 = vrot.lane.b32.xlu0 %v5630, 32
    %v5911 = vpop.permute.xlu0 %5910
    %5912 = vrot.lane.b32.xlu0 %v5631, 32
    %v5913 = vpop.permute.xlu0 %5912
    %5914 = vrot.lane.b32.xlu0 %v5632, 32
    %v5915 = vpop.permute.xlu0 %5914
    %5916 = vrot.lane.b32.xlu0 %v5633, 32
    %v5917 = vpop.permute.xlu0 %5916
    %5918 = vrot.lane.b32.xlu0 %v5634, 32
    %v5919 = vpop.permute.xlu0 %5918
    %5920 = vrot.lane.b32.xlu0 %v5635, 32
    %v5921 = vpop.permute.xlu0 %5920
    %5922 = vrot.lane.b32.xlu0 %v5636, 32
    %v5923 = vpop.permute.xlu0 %5922
    %5924 = vrot.lane.b32.xlu0 %v5637, 32
    %v5925 = vpop.permute.xlu0 %5924
    %5926 = vrot.lane.b32.xlu0 %v5638, 32
    %v5927 = vpop.permute.xlu0 %5926
    %5928 = vrot.lane.b32.xlu0 %v5639, 32
    %v5929 = vpop.permute.xlu0 %5928
    %5930 = vrot.lane.b32.xlu0 %v5640, 32
    %v5931 = vpop.permute.xlu0 %5930
    %5932 = vrot.lane.b32.xlu0 %v5641, 32
    %v5933 = vpop.permute.xlu0 %5932
    %5934 = vrot.lane.b32.xlu0 %v5642, 32
    %v5935 = vpop.permute.xlu0 %5934
    %5936 = vrot.lane.b32.xlu0 %v5643, 32
    %v5937 = vpop.permute.xlu0 %5936
    %5938 = vrot.lane.b32.xlu0 %v5644, 32
    %v5939 = vpop.permute.xlu0 %5938
    %5940 = vrot.lane.b32.xlu0 %v5645, 32
    %v5941 = vpop.permute.xlu0 %5940
    %5942 = vrot.lane.b32.xlu0 %v5646, 32
    %v5943 = vpop.permute.xlu0 %5942
    %5944 = vrot.lane.b32.xlu0 %v5647, 32
    %v5945 = vpop.permute.xlu0 %5944
    %5946 = vrot.lane.b32.xlu0 %v5648, 32
    %v5947 = vpop.permute.xlu0 %5946
    %5948 = vrot.lane.b32.xlu0 %v5649, 32
    %v5949 = vpop.permute.xlu0 %5948
    %5950 = vrot.lane.b32.xlu0 %v5650, 32
    %v5951 = vpop.permute.xlu0 %5950
    %5952 = vrot.lane.b32.xlu0 %v5651, 32
    %v5953 = vpop.permute.xlu0 %5952
    %5954 = vrot.lane.b32.xlu0 %v5652, 32
    %v5955 = vpop.permute.xlu0 %5954
    %5956 = vrot.lane.b32.xlu0 %v5653, 32
    %v5957 = vpop.permute.xlu0 %5956
    %5958 = vrot.lane.b32.xlu0 %v5654, 32
    %v5959 = vpop.permute.xlu0 %5958
    %5960 = vrot.lane.b32.xlu0 %v5655, 32
    %v5961 = vpop.permute.xlu0 %5960
    %5962 = vrot.lane.b32.xlu0 %v5656, 32
    %v5963 = vpop.permute.xlu0 %5962
    %5964 = vrot.lane.b32.xlu0 %v5657, 32
    %v5965 = vpop.permute.xlu0 %5964
    %5966 = vrot.lane.b32.xlu0 %v5658, 32
    %v5967 = vpop.permute.xlu0 %5966
    %5968 = vrot.lane.b32.xlu0 %v5659, 32
    %v5969 = vpop.permute.xlu0 %5968
    %5970 = vrot.lane.b32.xlu0 %v5660, 32
    %v5971 = vpop.permute.xlu0 %5970
    %5972 = vrot.lane.b32.xlu0 %v5661, 32
    %v5973 = vpop.permute.xlu0 %5972
    %5974 = vrot.lane.b32.xlu0 %v5662, 32
    %v5975 = vpop.permute.xlu0 %5974
    %5976 = vrot.lane.b32.xlu0 %v5663, 32
    %v5977 = vpop.permute.xlu0 %5976
    %5978 = vrot.lane.b32.xlu0 %v5664, 32
    %v5979 = vpop.permute.xlu0 %5978
    %5980 = vrot.lane.b32.xlu0 %v5665, 32
    %v5981 = vpop.permute.xlu0 %5980
    %5982 = vrot.lane.b32.xlu0 %v5666, 32
    %v5983 = vpop.permute.xlu0 %5982
    %5984 = vrot.lane.b32.xlu0 %v5667, 32
    %v5985 = vpop.permute.xlu0 %5984
    %5986 = vrot.lane.b32.xlu0 %v5668, 32
    %v5987 = vpop.permute.xlu0 %5986
    %5988 = vrot.lane.b32.xlu0 %v5669, 32
    %v5989 = vpop.permute.xlu0 %5988
    %5990 = vrot.lane.b32.xlu0 %v5670, 32
    %v5991 = vpop.permute.xlu0 %5990
    %5992 = vrot.lane.b32.xlu0 %v5671, 32
    %v5993 = vpop.permute.xlu0 %5992
    %5994 = vrot.lane.b32.xlu0 %v5672, 32
    %v5995 = vpop.permute.xlu0 %5994
    %5996 = vrot.lane.b32.xlu0 %v5673, 32
    %v5997 = vpop.permute.xlu0 %5996
    %5998 = vrot.lane.b32.xlu0 %v5674, 32
    %v5999 = vpop.permute.xlu0 %5998
    %6000 = vrot.lane.b32.xlu0 %v5675, 32
    %v6001 = vpop.permute.xlu0 %6000
    %6002 = vrot.lane.b32.xlu0 %v5676, 32
    %v6003 = vpop.permute.xlu0 %6002
    %6004 = vrot.lane.b32.xlu0 %v5677, 32
    %v6005 = vpop.permute.xlu0 %6004
    %6006 = vrot.lane.b32.xlu0 %v5678, 32
    %v6007 = vpop.permute.xlu0 %6006
    %6008 = vrot.lane.b32.xlu0 %v5679, 32
    %v6009 = vpop.permute.xlu0 %6008
    %6010 = vrot.lane.b32.xlu0 %v5680, 32
    %v6011 = vpop.permute.xlu0 %6010
    %6012 = vrot.lane.b32.xlu0 %v5681, 32
    %v6013 = vpop.permute.xlu0 %6012
    %6014 = vrot.lane.b32.xlu0 %v5682, 32
    %v6015 = vpop.permute.xlu0 %6014
    %6016 = vrot.lane.b32.xlu0 %v5683, 32
    %v6017 = vpop.permute.xlu0 %6016
    %6018 = vrot.lane.b32.xlu0 %v5684, 32
    %v6019 = vpop.permute.xlu0 %6018
    %6020 = vrot.lane.b32.xlu0 %v5685, 32
    %v6021 = vpop.permute.xlu0 %6020
    %6022 = vrot.lane.b32.xlu0 %v5686, 32
    %v6023 = vpop.permute.xlu0 %6022
    %6024 = vrot.lane.b32.xlu0 %v5687, 32
    %v6025 = vpop.permute.xlu0 %6024
    %6026 = vrot.lane.b32.xlu0 %v5688, 32
    %v6027 = vpop.permute.xlu0 %6026
    %6028 = vrot.lane.b32.xlu0 %v5689, 32
    %v6029 = vpop.permute.xlu0 %6028
    %6030 = vrot.lane.b32.xlu0 %v5690, 32
    %v6031 = vpop.permute.xlu0 %6030
    %6032 = vrot.lane.b32.xlu0 %v5691, 32
    %v6033 = vpop.permute.xlu0 %6032
    %6034 = vrot.lane.b32.xlu0 %v5692, 32
    %v6035 = vpop.permute.xlu0 %6034
    %6036 = vrot.lane.b32.xlu0 %v5693, 32
    %v6037 = vpop.permute.xlu0 %6036
    %6038 = vrot.lane.b32.xlu0 %v5694, 32
    %v6039 = vpop.permute.xlu0 %6038
    %6040 = vrot.lane.b32.xlu0 %v5695, 32
    %v6041 = vpop.permute.xlu0 %6040
    %6042 = vrot.lane.b32.xlu0 %v5696, 32
    %v6043 = vpop.permute.xlu0 %6042
    %6044 = vrot.lane.b32.xlu0 %v5697, 32
    %v6045 = vpop.permute.xlu0 %6044
    %6046 = vrot.lane.b32.xlu0 %v5698, 32
    %v6047 = vpop.permute.xlu0 %6046
    %6048 = vrot.lane.b32.xlu0 %v5699, 32
    %v6049 = vpop.permute.xlu0 %6048
    %6050 = vrot.lane.b32.xlu0 %v5700, 32
    %v6051 = vpop.permute.xlu0 %6050
    %6052 = vrot.lane.b32.xlu0 %v5701, 32
    %v6053 = vpop.permute.xlu0 %6052
    %6054 = vrot.lane.b32.xlu0 %v5702, 32
    %v6055 = vpop.permute.xlu0 %6054
    %6056 = vrot.lane.b32.xlu0 %v5703, 32
    %v6057 = vpop.permute.xlu0 %6056
    %6058 = vrot.lane.b32.xlu0 %v5704, 32
    %v6059 = vpop.permute.xlu0 %6058
    %6060 = vrot.lane.b32.xlu0 %v5705, 32
    %v6061 = vpop.permute.xlu0 %6060
    %6062 = vrot.lane.b32.xlu0 %v5706, 32
    %v6063 = vpop.permute.xlu0 %6062
    %6064 = vrot.lane.b32.xlu0 %v5707, 32
    %v6065 = vpop.permute.xlu0 %6064
    %6066 = vrot.lane.b32.xlu0 %v5708, 32
    %v6067 = vpop.permute.xlu0 %6066
    %6068 = vrot.lane.b32.xlu0 %v5709, 32
    %v6069 = vpop.permute.xlu0 %6068
    %vm6190 = vcmask 294144
    %6191 = vst.msk [vmem:[#allocation2] sm:$0xff] %vm6190, %v5831
    %vm6192 = vcmask 293120
    %6193 = vst.msk [vmem:[#allocation2 + $0x8] sm:$0x7f] %vm6192, %v5833
    %6194 = vst.msk [vmem:[#allocation2 + $0x10] sm:$0xff] %vm6190, %v5835
    %6195 = vst.msk [vmem:[#allocation2 + $0x18] sm:$0x7f] %vm6192, %v5837
    %6196 = vst.msk [vmem:[#allocation2 + $0x20] sm:$0xff] %vm6190, %v5839
    %6197 = vst.msk [vmem:[#allocation2 + $0x28] sm:$0x7f] %vm6192, %v5841
    %6198 = vst.msk [vmem:[#allocation2 + $0x30] sm:$0xff] %vm6190, %v5843
    %6199 = vst.msk [vmem:[#allocation2 + $0x38] sm:$0x7f] %vm6192, %v5845
    %6200 = vst.msk [vmem:[#allocation2 + $0x40] sm:$0xff] %vm6190, %v5847
    %6201 = vst.msk [vmem:[#allocation2 + $0x48] sm:$0x7f] %vm6192, %v5849
    %6202 = vst.msk [vmem:[#allocation2 + $0x50] sm:$0xff] %vm6190, %v5851
    %6203 = vst.msk [vmem:[#allocation2 + $0x58] sm:$0x7f] %vm6192, %v5853
    %6204 = vst.msk [vmem:[#allocation2 + $0x60] sm:$0xff] %vm6190, %v5855
    %6205 = vst.msk [vmem:[#allocation2 + $0x68] sm:$0x7f] %vm6192, %v5857
    %6206 = vst.msk [vmem:[#allocation2 + $0x70] sm:$0xff] %vm6190, %v5859
    %6207 = vst.msk [vmem:[#allocation2 + $0x78] sm:$0x7f] %vm6192, %v5861
    %6208 = vst.msk [vmem:[#allocation2 + $0x80] sm:$0xff] %vm6190, %v5863
    %6209 = vst.msk [vmem:[#allocation2 + $0x88] sm:$0x7f] %vm6192, %v5865
    %6210 = vst.msk [vmem:[#allocation2 + $0x90] sm:$0xff] %vm6190, %v5867
    %6211 = vst.msk [vmem:[#allocation2 + $0x98] sm:$0x7f] %vm6192, %v5869
    %6212 = vst.msk [vmem:[#allocation2 + $0xa0] sm:$0xff] %vm6190, %v5871
    %6213 = vst.msk [vmem:[#allocation2 + $0xa8] sm:$0x7f] %vm6192, %v5873
    %6214 = vst.msk [vmem:[#allocation2 + $0xb0] sm:$0xff] %vm6190, %v5875
    %6215 = vst.msk [vmem:[#allocation2 + $0xb8] sm:$0x7f] %vm6192, %v5877
    %6216 = vst.msk [vmem:[#allocation2 + $0xc0] sm:$0xff] %vm6190, %v5879
    %6217 = vst.msk [vmem:[#allocation2 + $0xc8] sm:$0x7f] %vm6192, %v5881
    %6218 = vst.msk [vmem:[#allocation2 + $0xd0] sm:$0xff] %vm6190, %v5883
    %6219 = vst.msk [vmem:[#allocation2 + $0xd8] sm:$0x7f] %vm6192, %v5885
    %6220 = vst.msk [vmem:[#allocation2 + $0xe0] sm:$0xff] %vm6190, %v5887
    %6221 = vst.msk [vmem:[#allocation2 + $0xe8] sm:$0x7f] %vm6192, %v5889
    %6222 = vst.msk [vmem:[#allocation2 + $0x100] sm:$0xff] %vm6190, %v5891
    %6223 = vst.msk [vmem:[#allocation2 + $0x108] sm:$0x7f] %vm6192, %v5893
    %6224 = vst.msk [vmem:[#allocation2 + $0x110] sm:$0xff] %vm6190, %v5895
    %6225 = vst.msk [vmem:[#allocation2 + $0x118] sm:$0x7f] %vm6192, %v5897
    %6226 = vst.msk [vmem:[#allocation2 + $0x120] sm:$0xff] %vm6190, %v5899
    %6227 = vst.msk [vmem:[#allocation2 + $0x128] sm:$0x7f] %vm6192, %v5901
    %6228 = vst.msk [vmem:[#allocation2 + $0x130] sm:$0xff] %vm6190, %v5903
    %6229 = vst.msk [vmem:[#allocation2 + $0x138] sm:$0x7f] %vm6192, %v5905
    %6230 = vst.msk [vmem:[#allocation2 + $0x140] sm:$0xff] %vm6190, %v5907
    %6231 = vst.msk [vmem:[#allocation2 + $0x148] sm:$0x7f] %vm6192, %v5909
    %6232 = vst.msk [vmem:[#allocation2 + $0x150] sm:$0xff] %vm6190, %v5911
    %6233 = vst.msk [vmem:[#allocation2 + $0x158] sm:$0x7f] %vm6192, %v5913
    %6234 = vst.msk [vmem:[#allocation2 + $0x160] sm:$0xff] %vm6190, %v5915
    %6235 = vst.msk [vmem:[#allocation2 + $0x168] sm:$0x7f] %vm6192, %v5917
    %6236 = vst.msk [vmem:[#allocation2 + $0x170] sm:$0xff] %vm6190, %v5919
    %6237 = vst.msk [vmem:[#allocation2 + $0x178] sm:$0x7f] %vm6192, %v5921
    %6238 = vst.msk [vmem:[#allocation2 + $0x180] sm:$0xff] %vm6190, %v5923
    %6239 = vst.msk [vmem:[#allocation2 + $0x188] sm:$0x7f] %vm6192, %v5925
    %6240 = vst.msk [vmem:[#allocation2 + $0x190] sm:$0xff] %vm6190, %v5927
    %6241 = vst.msk [vmem:[#allocation2 + $0x198] sm:$0x7f] %vm6192, %v5929
    %6242 = vst.msk [vmem:[#allocation2 + $0x1a0] sm:$0xff] %vm6190, %v5931
    %6243 = vst.msk [vmem:[#allocation2 + $0x1a8] sm:$0x7f] %vm6192, %v5933
    %6244 = vst.msk [vmem:[#allocation2 + $0x1b0] sm:$0xff] %vm6190, %v5935
    %6245 = vst.msk [vmem:[#allocation2 + $0x1b8] sm:$0x7f] %vm6192, %v5937
    %6246 = vst.msk [vmem:[#allocation2 + $0x1c0] sm:$0xff] %vm6190, %v5939
    %6247 = vst.msk [vmem:[#allocation2 + $0x1c8] sm:$0x7f] %vm6192, %v5941
    %6248 = vst.msk [vmem:[#allocation2 + $0x1d0] sm:$0xff] %vm6190, %v5943
    %6249 = vst.msk [vmem:[#allocation2 + $0x1d8] sm:$0x7f] %vm6192, %v5945
    %6250 = vst.msk [vmem:[#allocation2 + $0x1e0] sm:$0xff] %vm6190, %v5947
    %6251 = vst.msk [vmem:[#allocation2 + $0x1e8] sm:$0x7f] %vm6192, %v5949
    %6252 = vst.msk [vmem:[#allocation2 + $0x200] sm:$0xff] %vm6190, %v5951
    %6253 = vst.msk [vmem:[#allocation2 + $0x208] sm:$0x7f] %vm6192, %v5953
    %6254 = vst.msk [vmem:[#allocation2 + $0x210] sm:$0xff] %vm6190, %v5955
    %6255 = vst.msk [vmem:[#allocation2 + $0x218] sm:$0x7f] %vm6192, %v5957
    %6256 = vst.msk [vmem:[#allocation2 + $0x220] sm:$0xff] %vm6190, %v5959
    %6257 = vst.msk [vmem:[#allocation2 + $0x228] sm:$0x7f] %vm6192, %v5961
    %6258 = vst.msk [vmem:[#allocation2 + $0x230] sm:$0xff] %vm6190, %v5963
    %6259 = vst.msk [vmem:[#allocation2 + $0x238] sm:$0x7f] %vm6192, %v5965
    %6260 = vst.msk [vmem:[#allocation2 + $0x240] sm:$0xff] %vm6190, %v5967
    %6261 = vst.msk [vmem:[#allocation2 + $0x248] sm:$0x7f] %vm6192, %v5969
    %6262 = vst.msk [vmem:[#allocation2 + $0x250] sm:$0xff] %vm6190, %v5971
    %6263 = vst.msk [vmem:[#allocation2 + $0x258] sm:$0x7f] %vm6192, %v5973
    %6264 = vst.msk [vmem:[#allocation2 + $0x260] sm:$0xff] %vm6190, %v5975
    %6265 = vst.msk [vmem:[#allocation2 + $0x268] sm:$0x7f] %vm6192, %v5977
    %6266 = vst.msk [vmem:[#allocation2 + $0x270] sm:$0xff] %vm6190, %v5979
    %6267 = vst.msk [vmem:[#allocation2 + $0x278] sm:$0x7f] %vm6192, %v5981
    %6268 = vst.msk [vmem:[#allocation2 + $0x280] sm:$0xff] %vm6190, %v5983
    %6269 = vst.msk [vmem:[#allocation2 + $0x288] sm:$0x7f] %vm6192, %v5985
    %6270 = vst.msk [vmem:[#allocation2 + $0x290] sm:$0xff] %vm6190, %v5987
    %6271 = vst.msk [vmem:[#allocation2 + $0x298] sm:$0x7f] %vm6192, %v5989
    %6272 = vst.msk [vmem:[#allocation2 + $0x2a0] sm:$0xff] %vm6190, %v5991
    %6273 = vst.msk [vmem:[#allocation2 + $0x2a8] sm:$0x7f] %vm6192, %v5993
    %6274 = vst.msk [vmem:[#allocation2 + $0x2b0] sm:$0xff] %vm6190, %v5995
    %6275 = vst.msk [vmem:[#allocation2 + $0x2b8] sm:$0x7f] %vm6192, %v5997
    %6276 = vst.msk [vmem:[#allocation2 + $0x2c0] sm:$0xff] %vm6190, %v5999
    %6277 = vst.msk [vmem:[#allocation2 + $0x2c8] sm:$0x7f] %vm6192, %v6001
    %6278 = vst.msk [vmem:[#allocation2 + $0x2d0] sm:$0xff] %vm6190, %v6003
    %6279 = vst.msk [vmem:[#allocation2 + $0x2d8] sm:$0x7f] %vm6192, %v6005
    %6280 = vst.msk [vmem:[#allocation2 + $0x2e0] sm:$0xff] %vm6190, %v6007
    %6281 = vst.msk [vmem:[#allocation2 + $0x2e8] sm:$0x7f] %vm6192, %v6009
    %6282 = vst.msk [vmem:[#allocation2 + $0x300] sm:$0xff] %vm6190, %v6011
    %6283 = vst.msk [vmem:[#allocation2 + $0x308] sm:$0x7f] %vm6192, %v6013
    %6284 = vst.msk [vmem:[#allocation2 + $0x310] sm:$0xff] %vm6190, %v6015
    %6285 = vst.msk [vmem:[#allocation2 + $0x318] sm:$0x7f] %vm6192, %v6017
    %6286 = vst.msk [vmem:[#allocation2 + $0x320] sm:$0xff] %vm6190, %v6019
    %6287 = vst.msk [vmem:[#allocation2 + $0x328] sm:$0x7f] %vm6192, %v6021
    %6288 = vst.msk [vmem:[#allocation2 + $0x330] sm:$0xff] %vm6190, %v6023
    %6289 = vst.msk [vmem:[#allocation2 + $0x338] sm:$0x7f] %vm6192, %v6025
    %6290 = vst.msk [vmem:[#allocation2 + $0x340] sm:$0xff] %vm6190, %v6027
    %6291 = vst.msk [vmem:[#allocation2 + $0x348] sm:$0x7f] %vm6192, %v6029
    %6292 = vst.msk [vmem:[#allocation2 + $0x350] sm:$0xff] %vm6190, %v6031
    %6293 = vst.msk [vmem:[#allocation2 + $0x358] sm:$0x7f] %vm6192, %v6033
    %6294 = vst.msk [vmem:[#allocation2 + $0x360] sm:$0xff] %vm6190, %v6035
    %6295 = vst.msk [vmem:[#allocation2 + $0x368] sm:$0x7f] %vm6192, %v6037
    %6296 = vst.msk [vmem:[#allocation2 + $0x370] sm:$0xff] %vm6190, %v6039
    %6297 = vst.msk [vmem:[#allocation2 + $0x378] sm:$0x7f] %vm6192, %v6041
    %6298 = vst.msk [vmem:[#allocation2 + $0x380] sm:$0xff] %vm6190, %v6043
    %6299 = vst.msk [vmem:[#allocation2 + $0x388] sm:$0x7f] %vm6192, %v6045
    %6300 = vst.msk [vmem:[#allocation2 + $0x390] sm:$0xff] %vm6190, %v6047
    %6301 = vst.msk [vmem:[#allocation2 + $0x398] sm:$0x7f] %vm6192, %v6049
    %6302 = vst.msk [vmem:[#allocation2 + $0x3a0] sm:$0xff] %vm6190, %v6051
    %6303 = vst.msk [vmem:[#allocation2 + $0x3a8] sm:$0x7f] %vm6192, %v6053
    %6304 = vst.msk [vmem:[#allocation2 + $0x3b0] sm:$0xff] %vm6190, %v6055
    %6305 = vst.msk [vmem:[#allocation2 + $0x3b8] sm:$0x7f] %vm6192, %v6057
    %6306 = vst.msk [vmem:[#allocation2 + $0x3c0] sm:$0xff] %vm6190, %v6059
    %6307 = vst.msk [vmem:[#allocation2 + $0x3c8] sm:$0x7f] %vm6192, %v6061
    %6308 = vst.msk [vmem:[#allocation2 + $0x3d0] sm:$0xff] %vm6190, %v6063
    %6309 = vst.msk [vmem:[#allocation2 + $0x3d8] sm:$0x7f] %vm6192, %v6065
    %6310 = vst.msk [vmem:[#allocation2 + $0x3e0] sm:$0xff] %vm6190, %v6067
    %6311 = vst.msk [vmem:[#allocation2 + $0x3e8] sm:$0x7f] %vm6192, %v6069
    %v6312 = vld [vmem:[#allocation2] sm:$0xff]
    %v6313 = vld [vmem:[#allocation2 + $0x8] sm:$0xff]
    %v6314 = vld [vmem:[#allocation2 + $0x10] sm:$0xff]
    %v6315 = vld [vmem:[#allocation2 + $0x18] sm:$0xff]
    %v6316 = vld [vmem:[#allocation2 + $0x20] sm:$0xff]
    %v6317 = vld [vmem:[#allocation2 + $0x28] sm:$0xff]
    %v6318 = vld [vmem:[#allocation2 + $0x30] sm:$0xff]
    %v6319 = vld [vmem:[#allocation2 + $0x38] sm:$0xff]
    %v6320 = vld [vmem:[#allocation2 + $0x40] sm:$0xff]
    %v6321 = vld [vmem:[#allocation2 + $0x48] sm:$0xff]
    %v6322 = vld [vmem:[#allocation2 + $0x50] sm:$0xff]
    %v6323 = vld [vmem:[#allocation2 + $0x58] sm:$0xff]
    %v6324 = vld [vmem:[#allocation2 + $0x60] sm:$0xff]
    %v6325 = vld [vmem:[#allocation2 + $0x68] sm:$0xff]
    %v6326 = vld [vmem:[#allocation2 + $0x70] sm:$0xff]
    %v6327 = vld [vmem:[#allocation2 + $0x78] sm:$0xff]
    %v6328 = vld [vmem:[#allocation2 + $0x80] sm:$0xff]
    %v6329 = vld [vmem:[#allocation2 + $0x88] sm:$0xff]
    %v6330 = vld [vmem:[#allocation2 + $0x90] sm:$0xff]
    %v6331 = vld [vmem:[#allocation2 + $0x98] sm:$0xff]
    %v6332 = vld [vmem:[#allocation2 + $0xa0] sm:$0xff]
    %v6333 = vld [vmem:[#allocation2 + $0xa8] sm:$0xff]
    %v6334 = vld [vmem:[#allocation2 + $0xb0] sm:$0xff]
    %v6335 = vld [vmem:[#allocation2 + $0xb8] sm:$0xff]
    %v6336 = vld [vmem:[#allocation2 + $0xc0] sm:$0xff]
    %v6337 = vld [vmem:[#allocation2 + $0xc8] sm:$0xff]
    %v6338 = vld [vmem:[#allocation2 + $0xd0] sm:$0xff]
    %v6339 = vld [vmem:[#allocation2 + $0xd8] sm:$0xff]
    %v6340 = vld [vmem:[#allocation2 + $0xe0] sm:$0xff]
    %v6341 = vld [vmem:[#allocation2 + $0xe8] sm:$0xff]
    %v6342 = vld [vmem:[#allocation2 + $0xf0] sm:$0xff]
    %v6343 = vld [vmem:[#allocation2 + $0xf8] sm:$0xff]
    %v6344 = vld [vmem:[#allocation2 + $0x100] sm:$0xff]
    %v6345 = vld [vmem:[#allocation2 + $0x108] sm:$0xff]
    %v6346 = vld [vmem:[#allocation2 + $0x110] sm:$0xff]
    %v6347 = vld [vmem:[#allocation2 + $0x118] sm:$0xff]
    %v6348 = vld [vmem:[#allocation2 + $0x120] sm:$0xff]
    %v6349 = vld [vmem:[#allocation2 + $0x128] sm:$0xff]
    %v6350 = vld [vmem:[#allocation2 + $0x130] sm:$0xff]
    %v6351 = vld [vmem:[#allocation2 + $0x138] sm:$0xff]
    %v6352 = vld [vmem:[#allocation2 + $0x140] sm:$0xff]
    %v6353 = vld [vmem:[#allocation2 + $0x148] sm:$0xff]
    %v6354 = vld [vmem:[#allocation2 + $0x150] sm:$0xff]
    %v6355 = vld [vmem:[#allocation2 + $0x158] sm:$0xff]
    %v6356 = vld [vmem:[#allocation2 + $0x160] sm:$0xff]
    %v6357 = vld [vmem:[#allocation2 + $0x168] sm:$0xff]
    %v6358 = vld [vmem:[#allocation2 + $0x170] sm:$0xff]
    %v6359 = vld [vmem:[#allocation2 + $0x178] sm:$0xff]
    %v6360 = vld [vmem:[#allocation2 + $0x180] sm:$0xff]
    %v6361 = vld [vmem:[#allocation2 + $0x188] sm:$0xff]
    %v6362 = vld [vmem:[#allocation2 + $0x190] sm:$0xff]
    %v6363 = vld [vmem:[#allocation2 + $0x198] sm:$0xff]
    %v6364 = vld [vmem:[#allocation2 + $0x1a0] sm:$0xff]
    %v6365 = vld [vmem:[#allocation2 + $0x1a8] sm:$0xff]
    %v6366 = vld [vmem:[#allocation2 + $0x1b0] sm:$0xff]
    %v6367 = vld [vmem:[#allocation2 + $0x1b8] sm:$0xff]
    %v6368 = vld [vmem:[#allocation2 + $0x1c0] sm:$0xff]
    %v6369 = vld [vmem:[#allocation2 + $0x1c8] sm:$0xff]
    %v6370 = vld [vmem:[#allocation2 + $0x1d0] sm:$0xff]
    %v6371 = vld [vmem:[#allocation2 + $0x1d8] sm:$0xff]
    %v6372 = vld [vmem:[#allocation2 + $0x1e0] sm:$0xff]
    %v6373 = vld [vmem:[#allocation2 + $0x1e8] sm:$0xff]
    %v6374 = vld [vmem:[#allocation2 + $0x1f0] sm:$0xff]
    %v6375 = vld [vmem:[#allocation2 + $0x1f8] sm:$0xff]
    %v6376 = vld [vmem:[#allocation2 + $0x200] sm:$0xff]
    %v6377 = vld [vmem:[#allocation2 + $0x208] sm:$0xff]
    %v6378 = vld [vmem:[#allocation2 + $0x210] sm:$0xff]
    %v6379 = vld [vmem:[#allocation2 + $0x218] sm:$0xff]
    %v6380 = vld [vmem:[#allocation2 + $0x220] sm:$0xff]
    %v6381 = vld [vmem:[#allocation2 + $0x228] sm:$0xff]
    %v6382 = vld [vmem:[#allocation2 + $0x230] sm:$0xff]
    %v6383 = vld [vmem:[#allocation2 + $0x238] sm:$0xff]
    %v6384 = vld [vmem:[#allocation2 + $0x240] sm:$0xff]
    %v6385 = vld [vmem:[#allocation2 + $0x248] sm:$0xff]
    %v6386 = vld [vmem:[#allocation2 + $0x250] sm:$0xff]
    %v6387 = vld [vmem:[#allocation2 + $0x258] sm:$0xff]
    %v6388 = vld [vmem:[#allocation2 + $0x260] sm:$0xff]
    %v6389 = vld [vmem:[#allocation2 + $0x268] sm:$0xff]
    %v6390 = vld [vmem:[#allocation2 + $0x270] sm:$0xff]
    %v6391 = vld [vmem:[#allocation2 + $0x278] sm:$0xff]
    %v6392 = vld [vmem:[#allocation2 + $0x280] sm:$0xff]
    %v6393 = vld [vmem:[#allocation2 + $0x288] sm:$0xff]
    %v6394 = vld [vmem:[#allocation2 + $0x290] sm:$0xff]
    %v6395 = vld [vmem:[#allocation2 + $0x298] sm:$0xff]
    %v6396 = vld [vmem:[#allocation2 + $0x2a0] sm:$0xff]
    %v6397 = vld [vmem:[#allocation2 + $0x2a8] sm:$0xff]
    %v6398 = vld [vmem:[#allocation2 + $0x2b0] sm:$0xff]
    %v6399 = vld [vmem:[#allocation2 + $0x2b8] sm:$0xff]
    %v6400 = vld [vmem:[#allocation2 + $0x2c0] sm:$0xff]
    %v6401 = vld [vmem:[#allocation2 + $0x2c8] sm:$0xff]
    %v6402 = vld [vmem:[#allocation2 + $0x2d0] sm:$0xff]
    %v6403 = vld [vmem:[#allocation2 + $0x2d8] sm:$0xff]
    %v6404 = vld [vmem:[#allocation2 + $0x2e0] sm:$0xff]
    %v6405 = vld [vmem:[#allocation2 + $0x2e8] sm:$0xff]
    %v6406 = vld [vmem:[#allocation2 + $0x2f0] sm:$0xff]
    %v6407 = vld [vmem:[#allocation2 + $0x2f8] sm:$0xff]
    %v6408 = vld [vmem:[#allocation2 + $0x300] sm:$0xff]
    %v6409 = vld [vmem:[#allocation2 + $0x308] sm:$0xff]
    %v6410 = vld [vmem:[#allocation2 + $0x310] sm:$0xff]
    %v6411 = vld [vmem:[#allocation2 + $0x318] sm:$0xff]
    %v6412 = vld [vmem:[#allocation2 + $0x320] sm:$0xff]
    %v6413 = vld [vmem:[#allocation2 + $0x328] sm:$0xff]
    %v6414 = vld [vmem:[#allocation2 + $0x330] sm:$0xff]
    %v6415 = vld [vmem:[#allocation2 + $0x338] sm:$0xff]
    %v6416 = vld [vmem:[#allocation2 + $0x340] sm:$0xff]
    %v6417 = vld [vmem:[#allocation2 + $0x348] sm:$0xff]
    %v6418 = vld [vmem:[#allocation2 + $0x350] sm:$0xff]
    %v6419 = vld [vmem:[#allocation2 + $0x358] sm:$0xff]
    %v6420 = vld [vmem:[#allocation2 + $0x360] sm:$0xff]
    %v6421 = vld [vmem:[#allocation2 + $0x368] sm:$0xff]
    %v6422 = vld [vmem:[#allocation2 + $0x370] sm:$0xff]
    %v6423 = vld [vmem:[#allocation2 + $0x378] sm:$0xff]
    %v6424 = vld [vmem:[#allocation2 + $0x380] sm:$0xff]
    %v6425 = vld [vmem:[#allocation2 + $0x388] sm:$0xff]
    %v6426 = vld [vmem:[#allocation2 + $0x390] sm:$0xff]
    %v6427 = vld [vmem:[#allocation2 + $0x398] sm:$0xff]
    %v6428 = vld [vmem:[#allocation2 + $0x3a0] sm:$0xff]
    %v6429 = vld [vmem:[#allocation2 + $0x3a8] sm:$0xff]
    %v6430 = vld [vmem:[#allocation2 + $0x3b0] sm:$0xff]
    %v6431 = vld [vmem:[#allocation2 + $0x3b8] sm:$0xff]
    %v6432 = vld [vmem:[#allocation2 + $0x3c0] sm:$0xff]
    %v6433 = vld [vmem:[#allocation2 + $0x3c8] sm:$0xff]
    %v6434 = vld [vmem:[#allocation2 + $0x3d0] sm:$0xff]
    %v6435 = vld [vmem:[#allocation2 + $0x3d8] sm:$0xff]
    %v6436 = vld [vmem:[#allocation2 + $0x3e0] sm:$0xff]
    %v6437 = vld [vmem:[#allocation2 + $0x3e8] sm:$0xff]
    %v6438 = vld [vmem:[#allocation2 + $0x3f0] sm:$0xff]
    %v6439 = vld [vmem:[#allocation2 + $0x3f8] sm:$0xff]
    %v6440 = vpack.c.bf16 %v6313, %v6312
    %v6441 = vpack.c.bf16 %v6315, %v6314
    %v6442 = vpack.c.bf16 %v6317, %v6316
    %v6443 = vpack.c.bf16 %v6319, %v6318
    %v6444 = vpack.c.bf16 %v6321, %v6320
    %v6445 = vpack.c.bf16 %v6323, %v6322
    %v6446 = vpack.c.bf16 %v6325, %v6324
    %v6447 = vpack.c.bf16 %v6327, %v6326
    %v6448 = vpack.c.bf16 %v6329, %v6328
    %v6449 = vpack.c.bf16 %v6331, %v6330
    %v6450 = vpack.c.bf16 %v6333, %v6332
    %v6451 = vpack.c.bf16 %v6335, %v6334
    %v6452 = vpack.c.bf16 %v6337, %v6336
    %v6453 = vpack.c.bf16 %v6339, %v6338
    %v6454 = vpack.c.bf16 %v6341, %v6340
    %v6455 = vpack.c.bf16 %v6343, %v6342
    %v6456 = vpack.c.bf16 %v6345, %v6344
    %v6457 = vpack.c.bf16 %v6347, %v6346
    %v6458 = vpack.c.bf16 %v6349, %v6348
    %v6459 = vpack.c.bf16 %v6351, %v6350
    %v6460 = vpack.c.bf16 %v6353, %v6352
    %v6461 = vpack.c.bf16 %v6355, %v6354
    %v6462 = vpack.c.bf16 %v6357, %v6356
    %v6463 = vpack.c.bf16 %v6359, %v6358
    %v6464 = vpack.c.bf16 %v6361, %v6360
    %v6465 = vpack.c.bf16 %v6363, %v6362
    %v6466 = vpack.c.bf16 %v6365, %v6364
    %v6467 = vpack.c.bf16 %v6367, %v6366
    %v6468 = vpack.c.bf16 %v6369, %v6368
    %v6469 = vpack.c.bf16 %v6371, %v6370
    %v6470 = vpack.c.bf16 %v6373, %v6372
    %v6471 = vpack.c.bf16 %v6375, %v6374
    %v6472 = vpack.c.bf16 %v6377, %v6376
    %v6473 = vpack.c.bf16 %v6379, %v6378
    %v6474 = vpack.c.bf16 %v6381, %v6380
    %v6475 = vpack.c.bf16 %v6383, %v6382
    %v6476 = vpack.c.bf16 %v6385, %v6384
    %v6477 = vpack.c.bf16 %v6387, %v6386
    %v6478 = vpack.c.bf16 %v6389, %v6388
    %v6479 = vpack.c.bf16 %v6391, %v6390
    %v6480 = vpack.c.bf16 %v6393, %v6392
    %v6481 = vpack.c.bf16 %v6395, %v6394
    %v6482 = vpack.c.bf16 %v6397, %v6396
    %v6483 = vpack.c.bf16 %v6399, %v6398
    %v6484 = vpack.c.bf16 %v6401, %v6400
    %v6485 = vpack.c.bf16 %v6403, %v6402
    %v6486 = vpack.c.bf16 %v6405, %v6404
    %v6487 = vpack.c.bf16 %v6407, %v6406
    %v6488 = vpack.c.bf16 %v6409, %v6408
    %v6489 = vpack.c.bf16 %v6411, %v6410
    %v6490 = vpack.c.bf16 %v6413, %v6412
    %v6491 = vpack.c.bf16 %v6415, %v6414
    %v6492 = vpack.c.bf16 %v6417, %v6416
    %v6493 = vpack.c.bf16 %v6419, %v6418
    %v6494 = vpack.c.bf16 %v6421, %v6420
    %v6495 = vpack.c.bf16 %v6423, %v6422
    %v6496 = vpack.c.bf16 %v6425, %v6424
    %v6497 = vpack.c.bf16 %v6427, %v6426
    %v6498 = vpack.c.bf16 %v6429, %v6428
    %v6499 = vpack.c.bf16 %v6431, %v6430
    %v6500 = vpack.c.bf16 %v6433, %v6432
    %v6501 = vpack.c.bf16 %v6435, %v6434
    %v6502 = vpack.c.bf16 %v6437, %v6436
    %v6503 = vpack.c.bf16 %v6439, %v6438
    %v6504 = vld [vmem:[%s1] sm:$0xf]
    %v6505 = vld [vmem:[%s1 + $0x4] sm:$0xf]
    %v6506 = vld [vmem:[%s1 + $0x8] sm:$0xf]
    %v6507 = vld [vmem:[%s1 + $0xc] sm:$0xf]
    %v6508 = vld [vmem:[%s1 + $0x10] sm:$0x3]
    %v6514 = vunpack.c.l.b16 %v6504
    %v6515 = vunpack.c.l.b16 %v6505
    %v6516 = vunpack.c.l.b16 %v6506
    %v6517 = vunpack.c.l.b16 %v6507
    %v6518 = vunpack.c.l.b16 %v6508
    %v6519 = vpack.c.b16 %v6515, %v6514
    %v6520 = vpack.c.b16 %v6517, %v6516
    %v6521 = vpack.c.b16 %v6518, %v6518
    %v6525 = vsel %vm22, %v6440, 0
    %v6528 = vsel %vm22, %v6441, 0
    %v6531 = vsel %vm22, %v6442, 0
    %v6534 = vsel %vm22, %v6443, 0
    %v6537 = vsel %vm22, %v6444, 0
    %v6540 = vsel %vm22, %v6445, 0
    %v6543 = vsel %vm22, %v6446, 0
    %v6546 = vsel %vm22, %v6447, 0
    %v6549 = vsel %vm22, %v6448, 0
    %v6552 = vsel %vm22, %v6449, 0
    %v6555 = vsel %vm22, %v6450, 0
    %v6558 = vsel %vm22, %v6451, 0
    %v6561 = vsel %vm22, %v6452, 0
    %v6564 = vsel %vm22, %v6453, 0
    %v6567 = vsel %vm22, %v6454, 0
    %v6570 = vsel %vm22, %v6455, 0
    %v6573 = vsel %vm22, %v6456, 0
    %v6576 = vsel %vm22, %v6457, 0
    %v6579 = vsel %vm22, %v6458, 0
    %v6582 = vsel %vm22, %v6459, 0
    %v6585 = vsel %vm22, %v6460, 0
    %v6588 = vsel %vm22, %v6461, 0
    %v6591 = vsel %vm22, %v6462, 0
    %v6594 = vsel %vm22, %v6463, 0
    %v6597 = vsel %vm22, %v6464, 0
    %v6600 = vsel %vm22, %v6465, 0
    %v6603 = vsel %vm22, %v6466, 0
    %v6606 = vsel %vm22, %v6467, 0
    %v6609 = vsel %vm22, %v6468, 0
    %v6612 = vsel %vm22, %v6469, 0
    %v6615 = vsel %vm22, %v6470, 0
    %v6618 = vsel %vm22, %v6471, 0
    %v6621 = vsel %vm22, %v6472, 0
    %v6624 = vsel %vm22, %v6473, 0
    %v6627 = vsel %vm22, %v6474, 0
    %v6630 = vsel %vm22, %v6475, 0
    %v6633 = vsel %vm22, %v6476, 0
    %v6636 = vsel %vm22, %v6477, 0
    %v6639 = vsel %vm22, %v6478, 0
    %v6642 = vsel %vm22, %v6479, 0
    %v6645 = vsel %vm22, %v6480, 0
    %v6648 = vsel %vm22, %v6481, 0
    %v6651 = vsel %vm22, %v6482, 0
    %v6654 = vsel %vm22, %v6483, 0
    %v6657 = vsel %vm22, %v6484, 0
    %v6660 = vsel %vm22, %v6485, 0
    %v6663 = vsel %vm22, %v6486, 0
    %v6666 = vsel %vm22, %v6487, 0
    %v6669 = vsel %vm22, %v6488, 0
    %v6672 = vsel %vm22, %v6489, 0
    %v6675 = vsel %vm22, %v6490, 0
    %v6678 = vsel %vm22, %v6491, 0
    %v6681 = vsel %vm22, %v6492, 0
    %v6684 = vsel %vm22, %v6493, 0
    %v6687 = vsel %vm22, %v6494, 0
    %v6690 = vsel %vm22, %v6495, 0
    %v6693 = vsel %vm22, %v6496, 0
    %v6696 = vsel %vm22, %v6497, 0
    %v6699 = vsel %vm22, %v6498, 0
    %v6702 = vsel %vm22, %v6499, 0
    %v6705 = vsel %vm22, %v6500, 0
    %v6708 = vsel %vm22, %v6501, 0
    %v6711 = vsel %vm22, %v6502, 0
    %v6714 = vsel %vm22, %v6503, 0
    %vm6716 = vcmask 1041408
    %v6718 = vsel %vm6716, %v6521, 0
    %6720 = vmatprep.subr.bf16.mxu0 0
    %6721 = vmatpush1.bf16.msra.mxu0 %v6519
    %6722 = vmatprep.subr.bf16.mxu0 0
    %6723 = vmatpush1.bf16.msra.mxu0 %v6520
    %6724 = vmatprep.subr.bf16.mxu0 0
    %6725 = vmatpush1.bf16.msra.mxu0 %v6718
    %6726 = vmatprep.subr.bf16.mxu0 0
    %6727 = vmatpush1.bf16.msra.mxu0 0
    %6728 = vmatprep.subr.bf16.mxu0 0
    %6729 = vmatpush1.bf16.msra.mxu0 0
    %6730 = vmatprep.subr.bf16.mxu0 0
    %6731 = vmatpush1.bf16.msra.mxu0 0
    %6732 = vmatprep.subr.bf16.mxu0 0
    %6733 = vmatpush1.bf16.msra.mxu0 0
    %6734 = vmatprep.subr.bf16.mxu0 0
    %6735 = vmatpush1.bf16.msra.mxu0 0
    %6736 = vmatprep.subr.bf16.mxu0 0
    %6737 = vmatpush1.bf16.msra.mxu0 0
    %6738 = vmatprep.subr.bf16.mxu0 0
    %6739 = vmatpush1.bf16.msra.mxu0 0
    %6740 = vmatprep.subr.bf16.mxu0 0
    %6741 = vmatpush1.bf16.msra.mxu0 0
    %6742 = vmatprep.subr.bf16.mxu0 0
    %6743 = vmatpush1.bf16.msra.mxu0 0
    %6744 = vmatprep.subr.bf16.mxu0 0
    %6745 = vmatpush1.bf16.msra.mxu0 0
    %6746 = vmatprep.subr.bf16.mxu0 0
    %6747 = vmatpush1.bf16.msra.mxu0 0
    %6748 = vmatprep.subr.bf16.mxu0 0
    %6749 = vmatpush1.bf16.msra.mxu0 0
    %6750 = vmatprep.subr.bf16.mxu0 0
    %6751 = vmatpush1.bf16.msra.mxu0 0
    %6752 = vmatprep.mubr.bf16.mxu0 0
    %6753 = vmatmul.mubr.bf16.gmra.mrb[0].mxu0 %v6525
    %v6754 = vpop.f32.mrb[0].mxu0
    %v6755 = vadd.f32 0.0, %v6754
    %v6756 = vpop.f32.mrb[0].mxu0
    %v6757 = vpop.f32.mrb[0].mxu0
    %v6758 = vadd.f32 0.0, %v6757
    %v6759 = vpop.f32.mrb[0].mxu0
    %6760 = vmatprep.mubr.bf16.mxu0 0
    %6761 = vmatmul.mubr.bf16.gmra.mrb[0].mxu0 %v6528
    %v6762 = vpop.f32.mrb[0].mxu0
    %v6763 = vadd.f32 0.0, %v6762
    %v6764 = vpop.f32.mrb[0].mxu0
    %v6765 = vpop.f32.mrb[0].mxu0
    %v6766 = vadd.f32 0.0, %v6765
    %v6767 = vpop.f32.mrb[0].mxu0
    %6768 = vmatprep.mubr.bf16.mxu0 0
    %6769 = vmatmul.mubr.bf16.gmra.mrb[0].mxu0 %v6531
    %v6770 = vpop.f32.mrb[0].mxu0
    %v6771 = vadd.f32 0.0, %v6770
    %v6772 = vpop.f32.mrb[0].mxu0
    %v6773 = vpop.f32.mrb[0].mxu0
    %v6774 = vadd.f32 0.0, %v6773
    %v6775 = vpop.f32.mrb[0].mxu0
    %6776 = vmatprep.mubr.bf16.mxu0 0
    %6777 = vmatmul.mubr.bf16.gmra.mrb[0].mxu0 %v6534
    %v6778 = vpop.f32.mrb[0].mxu0
    %v6779 = vadd.f32 0.0, %v6778
    %v6780 = vpop.f32.mrb[0].mxu0
    %v6781 = vpop.f32.mrb[0].mxu0
    %v6782 = vadd.f32 0.0, %v6781
    %v6783 = vpop.f32.mrb[0].mxu0
    %6784 = vmatprep.mubr.bf16.mxu0 0
    %6785 = vmatmul.mubr.bf16.gmra.mrb[0].mxu0 %v6537
    %v6786 = vpop.f32.mrb[0].mxu0
    %v6787 = vadd.f32 0.0, %v6786
    %v6788 = vpop.f32.mrb[0].mxu0
    %v6789 = vpop.f32.mrb[0].mxu0
    %v6790 = vadd.f32 0.0, %v6789
    %v6791 = vpop.f32.mrb[0].mxu0
    %6792 = vmatprep.mubr.bf16.mxu0 0
    %6793 = vmatmul.mubr.bf16.gmra.mrb[0].mxu0 %v6540
    %v6794 = vpop.f32.mrb[0].mxu0
    %v6795 = vadd.f32 0.0, %v6794
    %v6796 = vpop.f32.mrb[0].mxu0
    %v6797 = vpop.f32.mrb[0].mxu0
    %v6798 = vadd.f32 0.0, %v6797
    %v6799 = vpop.f32.mrb[0].mxu0
    %6800 = vmatprep.mubr.bf16.mxu0 0
    %6801 = vmatmul.mubr.bf16.gmra.mrb[0].mxu0 %v6543
    %v6802 = vpop.f32.mrb[0].mxu0
    %v6803 = vadd.f32 0.0, %v6802
    %v6804 = vpop.f32.mrb[0].mxu0
    %v6805 = vpop.f32.mrb[0].mxu0
    %v6806 = vadd.f32 0.0, %v6805
    %v6807 = vpop.f32.mrb[0].mxu0
    %6808 = vmatprep.mubr.bf16.mxu0 0
    %6809 = vmatmul.mubr.bf16.gmra.mrb[0].mxu0 %v6546
    %v6810 = vpop.f32.mrb[0].mxu0
    %v6811 = vadd.f32 0.0, %v6810
    %v6812 = vpop.f32.mrb[0].mxu0
    %v6813 = vpop.f32.mrb[0].mxu0
    %v6814 = vadd.f32 0.0, %v6813
    %v6815 = vpop.f32.mrb[0].mxu0
    %6816 = vmatprep.mubr.bf16.mxu0 0
    %6817 = vmatmul.mubr.bf16.gmra.mrb[0].mxu0 %v6549
    %v6818 = vpop.f32.mrb[0].mxu0
    %v6819 = vadd.f32 0.0, %v6818
    %v6820 = vpop.f32.mrb[0].mxu0
    %v6821 = vpop.f32.mrb[0].mxu0
    %v6822 = vadd.f32 0.0, %v6821
    %v6823 = vpop.f32.mrb[0].mxu0
    %6824 = vmatprep.mubr.bf16.mxu0 0
    %6825 = vmatmul.mubr.bf16.gmra.mrb[0].mxu0 %v6552
    %v6826 = vpop.f32.mrb[0].mxu0
    %v6827 = vadd.f32 0.0, %v6826
    %v6828 = vpop.f32.mrb[0].mxu0
    %v6829 = vpop.f32.mrb[0].mxu0
    %v6830 = vadd.f32 0.0, %v6829
    %v6831 = vpop.f32.mrb[0].mxu0
    %6832 = vmatprep.mubr.bf16.mxu0 0
    %6833 = vmatmul.mubr.bf16.gmra.mrb[0].mxu0 %v6555
    %v6834 = vpop.f32.mrb[0].mxu0
    %v6835 = vadd.f32 0.0, %v6834
    %v6836 = vpop.f32.mrb[0].mxu0
    %v6837 = vpop.f32.mrb[0].mxu0
    %v6838 = vadd.f32 0.0, %v6837
    %v6839 = vpop.f32.mrb[0].mxu0
    %6840 = vmatprep.mubr.bf16.mxu0 0
    %6841 = vmatmul.mubr.bf16.gmra.mrb[0].mxu0 %v6558
    %v6842 = vpop.f32.mrb[0].mxu0
    %v6843 = vadd.f32 0.0, %v6842
    %v6844 = vpop.f32.mrb[0].mxu0
    %v6845 = vpop.f32.mrb[0].mxu0
    %v6846 = vadd.f32 0.0, %v6845
    %v6847 = vpop.f32.mrb[0].mxu0
    %6848 = vmatprep.mubr.bf16.mxu0 0
    %6849 = vmatmul.mubr.bf16.gmra.mrb[0].mxu0 %v6561
    %v6850 = vpop.f32.mrb[0].mxu0
    %v6851 = vadd.f32 0.0, %v6850
    %v6852 = vpop.f32.mrb[0].mxu0
    %v6853 = vpop.f32.mrb[0].mxu0
    %v6854 = vadd.f32 0.0, %v6853
    %v6855 = vpop.f32.mrb[0].mxu0
    %6856 = vmatprep.mubr.bf16.mxu0 0
    %6857 = vmatmul.mubr.bf16.gmra.mrb[0].mxu0 %v6564
    %v6858 = vpop.f32.mrb[0].mxu0
    %v6859 = vadd.f32 0.0, %v6858
    %v6860 = vpop.f32.mrb[0].mxu0
    %v6861 = vpop.f32.mrb[0].mxu0
    %v6862 = vadd.f32 0.0, %v6861
    %v6863 = vpop.f32.mrb[0].mxu0
    %6864 = vmatprep.mubr.bf16.mxu0 0
    %6865 = vmatmul.mubr.bf16.gmra.mrb[0].mxu0 %v6567
    %v6866 = vpop.f32.mrb[0].mxu0
    %v6867 = vadd.f32 0.0, %v6866
    %v6868 = vpop.f32.mrb[0].mxu0
    %v6869 = vpop.f32.mrb[0].mxu0
    %v6870 = vadd.f32 0.0, %v6869
    %v6871 = vpop.f32.mrb[0].mxu0
    %6872 = vmatprep.mubr.bf16.mxu0 0
    %6873 = vmatmul.mubr.bf16.gmra.mrb[0].mxu0 %v6570
    %v6874 = vpop.f32.mrb[0].mxu0
    %v6875 = vadd.f32 0.0, %v6874
    %v6876 = vpop.f32.mrb[0].mxu0
    %v6877 = vpop.f32.mrb[0].mxu0
    %v6878 = vadd.f32 0.0, %v6877
    %v6879 = vpop.f32.mrb[0].mxu0
    %6880 = vmatprep.mubr.bf16.mxu0 0
    %6881 = vmatmul.mubr.bf16.gmra.mrb[0].mxu0 %v6573
    %v6882 = vpop.f32.mrb[0].mxu0
    %v6883 = vadd.f32 0.0, %v6882
    %v6884 = vpop.f32.mrb[0].mxu0
    %v6885 = vpop.f32.mrb[0].mxu0
    %v6886 = vadd.f32 0.0, %v6885
    %v6887 = vpop.f32.mrb[0].mxu0
    %6888 = vmatprep.mubr.bf16.mxu0 0
    %6889 = vmatmul.mubr.bf16.gmra.mrb[0].mxu0 %v6576
    %v6890 = vpop.f32.mrb[0].mxu0
    %v6891 = vadd.f32 0.0, %v6890
    %v6892 = vpop.f32.mrb[0].mxu0
    %v6893 = vpop.f32.mrb[0].mxu0
    %v6894 = vadd.f32 0.0, %v6893
    %v6895 = vpop.f32.mrb[0].mxu0
    %6896 = vmatprep.mubr.bf16.mxu0 0
    %6897 = vmatmul.mubr.bf16.gmra.mrb[0].mxu0 %v6579
    %v6898 = vpop.f32.mrb[0].mxu0
    %v6899 = vadd.f32 0.0, %v6898
    %v6900 = vpop.f32.mrb[0].mxu0
    %v6901 = vpop.f32.mrb[0].mxu0
    %v6902 = vadd.f32 0.0, %v6901
    %v6903 = vpop.f32.mrb[0].mxu0
    %6904 = vmatprep.mubr.bf16.mxu0 0
    %6905 = vmatmul.mubr.bf16.gmra.mrb[0].mxu0 %v6582
    %v6906 = vpop.f32.mrb[0].mxu0
    %v6907 = vadd.f32 0.0, %v6906
    %v6908 = vpop.f32.mrb[0].mxu0
    %v6909 = vpop.f32.mrb[0].mxu0
    %v6910 = vadd.f32 0.0, %v6909
    %v6911 = vpop.f32.mrb[0].mxu0
    %6912 = vmatprep.mubr.bf16.mxu0 0
    %6913 = vmatmul.mubr.bf16.gmra.mrb[0].mxu0 %v6585
    %v6914 = vpop.f32.mrb[0].mxu0
    %v6915 = vadd.f32 0.0, %v6914
    %v6916 = vpop.f32.mrb[0].mxu0
    %v6917 = vpop.f32.mrb[0].mxu0
    %v6918 = vadd.f32 0.0, %v6917
    %v6919 = vpop.f32.mrb[0].mxu0
    %6920 = vmatprep.mubr.bf16.mxu0 0
    %6921 = vmatmul.mubr.bf16.gmra.mrb[0].mxu0 %v6588
    %v6922 = vpop.f32.mrb[0].mxu0
    %v6923 = vadd.f32 0.0, %v6922
    %v6924 = vpop.f32.mrb[0].mxu0
    %v6925 = vpop.f32.mrb[0].mxu0
    %v6926 = vadd.f32 0.0, %v6925
    %v6927 = vpop.f32.mrb[0].mxu0
    %6928 = vmatprep.mubr.bf16.mxu0 0
    %6929 = vmatmul.mubr.bf16.gmra.mrb[0].mxu0 %v6591
    %v6930 = vpop.f32.mrb[0].mxu0
    %v6931 = vadd.f32 0.0, %v6930
    %v6932 = vpop.f32.mrb[0].mxu0
    %v6933 = vpop.f32.mrb[0].mxu0
    %v6934 = vadd.f32 0.0, %v6933
    %v6935 = vpop.f32.mrb[0].mxu0
    %6936 = vmatprep.mubr.bf16.mxu0 0
    %6937 = vmatmul.mubr.bf16.gmra.mrb[0].mxu0 %v6594
    %v6938 = vpop.f32.mrb[0].mxu0
    %v6939 = vadd.f32 0.0, %v6938
    %v6940 = vpop.f32.mrb[0].mxu0
    %v6941 = vpop.f32.mrb[0].mxu0
    %v6942 = vadd.f32 0.0, %v6941
    %v6943 = vpop.f32.mrb[0].mxu0
    %6944 = vmatprep.mubr.bf16.mxu0 0
    %6945 = vmatmul.mubr.bf16.gmra.mrb[0].mxu0 %v6597
    %v6946 = vpop.f32.mrb[0].mxu0
    %v6947 = vadd.f32 0.0, %v6946
    %v6948 = vpop.f32.mrb[0].mxu0
    %v6949 = vpop.f32.mrb[0].mxu0
    %v6950 = vadd.f32 0.0, %v6949
    %v6951 = vpop.f32.mrb[0].mxu0
    %6952 = vmatprep.mubr.bf16.mxu0 0
    %6953 = vmatmul.mubr.bf16.gmra.mrb[0].mxu0 %v6600
    %v6954 = vpop.f32.mrb[0].mxu0
    %v6955 = vadd.f32 0.0, %v6954
    %v6956 = vpop.f32.mrb[0].mxu0
    %v6957 = vpop.f32.mrb[0].mxu0
    %v6958 = vadd.f32 0.0, %v6957
    %v6959 = vpop.f32.mrb[0].mxu0
    %6960 = vmatprep.mubr.bf16.mxu0 0
    %6961 = vmatmul.mubr.bf16.gmra.mrb[0].mxu0 %v6603
    %v6962 = vpop.f32.mrb[0].mxu0
    %v6963 = vadd.f32 0.0, %v6962
    %v6964 = vpop.f32.mrb[0].mxu0
    %v6965 = vpop.f32.mrb[0].mxu0
    %v6966 = vadd.f32 0.0, %v6965
    %v6967 = vpop.f32.mrb[0].mxu0
    %6968 = vmatprep.mubr.bf16.mxu0 0
    %6969 = vmatmul.mubr.bf16.gmra.mrb[0].mxu0 %v6606
    %v6970 = vpop.f32.mrb[0].mxu0
    %v6971 = vadd.f32 0.0, %v6970
    %v6972 = vpop.f32.mrb[0].mxu0
    %v6973 = vpop.f32.mrb[0].mxu0
    %v6974 = vadd.f32 0.0, %v6973
    %v6975 = vpop.f32.mrb[0].mxu0
    %6976 = vmatprep.mubr.bf16.mxu0 0
    %6977 = vmatmul.mubr.bf16.gmra.mrb[0].mxu0 %v6609
    %v6978 = vpop.f32.mrb[0].mxu0
    %v6979 = vadd.f32 0.0, %v6978
    %v6980 = vpop.f32.mrb[0].mxu0
    %v6981 = vpop.f32.mrb[0].mxu0
    %v6982 = vadd.f32 0.0, %v6981
    %v6983 = vpop.f32.mrb[0].mxu0
    %6984 = vmatprep.mubr.bf16.mxu0 0
    %6985 = vmatmul.mubr.bf16.gmra.mrb[0].mxu0 %v6612
    %v6986 = vpop.f32.mrb[0].mxu0
    %v6987 = vadd.f32 0.0, %v6986
    %v6988 = vpop.f32.mrb[0].mxu0
    %v6989 = vpop.f32.mrb[0].mxu0
    %v6990 = vadd.f32 0.0, %v6989
    %v6991 = vpop.f32.mrb[0].mxu0
    %6992 = vmatprep.mubr.bf16.mxu0 0
    %6993 = vmatmul.mubr.bf16.gmra.mrb[0].mxu0 %v6615
    %v6994 = vpop.f32.mrb[0].mxu0
    %v6995 = vadd.f32 0.0, %v6994
    %v6996 = vpop.f32.mrb[0].mxu0
    %v6997 = vpop.f32.mrb[0].mxu0
    %v6998 = vadd.f32 0.0, %v6997
    %v6999 = vpop.f32.mrb[0].mxu0
    %7000 = vmatprep.mubr.bf16.mxu0 0
    %7001 = vmatmul.mubr.bf16.gmra.mrb[0].mxu0 %v6618
    %v7002 = vpop.f32.mrb[0].mxu0
    %v7003 = vadd.f32 0.0, %v7002
    %v7004 = vpop.f32.mrb[0].mxu0
    %v7005 = vpop.f32.mrb[0].mxu0
    %v7006 = vadd.f32 0.0, %v7005
    %v7007 = vpop.f32.mrb[0].mxu0
    %7008 = vmatprep.mubr.bf16.mxu0 0
    %7009 = vmatmul.mubr.bf16.gmra.mrb[0].mxu0 %v6621
    %v7010 = vpop.f32.mrb[0].mxu0
    %v7011 = vadd.f32 0.0, %v7010
    %v7012 = vpop.f32.mrb[0].mxu0
    %v7013 = vpop.f32.mrb[0].mxu0
    %v7014 = vadd.f32 0.0, %v7013
    %v7015 = vpop.f32.mrb[0].mxu0
    %7016 = vmatprep.mubr.bf16.mxu0 0
    %7017 = vmatmul.mubr.bf16.gmra.mrb[0].mxu0 %v6624
    %v7018 = vpop.f32.mrb[0].mxu0
    %v7019 = vadd.f32 0.0, %v7018
    %v7020 = vpop.f32.mrb[0].mxu0
    %v7021 = vpop.f32.mrb[0].mxu0
    %v7022 = vadd.f32 0.0, %v7021
    %v7023 = vpop.f32.mrb[0].mxu0
    %7024 = vmatprep.mubr.bf16.mxu0 0
    %7025 = vmatmul.mubr.bf16.gmra.mrb[0].mxu0 %v6627
    %v7026 = vpop.f32.mrb[0].mxu0
    %v7027 = vadd.f32 0.0, %v7026
    %v7028 = vpop.f32.mrb[0].mxu0
    %v7029 = vpop.f32.mrb[0].mxu0
    %v7030 = vadd.f32 0.0, %v7029
    %v7031 = vpop.f32.mrb[0].mxu0
    %7032 = vmatprep.mubr.bf16.mxu0 0
    %7033 = vmatmul.mubr.bf16.gmra.mrb[0].mxu0 %v6630
    %v7034 = vpop.f32.mrb[0].mxu0
    %v7035 = vadd.f32 0.0, %v7034
    %v7036 = vpop.f32.mrb[0].mxu0
    %v7037 = vpop.f32.mrb[0].mxu0
    %v7038 = vadd.f32 0.0, %v7037
    %v7039 = vpop.f32.mrb[0].mxu0
    %7040 = vmatprep.mubr.bf16.mxu0 0
    %7041 = vmatmul.mubr.bf16.gmra.mrb[0].mxu0 %v6633
    %v7042 = vpop.f32.mrb[0].mxu0
    %v7043 = vadd.f32 0.0, %v7042
    %v7044 = vpop.f32.mrb[0].mxu0
    %v7045 = vpop.f32.mrb[0].mxu0
    %v7046 = vadd.f32 0.0, %v7045
    %v7047 = vpop.f32.mrb[0].mxu0
    %7048 = vmatprep.mubr.bf16.mxu0 0
    %7049 = vmatmul.mubr.bf16.gmra.mrb[0].mxu0 %v6636
    %v7050 = vpop.f32.mrb[0].mxu0
    %v7051 = vadd.f32 0.0, %v7050
    %v7052 = vpop.f32.mrb[0].mxu0
    %v7053 = vpop.f32.mrb[0].mxu0
    %v7054 = vadd.f32 0.0, %v7053
    %v7055 = vpop.f32.mrb[0].mxu0
    %7056 = vmatprep.mubr.bf16.mxu0 0
    %7057 = vmatmul.mubr.bf16.gmra.mrb[0].mxu0 %v6639
    %v7058 = vpop.f32.mrb[0].mxu0
    %v7059 = vadd.f32 0.0, %v7058
    %v7060 = vpop.f32.mrb[0].mxu0
    %v7061 = vpop.f32.mrb[0].mxu0
    %v7062 = vadd.f32 0.0, %v7061
    %v7063 = vpop.f32.mrb[0].mxu0
    %7064 = vmatprep.mubr.bf16.mxu0 0
    %7065 = vmatmul.mubr.bf16.gmra.mrb[0].mxu0 %v6642
    %v7066 = vpop.f32.mrb[0].mxu0
    %v7067 = vadd.f32 0.0, %v7066
    %v7068 = vpop.f32.mrb[0].mxu0
    %v7069 = vpop.f32.mrb[0].mxu0
    %v7070 = vadd.f32 0.0, %v7069
    %v7071 = vpop.f32.mrb[0].mxu0
    %7072 = vmatprep.mubr.bf16.mxu0 0
    %7073 = vmatmul.mubr.bf16.gmra.mrb[0].mxu0 %v6645
    %v7074 = vpop.f32.mrb[0].mxu0
    %v7075 = vadd.f32 0.0, %v7074
    %v7076 = vpop.f32.mrb[0].mxu0
    %v7077 = vpop.f32.mrb[0].mxu0
    %v7078 = vadd.f32 0.0, %v7077
    %v7079 = vpop.f32.mrb[0].mxu0
    %7080 = vmatprep.mubr.bf16.mxu0 0
    %7081 = vmatmul.mubr.bf16.gmra.mrb[0].mxu0 %v6648
    %v7082 = vpop.f32.mrb[0].mxu0
    %v7083 = vadd.f32 0.0, %v7082
    %v7084 = vpop.f32.mrb[0].mxu0
    %v7085 = vpop.f32.mrb[0].mxu0
    %v7086 = vadd.f32 0.0, %v7085
    %v7087 = vpop.f32.mrb[0].mxu0
    %7088 = vmatprep.mubr.bf16.mxu0 0
    %7089 = vmatmul.mubr.bf16.gmra.mrb[0].mxu0 %v6651
    %v7090 = vpop.f32.mrb[0].mxu0
    %v7091 = vadd.f32 0.0, %v7090
    %v7092 = vpop.f32.mrb[0].mxu0
    %v7093 = vpop.f32.mrb[0].mxu0
    %v7094 = vadd.f32 0.0, %v7093
    %v7095 = vpop.f32.mrb[0].mxu0
    %7096 = vmatprep.mubr.bf16.mxu0 0
    %7097 = vmatmul.mubr.bf16.gmra.mrb[0].mxu0 %v6654
    %v7098 = vpop.f32.mrb[0].mxu0
    %v7099 = vadd.f32 0.0, %v7098
    %v7100 = vpop.f32.mrb[0].mxu0
    %v7101 = vpop.f32.mrb[0].mxu0
    %v7102 = vadd.f32 0.0, %v7101
    %v7103 = vpop.f32.mrb[0].mxu0
    %7104 = vmatprep.mubr.bf16.mxu0 0
    %7105 = vmatmul.mubr.bf16.gmra.mrb[0].mxu0 %v6657
    %v7106 = vpop.f32.mrb[0].mxu0
    %v7107 = vadd.f32 0.0, %v7106
    %v7108 = vpop.f32.mrb[0].mxu0
    %v7109 = vpop.f32.mrb[0].mxu0
    %v7110 = vadd.f32 0.0, %v7109
    %v7111 = vpop.f32.mrb[0].mxu0
    %7112 = vmatprep.mubr.bf16.mxu0 0
    %7113 = vmatmul.mubr.bf16.gmra.mrb[0].mxu0 %v6660
    %v7114 = vpop.f32.mrb[0].mxu0
    %v7115 = vadd.f32 0.0, %v7114
    %v7116 = vpop.f32.mrb[0].mxu0
    %v7117 = vpop.f32.mrb[0].mxu0
    %v7118 = vadd.f32 0.0, %v7117
    %v7119 = vpop.f32.mrb[0].mxu0
    %7120 = vmatprep.mubr.bf16.mxu0 0
    %7121 = vmatmul.mubr.bf16.gmra.mrb[0].mxu0 %v6663
    %v7122 = vpop.f32.mrb[0].mxu0
    %v7123 = vadd.f32 0.0, %v7122
    %v7124 = vpop.f32.mrb[0].mxu0
    %v7125 = vpop.f32.mrb[0].mxu0
    %v7126 = vadd.f32 0.0, %v7125
    %v7127 = vpop.f32.mrb[0].mxu0
    %7128 = vmatprep.mubr.bf16.mxu0 0
    %7129 = vmatmul.mubr.bf16.gmra.mrb[0].mxu0 %v6666
    %v7130 = vpop.f32.mrb[0].mxu0
    %v7131 = vadd.f32 0.0, %v7130
    %v7132 = vpop.f32.mrb[0].mxu0
    %v7133 = vpop.f32.mrb[0].mxu0
    %v7134 = vadd.f32 0.0, %v7133
    %v7135 = vpop.f32.mrb[0].mxu0
    %7136 = vmatprep.mubr.bf16.mxu0 0
    %7137 = vmatmul.mubr.bf16.gmra.mrb[0].mxu0 %v6669
    %v7138 = vpop.f32.mrb[0].mxu0
    %v7139 = vadd.f32 0.0, %v7138
    %v7140 = vpop.f32.mrb[0].mxu0
    %v7141 = vpop.f32.mrb[0].mxu0
    %v7142 = vadd.f32 0.0, %v7141
    %v7143 = vpop.f32.mrb[0].mxu0
    %7144 = vmatprep.mubr.bf16.mxu0 0
    %7145 = vmatmul.mubr.bf16.gmra.mrb[0].mxu0 %v6672
    %v7146 = vpop.f32.mrb[0].mxu0
    %v7147 = vadd.f32 0.0, %v7146
    %v7148 = vpop.f32.mrb[0].mxu0
    %v7149 = vpop.f32.mrb[0].mxu0
    %v7150 = vadd.f32 0.0, %v7149
    %v7151 = vpop.f32.mrb[0].mxu0
    %7152 = vmatprep.mubr.bf16.mxu0 0
    %7153 = vmatmul.mubr.bf16.gmra.mrb[0].mxu0 %v6675
    %v7154 = vpop.f32.mrb[0].mxu0
    %v7155 = vadd.f32 0.0, %v7154
    %v7156 = vpop.f32.mrb[0].mxu0
    %v7157 = vpop.f32.mrb[0].mxu0
    %v7158 = vadd.f32 0.0, %v7157
    %v7159 = vpop.f32.mrb[0].mxu0
    %7160 = vmatprep.mubr.bf16.mxu0 0
    %7161 = vmatmul.mubr.bf16.gmra.mrb[0].mxu0 %v6678
    %v7162 = vpop.f32.mrb[0].mxu0
    %v7163 = vadd.f32 0.0, %v7162
    %v7164 = vpop.f32.mrb[0].mxu0
    %v7165 = vpop.f32.mrb[0].mxu0
    %v7166 = vadd.f32 0.0, %v7165
    %v7167 = vpop.f32.mrb[0].mxu0
    %7168 = vmatprep.mubr.bf16.mxu0 0
    %7169 = vmatmul.mubr.bf16.gmra.mrb[0].mxu0 %v6681
    %v7170 = vpop.f32.mrb[0].mxu0
    %v7171 = vadd.f32 0.0, %v7170
    %v7172 = vpop.f32.mrb[0].mxu0
    %v7173 = vpop.f32.mrb[0].mxu0
    %v7174 = vadd.f32 0.0, %v7173
    %v7175 = vpop.f32.mrb[0].mxu0
    %7176 = vmatprep.mubr.bf16.mxu0 0
    %7177 = vmatmul.mubr.bf16.gmra.mrb[0].mxu0 %v6684
    %v7178 = vpop.f32.mrb[0].mxu0
    %v7179 = vadd.f32 0.0, %v7178
    %v7180 = vpop.f32.mrb[0].mxu0
    %v7181 = vpop.f32.mrb[0].mxu0
    %v7182 = vadd.f32 0.0, %v7181
    %v7183 = vpop.f32.mrb[0].mxu0
    %7184 = vmatprep.mubr.bf16.mxu0 0
    %7185 = vmatmul.mubr.bf16.gmra.mrb[0].mxu0 %v6687
    %v7186 = vpop.f32.mrb[0].mxu0
    %v7187 = vadd.f32 0.0, %v7186
    %v7188 = vpop.f32.mrb[0].mxu0
    %v7189 = vpop.f32.mrb[0].mxu0
    %v7190 = vadd.f32 0.0, %v7189
    %v7191 = vpop.f32.mrb[0].mxu0
    %7192 = vmatprep.mubr.bf16.mxu0 0
    %7193 = vmatmul.mubr.bf16.gmra.mrb[0].mxu0 %v6690
    %v7194 = vpop.f32.mrb[0].mxu0
    %v7195 = vadd.f32 0.0, %v7194
    %v7196 = vpop.f32.mrb[0].mxu0
    %v7197 = vpop.f32.mrb[0].mxu0
    %v7198 = vadd.f32 0.0, %v7197
    %v7199 = vpop.f32.mrb[0].mxu0
    %7200 = vmatprep.mubr.bf16.mxu0 0
    %7201 = vmatmul.mubr.bf16.gmra.mrb[0].mxu0 %v6693
    %v7202 = vpop.f32.mrb[0].mxu0
    %v7203 = vadd.f32 0.0, %v7202
    %v7204 = vpop.f32.mrb[0].mxu0
    %v7205 = vpop.f32.mrb[0].mxu0
    %v7206 = vadd.f32 0.0, %v7205
    %v7207 = vpop.f32.mrb[0].mxu0
    %7208 = vmatprep.mubr.bf16.mxu0 0
    %7209 = vmatmul.mubr.bf16.gmra.mrb[0].mxu0 %v6696
    %v7210 = vpop.f32.mrb[0].mxu0
    %v7211 = vadd.f32 0.0, %v7210
    %v7212 = vpop.f32.mrb[0].mxu0
    %v7213 = vpop.f32.mrb[0].mxu0
    %v7214 = vadd.f32 0.0, %v7213
    %v7215 = vpop.f32.mrb[0].mxu0
    %7216 = vmatprep.mubr.bf16.mxu0 0
    %7217 = vmatmul.mubr.bf16.gmra.mrb[0].mxu0 %v6699
    %v7218 = vpop.f32.mrb[0].mxu0
    %v7219 = vadd.f32 0.0, %v7218
    %v7220 = vpop.f32.mrb[0].mxu0
    %v7221 = vpop.f32.mrb[0].mxu0
    %v7222 = vadd.f32 0.0, %v7221
    %v7223 = vpop.f32.mrb[0].mxu0
    %7224 = vmatprep.mubr.bf16.mxu0 0
    %7225 = vmatmul.mubr.bf16.gmra.mrb[0].mxu0 %v6702
    %v7226 = vpop.f32.mrb[0].mxu0
    %v7227 = vadd.f32 0.0, %v7226
    %v7228 = vpop.f32.mrb[0].mxu0
    %v7229 = vpop.f32.mrb[0].mxu0
    %v7230 = vadd.f32 0.0, %v7229
    %v7231 = vpop.f32.mrb[0].mxu0
    %7232 = vmatprep.mubr.bf16.mxu0 0
    %7233 = vmatmul.mubr.bf16.gmra.mrb[0].mxu0 %v6705
    %v7234 = vpop.f32.mrb[0].mxu0
    %v7235 = vadd.f32 0.0, %v7234
    %v7236 = vpop.f32.mrb[0].mxu0
    %v7237 = vpop.f32.mrb[0].mxu0
    %v7238 = vadd.f32 0.0, %v7237
    %v7239 = vpop.f32.mrb[0].mxu0
    %7240 = vmatprep.mubr.bf16.mxu0 0
    %7241 = vmatmul.mubr.bf16.gmra.mrb[0].mxu0 %v6708
    %v7242 = vpop.f32.mrb[0].mxu0
    %v7243 = vadd.f32 0.0, %v7242
    %v7244 = vpop.f32.mrb[0].mxu0
    %v7245 = vpop.f32.mrb[0].mxu0
    %v7246 = vadd.f32 0.0, %v7245
    %v7247 = vpop.f32.mrb[0].mxu0
    %7248 = vmatprep.mubr.bf16.mxu0 0
    %7249 = vmatmul.mubr.bf16.gmra.mrb[0].mxu0 %v6711
    %v7250 = vpop.f32.mrb[0].mxu0
    %v7251 = vadd.f32 0.0, %v7250
    %v7252 = vpop.f32.mrb[0].mxu0
    %v7253 = vpop.f32.mrb[0].mxu0
    %v7254 = vadd.f32 0.0, %v7253
    %v7255 = vpop.f32.mrb[0].mxu0
    %7256 = vmatprep.mubr.bf16.mxu0 0
    %7257 = vmatmul.mubr.bf16.gmra.mrb[0].mxu0 %v6714
    %v7258 = vpop.f32.mrb[0].mxu0
    %v7259 = vadd.f32 0.0, %v7258
    %v7260 = vpop.f32.mrb[0].mxu0
    %v7261 = vpop.f32.mrb[0].mxu0
    %v7262 = vadd.f32 0.0, %v7261
    %v7263 = vpop.f32.mrb[0].mxu0
    %7264 = vdwg.mxu0
    %v7265 = vmax.f32 %v6755, %v6763
    %v7266 = vmax.f32 %v6758, %v6766
    %v7267 = vmax.f32 %v6771, %v6779
    %v7268 = vmax.f32 %v6774, %v6782
    %v7269 = vmax.f32 %v6787, %v6795
    %v7270 = vmax.f32 %v6790, %v6798
    %v7271 = vmax.f32 %v6803, %v6811
    %v7272 = vmax.f32 %v6806, %v6814
    %v7273 = vmax.f32 %v6819, %v6827
    %v7274 = vmax.f32 %v6822, %v6830
    %v7275 = vmax.f32 %v6835, %v6843
    %v7276 = vmax.f32 %v6838, %v6846
    %v7277 = vmax.f32 %v6851, %v6859
    %v7278 = vmax.f32 %v6854, %v6862
    %v7279 = vmax.f32 %v6867, %v6875
    %v7280 = vmax.f32 %v6870, %v6878
    %v7281 = vmax.f32 %v6883, %v6891
    %v7282 = vmax.f32 %v6886, %v6894
    %v7283 = vmax.f32 %v6899, %v6907
    %v7284 = vmax.f32 %v6902, %v6910
    %v7285 = vmax.f32 %v6915, %v6923
    %v7286 = vmax.f32 %v6918, %v6926
    %v7287 = vmax.f32 %v6931, %v6939
    %v7288 = vmax.f32 %v6934, %v6942
    %v7289 = vmax.f32 %v6947, %v6955
    %v7290 = vmax.f32 %v6950, %v6958
    %v7291 = vmax.f32 %v6963, %v6971
    %v7292 = vmax.f32 %v6966, %v6974
    %v7293 = vmax.f32 %v6979, %v6987
    %v7294 = vmax.f32 %v6982, %v6990
    %v7295 = vmax.f32 %v6995, %v7003
    %v7296 = vmax.f32 %v6998, %v7006
    %v7297 = vmax.f32 %v7011, %v7019
    %v7298 = vmax.f32 %v7014, %v7022
    %v7299 = vmax.f32 %v7027, %v7035
    %v7300 = vmax.f32 %v7030, %v7038
    %v7301 = vmax.f32 %v7043, %v7051
    %v7302 = vmax.f32 %v7046, %v7054
    %v7303 = vmax.f32 %v7059, %v7067
    %v7304 = vmax.f32 %v7062, %v7070
    %v7305 = vmax.f32 %v7075, %v7083
    %v7306 = vmax.f32 %v7078, %v7086
    %v7307 = vmax.f32 %v7091, %v7099
    %v7308 = vmax.f32 %v7094, %v7102
    %v7309 = vmax.f32 %v7107, %v7115
    %v7310 = vmax.f32 %v7110, %v7118
    %v7311 = vmax.f32 %v7123, %v7131
    %v7312 = vmax.f32 %v7126, %v7134
    %v7313 = vmax.f32 %v7139, %v7147
    %v7314 = vmax.f32 %v7142, %v7150
    %v7315 = vmax.f32 %v7155, %v7163
    %v7316 = vmax.f32 %v7158, %v7166
    %v7317 = vmax.f32 %v7171, %v7179
    %v7318 = vmax.f32 %v7174, %v7182
    %v7319 = vmax.f32 %v7187, %v7195
    %v7320 = vmax.f32 %v7190, %v7198
    %v7321 = vmax.f32 %v7203, %v7211
    %v7322 = vmax.f32 %v7206, %v7214
    %v7323 = vmax.f32 %v7219, %v7227
    %v7324 = vmax.f32 %v7222, %v7230
    %v7325 = vmax.f32 %v7235, %v7243
    %v7326 = vmax.f32 %v7238, %v7246
    %v7327 = vmax.f32 %v7251, %v7259
    %v7328 = vmax.f32 %v7254, %v7262
    %vm7329 = vcmask 64512
    %7330 = vst.msk [vmem:[#allocation3] sm:$0xff] %vm7329, %v7265
    %7331 = vst.msk [vmem:[#allocation3 + $0x8] sm:$0xff] %vm7329, %v7266
    %7332 = vst.msk [vmem:[#allocation3 + $0x10] sm:$0xff] %vm7329, %v7267
    %7333 = vst.msk [vmem:[#allocation3 + $0x18] sm:$0xff] %vm7329, %v7268
    %7334 = vst.msk [vmem:[#allocation3 + $0x20] sm:$0xff] %vm7329, %v7269
    %7335 = vst.msk [vmem:[#allocation3 + $0x28] sm:$0xff] %vm7329, %v7270
    %7336 = vst.msk [vmem:[#allocation3 + $0x30] sm:$0xff] %vm7329, %v7271
    %7337 = vst.msk [vmem:[#allocation3 + $0x38] sm:$0xff] %vm7329, %v7272
    %7338 = vst.msk [vmem:[#allocation3 + $0x40] sm:$0xff] %vm7329, %v7273
    %7339 = vst.msk [vmem:[#allocation3 + $0x48] sm:$0xff] %vm7329, %v7274
    %7340 = vst.msk [vmem:[#allocation3 + $0x50] sm:$0xff] %vm7329, %v7275
    %7341 = vst.msk [vmem:[#allocation3 + $0x58] sm:$0xff] %vm7329, %v7276
    %7342 = vst.msk [vmem:[#allocation3 + $0x60] sm:$0xff] %vm7329, %v7277
    %7343 = vst.msk [vmem:[#allocation3 + $0x68] sm:$0xff] %vm7329, %v7278
    %7344 = vst.msk [vmem:[#allocation3 + $0x70] sm:$0xff] %vm7329, %v7279
    %7345 = vst.msk [vmem:[#allocation3 + $0x78] sm:$0xff] %vm7329, %v7280
    %7346 = vst.msk [vmem:[#allocation3 + $0x80] sm:$0xff] %vm7329, %v7281
    %7347 = vst.msk [vmem:[#allocation3 + $0x88] sm:$0xff] %vm7329, %v7282
    %7348 = vst.msk [vmem:[#allocation3 + $0x90] sm:$0xff] %vm7329, %v7283
    %7349 = vst.msk [vmem:[#allocation3 + $0x98] sm:$0xff] %vm7329, %v7284
    %7350 = vst.msk [vmem:[#allocation3 + $0xa0] sm:$0xff] %vm7329, %v7285
    %7351 = vst.msk [vmem:[#allocation3 + $0xa8] sm:$0xff] %vm7329, %v7286
    %7352 = vst.msk [vmem:[#allocation3 + $0xb0] sm:$0xff] %vm7329, %v7287
    %7353 = vst.msk [vmem:[#allocation3 + $0xb8] sm:$0xff] %vm7329, %v7288
    %7354 = vst.msk [vmem:[#allocation3 + $0xc0] sm:$0xff] %vm7329, %v7289
    %7355 = vst.msk [vmem:[#allocation3 + $0xc8] sm:$0xff] %vm7329, %v7290
    %7356 = vst.msk [vmem:[#allocation3 + $0xd0] sm:$0xff] %vm7329, %v7291
    %7357 = vst.msk [vmem:[#allocation3 + $0xd8] sm:$0xff] %vm7329, %v7292
    %7358 = vst.msk [vmem:[#allocation3 + $0xe0] sm:$0xff] %vm7329, %v7293
    %7359 = vst.msk [vmem:[#allocation3 + $0xe8] sm:$0xff] %vm7329, %v7294
    %7360 = vst.msk [vmem:[#allocation3 + $0xf0] sm:$0xff] %vm7329, %v7295
    %7361 = vst.msk [vmem:[#allocation3 + $0xf8] sm:$0xff] %vm7329, %v7296
    %7362 = vst.msk [vmem:[#allocation3 + $0x100] sm:$0xff] %vm7329, %v7297
    %7363 = vst.msk [vmem:[#allocation3 + $0x108] sm:$0xff] %vm7329, %v7298
    %7364 = vst.msk [vmem:[#allocation3 + $0x110] sm:$0xff] %vm7329, %v7299
    %7365 = vst.msk [vmem:[#allocation3 + $0x118] sm:$0xff] %vm7329, %v7300
    %7366 = vst.msk [vmem:[#allocation3 + $0x120] sm:$0xff] %vm7329, %v7301
    %7367 = vst.msk [vmem:[#allocation3 + $0x128] sm:$0xff] %vm7329, %v7302
    %7368 = vst.msk [vmem:[#allocation3 + $0x130] sm:$0xff] %vm7329, %v7303
    %7369 = vst.msk [vmem:[#allocation3 + $0x138] sm:$0xff] %vm7329, %v7304
    %7370 = vst.msk [vmem:[#allocation3 + $0x140] sm:$0xff] %vm7329, %v7305
    %7371 = vst.msk [vmem:[#allocation3 + $0x148] sm:$0xff] %vm7329, %v7306
    %7372 = vst.msk [vmem:[#allocation3 + $0x150] sm:$0xff] %vm7329, %v7307
    %7373 = vst.msk [vmem:[#allocation3 + $0x158] sm:$0xff] %vm7329, %v7308
    %7374 = vst.msk [vmem:[#allocation3 + $0x160] sm:$0xff] %vm7329, %v7309
    %7375 = vst.msk [vmem:[#allocation3 + $0x168] sm:$0xff] %vm7329, %v7310
    %7376 = vst.msk [vmem:[#allocation3 + $0x170] sm:$0xff] %vm7329, %v7311
    %7377 = vst.msk [vmem:[#allocation3 + $0x178] sm:$0xff] %vm7329, %v7312
    %7378 = vst.msk [vmem:[#allocation3 + $0x180] sm:$0xff] %vm7329, %v7313
    %7379 = vst.msk [vmem:[#allocation3 + $0x188] sm:$0xff] %vm7329, %v7314
    %7380 = vst.msk [vmem:[#allocation3 + $0x190] sm:$0xff] %vm7329, %v7315
    %7381 = vst.msk [vmem:[#allocation3 + $0x198] sm:$0xff] %vm7329, %v7316
    %7382 = vst.msk [vmem:[#allocation3 + $0x1a0] sm:$0xff] %vm7329, %v7317
    %7383 = vst.msk [vmem:[#allocation3 + $0x1a8] sm:$0xff] %vm7329, %v7318
    %7384 = vst.msk [vmem:[#allocation3 + $0x1b0] sm:$0xff] %vm7329, %v7319
    %7385 = vst.msk [vmem:[#allocation3 + $0x1b8] sm:$0xff] %vm7329, %v7320
    %7386 = vst.msk [vmem:[#allocation3 + $0x1c0] sm:$0xff] %vm7329, %v7321
    %7387 = vst.msk [vmem:[#allocation3 + $0x1c8] sm:$0xff] %vm7329, %v7322
    %7388 = vst.msk [vmem:[#allocation3 + $0x1d0] sm:$0xff] %vm7329, %v7323
    %7389 = vst.msk [vmem:[#allocation3 + $0x1d8] sm:$0xff] %vm7329, %v7324
    %7390 = vst.msk [vmem:[#allocation3 + $0x1e0] sm:$0xff] %vm7329, %v7325
    %7391 = vst.msk [vmem:[#allocation3 + $0x1e8] sm:$0xff] %vm7329, %v7326
    %7392 = vst.msk [vmem:[#allocation3 + $0x1f0] sm:$0xff] %vm7329, %v7327
    %7393 = vst.msk [vmem:[#allocation3 + $0x1f8] sm:$0xff] %vm7329, %v7328
    %v7394 = vld [vmem:[#allocation3] ss:$2 sm:$0xff]
    %s7395 = scalar_lea.vmem [#allocation3], 16
    %v7396 = vld [vmem:[%s7395] ss:$2 sm:$0xff]
    %s7397 = scalar_lea.vmem [#allocation3], 32
    %v7398 = vld [vmem:[%s7397] ss:$2 sm:$0xff]
    %s7399 = scalar_lea.vmem [#allocation3], 48
    %v7400 = vld [vmem:[%s7399] ss:$2 sm:$0xff]
    %s7401 = scalar_lea.vmem [#allocation3], 64
    %v7402 = vld [vmem:[%s7401] ss:$2 sm:$0xff]
    %s7403 = scalar_lea.vmem [#allocation3], 80
    %v7404 = vld [vmem:[%s7403] ss:$2 sm:$0xff]
    %s7405 = scalar_lea.vmem [#allocation3], 96
    %v7406 = vld [vmem:[%s7405] ss:$2 sm:$0xff]
    %s7407 = scalar_lea.vmem [#allocation3], 112
    %v7408 = vld [vmem:[%s7407] ss:$2 sm:$0xff]
    %s7409 = scalar_lea.vmem [#allocation3], 128
    %v7410 = vld [vmem:[%s7409] ss:$2 sm:$0xff]
    %s7411 = scalar_lea.vmem [#allocation3], 144
    %v7412 = vld [vmem:[%s7411] ss:$2 sm:$0xff]
    %s7413 = scalar_lea.vmem [#allocation3], 160
    %v7414 = vld [vmem:[%s7413] ss:$2 sm:$0xff]
    %s7415 = scalar_lea.vmem [#allocation3], 176
    %v7416 = vld [vmem:[%s7415] ss:$2 sm:$0xff]
    %s7417 = scalar_lea.vmem [#allocation3], 192
    %v7418 = vld [vmem:[%s7417] ss:$2 sm:$0xff]
    %s7419 = scalar_lea.vmem [#allocation3], 208
    %v7420 = vld [vmem:[%s7419] ss:$2 sm:$0xff]
    %s7421 = scalar_lea.vmem [#allocation3], 224
    %v7422 = vld [vmem:[%s7421] ss:$2 sm:$0xff]
    %s7423 = scalar_lea.vmem [#allocation3], 240
    %v7424 = vld [vmem:[%s7423] ss:$2 sm:$0xff]
    %s7425 = scalar_lea.vmem [#allocation3], 256
    %v7426 = vld [vmem:[%s7425] ss:$2 sm:$0xff]
    %s7427 = scalar_lea.vmem [#allocation3], 272
    %v7428 = vld [vmem:[%s7427] ss:$2 sm:$0xff]
    %s7429 = scalar_lea.vmem [#allocation3], 288
    %v7430 = vld [vmem:[%s7429] ss:$2 sm:$0xff]
    %s7431 = scalar_lea.vmem [#allocation3], 304
    %v7432 = vld [vmem:[%s7431] ss:$2 sm:$0xff]
    %s7433 = scalar_lea.vmem [#allocation3], 320
    %v7434 = vld [vmem:[%s7433] ss:$2 sm:$0xff]
    %s7435 = scalar_lea.vmem [#allocation3], 336
    %v7436 = vld [vmem:[%s7435] ss:$2 sm:$0xff]
    %s7437 = scalar_lea.vmem [#allocation3], 352
    %v7438 = vld [vmem:[%s7437] ss:$2 sm:$0xff]
    %s7439 = scalar_lea.vmem [#allocation3], 368
    %v7440 = vld [vmem:[%s7439] ss:$2 sm:$0xff]
    %s7441 = scalar_lea.vmem [#allocation3], 384
    %v7442 = vld [vmem:[%s7441] ss:$2 sm:$0xff]
    %s7443 = scalar_lea.vmem [#allocation3], 400
    %v7444 = vld [vmem:[%s7443] ss:$2 sm:$0xff]
    %s7445 = scalar_lea.vmem [#allocation3], 416
    %v7446 = vld [vmem:[%s7445] ss:$2 sm:$0xff]
    %s7447 = scalar_lea.vmem [#allocation3], 432
    %v7448 = vld [vmem:[%s7447] ss:$2 sm:$0xff]
    %s7449 = scalar_lea.vmem [#allocation3], 448
    %v7450 = vld [vmem:[%s7449] ss:$2 sm:$0xff]
    %s7451 = scalar_lea.vmem [#allocation3], 464
    %v7452 = vld [vmem:[%s7451] ss:$2 sm:$0xff]
    %s7453 = scalar_lea.vmem [#allocation3], 480
    %v7454 = vld [vmem:[%s7453] ss:$2 sm:$0xff]
    %s7455 = scalar_lea.vmem [#allocation3], 496
    %v7456 = vld [vmem:[%s7455] ss:$2 sm:$0xff]
    %s7457 = scalar_lea.vmem [#allocation3], 1
    %v7458 = vld [vmem:[%s7457] ss:$2 sm:$0xff]
    %s7459 = scalar_lea.vmem [#allocation3], 17
    %v7460 = vld [vmem:[%s7459] ss:$2 sm:$0xff]
    %s7461 = scalar_lea.vmem [#allocation3], 33
    %v7462 = vld [vmem:[%s7461] ss:$2 sm:$0xff]
    %s7463 = scalar_lea.vmem [#allocation3], 49
    %v7464 = vld [vmem:[%s7463] ss:$2 sm:$0xff]
    %s7465 = scalar_lea.vmem [#allocation3], 65
    %v7466 = vld [vmem:[%s7465] ss:$2 sm:$0xff]
    %s7467 = scalar_lea.vmem [#allocation3], 81
    %v7468 = vld [vmem:[%s7467] ss:$2 sm:$0xff]
    %s7469 = scalar_lea.vmem [#allocation3], 97
    %v7470 = vld [vmem:[%s7469] ss:$2 sm:$0xff]
    %s7471 = scalar_lea.vmem [#allocation3], 113
    %v7472 = vld [vmem:[%s7471] ss:$2 sm:$0xff]
    %s7473 = scalar_lea.vmem [#allocation3], 129
    %v7474 = vld [vmem:[%s7473] ss:$2 sm:$0xff]
    %s7475 = scalar_lea.vmem [#allocation3], 145
    %v7476 = vld [vmem:[%s7475] ss:$2 sm:$0xff]
    %s7477 = scalar_lea.vmem [#allocation3], 161
    %v7478 = vld [vmem:[%s7477] ss:$2 sm:$0xff]
    %s7479 = scalar_lea.vmem [#allocation3], 177
    %v7480 = vld [vmem:[%s7479] ss:$2 sm:$0xff]
    %s7481 = scalar_lea.vmem [#allocation3], 193
    %v7482 = vld [vmem:[%s7481] ss:$2 sm:$0xff]
    %s7483 = scalar_lea.vmem [#allocation3], 209
    %v7484 = vld [vmem:[%s7483] ss:$2 sm:$0xff]
    %s7485 = scalar_lea.vmem [#allocation3], 225
    %v7486 = vld [vmem:[%s7485] ss:$2 sm:$0xff]
    %s7487 = scalar_lea.vmem [#allocation3], 241
    %v7488 = vld [vmem:[%s7487] ss:$2 sm:$0xff]
    %s7489 = scalar_lea.vmem [#allocation3], 257
    %v7490 = vld [vmem:[%s7489] ss:$2 sm:$0xff]
    %s7491 = scalar_lea.vmem [#allocation3], 273
    %v7492 = vld [vmem:[%s7491] ss:$2 sm:$0xff]
    %s7493 = scalar_lea.vmem [#allocation3], 289
    %v7494 = vld [vmem:[%s7493] ss:$2 sm:$0xff]
    %s7495 = scalar_lea.vmem [#allocation3], 305
    %v7496 = vld [vmem:[%s7495] ss:$2 sm:$0xff]
    %s7497 = scalar_lea.vmem [#allocation3], 321
    %v7498 = vld [vmem:[%s7497] ss:$2 sm:$0xff]
    %s7499 = scalar_lea.vmem [#allocation3], 337
    %v7500 = vld [vmem:[%s7499] ss:$2 sm:$0xff]
    %s7501 = scalar_lea.vmem [#allocation3], 353
    %v7502 = vld [vmem:[%s7501] ss:$2 sm:$0xff]
    %s7503 = scalar_lea.vmem [#allocation3], 369
    %v7504 = vld [vmem:[%s7503] ss:$2 sm:$0xff]
    %s7505 = scalar_lea.vmem [#allocation3], 385
    %v7506 = vld [vmem:[%s7505] ss:$2 sm:$0xff]
    %s7507 = scalar_lea.vmem [#allocation3], 401
    %v7508 = vld [vmem:[%s7507] ss:$2 sm:$0xff]
    %s7509 = scalar_lea.vmem [#allocation3], 417
    %v7510 = vld [vmem:[%s7509] ss:$2 sm:$0xff]
    %s7511 = scalar_lea.vmem [#allocation3], 433
    %v7512 = vld [vmem:[%s7511] ss:$2 sm:$0xff]
    %s7513 = scalar_lea.vmem [#allocation3], 449
    %v7514 = vld [vmem:[%s7513] ss:$2 sm:$0xff]
    %s7515 = scalar_lea.vmem [#allocation3], 465
    %v7516 = vld [vmem:[%s7515] ss:$2 sm:$0xff]
    %s7517 = scalar_lea.vmem [#allocation3], 481
    %v7518 = vld [vmem:[%s7517] ss:$2 sm:$0xff]
    %s7519 = scalar_lea.vmem [#allocation3], 497
    %v7520 = vld [vmem:[%s7519] ss:$2 sm:$0xff]
    %v7521 = vmax.f32 %v7394, %v7458
    %v7522 = vmax.f32 %v7396, %v7460
    %v7523 = vmax.f32 %v7398, %v7462
    %v7524 = vmax.f32 %v7400, %v7464
    %v7525 = vmax.f32 %v7402, %v7466
    %v7526 = vmax.f32 %v7404, %v7468
    %v7527 = vmax.f32 %v7406, %v7470
    %v7528 = vmax.f32 %v7408, %v7472
    %v7529 = vmax.f32 %v7410, %v7474
    %v7530 = vmax.f32 %v7412, %v7476
    %v7531 = vmax.f32 %v7414, %v7478
    %v7532 = vmax.f32 %v7416, %v7480
    %v7533 = vmax.f32 %v7418, %v7482
    %v7534 = vmax.f32 %v7420, %v7484
    %v7535 = vmax.f32 %v7422, %v7486
    %v7536 = vmax.f32 %v7424, %v7488
    %v7537 = vmax.f32 %v7426, %v7490
    %v7538 = vmax.f32 %v7428, %v7492
    %v7539 = vmax.f32 %v7430, %v7494
    %v7540 = vmax.f32 %v7432, %v7496
    %v7541 = vmax.f32 %v7434, %v7498
    %v7542 = vmax.f32 %v7436, %v7500
    %v7543 = vmax.f32 %v7438, %v7502
    %v7544 = vmax.f32 %v7440, %v7504
    %v7545 = vmax.f32 %v7442, %v7506
    %v7546 = vmax.f32 %v7444, %v7508
    %v7547 = vmax.f32 %v7446, %v7510
    %v7548 = vmax.f32 %v7448, %v7512
    %v7549 = vmax.f32 %v7450, %v7514
    %v7550 = vmax.f32 %v7452, %v7516
    %v7551 = vmax.f32 %v7454, %v7518
    %v7552 = vmax.f32 %v7456, %v7520
    %v7553 = vld [vmem:[%s2] sm:$0x1]
    %v7555 = vlaneseq
    %v7556 = vshrl.u32 %v7555, 7
    %v7557 = vsub.s32 0, %v7556
    %v7558 = vrot.slane %v7553, %v7557
    %v7560 = vadd.f32 %v7521, %v7558
    %v7561 = vadd.f32 %v7522, %v7558
    %v7562 = vadd.f32 %v7523, %v7558
    %v7563 = vadd.f32 %v7524, %v7558
    %v7564 = vadd.f32 %v7525, %v7558
    %v7565 = vadd.f32 %v7526, %v7558
    %v7566 = vadd.f32 %v7527, %v7558
    %v7567 = vadd.f32 %v7528, %v7558
    %v7568 = vadd.f32 %v7529, %v7558
    %v7569 = vadd.f32 %v7530, %v7558
    %v7570 = vadd.f32 %v7531, %v7558
    %v7571 = vadd.f32 %v7532, %v7558
    %v7572 = vadd.f32 %v7533, %v7558
    %v7573 = vadd.f32 %v7534, %v7558
    %v7574 = vadd.f32 %v7535, %v7558
    %v7575 = vadd.f32 %v7536, %v7558
    %v7576 = vadd.f32 %v7537, %v7558
    %v7577 = vadd.f32 %v7538, %v7558
    %v7578 = vadd.f32 %v7539, %v7558
    %v7579 = vadd.f32 %v7540, %v7558
    %v7580 = vadd.f32 %v7541, %v7558
    %v7581 = vadd.f32 %v7542, %v7558
    %v7582 = vadd.f32 %v7543, %v7558
    %v7583 = vadd.f32 %v7544, %v7558
    %v7584 = vadd.f32 %v7545, %v7558
    %v7585 = vadd.f32 %v7546, %v7558
    %v7586 = vadd.f32 %v7547, %v7558
    %v7587 = vadd.f32 %v7548, %v7558
    %v7588 = vadd.f32 %v7549, %v7558
    %v7589 = vadd.f32 %v7550, %v7558
    %v7590 = vadd.f32 %v7551, %v7558
    %v7591 = vadd.f32 %v7552, %v7558
    %vm7592 = vcmp.ge.f32.partialorder %v7560, 0.0
    %vm7593 = vcmp.ge.f32.partialorder %v7561, 0.0
    %vm7594 = vcmp.ge.f32.partialorder %v7562, 0.0
    %vm7595 = vcmp.ge.f32.partialorder %v7563, 0.0
    %vm7596 = vcmp.ge.f32.partialorder %v7564, 0.0
    %vm7597 = vcmp.ge.f32.partialorder %v7565, 0.0
    %vm7598 = vcmp.ge.f32.partialorder %v7566, 0.0
    %vm7599 = vcmp.ge.f32.partialorder %v7567, 0.0
    %vm7600 = vcmp.ge.f32.partialorder %v7568, 0.0
    %vm7601 = vcmp.ge.f32.partialorder %v7569, 0.0
    %vm7602 = vcmp.ge.f32.partialorder %v7570, 0.0
    %vm7603 = vcmp.ge.f32.partialorder %v7571, 0.0
    %vm7604 = vcmp.ge.f32.partialorder %v7572, 0.0
    %vm7605 = vcmp.ge.f32.partialorder %v7573, 0.0
    %vm7606 = vcmp.ge.f32.partialorder %v7574, 0.0
    %vm7607 = vcmp.ge.f32.partialorder %v7575, 0.0
    %vm7608 = vcmp.ge.f32.partialorder %v7576, 0.0
    %vm7609 = vcmp.ge.f32.partialorder %v7577, 0.0
    %vm7610 = vcmp.ge.f32.partialorder %v7578, 0.0
    %vm7611 = vcmp.ge.f32.partialorder %v7579, 0.0
    %vm7612 = vcmp.ge.f32.partialorder %v7580, 0.0
    %vm7613 = vcmp.ge.f32.partialorder %v7581, 0.0
    %vm7614 = vcmp.ge.f32.partialorder %v7582, 0.0
    %vm7615 = vcmp.ge.f32.partialorder %v7583, 0.0
    %vm7616 = vcmp.ge.f32.partialorder %v7584, 0.0
    %vm7617 = vcmp.ge.f32.partialorder %v7585, 0.0
    %vm7618 = vcmp.ge.f32.partialorder %v7586, 0.0
    %vm7619 = vcmp.ge.f32.partialorder %v7587, 0.0
    %vm7620 = vcmp.ge.f32.partialorder %v7588, 0.0
    %vm7621 = vcmp.ge.f32.partialorder %v7589, 0.0
    %vm7622 = vcmp.ge.f32.partialorder %v7590, 0.0
    %vm7623 = vcmp.ge.f32.partialorder %v7591, 0.0
    %v7624 = vmul.f32 %v7560, 0.2
    %v7625 = vmul.f32 %v7561, 0.2
    %v7626 = vmul.f32 %v7562, 0.2
    %v7627 = vmul.f32 %v7563, 0.2
    %v7628 = vmul.f32 %v7564, 0.2
    %v7629 = vmul.f32 %v7565, 0.2
    %v7630 = vmul.f32 %v7566, 0.2
    %v7631 = vmul.f32 %v7567, 0.2
    %v7632 = vmul.f32 %v7568, 0.2
    %v7633 = vmul.f32 %v7569, 0.2
    %v7634 = vmul.f32 %v7570, 0.2
    %v7635 = vmul.f32 %v7571, 0.2
    %v7636 = vmul.f32 %v7572, 0.2
    %v7637 = vmul.f32 %v7573, 0.2
    %v7638 = vmul.f32 %v7574, 0.2
    %v7639 = vmul.f32 %v7575, 0.2
    %v7640 = vmul.f32 %v7576, 0.2
    %v7641 = vmul.f32 %v7577, 0.2
    %v7642 = vmul.f32 %v7578, 0.2
    %v7643 = vmul.f32 %v7579, 0.2
    %v7644 = vmul.f32 %v7580, 0.2
    %v7645 = vmul.f32 %v7581, 0.2
    %v7646 = vmul.f32 %v7582, 0.2
    %v7647 = vmul.f32 %v7583, 0.2
    %v7648 = vmul.f32 %v7584, 0.2
    %v7649 = vmul.f32 %v7585, 0.2
    %v7650 = vmul.f32 %v7586, 0.2
    %v7651 = vmul.f32 %v7587, 0.2
    %v7652 = vmul.f32 %v7588, 0.2
    %v7653 = vmul.f32 %v7589, 0.2
    %v7654 = vmul.f32 %v7590, 0.2
    %v7655 = vmul.f32 %v7591, 0.2
    %v7656 = vsel %vm7592, %v7560, %v7624
    %v7657 = vsel %vm7593, %v7561, %v7625
    %v7658 = vsel %vm7594, %v7562, %v7626
    %v7659 = vsel %vm7595, %v7563, %v7627
    %v7660 = vsel %vm7596, %v7564, %v7628
    %v7661 = vsel %vm7597, %v7565, %v7629
    %v7662 = vsel %vm7598, %v7566, %v7630
    %v7663 = vsel %vm7599, %v7567, %v7631
    %v7664 = vsel %vm7600, %v7568, %v7632
    %v7665 = vsel %vm7601, %v7569, %v7633
    %v7666 = vsel %vm7602, %v7570, %v7634
    %v7667 = vsel %vm7603, %v7571, %v7635
    %v7668 = vsel %vm7604, %v7572, %v7636
    %v7669 = vsel %vm7605, %v7573, %v7637
    %v7670 = vsel %vm7606, %v7574, %v7638
    %v7671 = vsel %vm7607, %v7575, %v7639
    %v7672 = vsel %vm7608, %v7576, %v7640
    %v7673 = vsel %vm7609, %v7577, %v7641
    %v7674 = vsel %vm7610, %v7578, %v7642
    %v7675 = vsel %vm7611, %v7579, %v7643
    %v7676 = vsel %vm7612, %v7580, %v7644
    %v7677 = vsel %vm7613, %v7581, %v7645
    %v7678 = vsel %vm7614, %v7582, %v7646
    %v7679 = vsel %vm7615, %v7583, %v7647
    %v7680 = vsel %vm7616, %v7584, %v7648
    %v7681 = vsel %vm7617, %v7585, %v7649
    %v7682 = vsel %vm7618, %v7586, %v7650
    %v7683 = vsel %vm7619, %v7587, %v7651
    %v7684 = vsel %vm7620, %v7588, %v7652
    %v7685 = vsel %vm7621, %v7589, %v7653
    %v7686 = vsel %vm7622, %v7590, %v7654
    %v7687 = vsel %vm7623, %v7591, %v7655
    %7688 = vst.msk [vmem:[#allocation4] sm:$0xff] %vm7329, %v7656
    %7689 = vst.msk [vmem:[#allocation4 + $0x8] sm:$0xff] %vm7329, %v7657
    %7690 = vst.msk [vmem:[#allocation4 + $0x10] sm:$0xff] %vm7329, %v7658
    %7691 = vst.msk [vmem:[#allocation4 + $0x18] sm:$0xff] %vm7329, %v7659
    %7692 = vst.msk [vmem:[#allocation4 + $0x20] sm:$0xff] %vm7329, %v7660
    %7693 = vst.msk [vmem:[#allocation4 + $0x28] sm:$0xff] %vm7329, %v7661
    %7694 = vst.msk [vmem:[#allocation4 + $0x30] sm:$0xff] %vm7329, %v7662
    %7695 = vst.msk [vmem:[#allocation4 + $0x38] sm:$0xff] %vm7329, %v7663
    %7696 = vst.msk [vmem:[#allocation4 + $0x40] sm:$0xff] %vm7329, %v7664
    %7697 = vst.msk [vmem:[#allocation4 + $0x48] sm:$0xff] %vm7329, %v7665
    %7698 = vst.msk [vmem:[#allocation4 + $0x50] sm:$0xff] %vm7329, %v7666
    %7699 = vst.msk [vmem:[#allocation4 + $0x58] sm:$0xff] %vm7329, %v7667
    %7700 = vst.msk [vmem:[#allocation4 + $0x60] sm:$0xff] %vm7329, %v7668
    %7701 = vst.msk [vmem:[#allocation4 + $0x68] sm:$0xff] %vm7329, %v7669
    %7702 = vst.msk [vmem:[#allocation4 + $0x70] sm:$0xff] %vm7329, %v7670
    %7703 = vst.msk [vmem:[#allocation4 + $0x78] sm:$0xff] %vm7329, %v7671
    %7704 = vst.msk [vmem:[#allocation4 + $0x80] sm:$0xff] %vm7329, %v7672
    %7705 = vst.msk [vmem:[#allocation4 + $0x88] sm:$0xff] %vm7329, %v7673
    %7706 = vst.msk [vmem:[#allocation4 + $0x90] sm:$0xff] %vm7329, %v7674
    %7707 = vst.msk [vmem:[#allocation4 + $0x98] sm:$0xff] %vm7329, %v7675
    %7708 = vst.msk [vmem:[#allocation4 + $0xa0] sm:$0xff] %vm7329, %v7676
    %7709 = vst.msk [vmem:[#allocation4 + $0xa8] sm:$0xff] %vm7329, %v7677
    %7710 = vst.msk [vmem:[#allocation4 + $0xb0] sm:$0xff] %vm7329, %v7678
    %7711 = vst.msk [vmem:[#allocation4 + $0xb8] sm:$0xff] %vm7329, %v7679
    %7712 = vst.msk [vmem:[#allocation4 + $0xc0] sm:$0xff] %vm7329, %v7680
    %7713 = vst.msk [vmem:[#allocation4 + $0xc8] sm:$0xff] %vm7329, %v7681
    %7714 = vst.msk [vmem:[#allocation4 + $0xd0] sm:$0xff] %vm7329, %v7682
    %7715 = vst.msk [vmem:[#allocation4 + $0xd8] sm:$0xff] %vm7329, %v7683
    %7716 = vst.msk [vmem:[#allocation4 + $0xe0] sm:$0xff] %vm7329, %v7684
    %7717 = vst.msk [vmem:[#allocation4 + $0xe8] sm:$0xff] %vm7329, %v7685
    %7718 = vst.msk [vmem:[#allocation4 + $0xf0] sm:$0xff] %vm7329, %v7686
    %7719 = vst.msk [vmem:[#allocation4 + $0xf8] sm:$0xff] %vm7329, %v7687
    %vm7720 = vcmask 588800
    %7721 = vst.msk [vmem:[#allocation5] sm:$0xff] %vm7720, 0.0
    %7722 = vst.msk [vmem:[#allocation5 + $0x8] sm:$0xff] %vm7720, 0.0
    %7723 = vst.msk [vmem:[#allocation5 + $0x10] sm:$0xff] %vm7720, 0.0
    %7724 = vst.msk [vmem:[#allocation5 + $0x18] sm:$0xff] %vm7720, 0.0
    %7725 = vst.msk [vmem:[#allocation5 + $0x20] sm:$0xff] %vm7720, 0.0
    %7726 = vst.msk [vmem:[#allocation5 + $0x28] sm:$0xff] %vm7720, 0.0
    %7727 = vst.msk [vmem:[#allocation5 + $0x30] sm:$0xff] %vm7720, 0.0
    %7728 = vst.msk [vmem:[#allocation5 + $0x38] sm:$0xff] %vm7720, 0.0
    %7729 = vst.msk [vmem:[#allocation5 + $0x40] sm:$0xff] %vm7720, 0.0
    %7730 = vst.msk [vmem:[#allocation5 + $0x48] sm:$0xff] %vm7720, 0.0
    %7731 = vst.msk [vmem:[#allocation5 + $0x50] sm:$0xff] %vm7720, 0.0
    %7732 = vst.msk [vmem:[#allocation5 + $0x58] sm:$0xff] %vm7720, 0.0
    %7733 = vst.msk [vmem:[#allocation5 + $0x60] sm:$0xff] %vm7720, 0.0
    %7734 = vst.msk [vmem:[#allocation5 + $0x68] sm:$0xff] %vm7720, 0.0
    %7735 = vst.msk [vmem:[#allocation5 + $0x70] sm:$0xff] %vm7720, 0.0
    %7736 = vst.msk [vmem:[#allocation5 + $0x78] sm:$0xff] %vm7720, 0.0
    %7737 = vst.msk [vmem:[#allocation5 + $0x80] sm:$0xff] %vm7720, 0.0
    %7738 = vst.msk [vmem:[#allocation5 + $0x88] sm:$0xff] %vm7720, 0.0
    %7739 = vst.msk [vmem:[#allocation5 + $0x90] sm:$0xff] %vm7720, 0.0
    %7740 = vst.msk [vmem:[#allocation5 + $0x98] sm:$0xff] %vm7720, 0.0
    %7741 = vst.msk [vmem:[#allocation5 + $0xa0] sm:$0xff] %vm7720, 0.0
    %7742 = vst.msk [vmem:[#allocation5 + $0xa8] sm:$0xff] %vm7720, 0.0
    %7743 = vst.msk [vmem:[#allocation5 + $0xb0] sm:$0xff] %vm7720, 0.0
    %7744 = vst.msk [vmem:[#allocation5 + $0xb8] sm:$0xff] %vm7720, 0.0
    %7745 = vst.msk [vmem:[#allocation5 + $0xc0] sm:$0xff] %vm7720, 0.0
    %7746 = vst.msk [vmem:[#allocation5 + $0xc8] sm:$0xff] %vm7720, 0.0
    %7747 = vst.msk [vmem:[#allocation5 + $0xd0] sm:$0xff] %vm7720, 0.0
    %7748 = vst.msk [vmem:[#allocation5 + $0xd8] sm:$0xff] %vm7720, 0.0
    %7749 = vst.msk [vmem:[#allocation5 + $0xe0] sm:$0xff] %vm7720, 0.0
    %7750 = vst.msk [vmem:[#allocation5 + $0xe8] sm:$0xff] %vm7720, 0.0
    %7751 = vst.msk [vmem:[#allocation5 + $0xf0] sm:$0xff] %vm7720, 0.0
    %7752 = vst.msk [vmem:[#allocation5 + $0xf8] sm:$0xff] %vm7720, 0.0
    %v7753 = vld [vmem:[#allocation4] sm:$0x7f]
    %v7754 = vld [vmem:[#allocation4 + $0x8] sm:$0x7f]
    %v7755 = vld [vmem:[#allocation4 + $0x10] sm:$0x7f]
    %v7756 = vld [vmem:[#allocation4 + $0x18] sm:$0x7f]
    %v7757 = vld [vmem:[#allocation4 + $0x20] sm:$0x7f]
    %v7758 = vld [vmem:[#allocation4 + $0x28] sm:$0x7f]
    %v7759 = vld [vmem:[#allocation4 + $0x30] sm:$0x7f]
    %v7760 = vld [vmem:[#allocation4 + $0x40] sm:$0x7f]
    %v7761 = vld [vmem:[#allocation4 + $0x48] sm:$0x7f]
    %v7762 = vld [vmem:[#allocation4 + $0x50] sm:$0x7f]
    %v7763 = vld [vmem:[#allocation4 + $0x58] sm:$0x7f]
    %v7764 = vld [vmem:[#allocation4 + $0x60] sm:$0x7f]
    %v7765 = vld [vmem:[#allocation4 + $0x68] sm:$0x7f]
    %v7766 = vld [vmem:[#allocation4 + $0x70] sm:$0x7f]
    %v7767 = vld [vmem:[#allocation4 + $0x80] sm:$0x7f]
    %v7768 = vld [vmem:[#allocation4 + $0x88] sm:$0x7f]
    %v7769 = vld [vmem:[#allocation4 + $0x90] sm:$0x7f]
    %v7770 = vld [vmem:[#allocation4 + $0x98] sm:$0x7f]
    %v7771 = vld [vmem:[#allocation4 + $0xa0] sm:$0x7f]
    %v7772 = vld [vmem:[#allocation4 + $0xa8] sm:$0x7f]
    %v7773 = vld [vmem:[#allocation4 + $0xb0] sm:$0x7f]
    %v7774 = vld [vmem:[#allocation4 + $0xc0] sm:$0x7f]
    %v7775 = vld [vmem:[#allocation4 + $0xc8] sm:$0x7f]
    %v7776 = vld [vmem:[#allocation4 + $0xd0] sm:$0x7f]
    %v7777 = vld [vmem:[#allocation4 + $0xd8] sm:$0x7f]
    %v7778 = vld [vmem:[#allocation4 + $0xe0] sm:$0x7f]
    %v7779 = vld [vmem:[#allocation4 + $0xe8] sm:$0x7f]
    %v7780 = vld [vmem:[#allocation4 + $0xf0] sm:$0x7f]
    %s7781 = scalar_lea.vmem [#allocation5], 8
    %vm7782 = vcmask 63488
    %7783 = vst.msk [vmem:[%s7781 + $0x1] sm:$0x7f] %vm7782, %v7753
    %7784 = vst.msk [vmem:[%s7781 + $0x9] sm:$0x7f] %vm7782, %v7754
    %7785 = vst.msk [vmem:[%s7781 + $0x11] sm:$0x7f] %vm7782, %v7755
    %7786 = vst.msk [vmem:[%s7781 + $0x19] sm:$0x7f] %vm7782, %v7756
    %7787 = vst.msk [vmem:[%s7781 + $0x21] sm:$0x7f] %vm7782, %v7757
    %7788 = vst.msk [vmem:[%s7781 + $0x29] sm:$0x7f] %vm7782, %v7758
    %7789 = vst.msk [vmem:[%s7781 + $0x31] sm:$0x7f] %vm7782, %v7759
    %7790 = vst.msk [vmem:[%s7781 + $0x41] sm:$0x7f] %vm7782, %v7760
    %7791 = vst.msk [vmem:[%s7781 + $0x49] sm:$0x7f] %vm7782, %v7761
    %7792 = vst.msk [vmem:[%s7781 + $0x51] sm:$0x7f] %vm7782, %v7762
    %7793 = vst.msk [vmem:[%s7781 + $0x59] sm:$0x7f] %vm7782, %v7763
    %7794 = vst.msk [vmem:[%s7781 + $0x61] sm:$0x7f] %vm7782, %v7764
    %7795 = vst.msk [vmem:[%s7781 + $0x69] sm:$0x7f] %vm7782, %v7765
    %7796 = vst.msk [vmem:[%s7781 + $0x71] sm:$0x7f] %vm7782, %v7766
    %7797 = vst.msk [vmem:[%s7781 + $0x81] sm:$0x7f] %vm7782, %v7767
    %7798 = vst.msk [vmem:[%s7781 + $0x89] sm:$0x7f] %vm7782, %v7768
    %7799 = vst.msk [vmem:[%s7781 + $0x91] sm:$0x7f] %vm7782, %v7769
    %7800 = vst.msk [vmem:[%s7781 + $0x99] sm:$0x7f] %vm7782, %v7770
    %7801 = vst.msk [vmem:[%s7781 + $0xa1] sm:$0x7f] %vm7782, %v7771
    %7802 = vst.msk [vmem:[%s7781 + $0xa9] sm:$0x7f] %vm7782, %v7772
    %7803 = vst.msk [vmem:[%s7781 + $0xb1] sm:$0x7f] %vm7782, %v7773
    %7804 = vst.msk [vmem:[%s7781 + $0xc1] sm:$0x7f] %vm7782, %v7774
    %7805 = vst.msk [vmem:[%s7781 + $0xc9] sm:$0x7f] %vm7782, %v7775
    %7806 = vst.msk [vmem:[%s7781 + $0xd1] sm:$0x7f] %vm7782, %v7776
    %7807 = vst.msk [vmem:[%s7781 + $0xd9] sm:$0x7f] %vm7782, %v7777
    %7808 = vst.msk [vmem:[%s7781 + $0xe1] sm:$0x7f] %vm7782, %v7778
    %7809 = vst.msk [vmem:[%s7781 + $0xe9] sm:$0x7f] %vm7782, %v7779
    %7810 = vst.msk [vmem:[%s7781 + $0xf1] sm:$0x7f] %vm7782, %v7780
    %v7811 = vld [vmem:[#allocation4] sm:$0xff]
    %v7812 = vld [vmem:[#allocation4 + $0x8] sm:$0xff]
    %v7813 = vld [vmem:[#allocation4 + $0x10] sm:$0xff]
    %v7814 = vld [vmem:[#allocation4 + $0x18] sm:$0xff]
    %v7815 = vld [vmem:[#allocation4 + $0x20] sm:$0xff]
    %v7816 = vld [vmem:[#allocation4 + $0x28] sm:$0xff]
    %v7817 = vld [vmem:[#allocation4 + $0x30] sm:$0xff]
    %v7818 = vld [vmem:[#allocation4 + $0x40] sm:$0xff]
    %v7819 = vld [vmem:[#allocation4 + $0x48] sm:$0xff]
    %v7820 = vld [vmem:[#allocation4 + $0x50] sm:$0xff]
    %v7821 = vld [vmem:[#allocation4 + $0x58] sm:$0xff]
    %v7822 = vld [vmem:[#allocation4 + $0x60] sm:$0xff]
    %v7823 = vld [vmem:[#allocation4 + $0x68] sm:$0xff]
    %v7824 = vld [vmem:[#allocation4 + $0x70] sm:$0xff]
    %v7825 = vld [vmem:[#allocation4 + $0x80] sm:$0xff]
    %v7826 = vld [vmem:[#allocation4 + $0x88] sm:$0xff]
    %v7827 = vld [vmem:[#allocation4 + $0x90] sm:$0xff]
    %v7828 = vld [vmem:[#allocation4 + $0x98] sm:$0xff]
    %v7829 = vld [vmem:[#allocation4 + $0xa0] sm:$0xff]
    %v7830 = vld [vmem:[#allocation4 + $0xa8] sm:$0xff]
    %v7831 = vld [vmem:[#allocation4 + $0xb0] sm:$0xff]
    %v7832 = vld [vmem:[#allocation4 + $0xc0] sm:$0xff]
    %v7833 = vld [vmem:[#allocation4 + $0xc8] sm:$0xff]
    %v7834 = vld [vmem:[#allocation4 + $0xd0] sm:$0xff]
    %v7835 = vld [vmem:[#allocation4 + $0xd8] sm:$0xff]
    %v7836 = vld [vmem:[#allocation4 + $0xe0] sm:$0xff]
    %v7837 = vld [vmem:[#allocation4 + $0xe8] sm:$0xff]
    %v7838 = vld [vmem:[#allocation4 + $0xf0] sm:$0xff]
    %7867 = vrot.lane.b32.xlu0 %v7811, 8
    %v7868 = vpop.permute.xlu0 %7867
    %7869 = vrot.lane.b32.xlu0 %v7812, 8
    %v7870 = vpop.permute.xlu0 %7869
    %7871 = vrot.lane.b32.xlu0 %v7813, 8
    %v7872 = vpop.permute.xlu0 %7871
    %7873 = vrot.lane.b32.xlu0 %v7814, 8
    %v7874 = vpop.permute.xlu0 %7873
    %7875 = vrot.lane.b32.xlu0 %v7815, 8
    %v7876 = vpop.permute.xlu0 %7875
    %7877 = vrot.lane.b32.xlu0 %v7816, 8
    %v7878 = vpop.permute.xlu0 %7877
    %7879 = vrot.lane.b32.xlu0 %v7817, 8
    %v7880 = vpop.permute.xlu0 %7879
    %7881 = vrot.lane.b32.xlu0 %v7818, 8
    %v7882 = vpop.permute.xlu0 %7881
    %7883 = vrot.lane.b32.xlu0 %v7819, 8
    %v7884 = vpop.permute.xlu0 %7883
    %7885 = vrot.lane.b32.xlu0 %v7820, 8
    %v7886 = vpop.permute.xlu0 %7885
    %7887 = vrot.lane.b32.xlu0 %v7821, 8
    %v7888 = vpop.permute.xlu0 %7887
    %7889 = vrot.lane.b32.xlu0 %v7822, 8
    %v7890 = vpop.permute.xlu0 %7889
    %7891 = vrot.lane.b32.xlu0 %v7823, 8
    %v7892 = vpop.permute.xlu0 %7891
    %7893 = vrot.lane.b32.xlu0 %v7824, 8
    %v7894 = vpop.permute.xlu0 %7893
    %7895 = vrot.lane.b32.xlu0 %v7825, 8
    %v7896 = vpop.permute.xlu0 %7895
    %7897 = vrot.lane.b32.xlu0 %v7826, 8
    %v7898 = vpop.permute.xlu0 %7897
    %7899 = vrot.lane.b32.xlu0 %v7827, 8
    %v7900 = vpop.permute.xlu0 %7899
    %7901 = vrot.lane.b32.xlu0 %v7828, 8
    %v7902 = vpop.permute.xlu0 %7901
    %7903 = vrot.lane.b32.xlu0 %v7829, 8
    %v7904 = vpop.permute.xlu0 %7903
    %7905 = vrot.lane.b32.xlu0 %v7830, 8
    %v7906 = vpop.permute.xlu0 %7905
    %7907 = vrot.lane.b32.xlu0 %v7831, 8
    %v7908 = vpop.permute.xlu0 %7907
    %7909 = vrot.lane.b32.xlu0 %v7832, 8
    %v7910 = vpop.permute.xlu0 %7909
    %7911 = vrot.lane.b32.xlu0 %v7833, 8
    %v7912 = vpop.permute.xlu0 %7911
    %7913 = vrot.lane.b32.xlu0 %v7834, 8
    %v7914 = vpop.permute.xlu0 %7913
    %7915 = vrot.lane.b32.xlu0 %v7835, 8
    %v7916 = vpop.permute.xlu0 %7915
    %7917 = vrot.lane.b32.xlu0 %v7836, 8
    %v7918 = vpop.permute.xlu0 %7917
    %7919 = vrot.lane.b32.xlu0 %v7837, 8
    %v7920 = vpop.permute.xlu0 %7919
    %7921 = vrot.lane.b32.xlu0 %v7838, 8
    %v7922 = vpop.permute.xlu0 %7921
    %vm7951 = vcmask 130112
    %7952 = vst.msk [vmem:[%s7781] sm:$0xff] %vm7951, %v7868
    %7953 = vst.msk [vmem:[%s7781 + $0x8] sm:$0xff] %vm7951, %v7870
    %7954 = vst.msk [vmem:[%s7781 + $0x10] sm:$0xff] %vm7951, %v7872
    %7955 = vst.msk [vmem:[%s7781 + $0x18] sm:$0xff] %vm7951, %v7874
    %7956 = vst.msk [vmem:[%s7781 + $0x20] sm:$0xff] %vm7951, %v7876
    %7957 = vst.msk [vmem:[%s7781 + $0x28] sm:$0xff] %vm7951, %v7878
    %7958 = vst.msk [vmem:[%s7781 + $0x30] sm:$0xff] %vm7951, %v7880
    %7959 = vst.msk [vmem:[%s7781 + $0x40] sm:$0xff] %vm7951, %v7882
    %7960 = vst.msk [vmem:[%s7781 + $0x48] sm:$0xff] %vm7951, %v7884
    %7961 = vst.msk [vmem:[%s7781 + $0x50] sm:$0xff] %vm7951, %v7886
    %7962 = vst.msk [vmem:[%s7781 + $0x58] sm:$0xff] %vm7951, %v7888
    %7963 = vst.msk [vmem:[%s7781 + $0x60] sm:$0xff] %vm7951, %v7890
    %7964 = vst.msk [vmem:[%s7781 + $0x68] sm:$0xff] %vm7951, %v7892
    %7965 = vst.msk [vmem:[%s7781 + $0x70] sm:$0xff] %vm7951, %v7894
    %7966 = vst.msk [vmem:[%s7781 + $0x80] sm:$0xff] %vm7951, %v7896
    %7967 = vst.msk [vmem:[%s7781 + $0x88] sm:$0xff] %vm7951, %v7898
    %7968 = vst.msk [vmem:[%s7781 + $0x90] sm:$0xff] %vm7951, %v7900
    %7969 = vst.msk [vmem:[%s7781 + $0x98] sm:$0xff] %vm7951, %v7902
    %7970 = vst.msk [vmem:[%s7781 + $0xa0] sm:$0xff] %vm7951, %v7904
    %7971 = vst.msk [vmem:[%s7781 + $0xa8] sm:$0xff] %vm7951, %v7906
    %7972 = vst.msk [vmem:[%s7781 + $0xb0] sm:$0xff] %vm7951, %v7908
    %7973 = vst.msk [vmem:[%s7781 + $0xc0] sm:$0xff] %vm7951, %v7910
    %7974 = vst.msk [vmem:[%s7781 + $0xc8] sm:$0xff] %vm7951, %v7912
    %7975 = vst.msk [vmem:[%s7781 + $0xd0] sm:$0xff] %vm7951, %v7914
    %7976 = vst.msk [vmem:[%s7781 + $0xd8] sm:$0xff] %vm7951, %v7916
    %7977 = vst.msk [vmem:[%s7781 + $0xe0] sm:$0xff] %vm7951, %v7918
    %7978 = vst.msk [vmem:[%s7781 + $0xe8] sm:$0xff] %vm7951, %v7920
    %7979 = vst.msk [vmem:[%s7781 + $0xf0] sm:$0xff] %vm7951, %v7922
    %v7980 = vld [vmem:[#allocation4 + $0x1] sm:$0x7f]
    %v7981 = vld [vmem:[#allocation4 + $0x9] sm:$0x7f]
    %v7982 = vld [vmem:[#allocation4 + $0x11] sm:$0x7f]
    %v7983 = vld [vmem:[#allocation4 + $0x19] sm:$0x7f]
    %v7984 = vld [vmem:[#allocation4 + $0x21] sm:$0x7f]
    %v7985 = vld [vmem:[#allocation4 + $0x29] sm:$0x7f]
    %v7986 = vld [vmem:[#allocation4 + $0x31] sm:$0x7f]
    %v7987 = vld [vmem:[#allocation4 + $0x41] sm:$0x7f]
    %v7988 = vld [vmem:[#allocation4 + $0x49] sm:$0x7f]
    %v7989 = vld [vmem:[#allocation4 + $0x51] sm:$0x7f]
    %v7990 = vld [vmem:[#allocation4 + $0x59] sm:$0x7f]
    %v7991 = vld [vmem:[#allocation4 + $0x61] sm:$0x7f]
    %v7992 = vld [vmem:[#allocation4 + $0x69] sm:$0x7f]
    %v7993 = vld [vmem:[#allocation4 + $0x71] sm:$0x7f]
    %v7994 = vld [vmem:[#allocation4 + $0x81] sm:$0x7f]
    %v7995 = vld [vmem:[#allocation4 + $0x89] sm:$0x7f]
    %v7996 = vld [vmem:[#allocation4 + $0x91] sm:$0x7f]
    %v7997 = vld [vmem:[#allocation4 + $0x99] sm:$0x7f]
    %v7998 = vld [vmem:[#allocation4 + $0xa1] sm:$0x7f]
    %v7999 = vld [vmem:[#allocation4 + $0xa9] sm:$0x7f]
    %v8000 = vld [vmem:[#allocation4 + $0xb1] sm:$0x7f]
    %v8001 = vld [vmem:[#allocation4 + $0xc1] sm:$0x7f]
    %v8002 = vld [vmem:[#allocation4 + $0xc9] sm:$0x7f]
    %v8003 = vld [vmem:[#allocation4 + $0xd1] sm:$0x7f]
    %v8004 = vld [vmem:[#allocation4 + $0xd9] sm:$0x7f]
    %v8005 = vld [vmem:[#allocation4 + $0xe1] sm:$0x7f]
    %v8006 = vld [vmem:[#allocation4 + $0xe9] sm:$0x7f]
    %v8007 = vld [vmem:[#allocation4 + $0xf1] sm:$0x7f]
    %8036 = vrot.lane.b32.xlu0 %v7980, 16
    %v8037 = vpop.permute.xlu0 %8036
    %8038 = vrot.lane.b32.xlu0 %v7981, 16
    %v8039 = vpop.permute.xlu0 %8038
    %8040 = vrot.lane.b32.xlu0 %v7982, 16
    %v8041 = vpop.permute.xlu0 %8040
    %8042 = vrot.lane.b32.xlu0 %v7983, 16
    %v8043 = vpop.permute.xlu0 %8042
    %8044 = vrot.lane.b32.xlu0 %v7984, 16
    %v8045 = vpop.permute.xlu0 %8044
    %8046 = vrot.lane.b32.xlu0 %v7985, 16
    %v8047 = vpop.permute.xlu0 %8046
    %8048 = vrot.lane.b32.xlu0 %v7986, 16
    %v8049 = vpop.permute.xlu0 %8048
    %8050 = vrot.lane.b32.xlu0 %v7987, 16
    %v8051 = vpop.permute.xlu0 %8050
    %8052 = vrot.lane.b32.xlu0 %v7988, 16
    %v8053 = vpop.permute.xlu0 %8052
    %8054 = vrot.lane.b32.xlu0 %v7989, 16
    %v8055 = vpop.permute.xlu0 %8054
    %8056 = vrot.lane.b32.xlu0 %v7990, 16
    %v8057 = vpop.permute.xlu0 %8056
    %8058 = vrot.lane.b32.xlu0 %v7991, 16
    %v8059 = vpop.permute.xlu0 %8058
    %8060 = vrot.lane.b32.xlu0 %v7992, 16
    %v8061 = vpop.permute.xlu0 %8060
    %8062 = vrot.lane.b32.xlu0 %v7993, 16
    %v8063 = vpop.permute.xlu0 %8062
    %8064 = vrot.lane.b32.xlu0 %v7994, 16
    %v8065 = vpop.permute.xlu0 %8064
    %8066 = vrot.lane.b32.xlu0 %v7995, 16
    %v8067 = vpop.permute.xlu0 %8066
    %8068 = vrot.lane.b32.xlu0 %v7996, 16
    %v8069 = vpop.permute.xlu0 %8068
    %8070 = vrot.lane.b32.xlu0 %v7997, 16
    %v8071 = vpop.permute.xlu0 %8070
    %8072 = vrot.lane.b32.xlu0 %v7998, 16
    %v8073 = vpop.permute.xlu0 %8072
    %8074 = vrot.lane.b32.xlu0 %v7999, 16
    %v8075 = vpop.permute.xlu0 %8074
    %8076 = vrot.lane.b32.xlu0 %v8000, 16
    %v8077 = vpop.permute.xlu0 %8076
    %8078 = vrot.lane.b32.xlu0 %v8001, 16
    %v8079 = vpop.permute.xlu0 %8078
    %8080 = vrot.lane.b32.xlu0 %v8002, 16
    %v8081 = vpop.permute.xlu0 %8080
    %8082 = vrot.lane.b32.xlu0 %v8003, 16
    %v8083 = vpop.permute.xlu0 %8082
    %8084 = vrot.lane.b32.xlu0 %v8004, 16
    %v8085 = vpop.permute.xlu0 %8084
    %8086 = vrot.lane.b32.xlu0 %v8005, 16
    %v8087 = vpop.permute.xlu0 %8086
    %8088 = vrot.lane.b32.xlu0 %v8006, 16
    %v8089 = vpop.permute.xlu0 %8088
    %8090 = vrot.lane.b32.xlu0 %v8007, 16
    %v8091 = vpop.permute.xlu0 %8090
    %vm8120 = vcmask 194688
    %8121 = vst.msk [vmem:[%s7781] sm:$0x7f] %vm8120, %v8037
    %8122 = vst.msk [vmem:[%s7781 + $0x8] sm:$0x7f] %vm8120, %v8039
    %8123 = vst.msk [vmem:[%s7781 + $0x10] sm:$0x7f] %vm8120, %v8041
    %8124 = vst.msk [vmem:[%s7781 + $0x18] sm:$0x7f] %vm8120, %v8043
    %8125 = vst.msk [vmem:[%s7781 + $0x20] sm:$0x7f] %vm8120, %v8045
    %8126 = vst.msk [vmem:[%s7781 + $0x28] sm:$0x7f] %vm8120, %v8047
    %8127 = vst.msk [vmem:[%s7781 + $0x30] sm:$0x7f] %vm8120, %v8049
    %8128 = vst.msk [vmem:[%s7781 + $0x40] sm:$0x7f] %vm8120, %v8051
    %8129 = vst.msk [vmem:[%s7781 + $0x48] sm:$0x7f] %vm8120, %v8053
    %8130 = vst.msk [vmem:[%s7781 + $0x50] sm:$0x7f] %vm8120, %v8055
    %8131 = vst.msk [vmem:[%s7781 + $0x58] sm:$0x7f] %vm8120, %v8057
    %8132 = vst.msk [vmem:[%s7781 + $0x60] sm:$0x7f] %vm8120, %v8059
    %8133 = vst.msk [vmem:[%s7781 + $0x68] sm:$0x7f] %vm8120, %v8061
    %8134 = vst.msk [vmem:[%s7781 + $0x70] sm:$0x7f] %vm8120, %v8063
    %8135 = vst.msk [vmem:[%s7781 + $0x80] sm:$0x7f] %vm8120, %v8065
    %8136 = vst.msk [vmem:[%s7781 + $0x88] sm:$0x7f] %vm8120, %v8067
    %8137 = vst.msk [vmem:[%s7781 + $0x90] sm:$0x7f] %vm8120, %v8069
    %8138 = vst.msk [vmem:[%s7781 + $0x98] sm:$0x7f] %vm8120, %v8071
    %8139 = vst.msk [vmem:[%s7781 + $0xa0] sm:$0x7f] %vm8120, %v8073
    %8140 = vst.msk [vmem:[%s7781 + $0xa8] sm:$0x7f] %vm8120, %v8075
    %8141 = vst.msk [vmem:[%s7781 + $0xb0] sm:$0x7f] %vm8120, %v8077
    %8142 = vst.msk [vmem:[%s7781 + $0xc0] sm:$0x7f] %vm8120, %v8079
    %8143 = vst.msk [vmem:[%s7781 + $0xc8] sm:$0x7f] %vm8120, %v8081
    %8144 = vst.msk [vmem:[%s7781 + $0xd0] sm:$0x7f] %vm8120, %v8083
    %8145 = vst.msk [vmem:[%s7781 + $0xd8] sm:$0x7f] %vm8120, %v8085
    %8146 = vst.msk [vmem:[%s7781 + $0xe0] sm:$0x7f] %vm8120, %v8087
    %8147 = vst.msk [vmem:[%s7781 + $0xe8] sm:$0x7f] %vm8120, %v8089
    %8148 = vst.msk [vmem:[%s7781 + $0xf0] sm:$0x7f] %vm8120, %v8091
    %v8149 = vld [vmem:[#allocation4] sm:$0x7f]
    %v8150 = vld [vmem:[#allocation4 + $0x8] sm:$0x7f]
    %v8151 = vld [vmem:[#allocation4 + $0x10] sm:$0x7f]
    %v8152 = vld [vmem:[#allocation4 + $0x18] sm:$0x7f]
    %v8153 = vld [vmem:[#allocation4 + $0x20] sm:$0x7f]
    %v8154 = vld [vmem:[#allocation4 + $0x28] sm:$0x7f]
    %v8155 = vld [vmem:[#allocation4 + $0x30] sm:$0x7f]
    %v8156 = vld [vmem:[#allocation4 + $0x38] sm:$0x7f]
    %v8157 = vld [vmem:[#allocation4 + $0x40] sm:$0x7f]
    %v8158 = vld [vmem:[#allocation4 + $0x48] sm:$0x7f]
    %v8159 = vld [vmem:[#allocation4 + $0x50] sm:$0x7f]
    %v8160 = vld [vmem:[#allocation4 + $0x58] sm:$0x7f]
    %v8161 = vld [vmem:[#allocation4 + $0x60] sm:$0x7f]
    %v8162 = vld [vmem:[#allocation4 + $0x68] sm:$0x7f]
    %v8163 = vld [vmem:[#allocation4 + $0x70] sm:$0x7f]
    %v8164 = vld [vmem:[#allocation4 + $0x78] sm:$0x7f]
    %v8165 = vld [vmem:[#allocation4 + $0x80] sm:$0x7f]
    %v8166 = vld [vmem:[#allocation4 + $0x88] sm:$0x7f]
    %v8167 = vld [vmem:[#allocation4 + $0x90] sm:$0x7f]
    %v8168 = vld [vmem:[#allocation4 + $0x98] sm:$0x7f]
    %v8169 = vld [vmem:[#allocation4 + $0xa0] sm:$0x7f]
    %v8170 = vld [vmem:[#allocation4 + $0xa8] sm:$0x7f]
    %v8171 = vld [vmem:[#allocation4 + $0xb0] sm:$0x7f]
    %v8172 = vld [vmem:[#allocation4 + $0xb8] sm:$0x7f]
    %v8173 = vld [vmem:[#allocation4 + $0xc0] sm:$0x7f]
    %v8174 = vld [vmem:[#allocation4 + $0xc8] sm:$0x7f]
    %v8175 = vld [vmem:[#allocation4 + $0xd0] sm:$0x7f]
    %v8176 = vld [vmem:[#allocation4 + $0xd8] sm:$0x7f]
    %v8177 = vld [vmem:[#allocation4 + $0xe0] sm:$0x7f]
    %v8178 = vld [vmem:[#allocation4 + $0xe8] sm:$0x7f]
    %v8179 = vld [vmem:[#allocation4 + $0xf0] sm:$0x7f]
    %v8180 = vld [vmem:[#allocation4 + $0xf8] sm:$0x7f]
    %8213 = vrot.lane.b32.xlu0 %v8149, 24
    %v8214 = vpop.permute.xlu0 %8213
    %8215 = vrot.lane.b32.xlu0 %v8150, 24
    %v8216 = vpop.permute.xlu0 %8215
    %8217 = vrot.lane.b32.xlu0 %v8151, 24
    %v8218 = vpop.permute.xlu0 %8217
    %8219 = vrot.lane.b32.xlu0 %v8152, 24
    %v8220 = vpop.permute.xlu0 %8219
    %8221 = vrot.lane.b32.xlu0 %v8153, 24
    %v8222 = vpop.permute.xlu0 %8221
    %8223 = vrot.lane.b32.xlu0 %v8154, 24
    %v8224 = vpop.permute.xlu0 %8223
    %8225 = vrot.lane.b32.xlu0 %v8155, 24
    %v8226 = vpop.permute.xlu0 %8225
    %8227 = vrot.lane.b32.xlu0 %v8156, 24
    %v8228 = vpop.permute.xlu0 %8227
    %8229 = vrot.lane.b32.xlu0 %v8157, 24
    %v8230 = vpop.permute.xlu0 %8229
    %8231 = vrot.lane.b32.xlu0 %v8158, 24
    %v8232 = vpop.permute.xlu0 %8231
    %8233 = vrot.lane.b32.xlu0 %v8159, 24
    %v8234 = vpop.permute.xlu0 %8233
    %8235 = vrot.lane.b32.xlu0 %v8160, 24
    %v8236 = vpop.permute.xlu0 %8235
    %8237 = vrot.lane.b32.xlu0 %v8161, 24
    %v8238 = vpop.permute.xlu0 %8237
    %8239 = vrot.lane.b32.xlu0 %v8162, 24
    %v8240 = vpop.permute.xlu0 %8239
    %8241 = vrot.lane.b32.xlu0 %v8163, 24
    %v8242 = vpop.permute.xlu0 %8241
    %8243 = vrot.lane.b32.xlu0 %v8164, 24
    %v8244 = vpop.permute.xlu0 %8243
    %8245 = vrot.lane.b32.xlu0 %v8165, 24
    %v8246 = vpop.permute.xlu0 %8245
    %8247 = vrot.lane.b32.xlu0 %v8166, 24
    %v8248 = vpop.permute.xlu0 %8247
    %8249 = vrot.lane.b32.xlu0 %v8167, 24
    %v8250 = vpop.permute.xlu0 %8249
    %8251 = vrot.lane.b32.xlu0 %v8168, 24
    %v8252 = vpop.permute.xlu0 %8251
    %8253 = vrot.lane.b32.xlu0 %v8169, 24
    %v8254 = vpop.permute.xlu0 %8253
    %8255 = vrot.lane.b32.xlu0 %v8170, 24
    %v8256 = vpop.permute.xlu0 %8255
    %8257 = vrot.lane.b32.xlu0 %v8171, 24
    %v8258 = vpop.permute.xlu0 %8257
    %8259 = vrot.lane.b32.xlu0 %v8172, 24
    %v8260 = vpop.permute.xlu0 %8259
    %8261 = vrot.lane.b32.xlu0 %v8173, 24
    %v8262 = vpop.permute.xlu0 %8261
    %8263 = vrot.lane.b32.xlu0 %v8174, 24
    %v8264 = vpop.permute.xlu0 %8263
    %8265 = vrot.lane.b32.xlu0 %v8175, 24
    %v8266 = vpop.permute.xlu0 %8265
    %8267 = vrot.lane.b32.xlu0 %v8176, 24
    %v8268 = vpop.permute.xlu0 %8267
    %8269 = vrot.lane.b32.xlu0 %v8177, 24
    %v8270 = vpop.permute.xlu0 %8269
    %8271 = vrot.lane.b32.xlu0 %v8178, 24
    %v8272 = vpop.permute.xlu0 %8271
    %8273 = vrot.lane.b32.xlu0 %v8179, 24
    %v8274 = vpop.permute.xlu0 %8273
    %8275 = vrot.lane.b32.xlu0 %v8180, 24
    %v8276 = vpop.permute.xlu0 %8275
    %vm8309 = vcmask 260288
    %8310 = vst.msk [vmem:[#allocation5 + $0x1] sm:$0x7f] %vm8309, %v8214
    %8311 = vst.msk [vmem:[#allocation5 + $0x9] sm:$0x7f] %vm8309, %v8216
    %8312 = vst.msk [vmem:[#allocation5 + $0x11] sm:$0x7f] %vm8309, %v8218
    %8313 = vst.msk [vmem:[#allocation5 + $0x19] sm:$0x7f] %vm8309, %v8220
    %8314 = vst.msk [vmem:[#allocation5 + $0x21] sm:$0x7f] %vm8309, %v8222
    %8315 = vst.msk [vmem:[#allocation5 + $0x29] sm:$0x7f] %vm8309, %v8224
    %8316 = vst.msk [vmem:[#allocation5 + $0x31] sm:$0x7f] %vm8309, %v8226
    %8317 = vst.msk [vmem:[#allocation5 + $0x39] sm:$0x7f] %vm8309, %v8228
    %8318 = vst.msk [vmem:[#allocation5 + $0x41] sm:$0x7f] %vm8309, %v8230
    %8319 = vst.msk [vmem:[#allocation5 + $0x49] sm:$0x7f] %vm8309, %v8232
    %8320 = vst.msk [vmem:[#allocation5 + $0x51] sm:$0x7f] %vm8309, %v8234
    %8321 = vst.msk [vmem:[#allocation5 + $0x59] sm:$0x7f] %vm8309, %v8236
    %8322 = vst.msk [vmem:[#allocation5 + $0x61] sm:$0x7f] %vm8309, %v8238
    %8323 = vst.msk [vmem:[#allocation5 + $0x69] sm:$0x7f] %vm8309, %v8240
    %8324 = vst.msk [vmem:[#allocation5 + $0x71] sm:$0x7f] %vm8309, %v8242
    %8325 = vst.msk [vmem:[#allocation5 + $0x79] sm:$0x7f] %vm8309, %v8244
    %8326 = vst.msk [vmem:[#allocation5 + $0x81] sm:$0x7f] %vm8309, %v8246
    %8327 = vst.msk [vmem:[#allocation5 + $0x89] sm:$0x7f] %vm8309, %v8248
    %8328 = vst.msk [vmem:[#allocation5 + $0x91] sm:$0x7f] %vm8309, %v8250
    %8329 = vst.msk [vmem:[#allocation5 + $0x99] sm:$0x7f] %vm8309, %v8252
    %8330 = vst.msk [vmem:[#allocation5 + $0xa1] sm:$0x7f] %vm8309, %v8254
    %8331 = vst.msk [vmem:[#allocation5 + $0xa9] sm:$0x7f] %vm8309, %v8256
    %8332 = vst.msk [vmem:[#allocation5 + $0xb1] sm:$0x7f] %vm8309, %v8258
    %8333 = vst.msk [vmem:[#allocation5 + $0xb9] sm:$0x7f] %vm8309, %v8260
    %8334 = vst.msk [vmem:[#allocation5 + $0xc1] sm:$0x7f] %vm8309, %v8262
    %8335 = vst.msk [vmem:[#allocation5 + $0xc9] sm:$0x7f] %vm8309, %v8264
    %8336 = vst.msk [vmem:[#allocation5 + $0xd1] sm:$0x7f] %vm8309, %v8266
    %8337 = vst.msk [vmem:[#allocation5 + $0xd9] sm:$0x7f] %vm8309, %v8268
    %8338 = vst.msk [vmem:[#allocation5 + $0xe1] sm:$0x7f] %vm8309, %v8270
    %8339 = vst.msk [vmem:[#allocation5 + $0xe9] sm:$0x7f] %vm8309, %v8272
    %8340 = vst.msk [vmem:[#allocation5 + $0xf1] sm:$0x7f] %vm8309, %v8274
    %8341 = vst.msk [vmem:[#allocation5 + $0xf9] sm:$0x7f] %vm8309, %v8276
    %v8342 = vld [vmem:[#allocation4] sm:$0xff]
    %v8343 = vld [vmem:[#allocation4 + $0x8] sm:$0xff]
    %v8344 = vld [vmem:[#allocation4 + $0x10] sm:$0xff]
    %v8345 = vld [vmem:[#allocation4 + $0x18] sm:$0xff]
    %v8346 = vld [vmem:[#allocation4 + $0x20] sm:$0xff]
    %v8347 = vld [vmem:[#allocation4 + $0x28] sm:$0xff]
    %v8348 = vld [vmem:[#allocation4 + $0x30] sm:$0xff]
    %v8349 = vld [vmem:[#allocation4 + $0x38] sm:$0xff]
    %v8350 = vld [vmem:[#allocation4 + $0x40] sm:$0xff]
    %v8351 = vld [vmem:[#allocation4 + $0x48] sm:$0xff]
    %v8352 = vld [vmem:[#allocation4 + $0x50] sm:$0xff]
    %v8353 = vld [vmem:[#allocation4 + $0x58] sm:$0xff]
    %v8354 = vld [vmem:[#allocation4 + $0x60] sm:$0xff]
    %v8355 = vld [vmem:[#allocation4 + $0x68] sm:$0xff]
    %v8356 = vld [vmem:[#allocation4 + $0x70] sm:$0xff]
    %v8357 = vld [vmem:[#allocation4 + $0x78] sm:$0xff]
    %v8358 = vld [vmem:[#allocation4 + $0x80] sm:$0xff]
    %v8359 = vld [vmem:[#allocation4 + $0x88] sm:$0xff]
    %v8360 = vld [vmem:[#allocation4 + $0x90] sm:$0xff]
    %v8361 = vld [vmem:[#allocation4 + $0x98] sm:$0xff]
    %v8362 = vld [vmem:[#allocation4 + $0xa0] sm:$0xff]
    %v8363 = vld [vmem:[#allocation4 + $0xa8] sm:$0xff]
    %v8364 = vld [vmem:[#allocation4 + $0xb0] sm:$0xff]
    %v8365 = vld [vmem:[#allocation4 + $0xb8] sm:$0xff]
    %v8366 = vld [vmem:[#allocation4 + $0xc0] sm:$0xff]
    %v8367 = vld [vmem:[#allocation4 + $0xc8] sm:$0xff]
    %v8368 = vld [vmem:[#allocation4 + $0xd0] sm:$0xff]
    %v8369 = vld [vmem:[#allocation4 + $0xd8] sm:$0xff]
    %v8370 = vld [vmem:[#allocation4 + $0xe0] sm:$0xff]
    %v8371 = vld [vmem:[#allocation4 + $0xe8] sm:$0xff]
    %v8372 = vld [vmem:[#allocation4 + $0xf0] sm:$0xff]
    %v8373 = vld [vmem:[#allocation4 + $0xf8] sm:$0xff]
    %8406 = vrot.lane.b32.xlu0 %v8342, 32
    %v8407 = vpop.permute.xlu0 %8406
    %8408 = vrot.lane.b32.xlu0 %v8343, 32
    %v8409 = vpop.permute.xlu0 %8408
    %8410 = vrot.lane.b32.xlu0 %v8344, 32
    %v8411 = vpop.permute.xlu0 %8410
    %8412 = vrot.lane.b32.xlu0 %v8345, 32
    %v8413 = vpop.permute.xlu0 %8412
    %8414 = vrot.lane.b32.xlu0 %v8346, 32
    %v8415 = vpop.permute.xlu0 %8414
    %8416 = vrot.lane.b32.xlu0 %v8347, 32
    %v8417 = vpop.permute.xlu0 %8416
    %8418 = vrot.lane.b32.xlu0 %v8348, 32
    %v8419 = vpop.permute.xlu0 %8418
    %8420 = vrot.lane.b32.xlu0 %v8349, 32
    %v8421 = vpop.permute.xlu0 %8420
    %8422 = vrot.lane.b32.xlu0 %v8350, 32
    %v8423 = vpop.permute.xlu0 %8422
    %8424 = vrot.lane.b32.xlu0 %v8351, 32
    %v8425 = vpop.permute.xlu0 %8424
    %8426 = vrot.lane.b32.xlu0 %v8352, 32
    %v8427 = vpop.permute.xlu0 %8426
    %8428 = vrot.lane.b32.xlu0 %v8353, 32
    %v8429 = vpop.permute.xlu0 %8428
    %8430 = vrot.lane.b32.xlu0 %v8354, 32
    %v8431 = vpop.permute.xlu0 %8430
    %8432 = vrot.lane.b32.xlu0 %v8355, 32
    %v8433 = vpop.permute.xlu0 %8432
    %8434 = vrot.lane.b32.xlu0 %v8356, 32
    %v8435 = vpop.permute.xlu0 %8434
    %8436 = vrot.lane.b32.xlu0 %v8357, 32
    %v8437 = vpop.permute.xlu0 %8436
    %8438 = vrot.lane.b32.xlu0 %v8358, 32
    %v8439 = vpop.permute.xlu0 %8438
    %8440 = vrot.lane.b32.xlu0 %v8359, 32
    %v8441 = vpop.permute.xlu0 %8440
    %8442 = vrot.lane.b32.xlu0 %v8360, 32
    %v8443 = vpop.permute.xlu0 %8442
    %8444 = vrot.lane.b32.xlu0 %v8361, 32
    %v8445 = vpop.permute.xlu0 %8444
    %8446 = vrot.lane.b32.xlu0 %v8362, 32
    %v8447 = vpop.permute.xlu0 %8446
    %8448 = vrot.lane.b32.xlu0 %v8363, 32
    %v8449 = vpop.permute.xlu0 %8448
    %8450 = vrot.lane.b32.xlu0 %v8364, 32
    %v8451 = vpop.permute.xlu0 %8450
    %8452 = vrot.lane.b32.xlu0 %v8365, 32
    %v8453 = vpop.permute.xlu0 %8452
    %8454 = vrot.lane.b32.xlu0 %v8366, 32
    %v8455 = vpop.permute.xlu0 %8454
    %8456 = vrot.lane.b32.xlu0 %v8367, 32
    %v8457 = vpop.permute.xlu0 %8456
    %8458 = vrot.lane.b32.xlu0 %v8368, 32
    %v8459 = vpop.permute.xlu0 %8458
    %8460 = vrot.lane.b32.xlu0 %v8369, 32
    %v8461 = vpop.permute.xlu0 %8460
    %8462 = vrot.lane.b32.xlu0 %v8370, 32
    %v8463 = vpop.permute.xlu0 %8462
    %8464 = vrot.lane.b32.xlu0 %v8371, 32
    %v8465 = vpop.permute.xlu0 %8464
    %8466 = vrot.lane.b32.xlu0 %v8372, 32
    %v8467 = vpop.permute.xlu0 %8466
    %8468 = vrot.lane.b32.xlu0 %v8373, 32
    %v8469 = vpop.permute.xlu0 %8468
    %vm8502 = vcmask 326912
    %8503 = vst.msk [vmem:[#allocation5] sm:$0xff] %vm8502, %v8407
    %8504 = vst.msk [vmem:[#allocation5 + $0x8] sm:$0xff] %vm8502, %v8409
    %8505 = vst.msk [vmem:[#allocation5 + $0x10] sm:$0xff] %vm8502, %v8411
    %8506 = vst.msk [vmem:[#allocation5 + $0x18] sm:$0xff] %vm8502, %v8413
    %8507 = vst.msk [vmem:[#allocation5 + $0x20] sm:$0xff] %vm8502, %v8415
    %8508 = vst.msk [vmem:[#allocation5 + $0x28] sm:$0xff] %vm8502, %v8417
    %8509 = vst.msk [vmem:[#allocation5 + $0x30] sm:$0xff] %vm8502, %v8419
    %8510 = vst.msk [vmem:[#allocation5 + $0x38] sm:$0xff] %vm8502, %v8421
    %8511 = vst.msk [vmem:[#allocation5 + $0x40] sm:$0xff] %vm8502, %v8423
    %8512 = vst.msk [vmem:[#allocation5 + $0x48] sm:$0xff] %vm8502, %v8425
    %8513 = vst.msk [vmem:[#allocation5 + $0x50] sm:$0xff] %vm8502, %v8427
    %8514 = vst.msk [vmem:[#allocation5 + $0x58] sm:$0xff] %vm8502, %v8429
    %8515 = vst.msk [vmem:[#allocation5 + $0x60] sm:$0xff] %vm8502, %v8431
    %8516 = vst.msk [vmem:[#allocation5 + $0x68] sm:$0xff] %vm8502, %v8433
    %8517 = vst.msk [vmem:[#allocation5 + $0x70] sm:$0xff] %vm8502, %v8435
    %8518 = vst.msk [vmem:[#allocation5 + $0x78] sm:$0xff] %vm8502, %v8437
    %8519 = vst.msk [vmem:[#allocation5 + $0x80] sm:$0xff] %vm8502, %v8439
    %8520 = vst.msk [vmem:[#allocation5 + $0x88] sm:$0xff] %vm8502, %v8441
    %8521 = vst.msk [vmem:[#allocation5 + $0x90] sm:$0xff] %vm8502, %v8443
    %8522 = vst.msk [vmem:[#allocation5 + $0x98] sm:$0xff] %vm8502, %v8445
    %8523 = vst.msk [vmem:[#allocation5 + $0xa0] sm:$0xff] %vm8502, %v8447
    %8524 = vst.msk [vmem:[#allocation5 + $0xa8] sm:$0xff] %vm8502, %v8449
    %8525 = vst.msk [vmem:[#allocation5 + $0xb0] sm:$0xff] %vm8502, %v8451
    %8526 = vst.msk [vmem:[#allocation5 + $0xb8] sm:$0xff] %vm8502, %v8453
    %8527 = vst.msk [vmem:[#allocation5 + $0xc0] sm:$0xff] %vm8502, %v8455
    %8528 = vst.msk [vmem:[#allocation5 + $0xc8] sm:$0xff] %vm8502, %v8457
    %8529 = vst.msk [vmem:[#allocation5 + $0xd0] sm:$0xff] %vm8502, %v8459
    %8530 = vst.msk [vmem:[#allocation5 + $0xd8] sm:$0xff] %vm8502, %v8461
    %8531 = vst.msk [vmem:[#allocation5 + $0xe0] sm:$0xff] %vm8502, %v8463
    %8532 = vst.msk [vmem:[#allocation5 + $0xe8] sm:$0xff] %vm8502, %v8465
    %8533 = vst.msk [vmem:[#allocation5 + $0xf0] sm:$0xff] %vm8502, %v8467
    %8534 = vst.msk [vmem:[#allocation5 + $0xf8] sm:$0xff] %vm8502, %v8469
    %v8535 = vld [vmem:[#allocation4 + $0x1] sm:$0x7f]
    %v8536 = vld [vmem:[#allocation4 + $0x9] sm:$0x7f]
    %v8537 = vld [vmem:[#allocation4 + $0x11] sm:$0x7f]
    %v8538 = vld [vmem:[#allocation4 + $0x19] sm:$0x7f]
    %v8539 = vld [vmem:[#allocation4 + $0x21] sm:$0x7f]
    %v8540 = vld [vmem:[#allocation4 + $0x29] sm:$0x7f]
    %v8541 = vld [vmem:[#allocation4 + $0x31] sm:$0x7f]
    %v8542 = vld [vmem:[#allocation4 + $0x39] sm:$0x7f]
    %v8543 = vld [vmem:[#allocation4 + $0x41] sm:$0x7f]
    %v8544 = vld [vmem:[#allocation4 + $0x49] sm:$0x7f]
    %v8545 = vld [vmem:[#allocation4 + $0x51] sm:$0x7f]
    %v8546 = vld [vmem:[#allocation4 + $0x59] sm:$0x7f]
    %v8547 = vld [vmem:[#allocation4 + $0x61] sm:$0x7f]
    %v8548 = vld [vmem:[#allocation4 + $0x69] sm:$0x7f]
    %v8549 = vld [vmem:[#allocation4 + $0x71] sm:$0x7f]
    %v8550 = vld [vmem:[#allocation4 + $0x79] sm:$0x7f]
    %v8551 = vld [vmem:[#allocation4 + $0x81] sm:$0x7f]
    %v8552 = vld [vmem:[#allocation4 + $0x89] sm:$0x7f]
    %v8553 = vld [vmem:[#allocation4 + $0x91] sm:$0x7f]
    %v8554 = vld [vmem:[#allocation4 + $0x99] sm:$0x7f]
    %v8555 = vld [vmem:[#allocation4 + $0xa1] sm:$0x7f]
    %v8556 = vld [vmem:[#allocation4 + $0xa9] sm:$0x7f]
    %v8557 = vld [vmem:[#allocation4 + $0xb1] sm:$0x7f]
    %v8558 = vld [vmem:[#allocation4 + $0xb9] sm:$0x7f]
    %v8559 = vld [vmem:[#allocation4 + $0xc1] sm:$0x7f]
    %v8560 = vld [vmem:[#allocation4 + $0xc9] sm:$0x7f]
    %v8561 = vld [vmem:[#allocation4 + $0xd1] sm:$0x7f]
    %v8562 = vld [vmem:[#allocation4 + $0xd9] sm:$0x7f]
    %v8563 = vld [vmem:[#allocation4 + $0xe1] sm:$0x7f]
    %v8564 = vld [vmem:[#allocation4 + $0xe9] sm:$0x7f]
    %v8565 = vld [vmem:[#allocation4 + $0xf1] sm:$0x7f]
    %v8566 = vld [vmem:[#allocation4 + $0xf9] sm:$0x7f]
    %8599 = vrot.lane.b32.xlu0 %v8535, 40
    %v8600 = vpop.permute.xlu0 %8599
    %8601 = vrot.lane.b32.xlu0 %v8536, 40
    %v8602 = vpop.permute.xlu0 %8601
    %8603 = vrot.lane.b32.xlu0 %v8537, 40
    %v8604 = vpop.permute.xlu0 %8603
    %8605 = vrot.lane.b32.xlu0 %v8538, 40
    %v8606 = vpop.permute.xlu0 %8605
    %8607 = vrot.lane.b32.xlu0 %v8539, 40
    %v8608 = vpop.permute.xlu0 %8607
    %8609 = vrot.lane.b32.xlu0 %v8540, 40
    %v8610 = vpop.permute.xlu0 %8609
    %8611 = vrot.lane.b32.xlu0 %v8541, 40
    %v8612 = vpop.permute.xlu0 %8611
    %8613 = vrot.lane.b32.xlu0 %v8542, 40
    %v8614 = vpop.permute.xlu0 %8613
    %8615 = vrot.lane.b32.xlu0 %v8543, 40
    %v8616 = vpop.permute.xlu0 %8615
    %8617 = vrot.lane.b32.xlu0 %v8544, 40
    %v8618 = vpop.permute.xlu0 %8617
    %8619 = vrot.lane.b32.xlu0 %v8545, 40
    %v8620 = vpop.permute.xlu0 %8619
    %8621 = vrot.lane.b32.xlu0 %v8546, 40
    %v8622 = vpop.permute.xlu0 %8621
    %8623 = vrot.lane.b32.xlu0 %v8547, 40
    %v8624 = vpop.permute.xlu0 %8623
    %8625 = vrot.lane.b32.xlu0 %v8548, 40
    %v8626 = vpop.permute.xlu0 %8625
    %8627 = vrot.lane.b32.xlu0 %v8549, 40
    %v8628 = vpop.permute.xlu0 %8627
    %8629 = vrot.lane.b32.xlu0 %v8550, 40
    %v8630 = vpop.permute.xlu0 %8629
    %8631 = vrot.lane.b32.xlu0 %v8551, 40
    %v8632 = vpop.permute.xlu0 %8631
    %8633 = vrot.lane.b32.xlu0 %v8552, 40
    %v8634 = vpop.permute.xlu0 %8633
    %8635 = vrot.lane.b32.xlu0 %v8553, 40
    %v8636 = vpop.permute.xlu0 %8635
    %8637 = vrot.lane.b32.xlu0 %v8554, 40
    %v8638 = vpop.permute.xlu0 %8637
    %8639 = vrot.lane.b32.xlu0 %v8555, 40
    %v8640 = vpop.permute.xlu0 %8639
    %8641 = vrot.lane.b32.xlu0 %v8556, 40
    %v8642 = vpop.permute.xlu0 %8641
    %8643 = vrot.lane.b32.xlu0 %v8557, 40
    %v8644 = vpop.permute.xlu0 %8643
    %8645 = vrot.lane.b32.xlu0 %v8558, 40
    %v8646 = vpop.permute.xlu0 %8645
    %8647 = vrot.lane.b32.xlu0 %v8559, 40
    %v8648 = vpop.permute.xlu0 %8647
    %8649 = vrot.lane.b32.xlu0 %v8560, 40
    %v8650 = vpop.permute.xlu0 %8649
    %8651 = vrot.lane.b32.xlu0 %v8561, 40
    %v8652 = vpop.permute.xlu0 %8651
    %8653 = vrot.lane.b32.xlu0 %v8562, 40
    %v8654 = vpop.permute.xlu0 %8653
    %8655 = vrot.lane.b32.xlu0 %v8563, 40
    %v8656 = vpop.permute.xlu0 %8655
    %8657 = vrot.lane.b32.xlu0 %v8564, 40
    %v8658 = vpop.permute.xlu0 %8657
    %8659 = vrot.lane.b32.xlu0 %v8565, 40
    %v8660 = vpop.permute.xlu0 %8659
    %8661 = vrot.lane.b32.xlu0 %v8566, 40
    %v8662 = vpop.permute.xlu0 %8661
    %vm8695 = vcmask 391488
    %8696 = vst.msk [vmem:[#allocation5] sm:$0x7f] %vm8695, %v8600
    %8697 = vst.msk [vmem:[#allocation5 + $0x8] sm:$0x7f] %vm8695, %v8602
    %8698 = vst.msk [vmem:[#allocation5 + $0x10] sm:$0x7f] %vm8695, %v8604
    %8699 = vst.msk [vmem:[#allocation5 + $0x18] sm:$0x7f] %vm8695, %v8606
    %8700 = vst.msk [vmem:[#allocation5 + $0x20] sm:$0x7f] %vm8695, %v8608
    %8701 = vst.msk [vmem:[#allocation5 + $0x28] sm:$0x7f] %vm8695, %v8610
    %8702 = vst.msk [vmem:[#allocation5 + $0x30] sm:$0x7f] %vm8695, %v8612
    %8703 = vst.msk [vmem:[#allocation5 + $0x38] sm:$0x7f] %vm8695, %v8614
    %8704 = vst.msk [vmem:[#allocation5 + $0x40] sm:$0x7f] %vm8695, %v8616
    %8705 = vst.msk [vmem:[#allocation5 + $0x48] sm:$0x7f] %vm8695, %v8618
    %8706 = vst.msk [vmem:[#allocation5 + $0x50] sm:$0x7f] %vm8695, %v8620
    %8707 = vst.msk [vmem:[#allocation5 + $0x58] sm:$0x7f] %vm8695, %v8622
    %8708 = vst.msk [vmem:[#allocation5 + $0x60] sm:$0x7f] %vm8695, %v8624
    %8709 = vst.msk [vmem:[#allocation5 + $0x68] sm:$0x7f] %vm8695, %v8626
    %8710 = vst.msk [vmem:[#allocation5 + $0x70] sm:$0x7f] %vm8695, %v8628
    %8711 = vst.msk [vmem:[#allocation5 + $0x78] sm:$0x7f] %vm8695, %v8630
    %8712 = vst.msk [vmem:[#allocation5 + $0x80] sm:$0x7f] %vm8695, %v8632
    %8713 = vst.msk [vmem:[#allocation5 + $0x88] sm:$0x7f] %vm8695, %v8634
    %8714 = vst.msk [vmem:[#allocation5 + $0x90] sm:$0x7f] %vm8695, %v8636
    %8715 = vst.msk [vmem:[#allocation5 + $0x98] sm:$0x7f] %vm8695, %v8638
    %8716 = vst.msk [vmem:[#allocation5 + $0xa0] sm:$0x7f] %vm8695, %v8640
    %8717 = vst.msk [vmem:[#allocation5 + $0xa8] sm:$0x7f] %vm8695, %v8642
    %8718 = vst.msk [vmem:[#allocation5 + $0xb0] sm:$0x7f] %vm8695, %v8644
    %8719 = vst.msk [vmem:[#allocation5 + $0xb8] sm:$0x7f] %vm8695, %v8646
    %8720 = vst.msk [vmem:[#allocation5 + $0xc0] sm:$0x7f] %vm8695, %v8648
    %8721 = vst.msk [vmem:[#allocation5 + $0xc8] sm:$0x7f] %vm8695, %v8650
    %8722 = vst.msk [vmem:[#allocation5 + $0xd0] sm:$0x7f] %vm8695, %v8652
    %8723 = vst.msk [vmem:[#allocation5 + $0xd8] sm:$0x7f] %vm8695, %v8654
    %8724 = vst.msk [vmem:[#allocation5 + $0xe0] sm:$0x7f] %vm8695, %v8656
    %8725 = vst.msk [vmem:[#allocation5 + $0xe8] sm:$0x7f] %vm8695, %v8658
    %8726 = vst.msk [vmem:[#allocation5 + $0xf0] sm:$0x7f] %vm8695, %v8660
    %8727 = vst.msk [vmem:[#allocation5 + $0xf8] sm:$0x7f] %vm8695, %v8662
    %s8728 = scalar_lea.vmem [#allocation4], 8
    %v8729 = vld [vmem:[%s8728] sm:$0x7f]
    %v8730 = vld [vmem:[%s8728 + $0x8] sm:$0x7f]
    %v8731 = vld [vmem:[%s8728 + $0x10] sm:$0x7f]
    %v8732 = vld [vmem:[%s8728 + $0x18] sm:$0x7f]
    %v8733 = vld [vmem:[%s8728 + $0x20] sm:$0x7f]
    %v8734 = vld [vmem:[%s8728 + $0x28] sm:$0x7f]
    %v8735 = vld [vmem:[%s8728 + $0x30] sm:$0x7f]
    %v8736 = vld [vmem:[%s8728 + $0x40] sm:$0x7f]
    %v8737 = vld [vmem:[%s8728 + $0x48] sm:$0x7f]
    %v8738 = vld [vmem:[%s8728 + $0x50] sm:$0x7f]
    %v8739 = vld [vmem:[%s8728 + $0x58] sm:$0x7f]
    %v8740 = vld [vmem:[%s8728 + $0x60] sm:$0x7f]
    %v8741 = vld [vmem:[%s8728 + $0x68] sm:$0x7f]
    %v8742 = vld [vmem:[%s8728 + $0x70] sm:$0x7f]
    %v8743 = vld [vmem:[%s8728 + $0x80] sm:$0x7f]
    %v8744 = vld [vmem:[%s8728 + $0x88] sm:$0x7f]
    %v8745 = vld [vmem:[%s8728 + $0x90] sm:$0x7f]
    %v8746 = vld [vmem:[%s8728 + $0x98] sm:$0x7f]
    %v8747 = vld [vmem:[%s8728 + $0xa0] sm:$0x7f]
    %v8748 = vld [vmem:[%s8728 + $0xa8] sm:$0x7f]
    %v8749 = vld [vmem:[%s8728 + $0xb0] sm:$0x7f]
    %v8750 = vld [vmem:[%s8728 + $0xc0] sm:$0x7f]
    %v8751 = vld [vmem:[%s8728 + $0xc8] sm:$0x7f]
    %v8752 = vld [vmem:[%s8728 + $0xd0] sm:$0x7f]
    %v8753 = vld [vmem:[%s8728 + $0xd8] sm:$0x7f]
    %v8754 = vld [vmem:[%s8728 + $0xe0] sm:$0x7f]
    %v8755 = vld [vmem:[%s8728 + $0xe8] sm:$0x7f]
    %v8756 = vld [vmem:[%s8728 + $0xf0] sm:$0x7f]
    %8785 = vrot.lane.b32.xlu0 %v8729, 48
    %v8786 = vpop.permute.xlu0 %8785
    %8787 = vrot.lane.b32.xlu0 %v8730, 48
    %v8788 = vpop.permute.xlu0 %8787
    %8789 = vrot.lane.b32.xlu0 %v8731, 48
    %v8790 = vpop.permute.xlu0 %8789
    %8791 = vrot.lane.b32.xlu0 %v8732, 48
    %v8792 = vpop.permute.xlu0 %8791
    %8793 = vrot.lane.b32.xlu0 %v8733, 48
    %v8794 = vpop.permute.xlu0 %8793
    %8795 = vrot.lane.b32.xlu0 %v8734, 48
    %v8796 = vpop.permute.xlu0 %8795
    %8797 = vrot.lane.b32.xlu0 %v8735, 48
    %v8798 = vpop.permute.xlu0 %8797
    %8799 = vrot.lane.b32.xlu0 %v8736, 48
    %v8800 = vpop.permute.xlu0 %8799
    %8801 = vrot.lane.b32.xlu0 %v8737, 48
    %v8802 = vpop.permute.xlu0 %8801
    %8803 = vrot.lane.b32.xlu0 %v8738, 48
    %v8804 = vpop.permute.xlu0 %8803
    %8805 = vrot.lane.b32.xlu0 %v8739, 48
    %v8806 = vpop.permute.xlu0 %8805
    %8807 = vrot.lane.b32.xlu0 %v8740, 48
    %v8808 = vpop.permute.xlu0 %8807
    %8809 = vrot.lane.b32.xlu0 %v8741, 48
    %v8810 = vpop.permute.xlu0 %8809
    %8811 = vrot.lane.b32.xlu0 %v8742, 48
    %v8812 = vpop.permute.xlu0 %8811
    %8813 = vrot.lane.b32.xlu0 %v8743, 48
    %v8814 = vpop.permute.xlu0 %8813
    %8815 = vrot.lane.b32.xlu0 %v8744, 48
    %v8816 = vpop.permute.xlu0 %8815
    %8817 = vrot.lane.b32.xlu0 %v8745, 48
    %v8818 = vpop.permute.xlu0 %8817
    %8819 = vrot.lane.b32.xlu0 %v8746, 48
    %v8820 = vpop.permute.xlu0 %8819
    %8821 = vrot.lane.b32.xlu0 %v8747, 48
    %v8822 = vpop.permute.xlu0 %8821
    %8823 = vrot.lane.b32.xlu0 %v8748, 48
    %v8824 = vpop.permute.xlu0 %8823
    %8825 = vrot.lane.b32.xlu0 %v8749, 48
    %v8826 = vpop.permute.xlu0 %8825
    %8827 = vrot.lane.b32.xlu0 %v8750, 48
    %v8828 = vpop.permute.xlu0 %8827
    %8829 = vrot.lane.b32.xlu0 %v8751, 48
    %v8830 = vpop.permute.xlu0 %8829
    %8831 = vrot.lane.b32.xlu0 %v8752, 48
    %v8832 = vpop.permute.xlu0 %8831
    %8833 = vrot.lane.b32.xlu0 %v8753, 48
    %v8834 = vpop.permute.xlu0 %8833
    %8835 = vrot.lane.b32.xlu0 %v8754, 48
    %v8836 = vpop.permute.xlu0 %8835
    %8837 = vrot.lane.b32.xlu0 %v8755, 48
    %v8838 = vpop.permute.xlu0 %8837
    %8839 = vrot.lane.b32.xlu0 %v8756, 48
    %v8840 = vpop.permute.xlu0 %8839
    %vm8869 = vcmask 457088
    %8870 = vst.msk [vmem:[#allocation5 + $0x1] sm:$0x7f] %vm8869, %v8786
    %8871 = vst.msk [vmem:[#allocation5 + $0x9] sm:$0x7f] %vm8869, %v8788
    %8872 = vst.msk [vmem:[#allocation5 + $0x11] sm:$0x7f] %vm8869, %v8790
    %8873 = vst.msk [vmem:[#allocation5 + $0x19] sm:$0x7f] %vm8869, %v8792
    %8874 = vst.msk [vmem:[#allocation5 + $0x21] sm:$0x7f] %vm8869, %v8794
    %8875 = vst.msk [vmem:[#allocation5 + $0x29] sm:$0x7f] %vm8869, %v8796
    %8876 = vst.msk [vmem:[#allocation5 + $0x31] sm:$0x7f] %vm8869, %v8798
    %8877 = vst.msk [vmem:[#allocation5 + $0x41] sm:$0x7f] %vm8869, %v8800
    %8878 = vst.msk [vmem:[#allocation5 + $0x49] sm:$0x7f] %vm8869, %v8802
    %8879 = vst.msk [vmem:[#allocation5 + $0x51] sm:$0x7f] %vm8869, %v8804
    %8880 = vst.msk [vmem:[#allocation5 + $0x59] sm:$0x7f] %vm8869, %v8806
    %8881 = vst.msk [vmem:[#allocation5 + $0x61] sm:$0x7f] %vm8869, %v8808
    %8882 = vst.msk [vmem:[#allocation5 + $0x69] sm:$0x7f] %vm8869, %v8810
    %8883 = vst.msk [vmem:[#allocation5 + $0x71] sm:$0x7f] %vm8869, %v8812
    %8884 = vst.msk [vmem:[#allocation5 + $0x81] sm:$0x7f] %vm8869, %v8814
    %8885 = vst.msk [vmem:[#allocation5 + $0x89] sm:$0x7f] %vm8869, %v8816
    %8886 = vst.msk [vmem:[#allocation5 + $0x91] sm:$0x7f] %vm8869, %v8818
    %8887 = vst.msk [vmem:[#allocation5 + $0x99] sm:$0x7f] %vm8869, %v8820
    %8888 = vst.msk [vmem:[#allocation5 + $0xa1] sm:$0x7f] %vm8869, %v8822
    %8889 = vst.msk [vmem:[#allocation5 + $0xa9] sm:$0x7f] %vm8869, %v8824
    %8890 = vst.msk [vmem:[#allocation5 + $0xb1] sm:$0x7f] %vm8869, %v8826
    %8891 = vst.msk [vmem:[#allocation5 + $0xc1] sm:$0x7f] %vm8869, %v8828
    %8892 = vst.msk [vmem:[#allocation5 + $0xc9] sm:$0x7f] %vm8869, %v8830
    %8893 = vst.msk [vmem:[#allocation5 + $0xd1] sm:$0x7f] %vm8869, %v8832
    %8894 = vst.msk [vmem:[#allocation5 + $0xd9] sm:$0x7f] %vm8869, %v8834
    %8895 = vst.msk [vmem:[#allocation5 + $0xe1] sm:$0x7f] %vm8869, %v8836
    %8896 = vst.msk [vmem:[#allocation5 + $0xe9] sm:$0x7f] %vm8869, %v8838
    %8897 = vst.msk [vmem:[#allocation5 + $0xf1] sm:$0x7f] %vm8869, %v8840
    %v8898 = vld [vmem:[%s8728] sm:$0xff]
    %v8899 = vld [vmem:[%s8728 + $0x8] sm:$0xff]
    %v8900 = vld [vmem:[%s8728 + $0x10] sm:$0xff]
    %v8901 = vld [vmem:[%s8728 + $0x18] sm:$0xff]
    %v8902 = vld [vmem:[%s8728 + $0x20] sm:$0xff]
    %v8903 = vld [vmem:[%s8728 + $0x28] sm:$0xff]
    %v8904 = vld [vmem:[%s8728 + $0x30] sm:$0xff]
    %v8905 = vld [vmem:[%s8728 + $0x40] sm:$0xff]
    %v8906 = vld [vmem:[%s8728 + $0x48] sm:$0xff]
    %v8907 = vld [vmem:[%s8728 + $0x50] sm:$0xff]
    %v8908 = vld [vmem:[%s8728 + $0x58] sm:$0xff]
    %v8909 = vld [vmem:[%s8728 + $0x60] sm:$0xff]
    %v8910 = vld [vmem:[%s8728 + $0x68] sm:$0xff]
    %v8911 = vld [vmem:[%s8728 + $0x70] sm:$0xff]
    %v8912 = vld [vmem:[%s8728 + $0x80] sm:$0xff]
    %v8913 = vld [vmem:[%s8728 + $0x88] sm:$0xff]
    %v8914 = vld [vmem:[%s8728 + $0x90] sm:$0xff]
    %v8915 = vld [vmem:[%s8728 + $0x98] sm:$0xff]
    %v8916 = vld [vmem:[%s8728 + $0xa0] sm:$0xff]
    %v8917 = vld [vmem:[%s8728 + $0xa8] sm:$0xff]
    %v8918 = vld [vmem:[%s8728 + $0xb0] sm:$0xff]
    %v8919 = vld [vmem:[%s8728 + $0xc0] sm:$0xff]
    %v8920 = vld [vmem:[%s8728 + $0xc8] sm:$0xff]
    %v8921 = vld [vmem:[%s8728 + $0xd0] sm:$0xff]
    %v8922 = vld [vmem:[%s8728 + $0xd8] sm:$0xff]
    %v8923 = vld [vmem:[%s8728 + $0xe0] sm:$0xff]
    %v8924 = vld [vmem:[%s8728 + $0xe8] sm:$0xff]
    %v8925 = vld [vmem:[%s8728 + $0xf0] sm:$0xff]
    %8954 = vrot.lane.b32.xlu0 %v8898, 56
    %v8955 = vpop.permute.xlu0 %8954
    %8956 = vrot.lane.b32.xlu0 %v8899, 56
    %v8957 = vpop.permute.xlu0 %8956
    %8958 = vrot.lane.b32.xlu0 %v8900, 56
    %v8959 = vpop.permute.xlu0 %8958
    %8960 = vrot.lane.b32.xlu0 %v8901, 56
    %v8961 = vpop.permute.xlu0 %8960
    %8962 = vrot.lane.b32.xlu0 %v8902, 56
    %v8963 = vpop.permute.xlu0 %8962
    %8964 = vrot.lane.b32.xlu0 %v8903, 56
    %v8965 = vpop.permute.xlu0 %8964
    %8966 = vrot.lane.b32.xlu0 %v8904, 56
    %v8967 = vpop.permute.xlu0 %8966
    %8968 = vrot.lane.b32.xlu0 %v8905, 56
    %v8969 = vpop.permute.xlu0 %8968
    %8970 = vrot.lane.b32.xlu0 %v8906, 56
    %v8971 = vpop.permute.xlu0 %8970
    %8972 = vrot.lane.b32.xlu0 %v8907, 56
    %v8973 = vpop.permute.xlu0 %8972
    %8974 = vrot.lane.b32.xlu0 %v8908, 56
    %v8975 = vpop.permute.xlu0 %8974
    %8976 = vrot.lane.b32.xlu0 %v8909, 56
    %v8977 = vpop.permute.xlu0 %8976
    %8978 = vrot.lane.b32.xlu0 %v8910, 56
    %v8979 = vpop.permute.xlu0 %8978
    %8980 = vrot.lane.b32.xlu0 %v8911, 56
    %v8981 = vpop.permute.xlu0 %8980
    %8982 = vrot.lane.b32.xlu0 %v8912, 56
    %v8983 = vpop.permute.xlu0 %8982
    %8984 = vrot.lane.b32.xlu0 %v8913, 56
    %v8985 = vpop.permute.xlu0 %8984
    %8986 = vrot.lane.b32.xlu0 %v8914, 56
    %v8987 = vpop.permute.xlu0 %8986
    %8988 = vrot.lane.b32.xlu0 %v8915, 56
    %v8989 = vpop.permute.xlu0 %8988
    %8990 = vrot.lane.b32.xlu0 %v8916, 56
    %v8991 = vpop.permute.xlu0 %8990
    %8992 = vrot.lane.b32.xlu0 %v8917, 56
    %v8993 = vpop.permute.xlu0 %8992
    %8994 = vrot.lane.b32.xlu0 %v8918, 56
    %v8995 = vpop.permute.xlu0 %8994
    %8996 = vrot.lane.b32.xlu0 %v8919, 56
    %v8997 = vpop.permute.xlu0 %8996
    %8998 = vrot.lane.b32.xlu0 %v8920, 56
    %v8999 = vpop.permute.xlu0 %8998
    %9000 = vrot.lane.b32.xlu0 %v8921, 56
    %v9001 = vpop.permute.xlu0 %9000
    %9002 = vrot.lane.b32.xlu0 %v8922, 56
    %v9003 = vpop.permute.xlu0 %9002
    %9004 = vrot.lane.b32.xlu0 %v8923, 56
    %v9005 = vpop.permute.xlu0 %9004
    %9006 = vrot.lane.b32.xlu0 %v8924, 56
    %v9007 = vpop.permute.xlu0 %9006
    %9008 = vrot.lane.b32.xlu0 %v8925, 56
    %v9009 = vpop.permute.xlu0 %9008
    %vm9038 = vcmask 523712
    %9039 = vst.msk [vmem:[#allocation5] sm:$0xff] %vm9038, %v8955
    %9040 = vst.msk [vmem:[#allocation5 + $0x8] sm:$0xff] %vm9038, %v8957
    %9041 = vst.msk [vmem:[#allocation5 + $0x10] sm:$0xff] %vm9038, %v8959
    %9042 = vst.msk [vmem:[#allocation5 + $0x18] sm:$0xff] %vm9038, %v8961
    %9043 = vst.msk [vmem:[#allocation5 + $0x20] sm:$0xff] %vm9038, %v8963
    %9044 = vst.msk [vmem:[#allocation5 + $0x28] sm:$0xff] %vm9038, %v8965
    %9045 = vst.msk [vmem:[#allocation5 + $0x30] sm:$0xff] %vm9038, %v8967
    %9046 = vst.msk [vmem:[#allocation5 + $0x40] sm:$0xff] %vm9038, %v8969
    %9047 = vst.msk [vmem:[#allocation5 + $0x48] sm:$0xff] %vm9038, %v8971
    %9048 = vst.msk [vmem:[#allocation5 + $0x50] sm:$0xff] %vm9038, %v8973
    %9049 = vst.msk [vmem:[#allocation5 + $0x58] sm:$0xff] %vm9038, %v8975
    %9050 = vst.msk [vmem:[#allocation5 + $0x60] sm:$0xff] %vm9038, %v8977
    %9051 = vst.msk [vmem:[#allocation5 + $0x68] sm:$0xff] %vm9038, %v8979
    %9052 = vst.msk [vmem:[#allocation5 + $0x70] sm:$0xff] %vm9038, %v8981
    %9053 = vst.msk [vmem:[#allocation5 + $0x80] sm:$0xff] %vm9038, %v8983
    %9054 = vst.msk [vmem:[#allocation5 + $0x88] sm:$0xff] %vm9038, %v8985
    %9055 = vst.msk [vmem:[#allocation5 + $0x90] sm:$0xff] %vm9038, %v8987
    %9056 = vst.msk [vmem:[#allocation5 + $0x98] sm:$0xff] %vm9038, %v8989
    %9057 = vst.msk [vmem:[#allocation5 + $0xa0] sm:$0xff] %vm9038, %v8991
    %9058 = vst.msk [vmem:[#allocation5 + $0xa8] sm:$0xff] %vm9038, %v8993
    %9059 = vst.msk [vmem:[#allocation5 + $0xb0] sm:$0xff] %vm9038, %v8995
    %9060 = vst.msk [vmem:[#allocation5 + $0xc0] sm:$0xff] %vm9038, %v8997
    %9061 = vst.msk [vmem:[#allocation5 + $0xc8] sm:$0xff] %vm9038, %v8999
    %9062 = vst.msk [vmem:[#allocation5 + $0xd0] sm:$0xff] %vm9038, %v9001
    %9063 = vst.msk [vmem:[#allocation5 + $0xd8] sm:$0xff] %vm9038, %v9003
    %9064 = vst.msk [vmem:[#allocation5 + $0xe0] sm:$0xff] %vm9038, %v9005
    %9065 = vst.msk [vmem:[#allocation5 + $0xe8] sm:$0xff] %vm9038, %v9007
    %9066 = vst.msk [vmem:[#allocation5 + $0xf0] sm:$0xff] %vm9038, %v9009
    %v9067 = vld [vmem:[%s8728 + $0x1] sm:$0x7f]
    %v9068 = vld [vmem:[%s8728 + $0x9] sm:$0x7f]
    %v9069 = vld [vmem:[%s8728 + $0x11] sm:$0x7f]
    %v9070 = vld [vmem:[%s8728 + $0x19] sm:$0x7f]
    %v9071 = vld [vmem:[%s8728 + $0x21] sm:$0x7f]
    %v9072 = vld [vmem:[%s8728 + $0x29] sm:$0x7f]
    %v9073 = vld [vmem:[%s8728 + $0x31] sm:$0x7f]
    %v9074 = vld [vmem:[%s8728 + $0x41] sm:$0x7f]
    %v9075 = vld [vmem:[%s8728 + $0x49] sm:$0x7f]
    %v9076 = vld [vmem:[%s8728 + $0x51] sm:$0x7f]
    %v9077 = vld [vmem:[%s8728 + $0x59] sm:$0x7f]
    %v9078 = vld [vmem:[%s8728 + $0x61] sm:$0x7f]
    %v9079 = vld [vmem:[%s8728 + $0x69] sm:$0x7f]
    %v9080 = vld [vmem:[%s8728 + $0x71] sm:$0x7f]
    %v9081 = vld [vmem:[%s8728 + $0x81] sm:$0x7f]
    %v9082 = vld [vmem:[%s8728 + $0x89] sm:$0x7f]
    %v9083 = vld [vmem:[%s8728 + $0x91] sm:$0x7f]
    %v9084 = vld [vmem:[%s8728 + $0x99] sm:$0x7f]
    %v9085 = vld [vmem:[%s8728 + $0xa1] sm:$0x7f]
    %v9086 = vld [vmem:[%s8728 + $0xa9] sm:$0x7f]
    %v9087 = vld [vmem:[%s8728 + $0xb1] sm:$0x7f]
    %v9088 = vld [vmem:[%s8728 + $0xc1] sm:$0x7f]
    %v9089 = vld [vmem:[%s8728 + $0xc9] sm:$0x7f]
    %v9090 = vld [vmem:[%s8728 + $0xd1] sm:$0x7f]
    %v9091 = vld [vmem:[%s8728 + $0xd9] sm:$0x7f]
    %v9092 = vld [vmem:[%s8728 + $0xe1] sm:$0x7f]
    %v9093 = vld [vmem:[%s8728 + $0xe9] sm:$0x7f]
    %v9094 = vld [vmem:[%s8728 + $0xf1] sm:$0x7f]
    %9123 = vrot.lane.b32.xlu0 %v9067, 64
    %v9124 = vpop.permute.xlu0 %9123
    %9125 = vrot.lane.b32.xlu0 %v9068, 64
    %v9126 = vpop.permute.xlu0 %9125
    %9127 = vrot.lane.b32.xlu0 %v9069, 64
    %v9128 = vpop.permute.xlu0 %9127
    %9129 = vrot.lane.b32.xlu0 %v9070, 64
    %v9130 = vpop.permute.xlu0 %9129
    %9131 = vrot.lane.b32.xlu0 %v9071, 64
    %v9132 = vpop.permute.xlu0 %9131
    %9133 = vrot.lane.b32.xlu0 %v9072, 64
    %v9134 = vpop.permute.xlu0 %9133
    %9135 = vrot.lane.b32.xlu0 %v9073, 64
    %v9136 = vpop.permute.xlu0 %9135
    %9137 = vrot.lane.b32.xlu0 %v9074, 64
    %v9138 = vpop.permute.xlu0 %9137
    %9139 = vrot.lane.b32.xlu0 %v9075, 64
    %v9140 = vpop.permute.xlu0 %9139
    %9141 = vrot.lane.b32.xlu0 %v9076, 64
    %v9142 = vpop.permute.xlu0 %9141
    %9143 = vrot.lane.b32.xlu0 %v9077, 64
    %v9144 = vpop.permute.xlu0 %9143
    %9145 = vrot.lane.b32.xlu0 %v9078, 64
    %v9146 = vpop.permute.xlu0 %9145
    %9147 = vrot.lane.b32.xlu0 %v9079, 64
    %v9148 = vpop.permute.xlu0 %9147
    %9149 = vrot.lane.b32.xlu0 %v9080, 64
    %v9150 = vpop.permute.xlu0 %9149
    %9151 = vrot.lane.b32.xlu0 %v9081, 64
    %v9152 = vpop.permute.xlu0 %9151
    %9153 = vrot.lane.b32.xlu0 %v9082, 64
    %v9154 = vpop.permute.xlu0 %9153
    %9155 = vrot.lane.b32.xlu0 %v9083, 64
    %v9156 = vpop.permute.xlu0 %9155
    %9157 = vrot.lane.b32.xlu0 %v9084, 64
    %v9158 = vpop.permute.xlu0 %9157
    %9159 = vrot.lane.b32.xlu0 %v9085, 64
    %v9160 = vpop.permute.xlu0 %9159
    %9161 = vrot.lane.b32.xlu0 %v9086, 64
    %v9162 = vpop.permute.xlu0 %9161
    %9163 = vrot.lane.b32.xlu0 %v9087, 64
    %v9164 = vpop.permute.xlu0 %9163
    %9165 = vrot.lane.b32.xlu0 %v9088, 64
    %v9166 = vpop.permute.xlu0 %9165
    %9167 = vrot.lane.b32.xlu0 %v9089, 64
    %v9168 = vpop.permute.xlu0 %9167
    %9169 = vrot.lane.b32.xlu0 %v9090, 64
    %v9170 = vpop.permute.xlu0 %9169
    %9171 = vrot.lane.b32.xlu0 %v9091, 64
    %v9172 = vpop.permute.xlu0 %9171
    %9173 = vrot.lane.b32.xlu0 %v9092, 64
    %v9174 = vpop.permute.xlu0 %9173
    %9175 = vrot.lane.b32.xlu0 %v9093, 64
    %v9176 = vpop.permute.xlu0 %9175
    %9177 = vrot.lane.b32.xlu0 %v9094, 64
    %v9178 = vpop.permute.xlu0 %9177
    %vm9207 = vcmask 588288
    %9208 = vst.msk [vmem:[#allocation5] sm:$0x7f] %vm9207, %v9124
    %9209 = vst.msk [vmem:[#allocation5 + $0x8] sm:$0x7f] %vm9207, %v9126
    %9210 = vst.msk [vmem:[#allocation5 + $0x10] sm:$0x7f] %vm9207, %v9128
    %9211 = vst.msk [vmem:[#allocation5 + $0x18] sm:$0x7f] %vm9207, %v9130
    %9212 = vst.msk [vmem:[#allocation5 + $0x20] sm:$0x7f] %vm9207, %v9132
    %9213 = vst.msk [vmem:[#allocation5 + $0x28] sm:$0x7f] %vm9207, %v9134
    %9214 = vst.msk [vmem:[#allocation5 + $0x30] sm:$0x7f] %vm9207, %v9136
    %9215 = vst.msk [vmem:[#allocation5 + $0x40] sm:$0x7f] %vm9207, %v9138
    %9216 = vst.msk [vmem:[#allocation5 + $0x48] sm:$0x7f] %vm9207, %v9140
    %9217 = vst.msk [vmem:[#allocation5 + $0x50] sm:$0x7f] %vm9207, %v9142
    %9218 = vst.msk [vmem:[#allocation5 + $0x58] sm:$0x7f] %vm9207, %v9144
    %9219 = vst.msk [vmem:[#allocation5 + $0x60] sm:$0x7f] %vm9207, %v9146
    %9220 = vst.msk [vmem:[#allocation5 + $0x68] sm:$0x7f] %vm9207, %v9148
    %9221 = vst.msk [vmem:[#allocation5 + $0x70] sm:$0x7f] %vm9207, %v9150
    %9222 = vst.msk [vmem:[#allocation5 + $0x80] sm:$0x7f] %vm9207, %v9152
    %9223 = vst.msk [vmem:[#allocation5 + $0x88] sm:$0x7f] %vm9207, %v9154
    %9224 = vst.msk [vmem:[#allocation5 + $0x90] sm:$0x7f] %vm9207, %v9156
    %9225 = vst.msk [vmem:[#allocation5 + $0x98] sm:$0x7f] %vm9207, %v9158
    %9226 = vst.msk [vmem:[#allocation5 + $0xa0] sm:$0x7f] %vm9207, %v9160
    %9227 = vst.msk [vmem:[#allocation5 + $0xa8] sm:$0x7f] %vm9207, %v9162
    %9228 = vst.msk [vmem:[#allocation5 + $0xb0] sm:$0x7f] %vm9207, %v9164
    %9229 = vst.msk [vmem:[#allocation5 + $0xc0] sm:$0x7f] %vm9207, %v9166
    %9230 = vst.msk [vmem:[#allocation5 + $0xc8] sm:$0x7f] %vm9207, %v9168
    %9231 = vst.msk [vmem:[#allocation5 + $0xd0] sm:$0x7f] %vm9207, %v9170
    %9232 = vst.msk [vmem:[#allocation5 + $0xd8] sm:$0x7f] %vm9207, %v9172
    %9233 = vst.msk [vmem:[#allocation5 + $0xe0] sm:$0x7f] %vm9207, %v9174
    %9234 = vst.msk [vmem:[#allocation5 + $0xe8] sm:$0x7f] %vm9207, %v9176
    %9235 = vst.msk [vmem:[#allocation5 + $0xf0] sm:$0x7f] %vm9207, %v9178
    %v9236 = vld [vmem:[#allocation5] sm:$0xff]
    %v9237 = vld [vmem:[#allocation5 + $0x8] sm:$0xff]
    %v9238 = vld [vmem:[#allocation5 + $0x10] sm:$0xff]
    %v9239 = vld [vmem:[#allocation5 + $0x18] sm:$0xff]
    %v9240 = vld [vmem:[#allocation5 + $0x20] sm:$0xff]
    %v9241 = vld [vmem:[#allocation5 + $0x28] sm:$0xff]
    %v9242 = vld [vmem:[#allocation5 + $0x30] sm:$0xff]
    %v9243 = vld [vmem:[#allocation5 + $0x38] sm:$0xff]
    %v9244 = vld [vmem:[#allocation5 + $0x40] sm:$0xff]
    %v9245 = vld [vmem:[#allocation5 + $0x48] sm:$0xff]
    %v9246 = vld [vmem:[#allocation5 + $0x50] sm:$0xff]
    %v9247 = vld [vmem:[#allocation5 + $0x58] sm:$0xff]
    %v9248 = vld [vmem:[#allocation5 + $0x60] sm:$0xff]
    %v9249 = vld [vmem:[#allocation5 + $0x68] sm:$0xff]
    %v9250 = vld [vmem:[#allocation5 + $0x70] sm:$0xff]
    %v9251 = vld [vmem:[#allocation5 + $0x78] sm:$0xff]
    %v9252 = vld [vmem:[#allocation5 + $0x80] sm:$0xff]
    %v9253 = vld [vmem:[#allocation5 + $0x88] sm:$0xff]
    %v9254 = vld [vmem:[#allocation5 + $0x90] sm:$0xff]
    %v9255 = vld [vmem:[#allocation5 + $0x98] sm:$0xff]
    %v9256 = vld [vmem:[#allocation5 + $0xa0] sm:$0xff]
    %v9257 = vld [vmem:[#allocation5 + $0xa8] sm:$0xff]
    %v9258 = vld [vmem:[#allocation5 + $0xb0] sm:$0xff]
    %v9259 = vld [vmem:[#allocation5 + $0xb8] sm:$0xff]
    %v9260 = vld [vmem:[#allocation5 + $0xc0] sm:$0xff]
    %v9261 = vld [vmem:[#allocation5 + $0xc8] sm:$0xff]
    %v9262 = vld [vmem:[#allocation5 + $0xd0] sm:$0xff]
    %v9263 = vld [vmem:[#allocation5 + $0xd8] sm:$0xff]
    %v9264 = vld [vmem:[#allocation5 + $0xe0] sm:$0xff]
    %v9265 = vld [vmem:[#allocation5 + $0xe8] sm:$0xff]
    %v9266 = vld [vmem:[#allocation5 + $0xf0] sm:$0xff]
    %v9267 = vld [vmem:[#allocation5 + $0xf8] sm:$0xff]
    %v9268 = vpack.c.bf16 %v9237, %v9236
    %v9269 = vpack.c.bf16 %v9239, %v9238
    %v9270 = vpack.c.bf16 %v9241, %v9240
    %v9271 = vpack.c.bf16 %v9243, %v9242
    %v9272 = vpack.c.bf16 %v9245, %v9244
    %v9273 = vpack.c.bf16 %v9247, %v9246
    %v9274 = vpack.c.bf16 %v9249, %v9248
    %v9275 = vpack.c.bf16 %v9251, %v9250
    %v9276 = vpack.c.bf16 %v9253, %v9252
    %v9277 = vpack.c.bf16 %v9255, %v9254
    %v9278 = vpack.c.bf16 %v9257, %v9256
    %v9279 = vpack.c.bf16 %v9259, %v9258
    %v9280 = vpack.c.bf16 %v9261, %v9260
    %v9281 = vpack.c.bf16 %v9263, %v9262
    %v9282 = vpack.c.bf16 %v9265, %v9264
    %v9283 = vpack.c.bf16 %v9267, %v9266
    %v9284 = vld [vmem:[%s3] sm:$0xf]
    %v9285 = vld [vmem:[%s3 + $0x4] sm:$0xf]
    %v9286 = vld [vmem:[%s3 + $0x8] sm:$0xf]
    %v9287 = vld [vmem:[%s3 + $0xc] sm:$0xf]
    %v9288 = vld [vmem:[%s3 + $0x10] sm:$0xf]
    %v9289 = vld [vmem:[%s3 + $0x14] sm:$0xf]
    %v9290 = vld [vmem:[%s3 + $0x18] sm:$0xf]
    %v9291 = vld [vmem:[%s3 + $0x1c] sm:$0xf]
    %v9292 = vld [vmem:[%s3 + $0x20] sm:$0xf]
    %v9302 = vunpack.c.l.b16 %v9284
    %v9303 = vunpack.c.l.b16 %v9285
    %v9304 = vunpack.c.l.b16 %v9286
    %v9305 = vunpack.c.l.b16 %v9287
    %v9306 = vunpack.c.l.b16 %v9288
    %v9307 = vunpack.c.l.b16 %v9289
    %v9308 = vunpack.c.l.b16 %v9290
    %v9309 = vunpack.c.l.b16 %v9291
    %v9310 = vunpack.c.l.b16 %v9292
    %v9311 = vpack.c.b16 %v9303, %v9302
    %v9312 = vpack.c.b16 %v9305, %v9304
    %v9313 = vpack.c.b16 %v9307, %v9306
    %v9314 = vpack.c.b16 %v9309, %v9308
    %v9315 = vpack.c.b16 %v9310, %v9310
    %v9321 = vsel %vm7720, %v9268, 0
    %v9324 = vsel %vm7720, %v9269, 0
    %v9327 = vsel %vm7720, %v9270, 0
    %v9330 = vsel %vm7720, %v9271, 0
    %v9333 = vsel %vm7720, %v9272, 0
    %v9336 = vsel %vm7720, %v9273, 0
    %v9339 = vsel %vm7720, %v9274, 0
    %v9342 = vsel %vm7720, %v9275, 0
    %v9345 = vsel %vm7720, %v9276, 0
    %v9348 = vsel %vm7720, %v9277, 0
    %v9351 = vsel %vm7720, %v9278, 0
    %v9354 = vsel %vm7720, %v9279, 0
    %v9357 = vsel %vm7720, %v9280, 0
    %v9360 = vsel %vm7720, %v9281, 0
    %v9363 = vsel %vm7720, %v9282, 0
    %v9366 = vsel %vm7720, %v9283, 0
    %vm9368 = vcmask 1043456
    %v9370 = vsel %vm9368, %v9315, 0
    %9372 = vmatprep.subr.bf16.mxu0 0
    %9373 = vmatpush1.bf16.msra.mxu0 %v9311
    %9374 = vmatprep.subr.bf16.mxu0 0
    %9375 = vmatpush1.bf16.msra.mxu0 %v9312
    %9376 = vmatprep.subr.bf16.mxu0 0
    %9377 = vmatpush1.bf16.msra.mxu0 %v9313
    %9378 = vmatprep.subr.bf16.mxu0 0
    %9379 = vmatpush1.bf16.msra.mxu0 %v9314
    %9380 = vmatprep.subr.bf16.mxu0 0
    %9381 = vmatpush1.bf16.msra.mxu0 %v9370
    %9382 = vmatprep.subr.bf16.mxu0 0
    %9383 = vmatpush1.bf16.msra.mxu0 0
    %9384 = vmatprep.subr.bf16.mxu0 0
    %9385 = vmatpush1.bf16.msra.mxu0 0
    %9386 = vmatprep.subr.bf16.mxu0 0
    %9387 = vmatpush1.bf16.msra.mxu0 0
    %9388 = vmatprep.subr.bf16.mxu0 0
    %9389 = vmatpush1.bf16.msra.mxu0 0
    %9390 = vmatprep.subr.bf16.mxu0 0
    %9391 = vmatpush1.bf16.msra.mxu0 0
    %9392 = vmatprep.subr.bf16.mxu0 0
    %9393 = vmatpush1.bf16.msra.mxu0 0
    %9394 = vmatprep.subr.bf16.mxu0 0
    %9395 = vmatpush1.bf16.msra.mxu0 0
    %9396 = vmatprep.subr.bf16.mxu0 0
    %9397 = vmatpush1.bf16.msra.mxu0 0
    %9398 = vmatprep.subr.bf16.mxu0 0
    %9399 = vmatpush1.bf16.msra.mxu0 0
    %9400 = vmatprep.subr.bf16.mxu0 0
    %9401 = vmatpush1.bf16.msra.mxu0 0
    %9402 = vmatprep.subr.bf16.mxu0 0
    %9403 = vmatpush1.bf16.msra.mxu0 0
    %9404 = vmatprep.mubr.bf16.mxu0 0
    %9405 = vmatmul.mubr.bf16.gmra.mrb[0].mxu0 %v9321
    %v9406 = vpop.f32.mrb[0].mxu0
    %v9407 = vadd.f32 0.0, %v9406
    %v9408 = vpop.f32.mrb[0].mxu0
    %v9409 = vpop.f32.mrb[0].mxu0
    %v9410 = vadd.f32 0.0, %v9409
    %v9411 = vpop.f32.mrb[0].mxu0
    %9412 = vmatprep.mubr.bf16.mxu0 0
    %9413 = vmatmul.mubr.bf16.gmra.mrb[0].mxu0 %v9324
    %v9414 = vpop.f32.mrb[0].mxu0
    %v9415 = vadd.f32 0.0, %v9414
    %v9416 = vpop.f32.mrb[0].mxu0
    %v9417 = vpop.f32.mrb[0].mxu0
    %v9418 = vadd.f32 0.0, %v9417
    %v9419 = vpop.f32.mrb[0].mxu0
    %9420 = vmatprep.mubr.bf16.mxu0 0
    %9421 = vmatmul.mubr.bf16.gmra.mrb[0].mxu0 %v9327
    %v9422 = vpop.f32.mrb[0].mxu0
    %v9423 = vadd.f32 0.0, %v9422
    %v9424 = vpop.f32.mrb[0].mxu0
    %v9425 = vpop.f32.mrb[0].mxu0
    %v9426 = vadd.f32 0.0, %v9425
    %v9427 = vpop.f32.mrb[0].mxu0
    %9428 = vmatprep.mubr.bf16.mxu0 0
    %9429 = vmatmul.mubr.bf16.gmra.mrb[0].mxu0 %v9330
    %v9430 = vpop.f32.mrb[0].mxu0
    %v9431 = vadd.f32 0.0, %v9430
    %v9432 = vpop.f32.mrb[0].mxu0
    %v9433 = vpop.f32.mrb[0].mxu0
    %v9434 = vadd.f32 0.0, %v9433
    %v9435 = vpop.f32.mrb[0].mxu0
    %9436 = vmatprep.mubr.bf16.mxu0 0
    %9437 = vmatmul.mubr.bf16.gmra.mrb[0].mxu0 %v9333
    %v9438 = vpop.f32.mrb[0].mxu0
    %v9439 = vadd.f32 0.0, %v9438
    %v9440 = vpop.f32.mrb[0].mxu0
    %v9441 = vpop.f32.mrb[0].mxu0
    %v9442 = vadd.f32 0.0, %v9441
    %v9443 = vpop.f32.mrb[0].mxu0
    %9444 = vmatprep.mubr.bf16.mxu0 0
    %9445 = vmatmul.mubr.bf16.gmra.mrb[0].mxu0 %v9336
    %v9446 = vpop.f32.mrb[0].mxu0
    %v9447 = vadd.f32 0.0, %v9446
    %v9448 = vpop.f32.mrb[0].mxu0
    %v9449 = vpop.f32.mrb[0].mxu0
    %v9450 = vadd.f32 0.0, %v9449
    %v9451 = vpop.f32.mrb[0].mxu0
    %9452 = vmatprep.mubr.bf16.mxu0 0
    %9453 = vmatmul.mubr.bf16.gmra.mrb[0].mxu0 %v9339
    %v9454 = vpop.f32.mrb[0].mxu0
    %v9455 = vadd.f32 0.0, %v9454
    %v9456 = vpop.f32.mrb[0].mxu0
    %v9457 = vpop.f32.mrb[0].mxu0
    %v9458 = vadd.f32 0.0, %v9457
    %v9459 = vpop.f32.mrb[0].mxu0
    %9460 = vmatprep.mubr.bf16.mxu0 0
    %9461 = vmatmul.mubr.bf16.gmra.mrb[0].mxu0 %v9342
    %v9462 = vpop.f32.mrb[0].mxu0
    %v9463 = vadd.f32 0.0, %v9462
    %v9464 = vpop.f32.mrb[0].mxu0
    %v9465 = vpop.f32.mrb[0].mxu0
    %v9466 = vadd.f32 0.0, %v9465
    %v9467 = vpop.f32.mrb[0].mxu0
    %9468 = vmatprep.mubr.bf16.mxu0 0
    %9469 = vmatmul.mubr.bf16.gmra.mrb[0].mxu0 %v9345
    %v9470 = vpop.f32.mrb[0].mxu0
    %v9471 = vadd.f32 0.0, %v9470
    %v9472 = vpop.f32.mrb[0].mxu0
    %v9473 = vpop.f32.mrb[0].mxu0
    %v9474 = vadd.f32 0.0, %v9473
    %v9475 = vpop.f32.mrb[0].mxu0
    %9476 = vmatprep.mubr.bf16.mxu0 0
    %9477 = vmatmul.mubr.bf16.gmra.mrb[0].mxu0 %v9348
    %v9478 = vpop.f32.mrb[0].mxu0
    %v9479 = vadd.f32 0.0, %v9478
    %v9480 = vpop.f32.mrb[0].mxu0
    %v9481 = vpop.f32.mrb[0].mxu0
    %v9482 = vadd.f32 0.0, %v9481
    %v9483 = vpop.f32.mrb[0].mxu0
    %9484 = vmatprep.mubr.bf16.mxu0 0
    %9485 = vmatmul.mubr.bf16.gmra.mrb[0].mxu0 %v9351
    %v9486 = vpop.f32.mrb[0].mxu0
    %v9487 = vadd.f32 0.0, %v9486
    %v9488 = vpop.f32.mrb[0].mxu0
    %v9489 = vpop.f32.mrb[0].mxu0
    %v9490 = vadd.f32 0.0, %v9489
    %v9491 = vpop.f32.mrb[0].mxu0
    %9492 = vmatprep.mubr.bf16.mxu0 0
    %9493 = vmatmul.mubr.bf16.gmra.mrb[0].mxu0 %v9354
    %v9494 = vpop.f32.mrb[0].mxu0
    %v9495 = vadd.f32 0.0, %v9494
    %v9496 = vpop.f32.mrb[0].mxu0
    %v9497 = vpop.f32.mrb[0].mxu0
    %v9498 = vadd.f32 0.0, %v9497
    %v9499 = vpop.f32.mrb[0].mxu0
    %9500 = vmatprep.mubr.bf16.mxu0 0
    %9501 = vmatmul.mubr.bf16.gmra.mrb[0].mxu0 %v9357
    %v9502 = vpop.f32.mrb[0].mxu0
    %v9503 = vadd.f32 0.0, %v9502
    %v9504 = vpop.f32.mrb[0].mxu0
    %v9505 = vpop.f32.mrb[0].mxu0
    %v9506 = vadd.f32 0.0, %v9505
    %v9507 = vpop.f32.mrb[0].mxu0
    %9508 = vmatprep.mubr.bf16.mxu0 0
    %9509 = vmatmul.mubr.bf16.gmra.mrb[0].mxu0 %v9360
    %v9510 = vpop.f32.mrb[0].mxu0
    %v9511 = vadd.f32 0.0, %v9510
    %v9512 = vpop.f32.mrb[0].mxu0
    %v9513 = vpop.f32.mrb[0].mxu0
    %v9514 = vadd.f32 0.0, %v9513
    %v9515 = vpop.f32.mrb[0].mxu0
    %9516 = vmatprep.mubr.bf16.mxu0 0
    %9517 = vmatmul.mubr.bf16.gmra.mrb[0].mxu0 %v9363
    %v9518 = vpop.f32.mrb[0].mxu0
    %v9519 = vadd.f32 0.0, %v9518
    %v9520 = vpop.f32.mrb[0].mxu0
    %v9521 = vpop.f32.mrb[0].mxu0
    %v9522 = vadd.f32 0.0, %v9521
    %v9523 = vpop.f32.mrb[0].mxu0
    %9524 = vmatprep.mubr.bf16.mxu0 0
    %9525 = vmatmul.mubr.bf16.gmra.mrb[0].mxu0 %v9366
    %v9526 = vpop.f32.mrb[0].mxu0
    %v9527 = vadd.f32 0.0, %v9526
    %v9528 = vpop.f32.mrb[0].mxu0
    %v9529 = vpop.f32.mrb[0].mxu0
    %v9530 = vadd.f32 0.0, %v9529
    %v9531 = vpop.f32.mrb[0].mxu0
    %9532 = vdwg.mxu0
    %v9533 = vmax.f32 %v9407, %v9410
    %v9534 = vmax.f32 %v9415, %v9418
    %v9535 = vmax.f32 %v9423, %v9426
    %v9536 = vmax.f32 %v9431, %v9434
    %v9537 = vmax.f32 %v9439, %v9442
    %v9538 = vmax.f32 %v9447, %v9450
    %v9539 = vmax.f32 %v9455, %v9458
    %v9540 = vmax.f32 %v9463, %v9466
    %v9541 = vmax.f32 %v9471, %v9474
    %v9542 = vmax.f32 %v9479, %v9482
    %v9543 = vmax.f32 %v9487, %v9490
    %v9544 = vmax.f32 %v9495, %v9498
    %v9545 = vmax.f32 %v9503, %v9506
    %v9546 = vmax.f32 %v9511, %v9514
    %v9547 = vmax.f32 %v9519, %v9522
    %v9548 = vmax.f32 %v9527, %v9530
    %vm9549 = vcmask 130048
    %9550 = vst.msk [vmem:[#allocation6] sm:$0xff] %vm9549, %v9533
    %9551 = vst.msk [vmem:[#allocation6 + $0x8] sm:$0xff] %vm9549, %v9534
    %9552 = vst.msk [vmem:[#allocation6 + $0x10] sm:$0xff] %vm9549, %v9535
    %9553 = vst.msk [vmem:[#allocation6 + $0x18] sm:$0xff] %vm9549, %v9536
    %9554 = vst.msk [vmem:[#allocation6 + $0x20] sm:$0xff] %vm9549, %v9537
    %9555 = vst.msk [vmem:[#allocation6 + $0x28] sm:$0xff] %vm9549, %v9538
    %9556 = vst.msk [vmem:[#allocation6 + $0x30] sm:$0xff] %vm9549, %v9539
    %9557 = vst.msk [vmem:[#allocation6 + $0x38] sm:$0xff] %vm9549, %v9540
    %9558 = vst.msk [vmem:[#allocation6 + $0x40] sm:$0xff] %vm9549, %v9541
    %9559 = vst.msk [vmem:[#allocation6 + $0x48] sm:$0xff] %vm9549, %v9542
    %9560 = vst.msk [vmem:[#allocation6 + $0x50] sm:$0xff] %vm9549, %v9543
    %9561 = vst.msk [vmem:[#allocation6 + $0x58] sm:$0xff] %vm9549, %v9544
    %9562 = vst.msk [vmem:[#allocation6 + $0x60] sm:$0xff] %vm9549, %v9545
    %9563 = vst.msk [vmem:[#allocation6 + $0x68] sm:$0xff] %vm9549, %v9546
    %9564 = vst.msk [vmem:[#allocation6 + $0x70] sm:$0xff] %vm9549, %v9547
    %9565 = vst.msk [vmem:[#allocation6 + $0x78] sm:$0xff] %vm9549, %v9548
    %v9566 = vld [vmem:[#allocation6] ss:$2 sm:$0xff]
    %s9567 = scalar_lea.vmem [#allocation6], 16
    %v9568 = vld [vmem:[%s9567] ss:$2 sm:$0xff]
    %s9569 = scalar_lea.vmem [#allocation6], 32
    %v9570 = vld [vmem:[%s9569] ss:$2 sm:$0xff]
    %s9571 = scalar_lea.vmem [#allocation6], 48
    %v9572 = vld [vmem:[%s9571] ss:$2 sm:$0xff]
    %s9573 = scalar_lea.vmem [#allocation6], 64
    %v9574 = vld [vmem:[%s9573] ss:$2 sm:$0xff]
    %s9575 = scalar_lea.vmem [#allocation6], 80
    %v9576 = vld [vmem:[%s9575] ss:$2 sm:$0xff]
    %s9577 = scalar_lea.vmem [#allocation6], 96
    %v9578 = vld [vmem:[%s9577] ss:$2 sm:$0xff]
    %s9579 = scalar_lea.vmem [#allocation6], 112
    %v9580 = vld [vmem:[%s9579] ss:$2 sm:$0xff]
    %s9581 = scalar_lea.vmem [#allocation6], 1
    %v9582 = vld [vmem:[%s9581] ss:$2 sm:$0xff]
    %s9583 = scalar_lea.vmem [#allocation6], 17
    %v9584 = vld [vmem:[%s9583] ss:$2 sm:$0xff]
    %s9585 = scalar_lea.vmem [#allocation6], 33
    %v9586 = vld [vmem:[%s9585] ss:$2 sm:$0xff]
    %s9587 = scalar_lea.vmem [#allocation6], 49
    %v9588 = vld [vmem:[%s9587] ss:$2 sm:$0xff]
    %s9589 = scalar_lea.vmem [#allocation6], 65
    %v9590 = vld [vmem:[%s9589] ss:$2 sm:$0xff]
    %s9591 = scalar_lea.vmem [#allocation6], 81
    %v9592 = vld [vmem:[%s9591] ss:$2 sm:$0xff]
    %s9593 = scalar_lea.vmem [#allocation6], 97
    %v9594 = vld [vmem:[%s9593] ss:$2 sm:$0xff]
    %s9595 = scalar_lea.vmem [#allocation6], 113
    %v9596 = vld [vmem:[%s9595] ss:$2 sm:$0xff]
    %v9597 = vmax.f32 %v9566, %v9582
    %v9598 = vmax.f32 %v9568, %v9584
    %v9599 = vmax.f32 %v9570, %v9586
    %v9600 = vmax.f32 %v9572, %v9588
    %v9601 = vmax.f32 %v9574, %v9590
    %v9602 = vmax.f32 %v9576, %v9592
    %v9603 = vmax.f32 %v9578, %v9594
    %v9604 = vmax.f32 %v9580, %v9596
    %v9605 = vld [vmem:[%s4] sm:$0x1]
    %v9607 = vlaneseq
    %v9608 = vshrl.u32 %v9607, 7
    %v9609 = vsub.s32 0, %v9608
    %v9610 = vrot.slane %v9605, %v9609
    %v9612 = vadd.f32 %v9597, %v9610
    %v9613 = vadd.f32 %v9598, %v9610
    %v9614 = vadd.f32 %v9599, %v9610
    %v9615 = vadd.f32 %v9600, %v9610
    %v9616 = vadd.f32 %v9601, %v9610
    %v9617 = vadd.f32 %v9602, %v9610
    %v9618 = vadd.f32 %v9603, %v9610
    %v9619 = vadd.f32 %v9604, %v9610
    %vm9620 = vcmp.ge.f32.partialorder %v9612, 0.0
    %vm9621 = vcmp.ge.f32.partialorder %v9613, 0.0
    %vm9622 = vcmp.ge.f32.partialorder %v9614, 0.0
    %vm9623 = vcmp.ge.f32.partialorder %v9615, 0.0
    %vm9624 = vcmp.ge.f32.partialorder %v9616, 0.0
    %vm9625 = vcmp.ge.f32.partialorder %v9617, 0.0
    %vm9626 = vcmp.ge.f32.partialorder %v9618, 0.0
    %vm9627 = vcmp.ge.f32.partialorder %v9619, 0.0
    %v9628 = vmul.f32 %v9612, 0.2
    %v9629 = vmul.f32 %v9613, 0.2
    %v9630 = vmul.f32 %v9614, 0.2
    %v9631 = vmul.f32 %v9615, 0.2
    %v9632 = vmul.f32 %v9616, 0.2
    %v9633 = vmul.f32 %v9617, 0.2
    %v9634 = vmul.f32 %v9618, 0.2
    %v9635 = vmul.f32 %v9619, 0.2
    %v9636 = vsel %vm9620, %v9612, %v9628
    %v9637 = vsel %vm9621, %v9613, %v9629
    %v9638 = vsel %vm9622, %v9614, %v9630
    %v9639 = vsel %vm9623, %v9615, %v9631
    %v9640 = vsel %vm9624, %v9616, %v9632
    %v9641 = vsel %vm9625, %v9617, %v9633
    %v9642 = vsel %vm9626, %v9618, %v9634
    %v9643 = vsel %vm9627, %v9619, %v9635
    %9644 = vst.msk [vmem:[#allocation7] sm:$0xff] %vm9549, %v9636
    %9645 = vst.msk [vmem:[#allocation7 + $0x8] sm:$0xff] %vm9549, %v9637
    %9646 = vst.msk [vmem:[#allocation7 + $0x10] sm:$0xff] %vm9549, %v9638
    %9647 = vst.msk [vmem:[#allocation7 + $0x18] sm:$0xff] %vm9549, %v9639
    %9648 = vst.msk [vmem:[#allocation7 + $0x20] sm:$0xff] %vm9549, %v9640
    %9649 = vst.msk [vmem:[#allocation7 + $0x28] sm:$0xff] %vm9549, %v9641
    %9650 = vst.msk [vmem:[#allocation7 + $0x30] sm:$0xff] %vm9549, %v9642
    %9651 = vst.msk [vmem:[#allocation7 + $0x38] sm:$0xff] %vm9549, %v9643
    // Predicated region
    $region22: #{_lambda_.1} parent=1 // pred_check
      _
    $region23: #{_lambda_.1} parent=1 // pred_check_branch
      %9653 = sbr.rel (0) target = $region25
    $region24: #{_lambda_.1} parent=1 // pred_region
      %s9655 = ssub.s32 1024, 1024
      %9656 = vsyncadd [#allocation8], %s9655
      %s9657 = sshll.u32 [#allocation7], 4
      %s9658 = int_to_ptr.vmem [resolvable:$true] %s9657
      %9663 = dma.vmem_to_hbm [thread:$0]  %s9658, 1024, %s5, [#allocation8], 128, 128, 8
    $region25: #{_lambda_.1} parent=1 // pred_fallthru
      _
    // Predicated region
    $region26: #{_lambda_.1} parent=1 // pred_check
      _
    $region27: #{_lambda_.1} parent=1 // pred_check_branch
      %9665 = sbr.rel (0) target = $region29
    $region28: #{_lambda_.1} parent=1 // pred_region
      %9666 = dma.done [#allocation8], 1024
    $region29: #{_lambda_.1} parent=1 // pred_fallthru
      _
    %9667 = vsyncpa [#allocation8], 1

</llo_original>
